<compile_context>
chip_gen: v5e
topology: v5e:2x2
jax: 0.10.0
libtpu: 0.0.40
codegen_flags: <defaults>
</compile_context>

<pallas_src>
import functools

import numpy as np
import jax
import jax.numpy as jnp
from jax.experimental import pallas as pl
from jax.experimental.pallas import tpu as pltpu


# ----------------------------------------------------------------------------
# Constants
# ----------------------------------------------------------------------------
PTS_FREQS = 10   # -> 3 + 3*2*10 = 63 features
VIEW_FREQS = 4   # -> 3 + 3*2*4  = 27 features
PTS_CH = 3 + 3 * 2 * PTS_FREQS
VIEW_CH = 3 + 3 * 2 * VIEW_FREQS
F = 128          # lane-padded feature width used everywhere inside the kernel
OUT_LANES = 8    # kernel output lanes: alpha in lane 0, rgb in lanes 1:4


def _round_up(x, m):
    return ((x + m - 1) // m) * m


# ----------------------------------------------------------------------------
# Shared in-kernel positional-encoding constants
#   encw (8, 128): rows 0-2 = pts x/y/z frequency-coefficient rows,
#                  rows 3-5 = view x/y/z frequency-coefficient rows.
#   encm (6, 128): [pts_id, pts_sin, pts_cos, view_id, view_sin, view_cos] masks.
# ----------------------------------------------------------------------------
def _make_enc_constants():
    encw = np.zeros((8, F), np.float32)
    encm = np.zeros((6, F), np.float32)

    def fill(row0, mrow0, num_freqs):
        for c in range(3):                       # identity lanes 0..2
            encw[row0 + c, c] = 1.0
            encm[mrow0 + 0, c] = 1.0
        for l in range(num_freqs):
            fr = float(2.0 ** l)
            for c in range(3):
                lane_sin = 3 + l * 6 + c
                lane_cos = 3 + l * 6 + 3 + c
                encw[row0 + c, lane_sin] = fr
                encw[row0 + c, lane_cos] = fr
                encm[mrow0 + 1, lane_sin] = 1.0  # sin mask
                encm[mrow0 + 2, lane_cos] = 1.0  # cos mask

    fill(0, 0, PTS_FREQS)
    fill(3, 3, VIEW_FREQS)
    return {"w": jnp.asarray(encw), "m": jnp.asarray(encm)}


# ----------------------------------------------------------------------------
# Pallas kernel: fused, lane-padded NeRF MLP (posenc + trunk + heads) per tile
# ----------------------------------------------------------------------------
def _make_mlp_kernel(depth, samples):
    def kernel(pts_ref, view_ref, wl_ref, bl_ref, wh_ref, bh_ref,
               encw_ref, encm_ref, out_ref):
        # pts_ref:  (tile, 3) f32 raw xyz   (tile = n_rays * samples, ray-major)
        # view_ref: (n_rays, 3) f32 raw view dirs (one per ray)
        # wl_ref:   (depth, 128, 128) bf16   bl_ref: (depth, 128) f32
        # wh_ref:   (4, 128, 128) bf16 = [fused alpha+feat head, view_feat, view_dir, rgb]
        # bh_ref:   (4, 128) f32       = [head bias, view bias, rgb bias, alpha lane mask]
        tile = pts_ref.shape[0]
        n_rays = view_ref.shape[0]

        encw = encw_ref[...]                     # (8, F)
        encm = encm_ref[...]                     # (6, F)
        bl = bl_ref[...]                         # (depth, F)
        bh = bh_ref[...]                         # (4, F)

        # ---- in-kernel positional encoding of points (f32 -> bf16) ----
        pts = pts_ref[...]                       # (tile, 3) f32
        xb = (pts[:, 0:1] * encw[0:1, :] + pts[:, 1:2] * encw[1:2, :]
              + pts[:, 2:3] * encw[2:3, :])      # (tile, F) f32
        feat = (encm[0:1, :] * xb + encm[1:2, :] * jnp.sin(xb)
                + encm[2:3, :] * jnp.cos(xb))
        h = feat.astype(jnp.bfloat16)

        # ---- trunk MLP: full-lane 128x128 MXU passes ----
        for l in range(depth):
            acc = jnp.dot(h, wl_ref[l], preferred_element_type=jnp.float32)
            h = jnp.maximum(acc + bl[l:l + 1, :], 0.0).astype(jnp.bfloat16)

        # ---- fused alpha (lane 0) + feature (lanes 1:1+W) head ----
        head = jnp.dot(h, wh_ref[0], preferred_element_type=jnp.float32) + bh[0:1, :]
        head_bf = head.astype(jnp.bfloat16)
        # Route raw alpha into lane 0 of the narrow output (8 lanes only).
        alpha = head[:, :OUT_LANES] * bh[3:4, :OUT_LANES]

        # ---- view branch: encode ONCE per ray, project, broadcast over samples ----
        vxyz = view_ref[...]                     # (n_rays, 3) f32
        vxb = (vxyz[:, 0:1] * encw[3:4, :] + vxyz[:, 1:2] * encw[4:5, :]
               + vxyz[:, 2:3] * encw[5:6, :])
        vfeat = (encm[3:4, :] * vxb + encm[4:5, :] * jnp.sin(vxb)
                 + encm[5:6, :] * jnp.cos(vxb))
        view_c = jnp.dot(vfeat.astype(jnp.bfloat16), wh_ref[2],
                         preferred_element_type=jnp.float32)   # (n_rays, F)

        h2 = jnp.dot(head_bf, wh_ref[1], preferred_element_type=jnp.float32) + bh[1:2, :]
        if samples > 1:
            # (tile, F) -> (n_rays, samples, F): layout-preserving (samples % 8 == 0).
            h2 = (h2.reshape(n_rays, samples, F) + view_c[:, None, :]).reshape(tile, F)
        else:
            h2 = h2 + view_c
        h2 = jnp.maximum(h2, 0.0).astype(jnp.bfloat16)

        # ---- rgb head into lanes 1:4; only 8 output lanes leave the kernel ----
        rgb = jnp.dot(h2, wh_ref[3], preferred_element_type=jnp.float32)
        out_ref[...] = rgb[:, :OUT_LANES] + bh[2:3, :OUT_LANES] + alpha

    return kernel


def run_nerf_mlp(params, enc, pts_xyz, view_xyz, samples_per_ray, max_tile=2048):
    """pts_xyz: (N, rows, 3) f32, ray-major rows (row = ray*S + sample).
       view_xyz: (N, rows // S, 3) f32 (one direction per ray).
       Returns (N, rows, OUT_LANES) f32: raw alpha in lane 0, raw rgb in lanes 1:4."""
    N, rows, _ = pts_xyz.shape
    depth = params["wl"].shape[1]

    S = samples_per_ray
    if S % 8 != 0 or 8 * S > max_tile:
        # Fallback: expand view dirs per sample (kernel broadcast needs S % 8 == 0).
        reps = rows // view_xyz.shape[1]
        view_xyz = jnp.repeat(view_xyz, reps, axis=1)
        S = 1
    R = rows // S

    # Balanced ray tiling (multiple-of-8 rays per tile, bounded padding).
    max_rays = max(8, (max_tile // S) // 8 * 8)
    r_pad8 = _round_up(R, 8)
    n_tiles = -(-r_pad8 // max_rays)
    tile_rays = _round_up(-(-r_pad8 // n_tiles), 8)
    R_pad = tile_rays * n_tiles
    rows_pad = R_pad * S
    tile = tile_rays * S

    if rows_pad != rows:
        pts_xyz = jnp.pad(pts_xyz, ((0, 0), (0, rows_pad - rows), (0, 0)))
    if R_pad != R:
        view_xyz = jnp.pad(view_xyz, ((0, 0), (0, R_pad - R), (0, 0)))

    if N == 1:
        # Static net: 1-D grid over row tiles so megacore (v7x) shards rows.
        grid = (n_tiles,)
        dim_sem = ("parallel",)
        row3 = lambda i: (0, i, 0)
        net3 = lambda i: (0, 0, 0)
        net4 = lambda i: (0, 0, 0, 0)
        shared2 = lambda i: (0, 0)
    else:
        grid = (N, n_tiles)
        dim_sem = ("parallel", "parallel")
        row3 = lambda v, i: (v, i, 0)
        net3 = lambda v, i: (v, 0, 0)
        net4 = lambda v, i: (v, 0, 0, 0)
        shared2 = lambda v, i: (0, 0)

    flops = 2 * F * F * N * (rows_pad * (depth + 3) + R_pad)
    transcendentals = 2 * F * N * (rows_pad + R_pad)
    bytes_accessed = (N * rows_pad * 3 * 4 + N * R_pad * 3 * 4
                      + N * rows_pad * OUT_LANES * 4
                      + 2 * (params["wl"].size + params["wh"].size)
                      + 4 * (params["bl"].size + params["bh"].size))

    out = pl.pallas_call(
        _make_mlp_kernel(depth, S),
        out_shape=jax.ShapeDtypeStruct((N, rows_pad, OUT_LANES), jnp.float32),
        grid=grid,
        in_specs=[
            pl.BlockSpec((None, tile, 3), row3),
            pl.BlockSpec((None, tile_rays, 3), row3),
            # Per-network weights: block index constant along the row axis ->
            # fetched once per network, held resident across row tiles.
            pl.BlockSpec((None, depth, F, F), net4),
            pl.BlockSpec((None, depth, F), net3),
            pl.BlockSpec((None, 4, F, F), net4),
            pl.BlockSpec((None, 4, F), net3),
            # Shared encoding constants: fetched once.
            pl.BlockSpec((8, F), shared2),
            pl.BlockSpec((6, F), shared2),
        ],
        out_specs=pl.BlockSpec((None, tile, OUT_LANES), row3),
        compiler_params=pltpu.CompilerParams(
            dimension_semantics=dim_sem,
            vmem_limit_bytes=32 * 1024 * 1024),
        cost_estimate=pl.CostEstimate(
            flops=int(flops),
            transcendentals=int(transcendentals),
            bytes_accessed=int(bytes_accessed)),
    )(pts_xyz, view_xyz, params["wl"], params["bl"], params["wh"],
      params["bh"], enc["w"], enc["m"])

    return out[:, :rows, :]


# ----------------------------------------------------------------------------
# Deterministic parameter construction (pre-padded / pre-fused for the kernel)
# ----------------------------------------------------------------------------
def init_nerf_params(key, depth, width):
    keys = jax.random.split(key, depth + 4)

    def rnd(k, shape):
        return 0.1 * jax.random.normal(k, shape, jnp.float32)

    wl = jnp.zeros((depth, F, F), jnp.float32)
    bl = jnp.zeros((depth, F), jnp.float32)          # biases are zero-init
    in_dim = PTS_CH
    for l in range(depth):
        w = rnd(keys[l], (in_dim, width))
        wl = wl.at[l, :in_dim, :width].set(w)
        in_dim = width

    aw = rnd(keys[depth + 0], (width, 1))                     # alpha head
    fw = rnd(keys[depth + 1], (width, width))                 # feature head
    vw = rnd(keys[depth + 2], (width + VIEW_CH, width // 2))  # view branch
    rw = rnd(keys[depth + 3], (width // 2, 3))                # rgb head

    wh = jnp.zeros((4, F, F), jnp.float32)
    bh = jnp.zeros((4, F), jnp.float32)
    # slot 0: fused alpha (col 0) + feature (cols 1:1+width) head.
    wh = wh.at[0, :width, 0].set(aw[:, 0])
    wh = wh.at[0, :width, 1:1 + width].set(fw)
    # slot 1: view branch weight acting on the fused head output (feat part).
    wh = wh.at[1, 1:1 + width, :width // 2].set(vw[:width])
    # slot 2: view branch weight acting on the (lane-encoded) view directions.
    wh = wh.at[2, :VIEW_CH, :width // 2].set(vw[width:])
    # slot 3: rgb head into lanes 1:4.
    wh = wh.at[3, :width // 2, 1:4].set(rw)
    # bh slot 3 is the alpha routing lane-mask (1.0 at lane 0).
    bh = bh.at[3, 0].set(1.0)

    return {"wl": wl.astype(jnp.bfloat16), "bl": bl,
            "wh": wh.astype(jnp.bfloat16), "bh": bh}


# ----------------------------------------------------------------------------
# raw2outputs_star (volume rendering compositing) — plain-JAX glue
#   dynamic inputs are (V, R, S) / (V, R, S, 3): no layout transposes needed.
# ----------------------------------------------------------------------------
def raw2outputs_star(raw_alpha_s, raw_rgb_s, raw_alpha_d, raw_rgb_d,
                     z_vals, rays_d, far_dist):
    n_rays, n_samples = z_vals.shape
    dists = z_vals[:, 1:] - z_vals[:, :-1]
    dists = jnp.concatenate(
        [dists, jnp.full((n_rays, 1), far_dist, jnp.float32)], axis=-1)
    dists = dists * jnp.linalg.norm(rays_d, axis=-1, keepdims=True)

    rgb_s = jax.nn.sigmoid(raw_rgb_s)                                  # (R,S,3)
    rgb_d = jax.nn.sigmoid(raw_rgb_d)                                  # (V,R,S,3)
    alpha_s = 1.0 - jnp.exp(-jax.nn.relu(raw_alpha_s) * dists)         # (R,S)
    alpha_d = 1.0 - jnp.exp(
        -jax.nn.relu(raw_alpha_d) * dists[None, :, :])                 # (V,R,S)

    trans_s = 1.0 - alpha_s
    trans_d = jnp.prod(1.0 - alpha_d, axis=0)                          # (R,S)
    alpha_total = 1.0 - trans_s * trans_d                              # (R,S)

    transmittance = jnp.cumprod(
        jnp.concatenate(
            [jnp.ones((n_rays, 1), jnp.float32),
             1.0 - alpha_total + 1e-10], axis=-1),
        axis=-1)[:, :-1]                                               # (R,S)
    weights = alpha_total * transmittance

    rgb_contrib = (alpha_s[..., None] * rgb_s +
                   jnp.sum(alpha_d[..., None] * rgb_d, axis=0))        # (R,S,3)
    rgb_map = jnp.sum(transmittance[..., None] * rgb_contrib, axis=1)  # (R,3)
    depth_map = jnp.sum(weights * z_vals, axis=-1)                     # (R,)
    acc_map = jnp.sum(weights, axis=-1)                                # (R,)
    rgb_map_static = jnp.sum(
        transmittance[..., None] * alpha_s[..., None] * rgb_s, axis=1)
    rgb_map_dynamic = jnp.sum(
        transmittance[None, :, :, None] * alpha_d[..., None] * rgb_d, axis=2)
    rgb_map_dynamic = jnp.transpose(rgb_map_dynamic, (1, 0, 2))        # (R,V,3), tiny

    return {
        "rgb": rgb_map,
        "depth": depth_map,
        "acc": acc_map,
        "weights": weights,
        "rgb_static": rgb_map_static,
        "rgb_dynamic": rgb_map_dynamic,
    }


# ----------------------------------------------------------------------------
# Jitted forward_chunk (static net + batched dynamic nets, 2 pallas_calls)
# ----------------------------------------------------------------------------
@functools.partial(jax.jit, static_argnames=("far_dist",))
def _star_forward_chunk(static_params, dynamic_params, enc, pts, viewdirs,
                        z_vals, rays_d, pose, far_dist):
    R, S, _ = pts.shape
    V = pose.shape[0]
    rows = R * S

    pts_flat = pts.reshape(rows, 3)

    # ---- static NeRF (raw xyz / per-ray view dirs go straight to the kernel) ----
    out_s = run_nerf_mlp(static_params, enc, pts_flat[None], viewdirs[None], S)
    raw_alpha_s = out_s[0, :, 0].reshape(R, S)
    raw_rgb_s = out_s[0, :, 1:4].reshape(R, S, 3)

    # ---- rigid-transform points / view dirs into each vehicle frame ----
    pts_homog = jnp.concatenate(
        [pts_flat, jnp.ones((rows, 1), jnp.float32)], axis=-1)          # (rows,4)
    pts_dyn = jnp.einsum("vij,nj->vni", pose, pts_homog)[..., :3]       # (V,rows,3)
    view_dyn = jnp.einsum("vij,nj->vni", pose[:, :3, :3], viewdirs)     # (V,R,3)

    # ---- all dynamic NeRFs in a single batched pallas_call ----
    out_d = run_nerf_mlp(dynamic_params, enc, pts_dyn, view_dyn, S)     # (V,rows,8)
    raw_alpha_d = out_d[:, :, 0].reshape(V, R, S)
    raw_rgb_d = out_d[:, :, 1:4].reshape(V, R, S, 3)

    return raw2outputs_star(raw_alpha_s, raw_rgb_s, raw_alpha_d, raw_rgb_d,
                            z_vals, rays_d, far_dist)


# ----------------------------------------------------------------------------
# STaR module (forward / forward_chunk)
# ----------------------------------------------------------------------------
class STaRPallas:
    def __init__(self, num_vehicles=2, chunk=1024, far_dist=100.0,
                 netdepth=4, netwidth=32, seed=0):
        self.num_vehicles = num_vehicles
        self.chunk = chunk
        self.far_dist = float(far_dist)
        self.enc = _make_enc_constants()
        key = jax.random.PRNGKey(seed)
        k_static, *k_dyn = jax.random.split(key, 1 + num_vehicles)
        sp = init_nerf_params(k_static, netdepth, netwidth)
        self.static_params = jax.tree_util.tree_map(lambda x: x[None], sp)
        dyn = [init_nerf_params(k, netdepth // 2, netwidth) for k in k_dyn]
        self.dynamic_params = jax.tree_util.tree_map(
            lambda *xs: jnp.stack(xs, axis=0), *dyn)

    def forward_chunk(self, pts, viewdirs, z_vals, rays_d, pose):
        return _star_forward_chunk(self.static_params, self.dynamic_params,
                                   self.enc, pts, viewdirs, z_vals, rays_d,
                                   pose, far_dist=self.far_dist)

    def forward(self, pts, viewdirs, z_vals, rays_d, pose):
        result = {}
        n = pts.shape[0]
        for i in range(0, n, self.chunk):
            end_i = min(n, i + self.chunk)
            chunk_result = self.forward_chunk(
                pts[i:end_i], viewdirs[i:end_i],
                z_vals[i:end_i], rays_d[i:end_i], pose)
            for k, v in chunk_result.items():
                result.setdefault(k, []).append(v)
        for k, v in result.items():
            if v[0].ndim == 0:
                result[k] = sum(v)
            else:
                result[k] = jnp.concatenate(v, axis=0)
        return result


# ----------------------------------------------------------------------------
# main
# ----------------------------------------------------------------------------
if __name__ == "__main__":
    key = jax.random.PRNGKey(0)
    num_rays, num_samples, num_vehicles = 8, 8, 2

    k1, k2, k3, k4, k5 = jax.random.split(key, 5)
    pts = jax.random.normal(k1, (num_rays, num_samples, 3), jnp.float32)
    viewdirs = jax.random.normal(k2, (num_rays, 3), jnp.float32)
    viewdirs = viewdirs / jnp.linalg.norm(viewdirs, axis=-1, keepdims=True)
    z_vals = jnp.sort(
        jax.random.uniform(k3, (num_rays, num_samples), jnp.float32,
                           minval=0.1, maxval=5.0), axis=-1)
    rays_d = jax.random.normal(k4, (num_rays, 3), jnp.float32)

    # Poses: identity rotations with small random translations.
    trans = 0.1 * jax.random.normal(k5, (num_vehicles, 3), jnp.float32)
    pose = jnp.tile(jnp.eye(4, dtype=jnp.float32)[None], (num_vehicles, 1, 1))
    pose = pose.at[:, :3, 3].set(trans)

    # chunk = full ray count -> one fused launch per network family.
    model = STaRPallas(num_vehicles=num_vehicles, chunk=num_rays,
                       far_dist=100.0, netdepth=4, netwidth=32, seed=0)
    out = model.forward(pts, viewdirs, z_vals, rays_d, pose)
    jax.block_until_ready(out["rgb"])

    assert out["rgb"].shape == (num_rays, 3)
    assert out["depth"].shape == (num_rays,)
    assert out["weights"].shape == (num_rays, num_samples)
    assert out["rgb_dynamic"].shape == (num_rays, num_vehicles, 3)
    assert bool(jnp.all(jnp.isfinite(out["rgb"])))
    print("KERNEL_OK")
</pallas_src>

<mosaic_0001>
module attributes {stable_mosaic.version = 11 : i64} {
  func.func @kernel(%arg0: i32, %arg1: memref<1x64x3xf32, #tpu.memory_space<vmem>>, %arg2: memref<1x8x3xf32, #tpu.memory_space<vmem>>, %arg3: memref<1x4x128x128xbf16, #tpu.memory_space<vmem>>, %arg4: memref<1x4x128xf32, #tpu.memory_space<vmem>>, %arg5: memref<1x4x128x128xbf16, #tpu.memory_space<vmem>>, %arg6: memref<1x4x128xf32, #tpu.memory_space<vmem>>, %arg7: memref<8x128xf32, #tpu.memory_space<vmem>>, %arg8: memref<6x128xf32, #tpu.memory_space<vmem>>, %arg9: memref<1x64x8xf32, #tpu.memory_space<vmem>>) attributes {dimension_semantics = [#tpu.dimension_semantics<parallel>], iteration_bounds = array<i64: 1>, scalar_prefetch = 0 : i64, scratch_operands = 0 : i64, tpu.core_type = #tpu.core_type<tc>, window_params = [{transform_indices = @transform_0, window_bounds = array<i64: 1, 64, 3>}, {transform_indices = @transform_1, window_bounds = array<i64: 1, 8, 3>}, {pipeline_mode = #tpu.pipeline_mode<synchronous>, transform_indices = @transform_2, window_bounds = array<i64: 1, 4, 128, 128>}, {pipeline_mode = #tpu.pipeline_mode<synchronous>, transform_indices = @transform_3, window_bounds = array<i64: 1, 4, 128>}, {pipeline_mode = #tpu.pipeline_mode<synchronous>, transform_indices = @transform_4, window_bounds = array<i64: 1, 4, 128, 128>}, {pipeline_mode = #tpu.pipeline_mode<synchronous>, transform_indices = @transform_5, window_bounds = array<i64: 1, 4, 128>}, {pipeline_mode = #tpu.pipeline_mode<synchronous>, transform_indices = @transform_6, window_bounds = array<i64: 8, 128>}, {pipeline_mode = #tpu.pipeline_mode<synchronous>, transform_indices = @transform_7, window_bounds = array<i64: 6, 128>}, {transform_indices = @transform_8, window_bounds = array<i64: 1, 64, 8>}]} {
    %c0 = arith.constant 0 : index
    %c0_0 = arith.constant 0 : index
    %0 = vector.load %arg7[%c0, %c0_0] : memref<8x128xf32, #tpu.memory_space<vmem>>, vector<8x128xf32>
    %c0_1 = arith.constant 0 : index
    %c0_2 = arith.constant 0 : index
    %1 = vector.load %arg8[%c0_1, %c0_2] : memref<6x128xf32, #tpu.memory_space<vmem>>, vector<6x128xf32>
    %c0_3 = arith.constant 0 : index
    %c0_4 = arith.constant 0 : index
    %c0_5 = arith.constant 0 : index
    %2 = vector.load %arg4[%c0_3, %c0_4, %c0_5] : memref<1x4x128xf32, #tpu.memory_space<vmem>>, vector<1x4x128xf32>
    %3 = vector.shape_cast %2 : vector<1x4x128xf32> to vector<4x128xf32>
    %c0_6 = arith.constant 0 : index
    %c0_7 = arith.constant 0 : index
    %c0_8 = arith.constant 0 : index
    %4 = vector.load %arg6[%c0_6, %c0_7, %c0_8] : memref<1x4x128xf32, #tpu.memory_space<vmem>>, vector<1x4x128xf32>
    %5 = vector.shape_cast %4 : vector<1x4x128xf32> to vector<4x128xf32>
    %c0_9 = arith.constant 0 : index
    %c0_10 = arith.constant 0 : index
    %c0_11 = arith.constant 0 : index
    %6 = vector.load %arg1[%c0_9, %c0_10, %c0_11] : memref<1x64x3xf32, #tpu.memory_space<vmem>>, vector<1x64x3xf32>
    %7 = vector.shape_cast %6 : vector<1x64x3xf32> to vector<64x3xf32>
    %8 = vector.extract_strided_slice %7 {offsets = [0, 0], sizes = [64, 1], strides = [1, 1]} : vector<64x3xf32> to vector<64x1xf32>
    %9 = vector.extract_strided_slice %0 {offsets = [0, 0], sizes = [1, 128], strides = [1, 1]} : vector<8x128xf32> to vector<1x128xf32>
    %10 = vector.broadcast %8 : vector<64x1xf32> to vector<64x128xf32>
    %11 = vector.broadcast %9 : vector<1x128xf32> to vector<64x128xf32>
    %12 = arith.mulf %10, %11 : vector<64x128xf32>
    %13 = vector.extract_strided_slice %7 {offsets = [0, 1], sizes = [64, 1], strides = [1, 1]} : vector<64x3xf32> to vector<64x1xf32>
    %14 = vector.extract_strided_slice %0 {offsets = [1, 0], sizes = [1, 128], strides = [1, 1]} : vector<8x128xf32> to vector<1x128xf32>
    %15 = vector.broadcast %13 : vector<64x1xf32> to vector<64x128xf32>
    %16 = vector.broadcast %14 : vector<1x128xf32> to vector<64x128xf32>
    %17 = arith.mulf %15, %16 : vector<64x128xf32>
    %18 = arith.addf %12, %17 : vector<64x128xf32>
    %19 = vector.extract_strided_slice %7 {offsets = [0, 2], sizes = [64, 1], strides = [1, 1]} : vector<64x3xf32> to vector<64x1xf32>
    %20 = vector.extract_strided_slice %0 {offsets = [2, 0], sizes = [1, 128], strides = [1, 1]} : vector<8x128xf32> to vector<1x128xf32>
    %21 = vector.broadcast %19 : vector<64x1xf32> to vector<64x128xf32>
    %22 = vector.broadcast %20 : vector<1x128xf32> to vector<64x128xf32>
    %23 = arith.mulf %21, %22 : vector<64x128xf32>
    %24 = arith.addf %18, %23 : vector<64x128xf32>
    %25 = vector.extract_strided_slice %1 {offsets = [0, 0], sizes = [1, 128], strides = [1, 1]} : vector<6x128xf32> to vector<1x128xf32>
    %26 = vector.broadcast %25 : vector<1x128xf32> to vector<64x128xf32>
    %27 = arith.mulf %26, %24 : vector<64x128xf32>
    %28 = vector.extract_strided_slice %1 {offsets = [1, 0], sizes = [1, 128], strides = [1, 1]} : vector<6x128xf32> to vector<1x128xf32>
    %29 = math.sin %24 : vector<64x128xf32>
    %30 = vector.broadcast %28 : vector<1x128xf32> to vector<64x128xf32>
    %31 = arith.mulf %30, %29 : vector<64x128xf32>
    %32 = arith.addf %27, %31 : vector<64x128xf32>
    %33 = vector.extract_strided_slice %1 {offsets = [2, 0], sizes = [1, 128], strides = [1, 1]} : vector<6x128xf32> to vector<1x128xf32>
    %34 = math.cos %24 : vector<64x128xf32>
    %35 = vector.broadcast %33 : vector<1x128xf32> to vector<64x128xf32>
    %36 = arith.mulf %35, %34 : vector<64x128xf32>
    %37 = arith.addf %32, %36 : vector<64x128xf32>
    %38 = arith.truncf %37 : vector<64x128xf32> to vector<64x128xbf16>
    %c0_12 = arith.constant 0 : index
    %c0_13 = arith.constant 0 : index
    %c0_14 = arith.constant 0 : index
    %c0_15 = arith.constant 0 : index
    %39 = vector.load %arg3[%c0_12, %c0_13, %c0_14, %c0_15] : memref<1x4x128x128xbf16, #tpu.memory_space<vmem>>, vector<1x1x128x128xbf16>
    %40 = vector.shape_cast %39 : vector<1x1x128x128xbf16> to vector<128x128xbf16>
    %cst = arith.constant dense<0.000000e+00> : vector<64x128xf32>
    %41 = tpu.matmul %38, %40, %cst {dimension_numbers = #tpu.dot_dimension_numbers<[1], [0], [0], [1], [0, 0, 1, 1], [], []>} : vector<64x128xbf16>, vector<128x128xbf16>, vector<64x128xf32> -> vector<64x128xf32>
    %42 = vector.extract_strided_slice %3 {offsets = [0, 0], sizes = [1, 128], strides = [1, 1]} : vector<4x128xf32> to vector<1x128xf32>
    %43 = vector.broadcast %42 : vector<1x128xf32> to vector<64x128xf32>
    %44 = arith.addf %41, %43 : vector<64x128xf32>
    %cst_16 = arith.constant 0.000000e+00 : f32
    %45 = vector.broadcast %cst_16 : f32 to vector<64x128xf32>
    %46 = arith.maximumf %44, %45 : vector<64x128xf32>
    %47 = arith.truncf %46 : vector<64x128xf32> to vector<64x128xbf16>
    %c0_17 = arith.constant 0 : index
    %c1 = arith.constant 1 : index
    %c0_18 = arith.constant 0 : index
    %c0_19 = arith.constant 0 : index
    %48 = vector.load %arg3[%c0_17, %c1, %c0_18, %c0_19] : memref<1x4x128x128xbf16, #tpu.memory_space<vmem>>, vector<1x1x128x128xbf16>
    %49 = vector.shape_cast %48 : vector<1x1x128x128xbf16> to vector<128x128xbf16>
    %cst_20 = arith.constant dense<0.000000e+00> : vector<64x128xf32>
    %50 = tpu.matmul %47, %49, %cst_20 {dimension_numbers = #tpu.dot_dimension_numbers<[1], [0], [0], [1], [0, 0, 1, 1], [], []>} : vector<64x128xbf16>, vector<128x128xbf16>, vector<64x128xf32> -> vector<64x128xf32>
    %51 = vector.extract_strided_slice %3 {offsets = [1, 0], sizes = [1, 128], strides = [1, 1]} : vector<4x128xf32> to vector<1x128xf32>
    %52 = vector.broadcast %51 : vector<1x128xf32> to vector<64x128xf32>
    %53 = arith.addf %50, %52 : vector<64x128xf32>
    %cst_21 = arith.constant 0.000000e+00 : f32
    %54 = vector.broadcast %cst_21 : f32 to vector<64x128xf32>
    %55 = arith.maximumf %53, %54 : vector<64x128xf32>
    %56 = arith.truncf %55 : vector<64x128xf32> to vector<64x128xbf16>
    %c0_22 = arith.constant 0 : index
    %c2 = arith.constant 2 : index
    %c0_23 = arith.constant 0 : index
    %c0_24 = arith.constant 0 : index
    %57 = vector.load %arg3[%c0_22, %c2, %c0_23, %c0_24] : memref<1x4x128x128xbf16, #tpu.memory_space<vmem>>, vector<1x1x128x128xbf16>
    %58 = vector.shape_cast %57 : vector<1x1x128x128xbf16> to vector<128x128xbf16>
    %cst_25 = arith.constant dense<0.000000e+00> : vector<64x128xf32>
    %59 = tpu.matmul %56, %58, %cst_25 {dimension_numbers = #tpu.dot_dimension_numbers<[1], [0], [0], [1], [0, 0, 1, 1], [], []>} : vector<64x128xbf16>, vector<128x128xbf16>, vector<64x128xf32> -> vector<64x128xf32>
    %60 = vector.extract_strided_slice %3 {offsets = [2, 0], sizes = [1, 128], strides = [1, 1]} : vector<4x128xf32> to vector<1x128xf32>
    %61 = vector.broadcast %60 : vector<1x128xf32> to vector<64x128xf32>
    %62 = arith.addf %59, %61 : vector<64x128xf32>
    %cst_26 = arith.constant 0.000000e+00 : f32
    %63 = vector.broadcast %cst_26 : f32 to vector<64x128xf32>
    %64 = arith.maximumf %62, %63 : vector<64x128xf32>
    %65 = arith.truncf %64 : vector<64x128xf32> to vector<64x128xbf16>
    %c0_27 = arith.constant 0 : index
    %c3 = arith.constant 3 : index
    %c0_28 = arith.constant 0 : index
    %c0_29 = arith.constant 0 : index
    %66 = vector.load %arg3[%c0_27, %c3, %c0_28, %c0_29] : memref<1x4x128x128xbf16, #tpu.memory_space<vmem>>, vector<1x1x128x128xbf16>
    %67 = vector.shape_cast %66 : vector<1x1x128x128xbf16> to vector<128x128xbf16>
    %cst_30 = arith.constant dense<0.000000e+00> : vector<64x128xf32>
    %68 = tpu.matmul %65, %67, %cst_30 {dimension_numbers = #tpu.dot_dimension_numbers<[1], [0], [0], [1], [0, 0, 1, 1], [], []>} : vector<64x128xbf16>, vector<128x128xbf16>, vector<64x128xf32> -> vector<64x128xf32>
    %69 = vector.extract_strided_slice %3 {offsets = [3, 0], sizes = [1, 128], strides = [1, 1]} : vector<4x128xf32> to vector<1x128xf32>
    %70 = vector.broadcast %69 : vector<1x128xf32> to vector<64x128xf32>
    %71 = arith.addf %68, %70 : vector<64x128xf32>
    %cst_31 = arith.constant 0.000000e+00 : f32
    %72 = vector.broadcast %cst_31 : f32 to vector<64x128xf32>
    %73 = arith.maximumf %71, %72 : vector<64x128xf32>
    %74 = arith.truncf %73 : vector<64x128xf32> to vector<64x128xbf16>
    %c0_32 = arith.constant 0 : index
    %c0_33 = arith.constant 0 : index
    %c0_34 = arith.constant 0 : index
    %c0_35 = arith.constant 0 : index
    %75 = vector.load %arg5[%c0_32, %c0_33, %c0_34, %c0_35] : memref<1x4x128x128xbf16, #tpu.memory_space<vmem>>, vector<1x1x128x128xbf16>
    %76 = vector.shape_cast %75 : vector<1x1x128x128xbf16> to vector<128x128xbf16>
    %cst_36 = arith.constant dense<0.000000e+00> : vector<64x128xf32>
    %77 = tpu.matmul %74, %76, %cst_36 {dimension_numbers = #tpu.dot_dimension_numbers<[1], [0], [0], [1], [0, 0, 1, 1], [], []>} : vector<64x128xbf16>, vector<128x128xbf16>, vector<64x128xf32> -> vector<64x128xf32>
    %78 = vector.extract_strided_slice %5 {offsets = [0, 0], sizes = [1, 128], strides = [1, 1]} : vector<4x128xf32> to vector<1x128xf32>
    %79 = vector.broadcast %78 : vector<1x128xf32> to vector<64x128xf32>
    %80 = arith.addf %77, %79 : vector<64x128xf32>
    %81 = arith.truncf %80 : vector<64x128xf32> to vector<64x128xbf16>
    %82 = vector.extract_strided_slice %80 {offsets = [0, 0], sizes = [64, 8], strides = [1, 1]} : vector<64x128xf32> to vector<64x8xf32>
    %83 = vector.extract_strided_slice %5 {offsets = [3, 0], sizes = [1, 8], strides = [1, 1]} : vector<4x128xf32> to vector<1x8xf32>
    %84 = vector.broadcast %83 : vector<1x8xf32> to vector<64x8xf32>
    %85 = arith.mulf %82, %84 : vector<64x8xf32>
    %c0_37 = arith.constant 0 : index
    %c0_38 = arith.constant 0 : index
    %c0_39 = arith.constant 0 : index
    %86 = vector.load %arg2[%c0_37, %c0_38, %c0_39] : memref<1x8x3xf32, #tpu.memory_space<vmem>>, vector<1x8x3xf32>
    %87 = vector.shape_cast %86 : vector<1x8x3xf32> to vector<8x3xf32>
    %88 = vector.extract_strided_slice %87 {offsets = [0, 0], sizes = [8, 1], strides = [1, 1]} : vector<8x3xf32> to vector<8x1xf32>
    %89 = vector.extract_strided_slice %0 {offsets = [3, 0], sizes = [1, 128], strides = [1, 1]} : vector<8x128xf32> to vector<1x128xf32>
    %90 = vector.broadcast %88 : vector<8x1xf32> to vector<8x128xf32>
    %91 = vector.broadcast %89 : vector<1x128xf32> to vector<8x128xf32>
    %92 = arith.mulf %90, %91 : vector<8x128xf32>
    %93 = vector.extract_strided_slice %87 {offsets = [0, 1], sizes = [8, 1], strides = [1, 1]} : vector<8x3xf32> to vector<8x1xf32>
    %94 = vector.extract_strided_slice %0 {offsets = [4, 0], sizes = [1, 128], strides = [1, 1]} : vector<8x128xf32> to vector<1x128xf32>
    %95 = vector.broadcast %93 : vector<8x1xf32> to vector<8x128xf32>
    %96 = vector.broadcast %94 : vector<1x128xf32> to vector<8x128xf32>
    %97 = arith.mulf %95, %96 : vector<8x128xf32>
    %98 = arith.addf %92, %97 : vector<8x128xf32>
    %99 = vector.extract_strided_slice %87 {offsets = [0, 2], sizes = [8, 1], strides = [1, 1]} : vector<8x3xf32> to vector<8x1xf32>
    %100 = vector.extract_strided_slice %0 {offsets = [5, 0], sizes = [1, 128], strides = [1, 1]} : vector<8x128xf32> to vector<1x128xf32>
    %101 = vector.broadcast %99 : vector<8x1xf32> to vector<8x128xf32>
    %102 = vector.broadcast %100 : vector<1x128xf32> to vector<8x128xf32>
    %103 = arith.mulf %101, %102 : vector<8x128xf32>
    %104 = arith.addf %98, %103 : vector<8x128xf32>
    %105 = vector.extract_strided_slice %1 {offsets = [3, 0], sizes = [1, 128], strides = [1, 1]} : vector<6x128xf32> to vector<1x128xf32>
    %106 = vector.broadcast %105 : vector<1x128xf32> to vector<8x128xf32>
    %107 = arith.mulf %106, %104 : vector<8x128xf32>
    %108 = vector.extract_strided_slice %1 {offsets = [4, 0], sizes = [1, 128], strides = [1, 1]} : vector<6x128xf32> to vector<1x128xf32>
    %109 = math.sin %104 : vector<8x128xf32>
    %110 = vector.broadcast %108 : vector<1x128xf32> to vector<8x128xf32>
    %111 = arith.mulf %110, %109 : vector<8x128xf32>
    %112 = arith.addf %107, %111 : vector<8x128xf32>
    %113 = vector.extract_strided_slice %1 {offsets = [5, 0], sizes = [1, 128], strides = [1, 1]} : vector<6x128xf32> to vector<1x128xf32>
    %114 = math.cos %104 : vector<8x128xf32>
    %115 = vector.broadcast %113 : vector<1x128xf32> to vector<8x128xf32>
    %116 = arith.mulf %115, %114 : vector<8x128xf32>
    %117 = arith.addf %112, %116 : vector<8x128xf32>
    %118 = arith.truncf %117 : vector<8x128xf32> to vector<8x128xbf16>
    %c0_40 = arith.constant 0 : index
    %c2_41 = arith.constant 2 : index
    %c0_42 = arith.constant 0 : index
    %c0_43 = arith.constant 0 : index
    %119 = vector.load %arg5[%c0_40, %c2_41, %c0_42, %c0_43] : memref<1x4x128x128xbf16, #tpu.memory_space<vmem>>, vector<1x1x128x128xbf16>
    %120 = vector.shape_cast %119 : vector<1x1x128x128xbf16> to vector<128x128xbf16>
    %cst_44 = arith.constant dense<0.000000e+00> : vector<8x128xf32>
    %121 = tpu.matmul %118, %120, %cst_44 {dimension_numbers = #tpu.dot_dimension_numbers<[1], [0], [0], [1], [0, 0, 1, 1], [], []>} : vector<8x128xbf16>, vector<128x128xbf16>, vector<8x128xf32> -> vector<8x128xf32>
    %c0_45 = arith.constant 0 : index
    %c1_46 = arith.constant 1 : index
    %c0_47 = arith.constant 0 : index
    %c0_48 = arith.constant 0 : index
    %122 = vector.load %arg5[%c0_45, %c1_46, %c0_47, %c0_48] : memref<1x4x128x128xbf16, #tpu.memory_space<vmem>>, vector<1x1x128x128xbf16>
    %123 = vector.shape_cast %122 : vector<1x1x128x128xbf16> to vector<128x128xbf16>
    %cst_49 = arith.constant dense<0.000000e+00> : vector<64x128xf32>
    %124 = tpu.matmul %81, %123, %cst_49 {dimension_numbers = #tpu.dot_dimension_numbers<[1], [0], [0], [1], [0, 0, 1, 1], [], []>} : vector<64x128xbf16>, vector<128x128xbf16>, vector<64x128xf32> -> vector<64x128xf32>
    %125 = vector.extract_strided_slice %5 {offsets = [1, 0], sizes = [1, 128], strides = [1, 1]} : vector<4x128xf32> to vector<1x128xf32>
    %126 = vector.broadcast %125 : vector<1x128xf32> to vector<64x128xf32>
    %127 = arith.addf %124, %126 : vector<64x128xf32>
    %128 = vector.shape_cast %127 : vector<64x128xf32> to vector<8x8x128xf32>
    %129 = vector.shape_cast %121 : vector<8x128xf32> to vector<8x1x128xf32>
    %130 = vector.broadcast %129 : vector<8x1x128xf32> to vector<8x8x128xf32>
    %131 = arith.addf %128, %130 : vector<8x8x128xf32>
    %132 = vector.shape_cast %131 : vector<8x8x128xf32> to vector<64x128xf32>
    %cst_50 = arith.constant 0.000000e+00 : f32
    %133 = vector.broadcast %cst_50 : f32 to vector<64x128xf32>
    %134 = arith.maximumf %132, %133 : vector<64x128xf32>
    %135 = arith.truncf %134 : vector<64x128xf32> to vector<64x128xbf16>
    %c0_51 = arith.constant 0 : index
    %c3_52 = arith.constant 3 : index
    %c0_53 = arith.constant 0 : index
    %c0_54 = arith.constant 0 : index
    %136 = vector.load %arg5[%c0_51, %c3_52, %c0_53, %c0_54] : memref<1x4x128x128xbf16, #tpu.memory_space<vmem>>, vector<1x1x128x128xbf16>
    %137 = vector.shape_cast %136 : vector<1x1x128x128xbf16> to vector<128x128xbf16>
    %cst_55 = arith.constant dense<0.000000e+00> : vector<64x128xf32>
    %138 = tpu.matmul %135, %137, %cst_55 {dimension_numbers = #tpu.dot_dimension_numbers<[1], [0], [0], [1], [0, 0, 1, 1], [], []>} : vector<64x128xbf16>, vector<128x128xbf16>, vector<64x128xf32> -> vector<64x128xf32>
    %139 = vector.extract_strided_slice %138 {offsets = [0, 0], sizes = [64, 8], strides = [1, 1]} : vector<64x128xf32> to vector<64x8xf32>
    %140 = vector.extract_strided_slice %5 {offsets = [2, 0], sizes = [1, 8], strides = [1, 1]} : vector<4x128xf32> to vector<1x8xf32>
    %141 = vector.broadcast %140 : vector<1x8xf32> to vector<64x8xf32>
    %142 = arith.addf %139, %141 : vector<64x8xf32>
    %143 = arith.addf %142, %85 : vector<64x8xf32>
    %c0_56 = arith.constant 0 : index
    %c0_57 = arith.constant 0 : index
    %c0_58 = arith.constant 0 : index
    %144 = vector.load %arg9[%c0_56, %c0_57, %c0_58] : memref<1x64x8xf32, #tpu.memory_space<vmem>>, vector<1x64x8xf32>
    %145 = vector.shape_cast %144 : vector<1x64x8xf32> to vector<64x8xf32>
    %146 = vector.shape_cast %143 : vector<64x8xf32> to vector<1x64x8xf32>
    tpu.vector_store %arg9[%c0_56, %c0_57, %c0_58], %146 {strides = array<i32>} : memref<1x64x8xf32, #tpu.memory_space<vmem>>, vector<1x64x8xf32>,
    return
  }
  func.func @transform_0(%arg0: i32) -> (i32, i32, i32) {
    %c0_i32 = arith.constant 0 : i32
    %c0_i32_0 = arith.constant 0 : i32
    %c0_i32_1 = arith.constant 0 : i32
    return %c0_i32, %arg0, %c0_i32_0 : i32, i32, i32
  }
  func.func @transform_1(%arg0: i32) -> (i32, i32, i32) {
    %c0_i32 = arith.constant 0 : i32
    %c0_i32_0 = arith.constant 0 : i32
    %c0_i32_1 = arith.constant 0 : i32
    return %c0_i32, %arg0, %c0_i32_0 : i32, i32, i32
  }
  func.func @transform_2(%arg0: i32) -> (i32, i32, i32, i32) {
    %c0_i32 = arith.constant 0 : i32
    %c0_i32_0 = arith.constant 0 : i32
    %c0_i32_1 = arith.constant 0 : i32
    %c0_i32_2 = arith.constant 0 : i32
    %c0_i32_3 = arith.constant 0 : i32
    return %c0_i32, %c0_i32_0, %c0_i32_1, %c0_i32_2 : i32, i32, i32, i32
  }
  func.func @transform_3(%arg0: i32) -> (i32, i32, i32) {
    %c0_i32 = arith.constant 0 : i32
    %c0_i32_0 = arith.constant 0 : i32
    %c0_i32_1 = arith.constant 0 : i32
    %c0_i32_2 = arith.constant 0 : i32
    return %c0_i32, %c0_i32_0, %c0_i32_1 : i32, i32, i32
  }
  func.func @transform_4(%arg0: i32) -> (i32, i32, i32, i32) {
    %c0_i32 = arith.constant 0 : i32
    %c0_i32_0 = arith.constant 0 : i32
    %c0_i32_1 = arith.constant 0 : i32
    %c0_i32_2 = arith.constant 0 : i32
    %c0_i32_3 = arith.constant 0 : i32
    return %c0_i32, %c0_i32_0, %c0_i32_1, %c0_i32_2 : i32, i32, i32, i32
  }
  func.func @transform_5(%arg0: i32) -> (i32, i32, i32) {
    %c0_i32 = arith.constant 0 : i32
    %c0_i32_0 = arith.constant 0 : i32
    %c0_i32_1 = arith.constant 0 : i32
    %c0_i32_2 = arith.constant 0 : i32
    return %c0_i32, %c0_i32_0, %c0_i32_1 : i32, i32, i32
  }
  func.func @transform_6(%arg0: i32) -> (i32, i32) {
    %c0_i32 = arith.constant 0 : i32
    %c0_i32_0 = arith.constant 0 : i32
    %c0_i32_1 = arith.constant 0 : i32
    return %c0_i32, %c0_i32_0 : i32, i32
  }
  func.func @transform_7(%arg0: i32) -> (i32, i32) {
    %c0_i32 = arith.constant 0 : i32
    %c0_i32_0 = arith.constant 0 : i32
    %c0_i32_1 = arith.constant 0 : i32
    return %c0_i32, %c0_i32_0 : i32, i32
  }
  func.func @transform_8(%arg0: i32) -> (i32, i32, i32) {
    %c0_i32 = arith.constant 0 : i32
    %c0_i32_0 = arith.constant 0 : i32
    %c0_i32_1 = arith.constant 0 : i32
    return %c0_i32, %arg0, %c0_i32_0 : i32, i32, i32
  }
}

module attributes {stable_mosaic.version = 11 : i64} {
  func.func @kernel(%arg0: i32, %arg1: i32, %arg2: memref<1x64x3xf32, #tpu.memory_space<vmem>>, %arg3: memref<1x8x3xf32, #tpu.memory_space<vmem>>, %arg4: memref<1x2x128x128xbf16, #tpu.memory_space<vmem>>, %arg5: memref<1x2x128xf32, #tpu.memory_space<vmem>>, %arg6: memref<1x4x128x128xbf16, #tpu.memory_space<vmem>>, %arg7: memref<1x4x128xf32, #tpu.memory_space<vmem>>, %arg8: memref<8x128xf32, #tpu.memory_space<vmem>>, %arg9: memref<6x128xf32, #tpu.memory_space<vmem>>, %arg10: memref<1x64x8xf32, #tpu.memory_space<vmem>>) attributes {dimension_semantics = [#tpu.dimension_semantics<parallel>, #tpu.dimension_semantics<parallel>], iteration_bounds = array<i64: 2, 1>, scalar_prefetch = 0 : i64, scratch_operands = 0 : i64, tpu.core_type = #tpu.core_type<tc>, window_params = [{transform_indices = @transform_0, window_bounds = array<i64: 1, 64, 3>}, {transform_indices = @transform_1, window_bounds = array<i64: 1, 8, 3>}, {transform_indices = @transform_2, window_bounds = array<i64: 1, 2, 128, 128>}, {transform_indices = @transform_3, window_bounds = array<i64: 1, 2, 128>}, {transform_indices = @transform_4, window_bounds = array<i64: 1, 4, 128, 128>}, {transform_indices = @transform_5, window_bounds = array<i64: 1, 4, 128>}, {pipeline_mode = #tpu.pipeline_mode<synchronous>, transform_indices = @transform_6, window_bounds = array<i64: 8, 128>}, {pipeline_mode = #tpu.pipeline_mode<synchronous>, transform_indices = @transform_7, window_bounds = array<i64: 6, 128>}, {transform_indices = @transform_8, window_bounds = array<i64: 1, 64, 8>}]} {
    %c0 = arith.constant 0 : index
    %c0_0 = arith.constant 0 : index
    %0 = vector.load %arg8[%c0, %c0_0] : memref<8x128xf32, #tpu.memory_space<vmem>>, vector<8x128xf32>
    %c0_1 = arith.constant 0 : index
    %c0_2 = arith.constant 0 : index
    %1 = vector.load %arg9[%c0_1, %c0_2] : memref<6x128xf32, #tpu.memory_space<vmem>>, vector<6x128xf32>
    %c0_3 = arith.constant 0 : index
    %c0_4 = arith.constant 0 : index
    %c0_5 = arith.constant 0 : index
    %2 = vector.load %arg5[%c0_3, %c0_4, %c0_5] : memref<1x2x128xf32, #tpu.memory_space<vmem>>, vector<1x2x128xf32>
    %3 = vector.shape_cast %2 : vector<1x2x128xf32> to vector<2x128xf32>
    %c0_6 = arith.constant 0 : index
    %c0_7 = arith.constant 0 : index
    %c0_8 = arith.constant 0 : index
    %4 = vector.load %arg7[%c0_6, %c0_7, %c0_8] : memref<1x4x128xf32, #tpu.memory_space<vmem>>, vector<1x4x128xf32>
    %5 = vector.shape_cast %4 : vector<1x4x128xf32> to vector<4x128xf32>
    %c0_9 = arith.constant 0 : index
    %c0_10 = arith.constant 0 : index
    %c0_11 = arith.constant 0 : index
    %6 = vector.load %arg2[%c0_9, %c0_10, %c0_11] : memref<1x64x3xf32, #tpu.memory_space<vmem>>, vector<1x64x3xf32>
    %7 = vector.shape_cast %6 : vector<1x64x3xf32> to vector<64x3xf32>
    %8 = vector.extract_strided_slice %7 {offsets = [0, 0], sizes = [64, 1], strides = [1, 1]} : vector<64x3xf32> to vector<64x1xf32>
    %9 = vector.extract_strided_slice %0 {offsets = [0, 0], sizes = [1, 128], strides = [1, 1]} : vector<8x128xf32> to vector<1x128xf32>
    %10 = vector.broadcast %8 : vector<64x1xf32> to vector<64x128xf32>
    %11 = vector.broadcast %9 : vector<1x128xf32> to vector<64x128xf32>
    %12 = arith.mulf %10, %11 : vector<64x128xf32>
    %13 = vector.extract_strided_slice %7 {offsets = [0, 1], sizes = [64, 1], strides = [1, 1]} : vector<64x3xf32> to vector<64x1xf32>
    %14 = vector.extract_strided_slice %0 {offsets = [1, 0], sizes = [1, 128], strides = [1, 1]} : vector<8x128xf32> to vector<1x128xf32>
    %15 = vector.broadcast %13 : vector<64x1xf32> to vector<64x128xf32>
    %16 = vector.broadcast %14 : vector<1x128xf32> to vector<64x128xf32>
    %17 = arith.mulf %15, %16 : vector<64x128xf32>
    %18 = arith.addf %12, %17 : vector<64x128xf32>
    %19 = vector.extract_strided_slice %7 {offsets = [0, 2], sizes = [64, 1], strides = [1, 1]} : vector<64x3xf32> to vector<64x1xf32>
    %20 = vector.extract_strided_slice %0 {offsets = [2, 0], sizes = [1, 128], strides = [1, 1]} : vector<8x128xf32> to vector<1x128xf32>
    %21 = vector.broadcast %19 : vector<64x1xf32> to vector<64x128xf32>
    %22 = vector.broadcast %20 : vector<1x128xf32> to vector<64x128xf32>
    %23 = arith.mulf %21, %22 : vector<64x128xf32>
    %24 = arith.addf %18, %23 : vector<64x128xf32>
    %25 = vector.extract_strided_slice %1 {offsets = [0, 0], sizes = [1, 128], strides = [1, 1]} : vector<6x128xf32> to vector<1x128xf32>
    %26 = vector.broadcast %25 : vector<1x128xf32> to vector<64x128xf32>
    %27 = arith.mulf %26, %24 : vector<64x128xf32>
    %28 = vector.extract_strided_slice %1 {offsets = [1, 0], sizes = [1, 128], strides = [1, 1]} : vector<6x128xf32> to vector<1x128xf32>
    %29 = math.sin %24 : vector<64x128xf32>
    %30 = vector.broadcast %28 : vector<1x128xf32> to vector<64x128xf32>
    %31 = arith.mulf %30, %29 : vector<64x128xf32>
    %32 = arith.addf %27, %31 : vector<64x128xf32>
    %33 = vector.extract_strided_slice %1 {offsets = [2, 0], sizes = [1, 128], strides = [1, 1]} : vector<6x128xf32> to vector<1x128xf32>
    %34 = math.cos %24 : vector<64x128xf32>
    %35 = vector.broadcast %33 : vector<1x128xf32> to vector<64x128xf32>
    %36 = arith.mulf %35, %34 : vector<64x128xf32>
    %37 = arith.addf %32, %36 : vector<64x128xf32>
    %38 = arith.truncf %37 : vector<64x128xf32> to vector<64x128xbf16>
    %c0_12 = arith.constant 0 : index
    %c0_13 = arith.constant 0 : index
    %c0_14 = arith.constant 0 : index
    %c0_15 = arith.constant 0 : index
    %39 = vector.load %arg4[%c0_12, %c0_13, %c0_14, %c0_15] : memref<1x2x128x128xbf16, #tpu.memory_space<vmem>>, vector<1x1x128x128xbf16>
    %40 = vector.shape_cast %39 : vector<1x1x128x128xbf16> to vector<128x128xbf16>
    %cst = arith.constant dense<0.000000e+00> : vector<64x128xf32>
    %41 = tpu.matmul %38, %40, %cst {dimension_numbers = #tpu.dot_dimension_numbers<[1], [0], [0], [1], [0, 0, 1, 1], [], []>} : vector<64x128xbf16>, vector<128x128xbf16>, vector<64x128xf32> -> vector<64x128xf32>
    %42 = vector.extract_strided_slice %3 {offsets = [0, 0], sizes = [1, 128], strides = [1, 1]} : vector<2x128xf32> to vector<1x128xf32>
    %43 = vector.broadcast %42 : vector<1x128xf32> to vector<64x128xf32>
    %44 = arith.addf %41, %43 : vector<64x128xf32>
    %cst_16 = arith.constant 0.000000e+00 : f32
    %45 = vector.broadcast %cst_16 : f32 to vector<64x128xf32>
    %46 = arith.maximumf %44, %45 : vector<64x128xf32>
    %47 = arith.truncf %46 : vector<64x128xf32> to vector<64x128xbf16>
    %c0_17 = arith.constant 0 : index
    %c1 = arith.constant 1 : index
    %c0_18 = arith.constant 0 : index
    %c0_19 = arith.constant 0 : index
    %48 = vector.load %arg4[%c0_17, %c1, %c0_18, %c0_19] : memref<1x2x128x128xbf16, #tpu.memory_space<vmem>>, vector<1x1x128x128xbf16>
    %49 = vector.shape_cast %48 : vector<1x1x128x128xbf16> to vector<128x128xbf16>
    %cst_20 = arith.constant dense<0.000000e+00> : vector<64x128xf32>
    %50 = tpu.matmul %47, %49, %cst_20 {dimension_numbers = #tpu.dot_dimension_numbers<[1], [0], [0], [1], [0, 0, 1, 1], [], []>} : vector<64x128xbf16>, vector<128x128xbf16>, vector<64x128xf32> -> vector<64x128xf32>
    %51 = vector.extract_strided_slice %3 {offsets = [1, 0], sizes = [1, 128], strides = [1, 1]} : vector<2x128xf32> to vector<1x128xf32>
    %52 = vector.broadcast %51 : vector<1x128xf32> to vector<64x128xf32>
    %53 = arith.addf %50, %52 : vector<64x128xf32>
    %cst_21 = arith.constant 0.000000e+00 : f32
    %54 = vector.broadcast %cst_21 : f32 to vector<64x128xf32>
    %55 = arith.maximumf %53, %54 : vector<64x128xf32>
    %56 = arith.truncf %55 : vector<64x128xf32> to vector<64x128xbf16>
    %c0_22 = arith.constant 0 : index
    %c0_23 = arith.constant 0 : index
    %c0_24 = arith.constant 0 : index
    %c0_25 = arith.constant 0 : index
    %57 = vector.load %arg6[%c0_22, %c0_23, %c0_24, %c0_25] : memref<1x4x128x128xbf16, #tpu.memory_space<vmem>>, vector<1x1x128x128xbf16>
    %58 = vector.shape_cast %57 : vector<1x1x128x128xbf16> to vector<128x128xbf16>
    %cst_26 = arith.constant dense<0.000000e+00> : vector<64x128xf32>
    %59 = tpu.matmul %56, %58, %cst_26 {dimension_numbers = #tpu.dot_dimension_numbers<[1], [0], [0], [1], [0, 0, 1, 1], [], []>} : vector<64x128xbf16>, vector<128x128xbf16>, vector<64x128xf32> -> vector<64x128xf32>
    %60 = vector.extract_strided_slice %5 {offsets = [0, 0], sizes = [1, 128], strides = [1, 1]} : vector<4x128xf32> to vector<1x128xf32>
    %61 = vector.broadcast %60 : vector<1x128xf32> to vector<64x128xf32>
    %62 = arith.addf %59, %61 : vector<64x128xf32>
    %63 = arith.truncf %62 : vector<64x128xf32> to vector<64x128xbf16>
    %64 = vector.extract_strided_slice %62 {offsets = [0, 0], sizes = [64, 8], strides = [1, 1]} : vector<64x128xf32> to vector<64x8xf32>
    %65 = vector.extract_strided_slice %5 {offsets = [3, 0], sizes = [1, 8], strides = [1, 1]} : vector<4x128xf32> to vector<1x8xf32>
    %66 = vector.broadcast %65 : vector<1x8xf32> to vector<64x8xf32>
    %67 = arith.mulf %64, %66 : vector<64x8xf32>
    %c0_27 = arith.constant 0 : index
    %c0_28 = arith.constant 0 : index
    %c0_29 = arith.constant 0 : index
    %68 = vector.load %arg3[%c0_27, %c0_28, %c0_29] : memref<1x8x3xf32, #tpu.memory_space<vmem>>, vector<1x8x3xf32>
    %69 = vector.shape_cast %68 : vector<1x8x3xf32> to vector<8x3xf32>
    %70 = vector.extract_strided_slice %69 {offsets = [0, 0], sizes = [8, 1], strides = [1, 1]} : vector<8x3xf32> to vector<8x1xf32>
    %71 = vector.extract_strided_slice %0 {offsets = [3, 0], sizes = [1, 128], strides = [1, 1]} : vector<8x128xf32> to vector<1x128xf32>
    %72 = vector.broadcast %70 : vector<8x1xf32> to vector<8x128xf32>
    %73 = vector.broadcast %71 : vector<1x128xf32> to vector<8x128xf32>
    %74 = arith.mulf %72, %73 : vector<8x128xf32>
    %75 = vector.extract_strided_slice %69 {offsets = [0, 1], sizes = [8, 1], strides = [1, 1]} : vector<8x3xf32> to vector<8x1xf32>
    %76 = vector.extract_strided_slice %0 {offsets = [4, 0], sizes = [1, 128], strides = [1, 1]} : vector<8x128xf32> to vector<1x128xf32>
    %77 = vector.broadcast %75 : vector<8x1xf32> to vector<8x128xf32>
    %78 = vector.broadcast %76 : vector<1x128xf32> to vector<8x128xf32>
    %79 = arith.mulf %77, %78 : vector<8x128xf32>
    %80 = arith.addf %74, %79 : vector<8x128xf32>
    %81 = vector.extract_strided_slice %69 {offsets = [0, 2], sizes = [8, 1], strides = [1, 1]} : vector<8x3xf32> to vector<8x1xf32>
    %82 = vector.extract_strided_slice %0 {offsets = [5, 0], sizes = [1, 128], strides = [1, 1]} : vector<8x128xf32> to vector<1x128xf32>
    %83 = vector.broadcast %81 : vector<8x1xf32> to vector<8x128xf32>
    %84 = vector.broadcast %82 : vector<1x128xf32> to vector<8x128xf32>
    %85 = arith.mulf %83, %84 : vector<8x128xf32>
    %86 = arith.addf %80, %85 : vector<8x128xf32>
    %87 = vector.extract_strided_slice %1 {offsets = [3, 0], sizes = [1, 128], strides = [1, 1]} : vector<6x128xf32> to vector<1x128xf32>
    %88 = vector.broadcast %87 : vector<1x128xf32> to vector<8x128xf32>
    %89 = arith.mulf %88, %86 : vector<8x128xf32>
    %90 = vector.extract_strided_slice %1 {offsets = [4, 0], sizes = [1, 128], strides = [1, 1]} : vector<6x128xf32> to vector<1x128xf32>
    %91 = math.sin %86 : vector<8x128xf32>
    %92 = vector.broadcast %90 : vector<1x128xf32> to vector<8x128xf32>
    %93 = arith.mulf %92, %91 : vector<8x128xf32>
    %94 = arith.addf %89, %93 : vector<8x128xf32>
    %95 = vector.extract_strided_slice %1 {offsets = [5, 0], sizes = [1, 128], strides = [1, 1]} : vector<6x128xf32> to vector<1x128xf32>
    %96 = math.cos %86 : vector<8x128xf32>
    %97 = vector.broadcast %95 : vector<1x128xf32> to vector<8x128xf32>
    %98 = arith.mulf %97, %96 : vector<8x128xf32>
    %99 = arith.addf %94, %98 : vector<8x128xf32>
    %100 = arith.truncf %99 : vector<8x128xf32> to vector<8x128xbf16>
    %c0_30 = arith.constant 0 : index
    %c2 = arith.constant 2 : index
    %c0_31 = arith.constant 0 : index
    %c0_32 = arith.constant 0 : index
    %101 = vector.load %arg6[%c0_30, %c2, %c0_31, %c0_32] : memref<1x4x128x128xbf16, #tpu.memory_space<vmem>>, vector<1x1x128x128xbf16>
    %102 = vector.shape_cast %101 : vector<1x1x128x128xbf16> to vector<128x128xbf16>
    %cst_33 = arith.constant dense<0.000000e+00> : vector<8x128xf32>
    %103 = tpu.matmul %100, %102, %cst_33 {dimension_numbers = #tpu.dot_dimension_numbers<[1], [0], [0], [1], [0, 0, 1, 1], [], []>} : vector<8x128xbf16>, vector<128x128xbf16>, vector<8x128xf32> -> vector<8x128xf32>
    %c0_34 = arith.constant 0 : index
    %c1_35 = arith.constant 1 : index
    %c0_36 = arith.constant 0 : index
    %c0_37 = arith.constant 0 : index
    %104 = vector.load %arg6[%c0_34, %c1_35, %c0_36, %c0_37] : memref<1x4x128x128xbf16, #tpu.memory_space<vmem>>, vector<1x1x128x128xbf16>
    %105 = vector.shape_cast %104 : vector<1x1x128x128xbf16> to vector<128x128xbf16>
    %cst_38 = arith.constant dense<0.000000e+00> : vector<64x128xf32>
    %106 = tpu.matmul %63, %105, %cst_38 {dimension_numbers = #tpu.dot_dimension_numbers<[1], [0], [0], [1], [0, 0, 1, 1], [], []>} : vector<64x128xbf16>, vector<128x128xbf16>, vector<64x128xf32> -> vector<64x128xf32>
    %107 = vector.extract_strided_slice %5 {offsets = [1, 0], sizes = [1, 128], strides = [1, 1]} : vector<4x128xf32> to vector<1x128xf32>
    %108 = vector.broadcast %107 : vector<1x128xf32> to vector<64x128xf32>
    %109 = arith.addf %106, %108 : vector<64x128xf32>
    %110 = vector.shape_cast %109 : vector<64x128xf32> to vector<8x8x128xf32>
    %111 = vector.shape_cast %103 : vector<8x128xf32> to vector<8x1x128xf32>
    %112 = vector.broadcast %111 : vector<8x1x128xf32> to vector<8x8x128xf32>
    %113 = arith.addf %110, %112 : vector<8x8x128xf32>
    %114 = vector.shape_cast %113 : vector<8x8x128xf32> to vector<64x128xf32>
    %cst_39 = arith.constant 0.000000e+00 : f32
    %115 = vector.broadcast %cst_39 : f32 to vector<64x128xf32>
    %116 = arith.maximumf %114, %115 : vector<64x128xf32>
    %117 = arith.truncf %116 : vector<64x128xf32> to vector<64x128xbf16>
    %c0_40 = arith.constant 0 : index
    %c3 = arith.constant 3 : index
    %c0_41 = arith.constant 0 : index
    %c0_42 = arith.constant 0 : index
    %118 = vector.load %arg6[%c0_40, %c3, %c0_41, %c0_42] : memref<1x4x128x128xbf16, #tpu.memory_space<vmem>>, vector<1x1x128x128xbf16>
    %119 = vector.shape_cast %118 : vector<1x1x128x128xbf16> to vector<128x128xbf16>
    %cst_43 = arith.constant dense<0.000000e+00> : vector<64x128xf32>
    %120 = tpu.matmul %117, %119, %cst_43 {dimension_numbers = #tpu.dot_dimension_numbers<[1], [0], [0], [1], [0, 0, 1, 1], [], []>} : vector<64x128xbf16>, vector<128x128xbf16>, vector<64x128xf32> -> vector<64x128xf32>
    %121 = vector.extract_strided_slice %120 {offsets = [0, 0], sizes = [64, 8], strides = [1, 1]} : vector<64x128xf32> to vector<64x8xf32>
    %122 = vector.extract_strided_slice %5 {offsets = [2, 0], sizes = [1, 8], strides = [1, 1]} : vector<4x128xf32> to vector<1x8xf32>
    %123 = vector.broadcast %122 : vector<1x8xf32> to vector<64x8xf32>
    %124 = arith.addf %121, %123 : vector<64x8xf32>
    %125 = arith.addf %124, %67 : vector<64x8xf32>
    %c0_44 = arith.constant 0 : index
    %c0_45 = arith.constant 0 : index
    %c0_46 = arith.constant 0 : index
    %126 = vector.load %arg10[%c0_44, %c0_45, %c0_46] : memref<1x64x8xf32, #tpu.memory_space<vmem>>, vector<1x64x8xf32>
    %127 = vector.shape_cast %126 : vector<1x64x8xf32> to vector<64x8xf32>
    %128 = vector.shape_cast %125 : vector<64x8xf32> to vector<1x64x8xf32>
    tpu.vector_store %arg10[%c0_44, %c0_45, %c0_46], %128 {strides = array<i32>} : memref<1x64x8xf32, #tpu.memory_space<vmem>>, vector<1x64x8xf32>,
    return
  }
  func.func @transform_0(%arg0: i32, %arg1: i32) -> (i32, i32, i32) {
    %c0_i32 = arith.constant 0 : i32
    %c0_i32_0 = arith.constant 0 : i32
    return %arg0, %arg1, %c0_i32 : i32, i32, i32
  }
  func.func @transform_1(%arg0: i32, %arg1: i32) -> (i32, i32, i32) {
    %c0_i32 = arith.constant 0 : i32
    %c0_i32_0 = arith.constant 0 : i32
    return %arg0, %arg1, %c0_i32 : i32, i32, i32
  }
  func.func @transform_2(%arg0: i32, %arg1: i32) -> (i32, i32, i32, i32) {
    %c0_i32 = arith.constant 0 : i32
    %c0_i32_0 = arith.constant 0 : i32
    %c0_i32_1 = arith.constant 0 : i32
    %c0_i32_2 = arith.constant 0 : i32
    return %arg0, %c0_i32, %c0_i32_0, %c0_i32_1 : i32, i32, i32, i32
  }
  func.func @transform_3(%arg0: i32, %arg1: i32) -> (i32, i32, i32) {
    %c0_i32 = arith.constant 0 : i32
    %c0_i32_0 = arith.constant 0 : i32
    %c0_i32_1 = arith.constant 0 : i32
    return %arg0, %c0_i32, %c0_i32_0 : i32, i32, i32
  }
  func.func @transform_4(%arg0: i32, %arg1: i32) -> (i32, i32, i32, i32) {
    %c0_i32 = arith.constant 0 : i32
    %c0_i32_0 = arith.constant 0 : i32
    %c0_i32_1 = arith.constant 0 : i32
    %c0_i32_2 = arith.constant 0 : i32
    return %arg0, %c0_i32, %c0_i32_0, %c0_i32_1 : i32, i32, i32, i32
  }
  func.func @transform_5(%arg0: i32, %arg1: i32) -> (i32, i32, i32) {
    %c0_i32 = arith.constant 0 : i32
    %c0_i32_0 = arith.constant 0 : i32
    %c0_i32_1 = arith.constant 0 : i32
    return %arg0, %c0_i32, %c0_i32_0 : i32, i32, i32
  }
  func.func @transform_6(%arg0: i32, %arg1: i32) -> (i32, i32) {
    %c0_i32 = arith.constant 0 : i32
    %c0_i32_0 = arith.constant 0 : i32
    %c0_i32_1 = arith.constant 0 : i32
    return %c0_i32, %c0_i32_0 : i32, i32
  }
  func.func @transform_7(%arg0: i32, %arg1: i32) -> (i32, i32) {
    %c0_i32 = arith.constant 0 : i32
    %c0_i32_0 = arith.constant 0 : i32
    %c0_i32_1 = arith.constant 0 : i32
    return %c0_i32, %c0_i32_0 : i32, i32
  }
  func.func @transform_8(%arg0: i32, %arg1: i32) -> (i32, i32, i32) {
    %c0_i32 = arith.constant 0 : i32
    %c0_i32_0 = arith.constant 0 : i32
    return %arg0, %arg1, %c0_i32 : i32, i32, i32
  }
}

</mosaic_0001>

<llo_original>
// kernel: _star_forward_chunk.2
$region0: #{_star_forward_chunk.2}
  #allocation0 [shape = 'u32[]', space=smem, size = 0x4, offset = 0x4, fixed_abs, tag = 'smem constant byte address 0x4 - core index']
  #allocation1 [shape = 'u32[72,128]{1,0:T(1,128)}', space=vmem, size = 0x9000, scoped, tag = 'internal scratch']
  %s0 = inlined_call_operand.vmem [shape: f32[1,64,3], index: 0, kind: input, shape index: {}]
  %s1 = inlined_call_operand.vmem [shape: f32[1,8,3], index: 1, kind: input, shape index: {}]
  %s2 = inlined_call_operand.vmem [shape: bf16[1,4,128,128], index: 2, kind: input, shape index: {}]
  %s3 = inlined_call_operand.vmem [shape: f32[1,4,128], index: 3, kind: input, shape index: {}]
  %s4 = inlined_call_operand.vmem [shape: bf16[1,4,128,128], index: 4, kind: input, shape index: {}]
  %s5 = inlined_call_operand.vmem [shape: f32[1,4,128], index: 5, kind: input, shape index: {}]
  %s6 = inlined_call_operand.vmem [shape: f32[8,128], index: 6, kind: input, shape index: {}]
  %s7 = inlined_call_operand.vmem [shape: f32[6,128], index: 7, kind: input, shape index: {}]
  %s8 = inlined_call_operand.vmem [shape: f32[1,64,8], index: 8, kind: output, shape index: {}]
  %s9 = sld [smem:[#allocation0]]
  $region42: #{_star_forward_chunk.2} parent=0
    _
  %s11 = ssub.s32 1, %s9
  %s12 = scalar_select 0, %s11, %s9
  // Predicated region
  $region2: #{_star_forward_chunk.2} parent=0 // pred_check
    _
  $region3: #{_star_forward_chunk.2} parent=0 // pred_check_branch
    %14 = sbr.rel (0) target = $region5
  $region4: #{_star_forward_chunk.2} parent=0 // pred_region
    _
  $region5: #{_star_forward_chunk.2} parent=0 // pred_fallthru
    _
  // Predicated region
  $region6: #{_star_forward_chunk.2} parent=0 // pred_check
    _
  $region7: #{_star_forward_chunk.2} parent=0 // pred_check_branch
    %16 = sbr.rel (0) target = $region9
  $region8: #{_star_forward_chunk.2} parent=0 // pred_region
    _
  $region9: #{_star_forward_chunk.2} parent=0 // pred_fallthru
    _
  // Predicated region
  $region10: #{_star_forward_chunk.2} parent=0 // pred_check
    _
  $region11: #{_star_forward_chunk.2} parent=0 // pred_check_branch
    %18 = sbr.rel (0) target = $region13
  $region12: #{_star_forward_chunk.2} parent=0 // pred_region
    _
  $region13: #{_star_forward_chunk.2} parent=0 // pred_fallthru
    _
  // Predicated region
  $region14: #{_star_forward_chunk.2} parent=0 // pred_check
    _
  $region15: #{_star_forward_chunk.2} parent=0 // pred_check_branch
    %20 = sbr.rel (0) target = $region17
  $region16: #{_star_forward_chunk.2} parent=0 // pred_region
    _
  $region17: #{_star_forward_chunk.2} parent=0 // pred_fallthru
    _
  // Predicated region
  $region18: #{_star_forward_chunk.2} parent=0 // pred_check
    _
  $region19: #{_star_forward_chunk.2} parent=0 // pred_check_branch
    %22 = sbr.rel (0) target = $region21
  $region20: #{_star_forward_chunk.2} parent=0 // pred_region
    _
  $region21: #{_star_forward_chunk.2} parent=0 // pred_fallthru
    _
  // Predicated region
  $region22: #{_star_forward_chunk.2} parent=0 // pred_check
    _
  $region23: #{_star_forward_chunk.2} parent=0 // pred_check_branch
    %24 = sbr.rel (0) target = $region25
  $region24: #{_star_forward_chunk.2} parent=0 // pred_region
    _
  $region25: #{_star_forward_chunk.2} parent=0 // pred_fallthru
    _
  // Predicated region
  $region26: #{_star_forward_chunk.2} parent=0 // pred_check
    _
  $region27: #{_star_forward_chunk.2} parent=0 // pred_check_branch
    %26 = sbr.rel (0) target = $region29
  $region28: #{_star_forward_chunk.2} parent=0 // pred_region
    _
  $region29: #{_star_forward_chunk.2} parent=0 // pred_fallthru
    _
  // Predicated region
  $region30: #{_star_forward_chunk.2} parent=0 // pred_check
    _
  $region31: #{_star_forward_chunk.2} parent=0 // pred_check_branch
    %28 = sbr.rel (0) target = $region33
  $region32: #{_star_forward_chunk.2} parent=0 // pred_region
    _
  $region33: #{_star_forward_chunk.2} parent=0 // pred_fallthru
    _
  %v29 = vld [vmem:[%s6] sm:$0xff]
  %v30 = vld [vmem:[%s7] sm:$0x3f]
  %v31 = vld [vmem:[%s3] sm:$0xf]
  %v32 = vld [vmem:[%s5] sm:$0xf]
  %v33 = vld [vmem:[%s0] sm:$0xff]
  %v34 = vld [vmem:[%s0 + $0x8] sm:$0xff]
  %v35 = vld [vmem:[%s0 + $0x10] sm:$0xff]
  %v36 = vld [vmem:[%s0 + $0x18] sm:$0xff]
  %v37 = vld [vmem:[%s0 + $0x20] sm:$0xff]
  %v38 = vld [vmem:[%s0 + $0x28] sm:$0xff]
  %v39 = vld [vmem:[%s0 + $0x30] sm:$0xff]
  %v40 = vld [vmem:[%s0 + $0x38] sm:$0xff]
  %42 = vset.pattern.permute.xlu0 0
  %43 = vperm.xlu0 %42, %v33
  %v44 = vpop.permute.xlu0 %43
  %47 = vset.pattern.permute.xlu0 0
  %48 = vperm.xlu0 %47, %v34
  %v49 = vpop.permute.xlu0 %48
  %52 = vset.pattern.permute.xlu0 0
  %53 = vperm.xlu0 %52, %v35
  %v54 = vpop.permute.xlu0 %53
  %57 = vset.pattern.permute.xlu0 0
  %58 = vperm.xlu0 %57, %v36
  %v59 = vpop.permute.xlu0 %58
  %62 = vset.pattern.permute.xlu0 0
  %63 = vperm.xlu0 %62, %v37
  %v64 = vpop.permute.xlu0 %63
  %67 = vset.pattern.permute.xlu0 0
  %68 = vperm.xlu0 %67, %v38
  %v69 = vpop.permute.xlu0 %68
  %72 = vset.pattern.permute.xlu0 0
  %73 = vperm.xlu0 %72, %v39
  %v74 = vpop.permute.xlu0 %73
  %77 = vset.pattern.permute.xlu0 0
  %78 = vperm.xlu0 %77, %v40
  %v79 = vpop.permute.xlu0 %78
  %v81 = vperm.slane %v29, 0
  %v82 = vmul.f32 %v44, %v81
  %v83 = vmul.f32 %v49, %v81
  %v84 = vmul.f32 %v54, %v81
  %v85 = vmul.f32 %v59, %v81
  %v86 = vmul.f32 %v64, %v81
  %v87 = vmul.f32 %v69, %v81
  %v88 = vmul.f32 %v74, %v81
  %v89 = vmul.f32 %v79, %v81
  %90 = vset.pattern.permute.xlu0 1
  %91 = vperm.xlu0 %90, %v33
  %v92 = vpop.permute.xlu0 %91
  %94 = vset.pattern.permute.xlu0 1
  %95 = vperm.xlu0 %94, %v34
  %v96 = vpop.permute.xlu0 %95
  %98 = vset.pattern.permute.xlu0 1
  %99 = vperm.xlu0 %98, %v35
  %v100 = vpop.permute.xlu0 %99
  %102 = vset.pattern.permute.xlu0 1
  %103 = vperm.xlu0 %102, %v36
  %v104 = vpop.permute.xlu0 %103
  %106 = vset.pattern.permute.xlu0 1
  %107 = vperm.xlu0 %106, %v37
  %v108 = vpop.permute.xlu0 %107
  %110 = vset.pattern.permute.xlu0 1
  %111 = vperm.xlu0 %110, %v38
  %v112 = vpop.permute.xlu0 %111
  %114 = vset.pattern.permute.xlu0 1
  %115 = vperm.xlu0 %114, %v39
  %v116 = vpop.permute.xlu0 %115
  %118 = vset.pattern.permute.xlu0 1
  %119 = vperm.xlu0 %118, %v40
  %v120 = vpop.permute.xlu0 %119
  %v122 = vperm.slane %v29, 1
  %v123 = vmul.f32 %v92, %v122
  %v124 = vmul.f32 %v96, %v122
  %v125 = vmul.f32 %v100, %v122
  %v126 = vmul.f32 %v104, %v122
  %v127 = vmul.f32 %v108, %v122
  %v128 = vmul.f32 %v112, %v122
  %v129 = vmul.f32 %v116, %v122
  %v130 = vmul.f32 %v120, %v122
  %v131 = vadd.f32 %v82, %v123
  %v132 = vadd.f32 %v83, %v124
  %v133 = vadd.f32 %v84, %v125
  %v134 = vadd.f32 %v85, %v126
  %v135 = vadd.f32 %v86, %v127
  %v136 = vadd.f32 %v87, %v128
  %v137 = vadd.f32 %v88, %v129
  %v138 = vadd.f32 %v89, %v130
  %139 = vset.pattern.permute.xlu0 2
  %140 = vperm.xlu0 %139, %v33
  %v141 = vpop.permute.xlu0 %140
  %143 = vset.pattern.permute.xlu0 2
  %144 = vperm.xlu0 %143, %v34
  %v145 = vpop.permute.xlu0 %144
  %147 = vset.pattern.permute.xlu0 2
  %148 = vperm.xlu0 %147, %v35
  %v149 = vpop.permute.xlu0 %148
  %151 = vset.pattern.permute.xlu0 2
  %152 = vperm.xlu0 %151, %v36
  %v153 = vpop.permute.xlu0 %152
  %155 = vset.pattern.permute.xlu0 2
  %156 = vperm.xlu0 %155, %v37
  %v157 = vpop.permute.xlu0 %156
  %159 = vset.pattern.permute.xlu0 2
  %160 = vperm.xlu0 %159, %v38
  %v161 = vpop.permute.xlu0 %160
  %163 = vset.pattern.permute.xlu0 2
  %164 = vperm.xlu0 %163, %v39
  %v165 = vpop.permute.xlu0 %164
  %167 = vset.pattern.permute.xlu0 2
  %168 = vperm.xlu0 %167, %v40
  %v169 = vpop.permute.xlu0 %168
  %v171 = vperm.slane %v29, 2
  %v172 = vmul.f32 %v141, %v171
  %v173 = vmul.f32 %v145, %v171
  %v174 = vmul.f32 %v149, %v171
  %v175 = vmul.f32 %v153, %v171
  %v176 = vmul.f32 %v157, %v171
  %v177 = vmul.f32 %v161, %v171
  %v178 = vmul.f32 %v165, %v171
  %v179 = vmul.f32 %v169, %v171
  %v180 = vadd.f32 %v131, %v172
  %v181 = vadd.f32 %v132, %v173
  %v182 = vadd.f32 %v133, %v174
  %v183 = vadd.f32 %v134, %v175
  %v184 = vadd.f32 %v135, %v176
  %v185 = vadd.f32 %v136, %v177
  %v186 = vadd.f32 %v137, %v178
  %v187 = vadd.f32 %v138, %v179
  %v188 = vperm.slane %v30, 0
  %v189 = vmul.f32 %v188, %v180
  %v190 = vmul.f32 %v188, %v181
  %v191 = vmul.f32 %v188, %v182
  %v192 = vmul.f32 %v188, %v183
  %v193 = vmul.f32 %v188, %v184
  %v194 = vmul.f32 %v188, %v185
  %v195 = vmul.f32 %v188, %v186
  %v196 = vmul.f32 %v188, %v187
  %v197 = vand.u32 2147483647, %v180
  %vm198 = vcmp.le.f32.partialorder %v197, 0.7853982
  %vm199 = vcmp.lt.s32.totalorder %v180, 0
  %v200 = vand.u32 %v180, 2139095040
  %v201 = vshrl.u32 %v200, 23
  %v202 = vsub.s32 %v201, 127
  %v203 = vand.u32 2147483647, %v180
  %v204 = vand.u32 %v203, 8388607
  %v205 = vor.u32 %v204, 8388608
  %v206 = vsub.s32 0, %v205
  %v207 = vadd.s32 %v202, 1
  %vm208 = vcmp.gt.s32.totalorder %v207, 0
  %v209 = vsel %vm208, %v207, 0
  %v210 = vshrl.u32 %v209, 5
  %v211 = vand.u32 %v209, 31
  %v212 = vsub.s32 32, %v211
  %v213 = vshrl.u32 683565275, %v212
  %v214 = vshll.u32 683565275, %v211
  %v215 = vshrl.u32 2475754826, %v212
  %v216 = vor.u32 %v214, %v215
  %v217 = vshll.u32 2475754826, %v211
  %v218 = vshrl.u32 2131351028, %v212
  %v219 = vor.u32 %v217, %v218
  %v220 = vshll.u32 2131351028, %v211
  %v221 = vshrl.u32 2102212464, %v212
  %v222 = vor.u32 %v220, %v221
  %v223 = vshll.u32 2102212464, %v211
  %v224 = vshrl.u32 920167782, %v212
  %v225 = vor.u32 %v223, %v224
  %v226 = vshll.u32 920167782, %v211
  %v227 = vshrl.u32 1326507024, %v212
  %v228 = vor.u32 %v226, %v227
  %vm229 = vcmp.lt.s32.totalorder %v210, 1
  %vm230 = vcmp.lt.s32.totalorder %v210, 2
  %vm231 = vcmp.lt.s32.totalorder %v210, 3
  %vm232 = vcmp.lt.s32.totalorder %v210, 4
  %v233 = vsel %vm229, %v213, %v216
  %v234 = vsel %vm232, %v222, 2102212464
  %v235 = vsel %vm231, %v219, %v234
  %v236 = vsel %vm230, %v233, %v235
  %v237 = vsel %vm229, %v216, %v219
  %v238 = vsel %vm232, %v225, 920167782
  %v239 = vsel %vm231, %v222, %v238
  %v240 = vsel %vm230, %v237, %v239
  %v241 = vsel %vm229, %v219, %v222
  %v242 = vsel %vm232, %v228, 1326507024
  %v243 = vsel %vm231, %v225, %v242
  %v244 = vsel %vm230, %v241, %v243
  %v245 = vshll.u32 %v205, 8
  %v246 = vand.u32 %v245, 65535
  %v247 = vshrl.u32 %v245, 16
  %v248 = vand.u32 %v244, 65535
  %v249 = vshrl.u32 %v244, 16
  %v250 = vmul.u32 %v246, %v248
  %v251 = vmul.u32 %v246, %v249
  %v252 = vmul.u32 %v247, %v248
  %v253 = vmul.u32 %v247, %v249
  %v254 = vshll.u32 %v251, 16
  %v255 = vshrl.u32 %v251, 16
  %v256 = vshll.u32 %v252, 16
  %v257 = vshrl.u32 %v252, 16
  %vm258 = vc.u32 %v250, %v254
  %v259 = vsel %vm258, 1, 0
  %v260 = vadd.s32 %v250, %v254
  %v261 = vadd.s32 %v253, %v259
  %vm262 = vc.u32 %v260, %v256
  %v263 = vsel %vm262, 1, 0
  %v264 = vadd.s32 %v260, %v256
  %v265 = vadd.s32 %v261, %v263
  %v266 = vadd.s32 %v265, %v255
  %v267 = vadd.s32 %v266, %v257
  %v268 = vand.u32 %v245, 65535
  %v269 = vshrl.u32 %v245, 16
  %v270 = vand.u32 %v240, 65535
  %v271 = vshrl.u32 %v240, 16
  %v272 = vmul.u32 %v268, %v270
  %v273 = vmul.u32 %v268, %v271
  %v274 = vmul.u32 %v269, %v270
  %v275 = vmul.u32 %v269, %v271
  %v276 = vshll.u32 %v273, 16
  %v277 = vshrl.u32 %v273, 16
  %v278 = vshll.u32 %v274, 16
  %v279 = vshrl.u32 %v274, 16
  %vm280 = vc.u32 %v272, %v276
  %v281 = vsel %vm280, 1, 0
  %v282 = vadd.s32 %v272, %v276
  %v283 = vadd.s32 %v275, %v281
  %vm284 = vc.u32 %v282, %v278
  %v285 = vsel %vm284, 1, 0
  %v286 = vadd.s32 %v282, %v278
  %v287 = vadd.s32 %v283, %v285
  %v288 = vadd.s32 %v287, %v277
  %v289 = vadd.s32 %v288, %v279
  %v290 = vmul.u32 %v245, %v236
  %v291 = vadd.s32 %v267, %v286
  %vm292 = vc.u32 %v267, %v286
  %v293 = vadd.s32 %v289, 1
  %v294 = vsel %vm292, %v293, %v289
  %v295 = vadd.s32 %v290, %v294
  %v296 = vadd.s32 %v295, 536870912
  %v297 = vshrl.u32 %v296, 30
  %v298 = vshll.u32 %v297, 30
  %v299 = vsub.s32 %v295, %v298
  %vm300 = vcmp.lt.s32.totalorder %v299, 0
  %v301 = vsub.s32 0, %v299
  %v302 = vsel %vm300, %v301, %v299
  %v303 = vclz %v302
  %v304 = vsub.s32 %v303, 2
  %vm305 = vcmp.gt.s32.totalorder 0, %v304
  %v306 = vsel %vm305, 0, %v304
  %v307 = vsub.s32 32, %v306
  %v308 = vshll.u32 %v299, %v306
  %v309 = vshrl.u32 %v291, %v307
  %v310 = vor.u32 %v308, %v309
  %v311 = vsub.s32 4294967266, %v306
  %v312 = vadd.s32 %v311, 127
  %v313 = vshll.u32 %v312, 23
  %v314 = vor.u32 4788187, %v313
  %v315 = vand.u32 2147483647, %v314
  %v317 = vcvt.s32.f32 %v310
  %v318 = vmul.f32 %v317, %v315
  %v319 = vxor.u32 %v318, 2147483648
  %v320 = vsel %vm199, %v319, %v318
  %v321 = vsub.s32 4, %v297
  %v322 = vsel %vm199, %v321, %v297
  %v323 = vsel %vm198, %v180, %v320
  %v324 = vsel %vm198, 0, %v322
  %v325 = vmul.f32 %v323, %v323
  %v326 = vmul.f32 %v325, -0.001358992
  %v327 = vadd.f32 %v326, 0.041655596
  %v328 = vmul.f32 %v325, %v327
  %v329 = vadd.f32 %v328, -0.4999988
  %v330 = vmul.f32 %v325, %v329
  %v331 = vadd.f32 1.0, %v330
  %v332 = vmul.f32 %v323, %v323
  %v333 = vmul.f32 %v332, -0.00019511016
  %v334 = vadd.f32 %v333, 0.008332121
  %v335 = vmul.f32 %v332, %v334
  %v336 = vadd.f32 %v335, -0.16666654
  %v337 = vmul.f32 %v332, %v336
  %v338 = vadd.f32 %v337, 1.0
  %v339 = vmul.f32 %v338, %v323
  %vm340 = vweird.f32 %v180
  %v341 = vadd.s32 %v324, 3
  %v342 = vand.u32 %v341, 3
  %vm343 = vcmp.lt.s32.totalorder %v342, 2
  %vm344 = vcmp.eq.s32.totalorder %v342, 0
  %v345 = vxor.u32 %v339, 2147483648
  %v346 = vsel %vm344, %v331, %v345
  %vm347 = vcmp.eq.s32.totalorder %v342, 2
  %v348 = vxor.u32 %v331, 2147483648
  %v349 = vsel %vm347, %v348, %v339
  %v350 = vsel %vm343, %v346, %v349
  %v351 = vsel %vm340, nan, %v350
  %v352 = vand.u32 2147483647, %v181
  %vm353 = vcmp.le.f32.partialorder %v352, 0.7853982
  %vm354 = vcmp.lt.s32.totalorder %v181, 0
  %v355 = vand.u32 %v181, 2139095040
  %v356 = vshrl.u32 %v355, 23
  %v357 = vsub.s32 %v356, 127
  %v358 = vand.u32 2147483647, %v181
  %v359 = vand.u32 %v358, 8388607
  %v360 = vor.u32 %v359, 8388608
  %v361 = vsub.s32 0, %v360
  %v362 = vadd.s32 %v357, 1
  %vm363 = vcmp.gt.s32.totalorder %v362, 0
  %v364 = vsel %vm363, %v362, 0
  %v365 = vshrl.u32 %v364, 5
  %v366 = vand.u32 %v364, 31
  %v367 = vsub.s32 32, %v366
  %v368 = vshrl.u32 683565275, %v367
  %v369 = vshll.u32 683565275, %v366
  %v370 = vshrl.u32 2475754826, %v367
  %v371 = vor.u32 %v369, %v370
  %v372 = vshll.u32 2475754826, %v366
  %v373 = vshrl.u32 2131351028, %v367
  %v374 = vor.u32 %v372, %v373
  %v375 = vshll.u32 2131351028, %v366
  %v376 = vshrl.u32 2102212464, %v367
  %v377 = vor.u32 %v375, %v376
  %v378 = vshll.u32 2102212464, %v366
  %v379 = vshrl.u32 920167782, %v367
  %v380 = vor.u32 %v378, %v379
  %v381 = vshll.u32 920167782, %v366
  %v382 = vshrl.u32 1326507024, %v367
  %v383 = vor.u32 %v381, %v382
  %vm384 = vcmp.lt.s32.totalorder %v365, 1
  %vm385 = vcmp.lt.s32.totalorder %v365, 2
  %vm386 = vcmp.lt.s32.totalorder %v365, 3
  %vm387 = vcmp.lt.s32.totalorder %v365, 4
  %v388 = vsel %vm384, %v368, %v371
  %v389 = vsel %vm387, %v377, 2102212464
  %v390 = vsel %vm386, %v374, %v389
  %v391 = vsel %vm385, %v388, %v390
  %v392 = vsel %vm384, %v371, %v374
  %v393 = vsel %vm387, %v380, 920167782
  %v394 = vsel %vm386, %v377, %v393
  %v395 = vsel %vm385, %v392, %v394
  %v396 = vsel %vm384, %v374, %v377
  %v397 = vsel %vm387, %v383, 1326507024
  %v398 = vsel %vm386, %v380, %v397
  %v399 = vsel %vm385, %v396, %v398
  %v400 = vshll.u32 %v360, 8
  %v401 = vand.u32 %v400, 65535
  %v402 = vshrl.u32 %v400, 16
  %v403 = vand.u32 %v399, 65535
  %v404 = vshrl.u32 %v399, 16
  %v405 = vmul.u32 %v401, %v403
  %v406 = vmul.u32 %v401, %v404
  %v407 = vmul.u32 %v402, %v403
  %v408 = vmul.u32 %v402, %v404
  %v409 = vshll.u32 %v406, 16
  %v410 = vshrl.u32 %v406, 16
  %v411 = vshll.u32 %v407, 16
  %v412 = vshrl.u32 %v407, 16
  %vm413 = vc.u32 %v405, %v409
  %v414 = vsel %vm413, 1, 0
  %v415 = vadd.s32 %v405, %v409
  %v416 = vadd.s32 %v408, %v414
  %vm417 = vc.u32 %v415, %v411
  %v418 = vsel %vm417, 1, 0
  %v419 = vadd.s32 %v415, %v411
  %v420 = vadd.s32 %v416, %v418
  %v421 = vadd.s32 %v420, %v410
  %v422 = vadd.s32 %v421, %v412
  %v423 = vand.u32 %v400, 65535
  %v424 = vshrl.u32 %v400, 16
  %v425 = vand.u32 %v395, 65535
  %v426 = vshrl.u32 %v395, 16
  %v427 = vmul.u32 %v423, %v425
  %v428 = vmul.u32 %v423, %v426
  %v429 = vmul.u32 %v424, %v425
  %v430 = vmul.u32 %v424, %v426
  %v431 = vshll.u32 %v428, 16
  %v432 = vshrl.u32 %v428, 16
  %v433 = vshll.u32 %v429, 16
  %v434 = vshrl.u32 %v429, 16
  %vm435 = vc.u32 %v427, %v431
  %v436 = vsel %vm435, 1, 0
  %v437 = vadd.s32 %v427, %v431
  %v438 = vadd.s32 %v430, %v436
  %vm439 = vc.u32 %v437, %v433
  %v440 = vsel %vm439, 1, 0
  %v441 = vadd.s32 %v437, %v433
  %v442 = vadd.s32 %v438, %v440
  %v443 = vadd.s32 %v442, %v432
  %v444 = vadd.s32 %v443, %v434
  %v445 = vmul.u32 %v400, %v391
  %v446 = vadd.s32 %v422, %v441
  %vm447 = vc.u32 %v422, %v441
  %v448 = vadd.s32 %v444, 1
  %v449 = vsel %vm447, %v448, %v444
  %v450 = vadd.s32 %v445, %v449
  %v451 = vadd.s32 %v450, 536870912
  %v452 = vshrl.u32 %v451, 30
  %v453 = vshll.u32 %v452, 30
  %v454 = vsub.s32 %v450, %v453
  %vm455 = vcmp.lt.s32.totalorder %v454, 0
  %v456 = vsub.s32 0, %v454
  %v457 = vsel %vm455, %v456, %v454
  %v458 = vclz %v457
  %v459 = vsub.s32 %v458, 2
  %vm460 = vcmp.gt.s32.totalorder 0, %v459
  %v461 = vsel %vm460, 0, %v459
  %v462 = vsub.s32 32, %v461
  %v463 = vshll.u32 %v454, %v461
  %v464 = vshrl.u32 %v446, %v462
  %v465 = vor.u32 %v463, %v464
  %v466 = vsub.s32 4294967266, %v461
  %v467 = vadd.s32 %v466, 127
  %v468 = vshll.u32 %v467, 23
  %v469 = vor.u32 4788187, %v468
  %v470 = vand.u32 2147483647, %v469
  %v472 = vcvt.s32.f32 %v465
  %v473 = vmul.f32 %v472, %v470
  %v474 = vxor.u32 %v473, 2147483648
  %v475 = vsel %vm354, %v474, %v473
  %v476 = vsub.s32 4, %v452
  %v477 = vsel %vm354, %v476, %v452
  %v478 = vsel %vm353, %v181, %v475
  %v479 = vsel %vm353, 0, %v477
  %v480 = vmul.f32 %v478, %v478
  %v481 = vmul.f32 %v480, -0.001358992
  %v482 = vadd.f32 %v481, 0.041655596
  %v483 = vmul.f32 %v480, %v482
  %v484 = vadd.f32 %v483, -0.4999988
  %v485 = vmul.f32 %v480, %v484
  %v486 = vadd.f32 1.0, %v485
  %v487 = vmul.f32 %v478, %v478
  %v488 = vmul.f32 %v487, -0.00019511016
  %v489 = vadd.f32 %v488, 0.008332121
  %v490 = vmul.f32 %v487, %v489
  %v491 = vadd.f32 %v490, -0.16666654
  %v492 = vmul.f32 %v487, %v491
  %v493 = vadd.f32 %v492, 1.0
  %v494 = vmul.f32 %v493, %v478
  %vm495 = vweird.f32 %v181
  %v496 = vadd.s32 %v479, 3
  %v497 = vand.u32 %v496, 3
  %vm498 = vcmp.lt.s32.totalorder %v497, 2
  %vm499 = vcmp.eq.s32.totalorder %v497, 0
  %v500 = vxor.u32 %v494, 2147483648
  %v501 = vsel %vm499, %v486, %v500
  %vm502 = vcmp.eq.s32.totalorder %v497, 2
  %v503 = vxor.u32 %v486, 2147483648
  %v504 = vsel %vm502, %v503, %v494
  %v505 = vsel %vm498, %v501, %v504
  %v506 = vsel %vm495, nan, %v505
  %v507 = vand.u32 2147483647, %v182
  %vm508 = vcmp.le.f32.partialorder %v507, 0.7853982
  %vm509 = vcmp.lt.s32.totalorder %v182, 0
  %v510 = vand.u32 %v182, 2139095040
  %v511 = vshrl.u32 %v510, 23
  %v512 = vsub.s32 %v511, 127
  %v513 = vand.u32 2147483647, %v182
  %v514 = vand.u32 %v513, 8388607
  %v515 = vor.u32 %v514, 8388608
  %v516 = vsub.s32 0, %v515
  %v517 = vadd.s32 %v512, 1
  %vm518 = vcmp.gt.s32.totalorder %v517, 0
  %v519 = vsel %vm518, %v517, 0
  %v520 = vshrl.u32 %v519, 5
  %v521 = vand.u32 %v519, 31
  %v522 = vsub.s32 32, %v521
  %v523 = vshrl.u32 683565275, %v522
  %v524 = vshll.u32 683565275, %v521
  %v525 = vshrl.u32 2475754826, %v522
  %v526 = vor.u32 %v524, %v525
  %v527 = vshll.u32 2475754826, %v521
  %v528 = vshrl.u32 2131351028, %v522
  %v529 = vor.u32 %v527, %v528
  %v530 = vshll.u32 2131351028, %v521
  %v531 = vshrl.u32 2102212464, %v522
  %v532 = vor.u32 %v530, %v531
  %v533 = vshll.u32 2102212464, %v521
  %v534 = vshrl.u32 920167782, %v522
  %v535 = vor.u32 %v533, %v534
  %v536 = vshll.u32 920167782, %v521
  %v537 = vshrl.u32 1326507024, %v522
  %v538 = vor.u32 %v536, %v537
  %vm539 = vcmp.lt.s32.totalorder %v520, 1
  %vm540 = vcmp.lt.s32.totalorder %v520, 2
  %vm541 = vcmp.lt.s32.totalorder %v520, 3
  %vm542 = vcmp.lt.s32.totalorder %v520, 4
  %v543 = vsel %vm539, %v523, %v526
  %v544 = vsel %vm542, %v532, 2102212464
  %v545 = vsel %vm541, %v529, %v544
  %v546 = vsel %vm540, %v543, %v545
  %v547 = vsel %vm539, %v526, %v529
  %v548 = vsel %vm542, %v535, 920167782
  %v549 = vsel %vm541, %v532, %v548
  %v550 = vsel %vm540, %v547, %v549
  %v551 = vsel %vm539, %v529, %v532
  %v552 = vsel %vm542, %v538, 1326507024
  %v553 = vsel %vm541, %v535, %v552
  %v554 = vsel %vm540, %v551, %v553
  %v555 = vshll.u32 %v515, 8
  %v556 = vand.u32 %v555, 65535
  %v557 = vshrl.u32 %v555, 16
  %v558 = vand.u32 %v554, 65535
  %v559 = vshrl.u32 %v554, 16
  %v560 = vmul.u32 %v556, %v558
  %v561 = vmul.u32 %v556, %v559
  %v562 = vmul.u32 %v557, %v558
  %v563 = vmul.u32 %v557, %v559
  %v564 = vshll.u32 %v561, 16
  %v565 = vshrl.u32 %v561, 16
  %v566 = vshll.u32 %v562, 16
  %v567 = vshrl.u32 %v562, 16
  %vm568 = vc.u32 %v560, %v564
  %v569 = vsel %vm568, 1, 0
  %v570 = vadd.s32 %v560, %v564
  %v571 = vadd.s32 %v563, %v569
  %vm572 = vc.u32 %v570, %v566
  %v573 = vsel %vm572, 1, 0
  %v574 = vadd.s32 %v570, %v566
  %v575 = vadd.s32 %v571, %v573
  %v576 = vadd.s32 %v575, %v565
  %v577 = vadd.s32 %v576, %v567
  %v578 = vand.u32 %v555, 65535
  %v579 = vshrl.u32 %v555, 16
  %v580 = vand.u32 %v550, 65535
  %v581 = vshrl.u32 %v550, 16
  %v582 = vmul.u32 %v578, %v580
  %v583 = vmul.u32 %v578, %v581
  %v584 = vmul.u32 %v579, %v580
  %v585 = vmul.u32 %v579, %v581
  %v586 = vshll.u32 %v583, 16
  %v587 = vshrl.u32 %v583, 16
  %v588 = vshll.u32 %v584, 16
  %v589 = vshrl.u32 %v584, 16
  %vm590 = vc.u32 %v582, %v586
  %v591 = vsel %vm590, 1, 0
  %v592 = vadd.s32 %v582, %v586
  %v593 = vadd.s32 %v585, %v591
  %vm594 = vc.u32 %v592, %v588
  %v595 = vsel %vm594, 1, 0
  %v596 = vadd.s32 %v592, %v588
  %v597 = vadd.s32 %v593, %v595
  %v598 = vadd.s32 %v597, %v587
  %v599 = vadd.s32 %v598, %v589
  %v600 = vmul.u32 %v555, %v546
  %v601 = vadd.s32 %v577, %v596
  %vm602 = vc.u32 %v577, %v596
  %v603 = vadd.s32 %v599, 1
  %v604 = vsel %vm602, %v603, %v599
  %v605 = vadd.s32 %v600, %v604
  %v606 = vadd.s32 %v605, 536870912
  %v607 = vshrl.u32 %v606, 30
  %v608 = vshll.u32 %v607, 30
  %v609 = vsub.s32 %v605, %v608
  %vm610 = vcmp.lt.s32.totalorder %v609, 0
  %v611 = vsub.s32 0, %v609
  %v612 = vsel %vm610, %v611, %v609
  %v613 = vclz %v612
  %v614 = vsub.s32 %v613, 2
  %vm615 = vcmp.gt.s32.totalorder 0, %v614
  %v616 = vsel %vm615, 0, %v614
  %v617 = vsub.s32 32, %v616
  %v618 = vshll.u32 %v609, %v616
  %v619 = vshrl.u32 %v601, %v617
  %v620 = vor.u32 %v618, %v619
  %v621 = vsub.s32 4294967266, %v616
  %v622 = vadd.s32 %v621, 127
  %v623 = vshll.u32 %v622, 23
  %v624 = vor.u32 4788187, %v623
  %v625 = vand.u32 2147483647, %v624
  %v627 = vcvt.s32.f32 %v620
  %v628 = vmul.f32 %v627, %v625
  %v629 = vxor.u32 %v628, 2147483648
  %v630 = vsel %vm509, %v629, %v628
  %v631 = vsub.s32 4, %v607
  %v632 = vsel %vm509, %v631, %v607
  %v633 = vsel %vm508, %v182, %v630
  %v634 = vsel %vm508, 0, %v632
  %v635 = vmul.f32 %v633, %v633
  %v636 = vmul.f32 %v635, -0.001358992
  %v637 = vadd.f32 %v636, 0.041655596
  %v638 = vmul.f32 %v635, %v637
  %v639 = vadd.f32 %v638, -0.4999988
  %v640 = vmul.f32 %v635, %v639
  %v641 = vadd.f32 1.0, %v640
  %v642 = vmul.f32 %v633, %v633
  %v643 = vmul.f32 %v642, -0.00019511016
  %v644 = vadd.f32 %v643, 0.008332121
  %v645 = vmul.f32 %v642, %v644
  %v646 = vadd.f32 %v645, -0.16666654
  %v647 = vmul.f32 %v642, %v646
  %v648 = vadd.f32 %v647, 1.0
  %v649 = vmul.f32 %v648, %v633
  %vm650 = vweird.f32 %v182
  %v651 = vadd.s32 %v634, 3
  %v652 = vand.u32 %v651, 3
  %vm653 = vcmp.lt.s32.totalorder %v652, 2
  %vm654 = vcmp.eq.s32.totalorder %v652, 0
  %v655 = vxor.u32 %v649, 2147483648
  %v656 = vsel %vm654, %v641, %v655
  %vm657 = vcmp.eq.s32.totalorder %v652, 2
  %v658 = vxor.u32 %v641, 2147483648
  %v659 = vsel %vm657, %v658, %v649
  %v660 = vsel %vm653, %v656, %v659
  %v661 = vsel %vm650, nan, %v660
  %v662 = vand.u32 2147483647, %v183
  %vm663 = vcmp.le.f32.partialorder %v662, 0.7853982
  %vm664 = vcmp.lt.s32.totalorder %v183, 0
  %v665 = vand.u32 %v183, 2139095040
  %v666 = vshrl.u32 %v665, 23
  %v667 = vsub.s32 %v666, 127
  %v668 = vand.u32 2147483647, %v183
  %v669 = vand.u32 %v668, 8388607
  %v670 = vor.u32 %v669, 8388608
  %v671 = vsub.s32 0, %v670
  %v672 = vadd.s32 %v667, 1
  %vm673 = vcmp.gt.s32.totalorder %v672, 0
  %v674 = vsel %vm673, %v672, 0
  %v675 = vshrl.u32 %v674, 5
  %v676 = vand.u32 %v674, 31
  %v677 = vsub.s32 32, %v676
  %v678 = vshrl.u32 683565275, %v677
  %v679 = vshll.u32 683565275, %v676
  %v680 = vshrl.u32 2475754826, %v677
  %v681 = vor.u32 %v679, %v680
  %v682 = vshll.u32 2475754826, %v676
  %v683 = vshrl.u32 2131351028, %v677
  %v684 = vor.u32 %v682, %v683
  %v685 = vshll.u32 2131351028, %v676
  %v686 = vshrl.u32 2102212464, %v677
  %v687 = vor.u32 %v685, %v686
  %v688 = vshll.u32 2102212464, %v676
  %v689 = vshrl.u32 920167782, %v677
  %v690 = vor.u32 %v688, %v689
  %v691 = vshll.u32 920167782, %v676
  %v692 = vshrl.u32 1326507024, %v677
  %v693 = vor.u32 %v691, %v692
  %vm694 = vcmp.lt.s32.totalorder %v675, 1
  %vm695 = vcmp.lt.s32.totalorder %v675, 2
  %vm696 = vcmp.lt.s32.totalorder %v675, 3
  %vm697 = vcmp.lt.s32.totalorder %v675, 4
  %v698 = vsel %vm694, %v678, %v681
  %v699 = vsel %vm697, %v687, 2102212464
  %v700 = vsel %vm696, %v684, %v699
  %v701 = vsel %vm695, %v698, %v700
  %v702 = vsel %vm694, %v681, %v684
  %v703 = vsel %vm697, %v690, 920167782
  %v704 = vsel %vm696, %v687, %v703
  %v705 = vsel %vm695, %v702, %v704
  %v706 = vsel %vm694, %v684, %v687
  %v707 = vsel %vm697, %v693, 1326507024
  %v708 = vsel %vm696, %v690, %v707
  %v709 = vsel %vm695, %v706, %v708
  %v710 = vshll.u32 %v670, 8
  %v711 = vand.u32 %v710, 65535
  %v712 = vshrl.u32 %v710, 16
  %v713 = vand.u32 %v709, 65535
  %v714 = vshrl.u32 %v709, 16
  %v715 = vmul.u32 %v711, %v713
  %v716 = vmul.u32 %v711, %v714
  %v717 = vmul.u32 %v712, %v713
  %v718 = vmul.u32 %v712, %v714
  %v719 = vshll.u32 %v716, 16
  %v720 = vshrl.u32 %v716, 16
  %v721 = vshll.u32 %v717, 16
  %v722 = vshrl.u32 %v717, 16
  %vm723 = vc.u32 %v715, %v719
  %v724 = vsel %vm723, 1, 0
  %v725 = vadd.s32 %v715, %v719
  %v726 = vadd.s32 %v718, %v724
  %vm727 = vc.u32 %v725, %v721
  %v728 = vsel %vm727, 1, 0
  %v729 = vadd.s32 %v725, %v721
  %v730 = vadd.s32 %v726, %v728
  %v731 = vadd.s32 %v730, %v720
  %v732 = vadd.s32 %v731, %v722
  %v733 = vand.u32 %v710, 65535
  %v734 = vshrl.u32 %v710, 16
  %v735 = vand.u32 %v705, 65535
  %v736 = vshrl.u32 %v705, 16
  %v737 = vmul.u32 %v733, %v735
  %v738 = vmul.u32 %v733, %v736
  %v739 = vmul.u32 %v734, %v735
  %v740 = vmul.u32 %v734, %v736
  %v741 = vshll.u32 %v738, 16
  %v742 = vshrl.u32 %v738, 16
  %v743 = vshll.u32 %v739, 16
  %v744 = vshrl.u32 %v739, 16
  %vm745 = vc.u32 %v737, %v741
  %v746 = vsel %vm745, 1, 0
  %v747 = vadd.s32 %v737, %v741
  %v748 = vadd.s32 %v740, %v746
  %vm749 = vc.u32 %v747, %v743
  %v750 = vsel %vm749, 1, 0
  %v751 = vadd.s32 %v747, %v743
  %v752 = vadd.s32 %v748, %v750
  %v753 = vadd.s32 %v752, %v742
  %v754 = vadd.s32 %v753, %v744
  %v755 = vmul.u32 %v710, %v701
  %v756 = vadd.s32 %v732, %v751
  %vm757 = vc.u32 %v732, %v751
  %v758 = vadd.s32 %v754, 1
  %v759 = vsel %vm757, %v758, %v754
  %v760 = vadd.s32 %v755, %v759
  %v761 = vadd.s32 %v760, 536870912
  %v762 = vshrl.u32 %v761, 30
  %v763 = vshll.u32 %v762, 30
  %v764 = vsub.s32 %v760, %v763
  %vm765 = vcmp.lt.s32.totalorder %v764, 0
  %v766 = vsub.s32 0, %v764
  %v767 = vsel %vm765, %v766, %v764
  %v768 = vclz %v767
  %v769 = vsub.s32 %v768, 2
  %vm770 = vcmp.gt.s32.totalorder 0, %v769
  %v771 = vsel %vm770, 0, %v769
  %v772 = vsub.s32 32, %v771
  %v773 = vshll.u32 %v764, %v771
  %v774 = vshrl.u32 %v756, %v772
  %v775 = vor.u32 %v773, %v774
  %v776 = vsub.s32 4294967266, %v771
  %v777 = vadd.s32 %v776, 127
  %v778 = vshll.u32 %v777, 23
  %v779 = vor.u32 4788187, %v778
  %v780 = vand.u32 2147483647, %v779
  %v782 = vcvt.s32.f32 %v775
  %v783 = vmul.f32 %v782, %v780
  %v784 = vxor.u32 %v783, 2147483648
  %v785 = vsel %vm664, %v784, %v783
  %v786 = vsub.s32 4, %v762
  %v787 = vsel %vm664, %v786, %v762
  %v788 = vsel %vm663, %v183, %v785
  %v789 = vsel %vm663, 0, %v787
  %v790 = vmul.f32 %v788, %v788
  %v791 = vmul.f32 %v790, -0.001358992
  %v792 = vadd.f32 %v791, 0.041655596
  %v793 = vmul.f32 %v790, %v792
  %v794 = vadd.f32 %v793, -0.4999988
  %v795 = vmul.f32 %v790, %v794
  %v796 = vadd.f32 1.0, %v795
  %v797 = vmul.f32 %v788, %v788
  %v798 = vmul.f32 %v797, -0.00019511016
  %v799 = vadd.f32 %v798, 0.008332121
  %v800 = vmul.f32 %v797, %v799
  %v801 = vadd.f32 %v800, -0.16666654
  %v802 = vmul.f32 %v797, %v801
  %v803 = vadd.f32 %v802, 1.0
  %v804 = vmul.f32 %v803, %v788
  %vm805 = vweird.f32 %v183
  %v806 = vadd.s32 %v789, 3
  %v807 = vand.u32 %v806, 3
  %vm808 = vcmp.lt.s32.totalorder %v807, 2
  %vm809 = vcmp.eq.s32.totalorder %v807, 0
  %v810 = vxor.u32 %v804, 2147483648
  %v811 = vsel %vm809, %v796, %v810
  %vm812 = vcmp.eq.s32.totalorder %v807, 2
  %v813 = vxor.u32 %v796, 2147483648
  %v814 = vsel %vm812, %v813, %v804
  %v815 = vsel %vm808, %v811, %v814
  %v816 = vsel %vm805, nan, %v815
  %v817 = vand.u32 2147483647, %v184
  %vm818 = vcmp.le.f32.partialorder %v817, 0.7853982
  %vm819 = vcmp.lt.s32.totalorder %v184, 0
  %v820 = vand.u32 %v184, 2139095040
  %v821 = vshrl.u32 %v820, 23
  %v822 = vsub.s32 %v821, 127
  %v823 = vand.u32 2147483647, %v184
  %v824 = vand.u32 %v823, 8388607
  %v825 = vor.u32 %v824, 8388608
  %v826 = vsub.s32 0, %v825
  %v827 = vadd.s32 %v822, 1
  %vm828 = vcmp.gt.s32.totalorder %v827, 0
  %v829 = vsel %vm828, %v827, 0
  %v830 = vshrl.u32 %v829, 5
  %v831 = vand.u32 %v829, 31
  %v832 = vsub.s32 32, %v831
  %v833 = vshrl.u32 683565275, %v832
  %v834 = vshll.u32 683565275, %v831
  %v835 = vshrl.u32 2475754826, %v832
  %v836 = vor.u32 %v834, %v835
  %v837 = vshll.u32 2475754826, %v831
  %v838 = vshrl.u32 2131351028, %v832
  %v839 = vor.u32 %v837, %v838
  %v840 = vshll.u32 2131351028, %v831
  %v841 = vshrl.u32 2102212464, %v832
  %v842 = vor.u32 %v840, %v841
  %v843 = vshll.u32 2102212464, %v831
  %v844 = vshrl.u32 920167782, %v832
  %v845 = vor.u32 %v843, %v844
  %v846 = vshll.u32 920167782, %v831
  %v847 = vshrl.u32 1326507024, %v832
  %v848 = vor.u32 %v846, %v847
  %vm849 = vcmp.lt.s32.totalorder %v830, 1
  %vm850 = vcmp.lt.s32.totalorder %v830, 2
  %vm851 = vcmp.lt.s32.totalorder %v830, 3
  %vm852 = vcmp.lt.s32.totalorder %v830, 4
  %v853 = vsel %vm849, %v833, %v836
  %v854 = vsel %vm852, %v842, 2102212464
  %v855 = vsel %vm851, %v839, %v854
  %v856 = vsel %vm850, %v853, %v855
  %v857 = vsel %vm849, %v836, %v839
  %v858 = vsel %vm852, %v845, 920167782
  %v859 = vsel %vm851, %v842, %v858
  %v860 = vsel %vm850, %v857, %v859
  %v861 = vsel %vm849, %v839, %v842
  %v862 = vsel %vm852, %v848, 1326507024
  %v863 = vsel %vm851, %v845, %v862
  %v864 = vsel %vm850, %v861, %v863
  %v865 = vshll.u32 %v825, 8
  %v866 = vand.u32 %v865, 65535
  %v867 = vshrl.u32 %v865, 16
  %v868 = vand.u32 %v864, 65535
  %v869 = vshrl.u32 %v864, 16
  %v870 = vmul.u32 %v866, %v868
  %v871 = vmul.u32 %v866, %v869
  %v872 = vmul.u32 %v867, %v868
  %v873 = vmul.u32 %v867, %v869
  %v874 = vshll.u32 %v871, 16
  %v875 = vshrl.u32 %v871, 16
  %v876 = vshll.u32 %v872, 16
  %v877 = vshrl.u32 %v872, 16
  %vm878 = vc.u32 %v870, %v874
  %v879 = vsel %vm878, 1, 0
  %v880 = vadd.s32 %v870, %v874
  %v881 = vadd.s32 %v873, %v879
  %vm882 = vc.u32 %v880, %v876
  %v883 = vsel %vm882, 1, 0
  %v884 = vadd.s32 %v880, %v876
  %v885 = vadd.s32 %v881, %v883
  %v886 = vadd.s32 %v885, %v875
  %v887 = vadd.s32 %v886, %v877
  %v888 = vand.u32 %v865, 65535
  %v889 = vshrl.u32 %v865, 16
  %v890 = vand.u32 %v860, 65535
  %v891 = vshrl.u32 %v860, 16
  %v892 = vmul.u32 %v888, %v890
  %v893 = vmul.u32 %v888, %v891
  %v894 = vmul.u32 %v889, %v890
  %v895 = vmul.u32 %v889, %v891
  %v896 = vshll.u32 %v893, 16
  %v897 = vshrl.u32 %v893, 16
  %v898 = vshll.u32 %v894, 16
  %v899 = vshrl.u32 %v894, 16
  %vm900 = vc.u32 %v892, %v896
  %v901 = vsel %vm900, 1, 0
  %v902 = vadd.s32 %v892, %v896
  %v903 = vadd.s32 %v895, %v901
  %vm904 = vc.u32 %v902, %v898
  %v905 = vsel %vm904, 1, 0
  %v906 = vadd.s32 %v902, %v898
  %v907 = vadd.s32 %v903, %v905
  %v908 = vadd.s32 %v907, %v897
  %v909 = vadd.s32 %v908, %v899
  %v910 = vmul.u32 %v865, %v856
  %v911 = vadd.s32 %v887, %v906
  %vm912 = vc.u32 %v887, %v906
  %v913 = vadd.s32 %v909, 1
  %v914 = vsel %vm912, %v913, %v909
  %v915 = vadd.s32 %v910, %v914
  %v916 = vadd.s32 %v915, 536870912
  %v917 = vshrl.u32 %v916, 30
  %v918 = vshll.u32 %v917, 30
  %v919 = vsub.s32 %v915, %v918
  %vm920 = vcmp.lt.s32.totalorder %v919, 0
  %v921 = vsub.s32 0, %v919
  %v922 = vsel %vm920, %v921, %v919
  %v923 = vclz %v922
  %v924 = vsub.s32 %v923, 2
  %vm925 = vcmp.gt.s32.totalorder 0, %v924
  %v926 = vsel %vm925, 0, %v924
  %v927 = vsub.s32 32, %v926
  %v928 = vshll.u32 %v919, %v926
  %v929 = vshrl.u32 %v911, %v927
  %v930 = vor.u32 %v928, %v929
  %v931 = vsub.s32 4294967266, %v926
  %v932 = vadd.s32 %v931, 127
  %v933 = vshll.u32 %v932, 23
  %v934 = vor.u32 4788187, %v933
  %v935 = vand.u32 2147483647, %v934
  %v937 = vcvt.s32.f32 %v930
  %v938 = vmul.f32 %v937, %v935
  %v939 = vxor.u32 %v938, 2147483648
  %v940 = vsel %vm819, %v939, %v938
  %v941 = vsub.s32 4, %v917
  %v942 = vsel %vm819, %v941, %v917
  %v943 = vsel %vm818, %v184, %v940
  %v944 = vsel %vm818, 0, %v942
  %v945 = vmul.f32 %v943, %v943
  %v946 = vmul.f32 %v945, -0.001358992
  %v947 = vadd.f32 %v946, 0.041655596
  %v948 = vmul.f32 %v945, %v947
  %v949 = vadd.f32 %v948, -0.4999988
  %v950 = vmul.f32 %v945, %v949
  %v951 = vadd.f32 1.0, %v950
  %v952 = vmul.f32 %v943, %v943
  %v953 = vmul.f32 %v952, -0.00019511016
  %v954 = vadd.f32 %v953, 0.008332121
  %v955 = vmul.f32 %v952, %v954
  %v956 = vadd.f32 %v955, -0.16666654
  %v957 = vmul.f32 %v952, %v956
  %v958 = vadd.f32 %v957, 1.0
  %v959 = vmul.f32 %v958, %v943
  %vm960 = vweird.f32 %v184
  %v961 = vadd.s32 %v944, 3
  %v962 = vand.u32 %v961, 3
  %vm963 = vcmp.lt.s32.totalorder %v962, 2
  %vm964 = vcmp.eq.s32.totalorder %v962, 0
  %v965 = vxor.u32 %v959, 2147483648
  %v966 = vsel %vm964, %v951, %v965
  %vm967 = vcmp.eq.s32.totalorder %v962, 2
  %v968 = vxor.u32 %v951, 2147483648
  %v969 = vsel %vm967, %v968, %v959
  %v970 = vsel %vm963, %v966, %v969
  %v971 = vsel %vm960, nan, %v970
  %v972 = vand.u32 2147483647, %v185
  %vm973 = vcmp.le.f32.partialorder %v972, 0.7853982
  %vm974 = vcmp.lt.s32.totalorder %v185, 0
  %v975 = vand.u32 %v185, 2139095040
  %v976 = vshrl.u32 %v975, 23
  %v977 = vsub.s32 %v976, 127
  %v978 = vand.u32 2147483647, %v185
  %v979 = vand.u32 %v978, 8388607
  %v980 = vor.u32 %v979, 8388608
  %v981 = vsub.s32 0, %v980
  %v982 = vadd.s32 %v977, 1
  %vm983 = vcmp.gt.s32.totalorder %v982, 0
  %v984 = vsel %vm983, %v982, 0
  %v985 = vshrl.u32 %v984, 5
  %v986 = vand.u32 %v984, 31
  %v987 = vsub.s32 32, %v986
  %v988 = vshrl.u32 683565275, %v987
  %v989 = vshll.u32 683565275, %v986
  %v990 = vshrl.u32 2475754826, %v987
  %v991 = vor.u32 %v989, %v990
  %v992 = vshll.u32 2475754826, %v986
  %v993 = vshrl.u32 2131351028, %v987
  %v994 = vor.u32 %v992, %v993
  %v995 = vshll.u32 2131351028, %v986
  %v996 = vshrl.u32 2102212464, %v987
  %v997 = vor.u32 %v995, %v996
  %v998 = vshll.u32 2102212464, %v986
  %v999 = vshrl.u32 920167782, %v987
  %v1000 = vor.u32 %v998, %v999
  %v1001 = vshll.u32 920167782, %v986
  %v1002 = vshrl.u32 1326507024, %v987
  %v1003 = vor.u32 %v1001, %v1002
  %vm1004 = vcmp.lt.s32.totalorder %v985, 1
  %vm1005 = vcmp.lt.s32.totalorder %v985, 2
  %vm1006 = vcmp.lt.s32.totalorder %v985, 3
  %vm1007 = vcmp.lt.s32.totalorder %v985, 4
  %v1008 = vsel %vm1004, %v988, %v991
  %v1009 = vsel %vm1007, %v997, 2102212464
  %v1010 = vsel %vm1006, %v994, %v1009
  %v1011 = vsel %vm1005, %v1008, %v1010
  %v1012 = vsel %vm1004, %v991, %v994
  %v1013 = vsel %vm1007, %v1000, 920167782
  %v1014 = vsel %vm1006, %v997, %v1013
  %v1015 = vsel %vm1005, %v1012, %v1014
  %v1016 = vsel %vm1004, %v994, %v997
  %v1017 = vsel %vm1007, %v1003, 1326507024
  %v1018 = vsel %vm1006, %v1000, %v1017
  %v1019 = vsel %vm1005, %v1016, %v1018
  %v1020 = vshll.u32 %v980, 8
  %v1021 = vand.u32 %v1020, 65535
  %v1022 = vshrl.u32 %v1020, 16
  %v1023 = vand.u32 %v1019, 65535
  %v1024 = vshrl.u32 %v1019, 16
  %v1025 = vmul.u32 %v1021, %v1023
  %v1026 = vmul.u32 %v1021, %v1024
  %v1027 = vmul.u32 %v1022, %v1023
  %v1028 = vmul.u32 %v1022, %v1024
  %v1029 = vshll.u32 %v1026, 16
  %v1030 = vshrl.u32 %v1026, 16
  %v1031 = vshll.u32 %v1027, 16
  %v1032 = vshrl.u32 %v1027, 16
  %vm1033 = vc.u32 %v1025, %v1029
  %v1034 = vsel %vm1033, 1, 0
  %v1035 = vadd.s32 %v1025, %v1029
  %v1036 = vadd.s32 %v1028, %v1034
  %vm1037 = vc.u32 %v1035, %v1031
  %v1038 = vsel %vm1037, 1, 0
  %v1039 = vadd.s32 %v1035, %v1031
  %v1040 = vadd.s32 %v1036, %v1038
  %v1041 = vadd.s32 %v1040, %v1030
  %v1042 = vadd.s32 %v1041, %v1032
  %v1043 = vand.u32 %v1020, 65535
  %v1044 = vshrl.u32 %v1020, 16
  %v1045 = vand.u32 %v1015, 65535
  %v1046 = vshrl.u32 %v1015, 16
  %v1047 = vmul.u32 %v1043, %v1045
  %v1048 = vmul.u32 %v1043, %v1046
  %v1049 = vmul.u32 %v1044, %v1045
  %v1050 = vmul.u32 %v1044, %v1046
  %v1051 = vshll.u32 %v1048, 16
  %v1052 = vshrl.u32 %v1048, 16
  %v1053 = vshll.u32 %v1049, 16
  %v1054 = vshrl.u32 %v1049, 16
  %vm1055 = vc.u32 %v1047, %v1051
  %v1056 = vsel %vm1055, 1, 0
  %v1057 = vadd.s32 %v1047, %v1051
  %v1058 = vadd.s32 %v1050, %v1056
  %vm1059 = vc.u32 %v1057, %v1053
  %v1060 = vsel %vm1059, 1, 0
  %v1061 = vadd.s32 %v1057, %v1053
  %v1062 = vadd.s32 %v1058, %v1060
  %v1063 = vadd.s32 %v1062, %v1052
  %v1064 = vadd.s32 %v1063, %v1054
  %v1065 = vmul.u32 %v1020, %v1011
  %v1066 = vadd.s32 %v1042, %v1061
  %vm1067 = vc.u32 %v1042, %v1061
  %v1068 = vadd.s32 %v1064, 1
  %v1069 = vsel %vm1067, %v1068, %v1064
  %v1070 = vadd.s32 %v1065, %v1069
  %v1071 = vadd.s32 %v1070, 536870912
  %v1072 = vshrl.u32 %v1071, 30
  %v1073 = vshll.u32 %v1072, 30
  %v1074 = vsub.s32 %v1070, %v1073
  %vm1075 = vcmp.lt.s32.totalorder %v1074, 0
  %v1076 = vsub.s32 0, %v1074
  %v1077 = vsel %vm1075, %v1076, %v1074
  %v1078 = vclz %v1077
  %v1079 = vsub.s32 %v1078, 2
  %vm1080 = vcmp.gt.s32.totalorder 0, %v1079
  %v1081 = vsel %vm1080, 0, %v1079
  %v1082 = vsub.s32 32, %v1081
  %v1083 = vshll.u32 %v1074, %v1081
  %v1084 = vshrl.u32 %v1066, %v1082
  %v1085 = vor.u32 %v1083, %v1084
  %v1086 = vsub.s32 4294967266, %v1081
  %v1087 = vadd.s32 %v1086, 127
  %v1088 = vshll.u32 %v1087, 23
  %v1089 = vor.u32 4788187, %v1088
  %v1090 = vand.u32 2147483647, %v1089
  %v1092 = vcvt.s32.f32 %v1085
  %v1093 = vmul.f32 %v1092, %v1090
  %v1094 = vxor.u32 %v1093, 2147483648
  %v1095 = vsel %vm974, %v1094, %v1093
  %v1096 = vsub.s32 4, %v1072
  %v1097 = vsel %vm974, %v1096, %v1072
  %v1098 = vsel %vm973, %v185, %v1095
  %v1099 = vsel %vm973, 0, %v1097
  %v1100 = vmul.f32 %v1098, %v1098
  %v1101 = vmul.f32 %v1100, -0.001358992
  %v1102 = vadd.f32 %v1101, 0.041655596
  %v1103 = vmul.f32 %v1100, %v1102
  %v1104 = vadd.f32 %v1103, -0.4999988
  %v1105 = vmul.f32 %v1100, %v1104
  %v1106 = vadd.f32 1.0, %v1105
  %v1107 = vmul.f32 %v1098, %v1098
  %v1108 = vmul.f32 %v1107, -0.00019511016
  %v1109 = vadd.f32 %v1108, 0.008332121
  %v1110 = vmul.f32 %v1107, %v1109
  %v1111 = vadd.f32 %v1110, -0.16666654
  %v1112 = vmul.f32 %v1107, %v1111
  %v1113 = vadd.f32 %v1112, 1.0
  %v1114 = vmul.f32 %v1113, %v1098
  %vm1115 = vweird.f32 %v185
  %v1116 = vadd.s32 %v1099, 3
  %v1117 = vand.u32 %v1116, 3
  %vm1118 = vcmp.lt.s32.totalorder %v1117, 2
  %vm1119 = vcmp.eq.s32.totalorder %v1117, 0
  %v1120 = vxor.u32 %v1114, 2147483648
  %v1121 = vsel %vm1119, %v1106, %v1120
  %vm1122 = vcmp.eq.s32.totalorder %v1117, 2
  %v1123 = vxor.u32 %v1106, 2147483648
  %v1124 = vsel %vm1122, %v1123, %v1114
  %v1125 = vsel %vm1118, %v1121, %v1124
  %v1126 = vsel %vm1115, nan, %v1125
  %v1127 = vand.u32 2147483647, %v186
  %vm1128 = vcmp.le.f32.partialorder %v1127, 0.7853982
  %vm1129 = vcmp.lt.s32.totalorder %v186, 0
  %v1130 = vand.u32 %v186, 2139095040
  %v1131 = vshrl.u32 %v1130, 23
  %v1132 = vsub.s32 %v1131, 127
  %v1133 = vand.u32 2147483647, %v186
  %v1134 = vand.u32 %v1133, 8388607
  %v1135 = vor.u32 %v1134, 8388608
  %v1136 = vsub.s32 0, %v1135
  %v1137 = vadd.s32 %v1132, 1
  %vm1138 = vcmp.gt.s32.totalorder %v1137, 0
  %v1139 = vsel %vm1138, %v1137, 0
  %v1140 = vshrl.u32 %v1139, 5
  %v1141 = vand.u32 %v1139, 31
  %v1142 = vsub.s32 32, %v1141
  %v1143 = vshrl.u32 683565275, %v1142
  %v1144 = vshll.u32 683565275, %v1141
  %v1145 = vshrl.u32 2475754826, %v1142
  %v1146 = vor.u32 %v1144, %v1145
  %v1147 = vshll.u32 2475754826, %v1141
  %v1148 = vshrl.u32 2131351028, %v1142
  %v1149 = vor.u32 %v1147, %v1148
  %v1150 = vshll.u32 2131351028, %v1141
  %v1151 = vshrl.u32 2102212464, %v1142
  %v1152 = vor.u32 %v1150, %v1151
  %v1153 = vshll.u32 2102212464, %v1141
  %v1154 = vshrl.u32 920167782, %v1142
  %v1155 = vor.u32 %v1153, %v1154
  %v1156 = vshll.u32 920167782, %v1141
  %v1157 = vshrl.u32 1326507024, %v1142
  %v1158 = vor.u32 %v1156, %v1157
  %vm1159 = vcmp.lt.s32.totalorder %v1140, 1
  %vm1160 = vcmp.lt.s32.totalorder %v1140, 2
  %vm1161 = vcmp.lt.s32.totalorder %v1140, 3
  %vm1162 = vcmp.lt.s32.totalorder %v1140, 4
  %v1163 = vsel %vm1159, %v1143, %v1146
  %v1164 = vsel %vm1162, %v1152, 2102212464
  %v1165 = vsel %vm1161, %v1149, %v1164
  %v1166 = vsel %vm1160, %v1163, %v1165
  %v1167 = vsel %vm1159, %v1146, %v1149
  %v1168 = vsel %vm1162, %v1155, 920167782
  %v1169 = vsel %vm1161, %v1152, %v1168
  %v1170 = vsel %vm1160, %v1167, %v1169
  %v1171 = vsel %vm1159, %v1149, %v1152
  %v1172 = vsel %vm1162, %v1158, 1326507024
  %v1173 = vsel %vm1161, %v1155, %v1172
  %v1174 = vsel %vm1160, %v1171, %v1173
  %v1175 = vshll.u32 %v1135, 8
  %v1176 = vand.u32 %v1175, 65535
  %v1177 = vshrl.u32 %v1175, 16
  %v1178 = vand.u32 %v1174, 65535
  %v1179 = vshrl.u32 %v1174, 16
  %v1180 = vmul.u32 %v1176, %v1178
  %v1181 = vmul.u32 %v1176, %v1179
  %v1182 = vmul.u32 %v1177, %v1178
  %v1183 = vmul.u32 %v1177, %v1179
  %v1184 = vshll.u32 %v1181, 16
  %v1185 = vshrl.u32 %v1181, 16
  %v1186 = vshll.u32 %v1182, 16
  %v1187 = vshrl.u32 %v1182, 16
  %vm1188 = vc.u32 %v1180, %v1184
  %v1189 = vsel %vm1188, 1, 0
  %v1190 = vadd.s32 %v1180, %v1184
  %v1191 = vadd.s32 %v1183, %v1189
  %vm1192 = vc.u32 %v1190, %v1186
  %v1193 = vsel %vm1192, 1, 0
  %v1194 = vadd.s32 %v1190, %v1186
  %v1195 = vadd.s32 %v1191, %v1193
  %v1196 = vadd.s32 %v1195, %v1185
  %v1197 = vadd.s32 %v1196, %v1187
  %v1198 = vand.u32 %v1175, 65535
  %v1199 = vshrl.u32 %v1175, 16
  %v1200 = vand.u32 %v1170, 65535
  %v1201 = vshrl.u32 %v1170, 16
  %v1202 = vmul.u32 %v1198, %v1200
  %v1203 = vmul.u32 %v1198, %v1201
  %v1204 = vmul.u32 %v1199, %v1200
  %v1205 = vmul.u32 %v1199, %v1201
  %v1206 = vshll.u32 %v1203, 16
  %v1207 = vshrl.u32 %v1203, 16
  %v1208 = vshll.u32 %v1204, 16
  %v1209 = vshrl.u32 %v1204, 16
  %vm1210 = vc.u32 %v1202, %v1206
  %v1211 = vsel %vm1210, 1, 0
  %v1212 = vadd.s32 %v1202, %v1206
  %v1213 = vadd.s32 %v1205, %v1211
  %vm1214 = vc.u32 %v1212, %v1208
  %v1215 = vsel %vm1214, 1, 0
  %v1216 = vadd.s32 %v1212, %v1208
  %v1217 = vadd.s32 %v1213, %v1215
  %v1218 = vadd.s32 %v1217, %v1207
  %v1219 = vadd.s32 %v1218, %v1209
  %v1220 = vmul.u32 %v1175, %v1166
  %v1221 = vadd.s32 %v1197, %v1216
  %vm1222 = vc.u32 %v1197, %v1216
  %v1223 = vadd.s32 %v1219, 1
  %v1224 = vsel %vm1222, %v1223, %v1219
  %v1225 = vadd.s32 %v1220, %v1224
  %v1226 = vadd.s32 %v1225, 536870912
  %v1227 = vshrl.u32 %v1226, 30
  %v1228 = vshll.u32 %v1227, 30
  %v1229 = vsub.s32 %v1225, %v1228
  %vm1230 = vcmp.lt.s32.totalorder %v1229, 0
  %v1231 = vsub.s32 0, %v1229
  %v1232 = vsel %vm1230, %v1231, %v1229
  %v1233 = vclz %v1232
  %v1234 = vsub.s32 %v1233, 2
  %vm1235 = vcmp.gt.s32.totalorder 0, %v1234
  %v1236 = vsel %vm1235, 0, %v1234
  %v1237 = vsub.s32 32, %v1236
  %v1238 = vshll.u32 %v1229, %v1236
  %v1239 = vshrl.u32 %v1221, %v1237
  %v1240 = vor.u32 %v1238, %v1239
  %v1241 = vsub.s32 4294967266, %v1236
  %v1242 = vadd.s32 %v1241, 127
  %v1243 = vshll.u32 %v1242, 23
  %v1244 = vor.u32 4788187, %v1243
  %v1245 = vand.u32 2147483647, %v1244
  %v1247 = vcvt.s32.f32 %v1240
  %v1248 = vmul.f32 %v1247, %v1245
  %v1249 = vxor.u32 %v1248, 2147483648
  %v1250 = vsel %vm1129, %v1249, %v1248
  %v1251 = vsub.s32 4, %v1227
  %v1252 = vsel %vm1129, %v1251, %v1227
  %v1253 = vsel %vm1128, %v186, %v1250
  %v1254 = vsel %vm1128, 0, %v1252
  %v1255 = vmul.f32 %v1253, %v1253
  %v1256 = vmul.f32 %v1255, -0.001358992
  %v1257 = vadd.f32 %v1256, 0.041655596
  %v1258 = vmul.f32 %v1255, %v1257
  %v1259 = vadd.f32 %v1258, -0.4999988
  %v1260 = vmul.f32 %v1255, %v1259
  %v1261 = vadd.f32 1.0, %v1260
  %v1262 = vmul.f32 %v1253, %v1253
  %v1263 = vmul.f32 %v1262, -0.00019511016
  %v1264 = vadd.f32 %v1263, 0.008332121
  %v1265 = vmul.f32 %v1262, %v1264
  %v1266 = vadd.f32 %v1265, -0.16666654
  %v1267 = vmul.f32 %v1262, %v1266
  %v1268 = vadd.f32 %v1267, 1.0
  %v1269 = vmul.f32 %v1268, %v1253
  %vm1270 = vweird.f32 %v186
  %v1271 = vadd.s32 %v1254, 3
  %v1272 = vand.u32 %v1271, 3
  %vm1273 = vcmp.lt.s32.totalorder %v1272, 2
  %vm1274 = vcmp.eq.s32.totalorder %v1272, 0
  %v1275 = vxor.u32 %v1269, 2147483648
  %v1276 = vsel %vm1274, %v1261, %v1275
  %vm1277 = vcmp.eq.s32.totalorder %v1272, 2
  %v1278 = vxor.u32 %v1261, 2147483648
  %v1279 = vsel %vm1277, %v1278, %v1269
  %v1280 = vsel %vm1273, %v1276, %v1279
  %v1281 = vsel %vm1270, nan, %v1280
  %v1282 = vand.u32 2147483647, %v187
  %vm1283 = vcmp.le.f32.partialorder %v1282, 0.7853982
  %vm1284 = vcmp.lt.s32.totalorder %v187, 0
  %v1285 = vand.u32 %v187, 2139095040
  %v1286 = vshrl.u32 %v1285, 23
  %v1287 = vsub.s32 %v1286, 127
  %v1288 = vand.u32 2147483647, %v187
  %v1289 = vand.u32 %v1288, 8388607
  %v1290 = vor.u32 %v1289, 8388608
  %v1291 = vsub.s32 0, %v1290
  %v1292 = vadd.s32 %v1287, 1
  %vm1293 = vcmp.gt.s32.totalorder %v1292, 0
  %v1294 = vsel %vm1293, %v1292, 0
  %v1295 = vshrl.u32 %v1294, 5
  %v1296 = vand.u32 %v1294, 31
  %v1297 = vsub.s32 32, %v1296
  %v1298 = vshrl.u32 683565275, %v1297
  %v1299 = vshll.u32 683565275, %v1296
  %v1300 = vshrl.u32 2475754826, %v1297
  %v1301 = vor.u32 %v1299, %v1300
  %v1302 = vshll.u32 2475754826, %v1296
  %v1303 = vshrl.u32 2131351028, %v1297
  %v1304 = vor.u32 %v1302, %v1303
  %v1305 = vshll.u32 2131351028, %v1296
  %v1306 = vshrl.u32 2102212464, %v1297
  %v1307 = vor.u32 %v1305, %v1306
  %v1308 = vshll.u32 2102212464, %v1296
  %v1309 = vshrl.u32 920167782, %v1297
  %v1310 = vor.u32 %v1308, %v1309
  %v1311 = vshll.u32 920167782, %v1296
  %v1312 = vshrl.u32 1326507024, %v1297
  %v1313 = vor.u32 %v1311, %v1312
  %vm1314 = vcmp.lt.s32.totalorder %v1295, 1
  %vm1315 = vcmp.lt.s32.totalorder %v1295, 2
  %vm1316 = vcmp.lt.s32.totalorder %v1295, 3
  %vm1317 = vcmp.lt.s32.totalorder %v1295, 4
  %v1318 = vsel %vm1314, %v1298, %v1301
  %v1319 = vsel %vm1317, %v1307, 2102212464
  %v1320 = vsel %vm1316, %v1304, %v1319
  %v1321 = vsel %vm1315, %v1318, %v1320
  %v1322 = vsel %vm1314, %v1301, %v1304
  %v1323 = vsel %vm1317, %v1310, 920167782
  %v1324 = vsel %vm1316, %v1307, %v1323
  %v1325 = vsel %vm1315, %v1322, %v1324
  %v1326 = vsel %vm1314, %v1304, %v1307
  %v1327 = vsel %vm1317, %v1313, 1326507024
  %v1328 = vsel %vm1316, %v1310, %v1327
  %v1329 = vsel %vm1315, %v1326, %v1328
  %v1330 = vshll.u32 %v1290, 8
  %v1331 = vand.u32 %v1330, 65535
  %v1332 = vshrl.u32 %v1330, 16
  %v1333 = vand.u32 %v1329, 65535
  %v1334 = vshrl.u32 %v1329, 16
  %v1335 = vmul.u32 %v1331, %v1333
  %v1336 = vmul.u32 %v1331, %v1334
  %v1337 = vmul.u32 %v1332, %v1333
  %v1338 = vmul.u32 %v1332, %v1334
  %v1339 = vshll.u32 %v1336, 16
  %v1340 = vshrl.u32 %v1336, 16
  %v1341 = vshll.u32 %v1337, 16
  %v1342 = vshrl.u32 %v1337, 16
  %vm1343 = vc.u32 %v1335, %v1339
  %v1344 = vsel %vm1343, 1, 0
  %v1345 = vadd.s32 %v1335, %v1339
  %v1346 = vadd.s32 %v1338, %v1344
  %vm1347 = vc.u32 %v1345, %v1341
  %v1348 = vsel %vm1347, 1, 0
  %v1349 = vadd.s32 %v1345, %v1341
  %v1350 = vadd.s32 %v1346, %v1348
  %v1351 = vadd.s32 %v1350, %v1340
  %v1352 = vadd.s32 %v1351, %v1342
  %v1353 = vand.u32 %v1330, 65535
  %v1354 = vshrl.u32 %v1330, 16
  %v1355 = vand.u32 %v1325, 65535
  %v1356 = vshrl.u32 %v1325, 16
  %v1357 = vmul.u32 %v1353, %v1355
  %v1358 = vmul.u32 %v1353, %v1356
  %v1359 = vmul.u32 %v1354, %v1355
  %v1360 = vmul.u32 %v1354, %v1356
  %v1361 = vshll.u32 %v1358, 16
  %v1362 = vshrl.u32 %v1358, 16
  %v1363 = vshll.u32 %v1359, 16
  %v1364 = vshrl.u32 %v1359, 16
  %vm1365 = vc.u32 %v1357, %v1361
  %v1366 = vsel %vm1365, 1, 0
  %v1367 = vadd.s32 %v1357, %v1361
  %v1368 = vadd.s32 %v1360, %v1366
  %vm1369 = vc.u32 %v1367, %v1363
  %v1370 = vsel %vm1369, 1, 0
  %v1371 = vadd.s32 %v1367, %v1363
  %v1372 = vadd.s32 %v1368, %v1370
  %v1373 = vadd.s32 %v1372, %v1362
  %v1374 = vadd.s32 %v1373, %v1364
  %v1375 = vmul.u32 %v1330, %v1321
  %v1376 = vadd.s32 %v1352, %v1371
  %vm1377 = vc.u32 %v1352, %v1371
  %v1378 = vadd.s32 %v1374, 1
  %v1379 = vsel %vm1377, %v1378, %v1374
  %v1380 = vadd.s32 %v1375, %v1379
  %v1381 = vadd.s32 %v1380, 536870912
  %v1382 = vshrl.u32 %v1381, 30
  %v1383 = vshll.u32 %v1382, 30
  %v1384 = vsub.s32 %v1380, %v1383
  %vm1385 = vcmp.lt.s32.totalorder %v1384, 0
  %v1386 = vsub.s32 0, %v1384
  %v1387 = vsel %vm1385, %v1386, %v1384
  %v1388 = vclz %v1387
  %v1389 = vsub.s32 %v1388, 2
  %vm1390 = vcmp.gt.s32.totalorder 0, %v1389
  %v1391 = vsel %vm1390, 0, %v1389
  %v1392 = vsub.s32 32, %v1391
  %v1393 = vshll.u32 %v1384, %v1391
  %v1394 = vshrl.u32 %v1376, %v1392
  %v1395 = vor.u32 %v1393, %v1394
  %v1396 = vsub.s32 4294967266, %v1391
  %v1397 = vadd.s32 %v1396, 127
  %v1398 = vshll.u32 %v1397, 23
  %v1399 = vor.u32 4788187, %v1398
  %v1400 = vand.u32 2147483647, %v1399
  %v1402 = vcvt.s32.f32 %v1395
  %v1403 = vmul.f32 %v1402, %v1400
  %v1404 = vxor.u32 %v1403, 2147483648
  %v1405 = vsel %vm1284, %v1404, %v1403
  %v1406 = vsub.s32 4, %v1382
  %v1407 = vsel %vm1284, %v1406, %v1382
  %v1408 = vsel %vm1283, %v187, %v1405
  %v1409 = vsel %vm1283, 0, %v1407
  %v1410 = vmul.f32 %v1408, %v1408
  %v1411 = vmul.f32 %v1410, -0.001358992
  %v1412 = vadd.f32 %v1411, 0.041655596
  %v1413 = vmul.f32 %v1410, %v1412
  %v1414 = vadd.f32 %v1413, -0.4999988
  %v1415 = vmul.f32 %v1410, %v1414
  %v1416 = vadd.f32 1.0, %v1415
  %v1417 = vmul.f32 %v1408, %v1408
  %v1418 = vmul.f32 %v1417, -0.00019511016
  %v1419 = vadd.f32 %v1418, 0.008332121
  %v1420 = vmul.f32 %v1417, %v1419
  %v1421 = vadd.f32 %v1420, -0.16666654
  %v1422 = vmul.f32 %v1417, %v1421
  %v1423 = vadd.f32 %v1422, 1.0
  %v1424 = vmul.f32 %v1423, %v1408
  %vm1425 = vweird.f32 %v187
  %v1426 = vadd.s32 %v1409, 3
  %v1427 = vand.u32 %v1426, 3
  %vm1428 = vcmp.lt.s32.totalorder %v1427, 2
  %vm1429 = vcmp.eq.s32.totalorder %v1427, 0
  %v1430 = vxor.u32 %v1424, 2147483648
  %v1431 = vsel %vm1429, %v1416, %v1430
  %vm1432 = vcmp.eq.s32.totalorder %v1427, 2
  %v1433 = vxor.u32 %v1416, 2147483648
  %v1434 = vsel %vm1432, %v1433, %v1424
  %v1435 = vsel %vm1428, %v1431, %v1434
  %v1436 = vsel %vm1425, nan, %v1435
  %v1437 = vperm.slane %v30, 1
  %v1438 = vmul.f32 %v1437, %v351
  %v1439 = vmul.f32 %v1437, %v506
  %v1440 = vmul.f32 %v1437, %v661
  %v1441 = vmul.f32 %v1437, %v816
  %v1442 = vmul.f32 %v1437, %v971
  %v1443 = vmul.f32 %v1437, %v1126
  %v1444 = vmul.f32 %v1437, %v1281
  %v1445 = vmul.f32 %v1437, %v1436
  %v1446 = vadd.f32 %v189, %v1438
  %v1447 = vadd.f32 %v190, %v1439
  %v1448 = vadd.f32 %v191, %v1440
  %v1449 = vadd.f32 %v192, %v1441
  %v1450 = vadd.f32 %v193, %v1442
  %v1451 = vadd.f32 %v194, %v1443
  %v1452 = vadd.f32 %v195, %v1444
  %v1453 = vadd.f32 %v196, %v1445
  %v1454 = vand.u32 2147483647, %v180
  %vm1455 = vcmp.le.f32.partialorder %v1454, 0.7853982
  %vm1456 = vcmp.lt.s32.totalorder %v180, 0
  %v1457 = vand.u32 %v180, 2139095040
  %v1458 = vshrl.u32 %v1457, 23
  %v1459 = vsub.s32 %v1458, 127
  %v1460 = vand.u32 2147483647, %v180
  %v1461 = vand.u32 %v1460, 8388607
  %v1462 = vor.u32 %v1461, 8388608
  %v1463 = vsub.s32 0, %v1462
  %v1464 = vadd.s32 %v1459, 1
  %vm1465 = vcmp.gt.s32.totalorder %v1464, 0
  %v1466 = vsel %vm1465, %v1464, 0
  %v1467 = vshrl.u32 %v1466, 5
  %v1468 = vand.u32 %v1466, 31
  %v1469 = vsub.s32 32, %v1468
  %v1470 = vshrl.u32 683565275, %v1469
  %v1471 = vshll.u32 683565275, %v1468
  %v1472 = vshrl.u32 2475754826, %v1469
  %v1473 = vor.u32 %v1471, %v1472
  %v1474 = vshll.u32 2475754826, %v1468
  %v1475 = vshrl.u32 2131351028, %v1469
  %v1476 = vor.u32 %v1474, %v1475
  %v1477 = vshll.u32 2131351028, %v1468
  %v1478 = vshrl.u32 2102212464, %v1469
  %v1479 = vor.u32 %v1477, %v1478
  %v1480 = vshll.u32 2102212464, %v1468
  %v1481 = vshrl.u32 920167782, %v1469
  %v1482 = vor.u32 %v1480, %v1481
  %v1483 = vshll.u32 920167782, %v1468
  %v1484 = vshrl.u32 1326507024, %v1469
  %v1485 = vor.u32 %v1483, %v1484
  %vm1486 = vcmp.lt.s32.totalorder %v1467, 1
  %vm1487 = vcmp.lt.s32.totalorder %v1467, 2
  %vm1488 = vcmp.lt.s32.totalorder %v1467, 3
  %vm1489 = vcmp.lt.s32.totalorder %v1467, 4
  %v1490 = vsel %vm1486, %v1470, %v1473
  %v1491 = vsel %vm1489, %v1479, 2102212464
  %v1492 = vsel %vm1488, %v1476, %v1491
  %v1493 = vsel %vm1487, %v1490, %v1492
  %v1494 = vsel %vm1486, %v1473, %v1476
  %v1495 = vsel %vm1489, %v1482, 920167782
  %v1496 = vsel %vm1488, %v1479, %v1495
  %v1497 = vsel %vm1487, %v1494, %v1496
  %v1498 = vsel %vm1486, %v1476, %v1479
  %v1499 = vsel %vm1489, %v1485, 1326507024
  %v1500 = vsel %vm1488, %v1482, %v1499
  %v1501 = vsel %vm1487, %v1498, %v1500
  %v1502 = vshll.u32 %v1462, 8
  %v1503 = vand.u32 %v1502, 65535
  %v1504 = vshrl.u32 %v1502, 16
  %v1505 = vand.u32 %v1501, 65535
  %v1506 = vshrl.u32 %v1501, 16
  %v1507 = vmul.u32 %v1503, %v1505
  %v1508 = vmul.u32 %v1503, %v1506
  %v1509 = vmul.u32 %v1504, %v1505
  %v1510 = vmul.u32 %v1504, %v1506
  %v1511 = vshll.u32 %v1508, 16
  %v1512 = vshrl.u32 %v1508, 16
  %v1513 = vshll.u32 %v1509, 16
  %v1514 = vshrl.u32 %v1509, 16
  %vm1515 = vc.u32 %v1507, %v1511
  %v1516 = vsel %vm1515, 1, 0
  %v1517 = vadd.s32 %v1507, %v1511
  %v1518 = vadd.s32 %v1510, %v1516
  %vm1519 = vc.u32 %v1517, %v1513
  %v1520 = vsel %vm1519, 1, 0
  %v1521 = vadd.s32 %v1517, %v1513
  %v1522 = vadd.s32 %v1518, %v1520
  %v1523 = vadd.s32 %v1522, %v1512
  %v1524 = vadd.s32 %v1523, %v1514
  %v1525 = vand.u32 %v1502, 65535
  %v1526 = vshrl.u32 %v1502, 16
  %v1527 = vand.u32 %v1497, 65535
  %v1528 = vshrl.u32 %v1497, 16
  %v1529 = vmul.u32 %v1525, %v1527
  %v1530 = vmul.u32 %v1525, %v1528
  %v1531 = vmul.u32 %v1526, %v1527
  %v1532 = vmul.u32 %v1526, %v1528
  %v1533 = vshll.u32 %v1530, 16
  %v1534 = vshrl.u32 %v1530, 16
  %v1535 = vshll.u32 %v1531, 16
  %v1536 = vshrl.u32 %v1531, 16
  %vm1537 = vc.u32 %v1529, %v1533
  %v1538 = vsel %vm1537, 1, 0
  %v1539 = vadd.s32 %v1529, %v1533
  %v1540 = vadd.s32 %v1532, %v1538
  %vm1541 = vc.u32 %v1539, %v1535
  %v1542 = vsel %vm1541, 1, 0
  %v1543 = vadd.s32 %v1539, %v1535
  %v1544 = vadd.s32 %v1540, %v1542
  %v1545 = vadd.s32 %v1544, %v1534
  %v1546 = vadd.s32 %v1545, %v1536
  %v1547 = vmul.u32 %v1502, %v1493
  %v1548 = vadd.s32 %v1524, %v1543
  %vm1549 = vc.u32 %v1524, %v1543
  %v1550 = vadd.s32 %v1546, 1
  %v1551 = vsel %vm1549, %v1550, %v1546
  %v1552 = vadd.s32 %v1547, %v1551
  %v1553 = vadd.s32 %v1552, 536870912
  %v1554 = vshrl.u32 %v1553, 30
  %v1555 = vshll.u32 %v1554, 30
  %v1556 = vsub.s32 %v1552, %v1555
  %vm1557 = vcmp.lt.s32.totalorder %v1556, 0
  %v1558 = vsub.s32 0, %v1556
  %v1559 = vsel %vm1557, %v1558, %v1556
  %v1560 = vclz %v1559
  %v1561 = vsub.s32 %v1560, 2
  %vm1562 = vcmp.gt.s32.totalorder 0, %v1561
  %v1563 = vsel %vm1562, 0, %v1561
  %v1564 = vsub.s32 32, %v1563
  %v1565 = vshll.u32 %v1556, %v1563
  %v1566 = vshrl.u32 %v1548, %v1564
  %v1567 = vor.u32 %v1565, %v1566
  %v1568 = vsub.s32 4294967266, %v1563
  %v1569 = vadd.s32 %v1568, 127
  %v1570 = vshll.u32 %v1569, 23
  %v1571 = vor.u32 4788187, %v1570
  %v1572 = vand.u32 2147483647, %v1571
  %v1574 = vcvt.s32.f32 %v1567
  %v1575 = vmul.f32 %v1574, %v1572
  %v1576 = vxor.u32 %v1575, 2147483648
  %v1577 = vsel %vm1456, %v1576, %v1575
  %v1578 = vsub.s32 4, %v1554
  %v1579 = vsel %vm1456, %v1578, %v1554
  %v1580 = vsel %vm1455, %v180, %v1577
  %v1581 = vsel %vm1455, 0, %v1579
  %v1582 = vmul.f32 %v1580, %v1580
  %v1583 = vmul.f32 %v1582, -0.001358992
  %v1584 = vadd.f32 %v1583, 0.041655596
  %v1585 = vmul.f32 %v1582, %v1584
  %v1586 = vadd.f32 %v1585, -0.4999988
  %v1587 = vmul.f32 %v1582, %v1586
  %v1588 = vadd.f32 1.0, %v1587
  %v1589 = vmul.f32 %v1580, %v1580
  %v1590 = vmul.f32 %v1589, -0.00019511016
  %v1591 = vadd.f32 %v1590, 0.008332121
  %v1592 = vmul.f32 %v1589, %v1591
  %v1593 = vadd.f32 %v1592, -0.16666654
  %v1594 = vmul.f32 %v1589, %v1593
  %v1595 = vadd.f32 %v1594, 1.0
  %v1596 = vmul.f32 %v1595, %v1580
  %vm1597 = vweird.f32 %v180
  %v1598 = vand.u32 %v1581, 3
  %vm1599 = vcmp.lt.s32.totalorder %v1598, 2
  %vm1600 = vcmp.eq.s32.totalorder %v1598, 0
  %v1601 = vxor.u32 %v1596, 2147483648
  %v1602 = vsel %vm1600, %v1588, %v1601
  %vm1603 = vcmp.eq.s32.totalorder %v1598, 2
  %v1604 = vxor.u32 %v1588, 2147483648
  %v1605 = vsel %vm1603, %v1604, %v1596
  %v1606 = vsel %vm1599, %v1602, %v1605
  %v1607 = vsel %vm1597, nan, %v1606
  %v1608 = vand.u32 2147483647, %v181
  %vm1609 = vcmp.le.f32.partialorder %v1608, 0.7853982
  %vm1610 = vcmp.lt.s32.totalorder %v181, 0
  %v1611 = vand.u32 %v181, 2139095040
  %v1612 = vshrl.u32 %v1611, 23
  %v1613 = vsub.s32 %v1612, 127
  %v1614 = vand.u32 2147483647, %v181
  %v1615 = vand.u32 %v1614, 8388607
  %v1616 = vor.u32 %v1615, 8388608
  %v1617 = vsub.s32 0, %v1616
  %v1618 = vadd.s32 %v1613, 1
  %vm1619 = vcmp.gt.s32.totalorder %v1618, 0
  %v1620 = vsel %vm1619, %v1618, 0
  %v1621 = vshrl.u32 %v1620, 5
  %v1622 = vand.u32 %v1620, 31
  %v1623 = vsub.s32 32, %v1622
  %v1624 = vshrl.u32 683565275, %v1623
  %v1625 = vshll.u32 683565275, %v1622
  %v1626 = vshrl.u32 2475754826, %v1623
  %v1627 = vor.u32 %v1625, %v1626
  %v1628 = vshll.u32 2475754826, %v1622
  %v1629 = vshrl.u32 2131351028, %v1623
  %v1630 = vor.u32 %v1628, %v1629
  %v1631 = vshll.u32 2131351028, %v1622
  %v1632 = vshrl.u32 2102212464, %v1623
  %v1633 = vor.u32 %v1631, %v1632
  %v1634 = vshll.u32 2102212464, %v1622
  %v1635 = vshrl.u32 920167782, %v1623
  %v1636 = vor.u32 %v1634, %v1635
  %v1637 = vshll.u32 920167782, %v1622
  %v1638 = vshrl.u32 1326507024, %v1623
  %v1639 = vor.u32 %v1637, %v1638
  %vm1640 = vcmp.lt.s32.totalorder %v1621, 1
  %vm1641 = vcmp.lt.s32.totalorder %v1621, 2
  %vm1642 = vcmp.lt.s32.totalorder %v1621, 3
  %vm1643 = vcmp.lt.s32.totalorder %v1621, 4
  %v1644 = vsel %vm1640, %v1624, %v1627
  %v1645 = vsel %vm1643, %v1633, 2102212464
  %v1646 = vsel %vm1642, %v1630, %v1645
  %v1647 = vsel %vm1641, %v1644, %v1646
  %v1648 = vsel %vm1640, %v1627, %v1630
  %v1649 = vsel %vm1643, %v1636, 920167782
  %v1650 = vsel %vm1642, %v1633, %v1649
  %v1651 = vsel %vm1641, %v1648, %v1650
  %v1652 = vsel %vm1640, %v1630, %v1633
  %v1653 = vsel %vm1643, %v1639, 1326507024
  %v1654 = vsel %vm1642, %v1636, %v1653
  %v1655 = vsel %vm1641, %v1652, %v1654
  %v1656 = vshll.u32 %v1616, 8
  %v1657 = vand.u32 %v1656, 65535
  %v1658 = vshrl.u32 %v1656, 16
  %v1659 = vand.u32 %v1655, 65535
  %v1660 = vshrl.u32 %v1655, 16
  %v1661 = vmul.u32 %v1657, %v1659
  %v1662 = vmul.u32 %v1657, %v1660
  %v1663 = vmul.u32 %v1658, %v1659
  %v1664 = vmul.u32 %v1658, %v1660
  %v1665 = vshll.u32 %v1662, 16
  %v1666 = vshrl.u32 %v1662, 16
  %v1667 = vshll.u32 %v1663, 16
  %v1668 = vshrl.u32 %v1663, 16
  %vm1669 = vc.u32 %v1661, %v1665
  %v1670 = vsel %vm1669, 1, 0
  %v1671 = vadd.s32 %v1661, %v1665
  %v1672 = vadd.s32 %v1664, %v1670
  %vm1673 = vc.u32 %v1671, %v1667
  %v1674 = vsel %vm1673, 1, 0
  %v1675 = vadd.s32 %v1671, %v1667
  %v1676 = vadd.s32 %v1672, %v1674
  %v1677 = vadd.s32 %v1676, %v1666
  %v1678 = vadd.s32 %v1677, %v1668
  %v1679 = vand.u32 %v1656, 65535
  %v1680 = vshrl.u32 %v1656, 16
  %v1681 = vand.u32 %v1651, 65535
  %v1682 = vshrl.u32 %v1651, 16
  %v1683 = vmul.u32 %v1679, %v1681
  %v1684 = vmul.u32 %v1679, %v1682
  %v1685 = vmul.u32 %v1680, %v1681
  %v1686 = vmul.u32 %v1680, %v1682
  %v1687 = vshll.u32 %v1684, 16
  %v1688 = vshrl.u32 %v1684, 16
  %v1689 = vshll.u32 %v1685, 16
  %v1690 = vshrl.u32 %v1685, 16
  %vm1691 = vc.u32 %v1683, %v1687
  %v1692 = vsel %vm1691, 1, 0
  %v1693 = vadd.s32 %v1683, %v1687
  %v1694 = vadd.s32 %v1686, %v1692
  %vm1695 = vc.u32 %v1693, %v1689
  %v1696 = vsel %vm1695, 1, 0
  %v1697 = vadd.s32 %v1693, %v1689
  %v1698 = vadd.s32 %v1694, %v1696
  %v1699 = vadd.s32 %v1698, %v1688
  %v1700 = vadd.s32 %v1699, %v1690
  %v1701 = vmul.u32 %v1656, %v1647
  %v1702 = vadd.s32 %v1678, %v1697
  %vm1703 = vc.u32 %v1678, %v1697
  %v1704 = vadd.s32 %v1700, 1
  %v1705 = vsel %vm1703, %v1704, %v1700
  %v1706 = vadd.s32 %v1701, %v1705
  %v1707 = vadd.s32 %v1706, 536870912
  %v1708 = vshrl.u32 %v1707, 30
  %v1709 = vshll.u32 %v1708, 30
  %v1710 = vsub.s32 %v1706, %v1709
  %vm1711 = vcmp.lt.s32.totalorder %v1710, 0
  %v1712 = vsub.s32 0, %v1710
  %v1713 = vsel %vm1711, %v1712, %v1710
  %v1714 = vclz %v1713
  %v1715 = vsub.s32 %v1714, 2
  %vm1716 = vcmp.gt.s32.totalorder 0, %v1715
  %v1717 = vsel %vm1716, 0, %v1715
  %v1718 = vsub.s32 32, %v1717
  %v1719 = vshll.u32 %v1710, %v1717
  %v1720 = vshrl.u32 %v1702, %v1718
  %v1721 = vor.u32 %v1719, %v1720
  %v1722 = vsub.s32 4294967266, %v1717
  %v1723 = vadd.s32 %v1722, 127
  %v1724 = vshll.u32 %v1723, 23
  %v1725 = vor.u32 4788187, %v1724
  %v1726 = vand.u32 2147483647, %v1725
  %v1728 = vcvt.s32.f32 %v1721
  %v1729 = vmul.f32 %v1728, %v1726
  %v1730 = vxor.u32 %v1729, 2147483648
  %v1731 = vsel %vm1610, %v1730, %v1729
  %v1732 = vsub.s32 4, %v1708
  %v1733 = vsel %vm1610, %v1732, %v1708
  %v1734 = vsel %vm1609, %v181, %v1731
  %v1735 = vsel %vm1609, 0, %v1733
  %v1736 = vmul.f32 %v1734, %v1734
  %v1737 = vmul.f32 %v1736, -0.001358992
  %v1738 = vadd.f32 %v1737, 0.041655596
  %v1739 = vmul.f32 %v1736, %v1738
  %v1740 = vadd.f32 %v1739, -0.4999988
  %v1741 = vmul.f32 %v1736, %v1740
  %v1742 = vadd.f32 1.0, %v1741
  %v1743 = vmul.f32 %v1734, %v1734
  %v1744 = vmul.f32 %v1743, -0.00019511016
  %v1745 = vadd.f32 %v1744, 0.008332121
  %v1746 = vmul.f32 %v1743, %v1745
  %v1747 = vadd.f32 %v1746, -0.16666654
  %v1748 = vmul.f32 %v1743, %v1747
  %v1749 = vadd.f32 %v1748, 1.0
  %v1750 = vmul.f32 %v1749, %v1734
  %vm1751 = vweird.f32 %v181
  %v1752 = vand.u32 %v1735, 3
  %vm1753 = vcmp.lt.s32.totalorder %v1752, 2
  %vm1754 = vcmp.eq.s32.totalorder %v1752, 0
  %v1755 = vxor.u32 %v1750, 2147483648
  %v1756 = vsel %vm1754, %v1742, %v1755
  %vm1757 = vcmp.eq.s32.totalorder %v1752, 2
  %v1758 = vxor.u32 %v1742, 2147483648
  %v1759 = vsel %vm1757, %v1758, %v1750
  %v1760 = vsel %vm1753, %v1756, %v1759
  %v1761 = vsel %vm1751, nan, %v1760
  %v1762 = vand.u32 2147483647, %v182
  %vm1763 = vcmp.le.f32.partialorder %v1762, 0.7853982
  %vm1764 = vcmp.lt.s32.totalorder %v182, 0
  %v1765 = vand.u32 %v182, 2139095040
  %v1766 = vshrl.u32 %v1765, 23
  %v1767 = vsub.s32 %v1766, 127
  %v1768 = vand.u32 2147483647, %v182
  %v1769 = vand.u32 %v1768, 8388607
  %v1770 = vor.u32 %v1769, 8388608
  %v1771 = vsub.s32 0, %v1770
  %v1772 = vadd.s32 %v1767, 1
  %vm1773 = vcmp.gt.s32.totalorder %v1772, 0
  %v1774 = vsel %vm1773, %v1772, 0
  %v1775 = vshrl.u32 %v1774, 5
  %v1776 = vand.u32 %v1774, 31
  %v1777 = vsub.s32 32, %v1776
  %v1778 = vshrl.u32 683565275, %v1777
  %v1779 = vshll.u32 683565275, %v1776
  %v1780 = vshrl.u32 2475754826, %v1777
  %v1781 = vor.u32 %v1779, %v1780
  %v1782 = vshll.u32 2475754826, %v1776
  %v1783 = vshrl.u32 2131351028, %v1777
  %v1784 = vor.u32 %v1782, %v1783
  %v1785 = vshll.u32 2131351028, %v1776
  %v1786 = vshrl.u32 2102212464, %v1777
  %v1787 = vor.u32 %v1785, %v1786
  %v1788 = vshll.u32 2102212464, %v1776
  %v1789 = vshrl.u32 920167782, %v1777
  %v1790 = vor.u32 %v1788, %v1789
  %v1791 = vshll.u32 920167782, %v1776
  %v1792 = vshrl.u32 1326507024, %v1777
  %v1793 = vor.u32 %v1791, %v1792
  %vm1794 = vcmp.lt.s32.totalorder %v1775, 1
  %vm1795 = vcmp.lt.s32.totalorder %v1775, 2
  %vm1796 = vcmp.lt.s32.totalorder %v1775, 3
  %vm1797 = vcmp.lt.s32.totalorder %v1775, 4
  %v1798 = vsel %vm1794, %v1778, %v1781
  %v1799 = vsel %vm1797, %v1787, 2102212464
  %v1800 = vsel %vm1796, %v1784, %v1799
  %v1801 = vsel %vm1795, %v1798, %v1800
  %v1802 = vsel %vm1794, %v1781, %v1784
  %v1803 = vsel %vm1797, %v1790, 920167782
  %v1804 = vsel %vm1796, %v1787, %v1803
  %v1805 = vsel %vm1795, %v1802, %v1804
  %v1806 = vsel %vm1794, %v1784, %v1787
  %v1807 = vsel %vm1797, %v1793, 1326507024
  %v1808 = vsel %vm1796, %v1790, %v1807
  %v1809 = vsel %vm1795, %v1806, %v1808
  %v1810 = vshll.u32 %v1770, 8
  %v1811 = vand.u32 %v1810, 65535
  %v1812 = vshrl.u32 %v1810, 16
  %v1813 = vand.u32 %v1809, 65535
  %v1814 = vshrl.u32 %v1809, 16
  %v1815 = vmul.u32 %v1811, %v1813
  %v1816 = vmul.u32 %v1811, %v1814
  %v1817 = vmul.u32 %v1812, %v1813
  %v1818 = vmul.u32 %v1812, %v1814
  %v1819 = vshll.u32 %v1816, 16
  %v1820 = vshrl.u32 %v1816, 16
  %v1821 = vshll.u32 %v1817, 16
  %v1822 = vshrl.u32 %v1817, 16
  %vm1823 = vc.u32 %v1815, %v1819
  %v1824 = vsel %vm1823, 1, 0
  %v1825 = vadd.s32 %v1815, %v1819
  %v1826 = vadd.s32 %v1818, %v1824
  %vm1827 = vc.u32 %v1825, %v1821
  %v1828 = vsel %vm1827, 1, 0
  %v1829 = vadd.s32 %v1825, %v1821
  %v1830 = vadd.s32 %v1826, %v1828
  %v1831 = vadd.s32 %v1830, %v1820
  %v1832 = vadd.s32 %v1831, %v1822
  %v1833 = vand.u32 %v1810, 65535
  %v1834 = vshrl.u32 %v1810, 16
  %v1835 = vand.u32 %v1805, 65535
  %v1836 = vshrl.u32 %v1805, 16
  %v1837 = vmul.u32 %v1833, %v1835
  %v1838 = vmul.u32 %v1833, %v1836
  %v1839 = vmul.u32 %v1834, %v1835
  %v1840 = vmul.u32 %v1834, %v1836
  %v1841 = vshll.u32 %v1838, 16
  %v1842 = vshrl.u32 %v1838, 16
  %v1843 = vshll.u32 %v1839, 16
  %v1844 = vshrl.u32 %v1839, 16
  %vm1845 = vc.u32 %v1837, %v1841
  %v1846 = vsel %vm1845, 1, 0
  %v1847 = vadd.s32 %v1837, %v1841
  %v1848 = vadd.s32 %v1840, %v1846
  %vm1849 = vc.u32 %v1847, %v1843
  %v1850 = vsel %vm1849, 1, 0
  %v1851 = vadd.s32 %v1847, %v1843
  %v1852 = vadd.s32 %v1848, %v1850
  %v1853 = vadd.s32 %v1852, %v1842
  %v1854 = vadd.s32 %v1853, %v1844
  %v1855 = vmul.u32 %v1810, %v1801
  %v1856 = vadd.s32 %v1832, %v1851
  %vm1857 = vc.u32 %v1832, %v1851
  %v1858 = vadd.s32 %v1854, 1
  %v1859 = vsel %vm1857, %v1858, %v1854
  %v1860 = vadd.s32 %v1855, %v1859
  %v1861 = vadd.s32 %v1860, 536870912
  %v1862 = vshrl.u32 %v1861, 30
  %v1863 = vshll.u32 %v1862, 30
  %v1864 = vsub.s32 %v1860, %v1863
  %vm1865 = vcmp.lt.s32.totalorder %v1864, 0
  %v1866 = vsub.s32 0, %v1864
  %v1867 = vsel %vm1865, %v1866, %v1864
  %v1868 = vclz %v1867
  %v1869 = vsub.s32 %v1868, 2
  %vm1870 = vcmp.gt.s32.totalorder 0, %v1869
  %v1871 = vsel %vm1870, 0, %v1869
  %v1872 = vsub.s32 32, %v1871
  %v1873 = vshll.u32 %v1864, %v1871
  %v1874 = vshrl.u32 %v1856, %v1872
  %v1875 = vor.u32 %v1873, %v1874
  %v1876 = vsub.s32 4294967266, %v1871
  %v1877 = vadd.s32 %v1876, 127
  %v1878 = vshll.u32 %v1877, 23
  %v1879 = vor.u32 4788187, %v1878
  %v1880 = vand.u32 2147483647, %v1879
  %v1882 = vcvt.s32.f32 %v1875
  %v1883 = vmul.f32 %v1882, %v1880
  %v1884 = vxor.u32 %v1883, 2147483648
  %v1885 = vsel %vm1764, %v1884, %v1883
  %v1886 = vsub.s32 4, %v1862
  %v1887 = vsel %vm1764, %v1886, %v1862
  %v1888 = vsel %vm1763, %v182, %v1885
  %v1889 = vsel %vm1763, 0, %v1887
  %v1890 = vmul.f32 %v1888, %v1888
  %v1891 = vmul.f32 %v1890, -0.001358992
  %v1892 = vadd.f32 %v1891, 0.041655596
  %v1893 = vmul.f32 %v1890, %v1892
  %v1894 = vadd.f32 %v1893, -0.4999988
  %v1895 = vmul.f32 %v1890, %v1894
  %v1896 = vadd.f32 1.0, %v1895
  %v1897 = vmul.f32 %v1888, %v1888
  %v1898 = vmul.f32 %v1897, -0.00019511016
  %v1899 = vadd.f32 %v1898, 0.008332121
  %v1900 = vmul.f32 %v1897, %v1899
  %v1901 = vadd.f32 %v1900, -0.16666654
  %v1902 = vmul.f32 %v1897, %v1901
  %v1903 = vadd.f32 %v1902, 1.0
  %v1904 = vmul.f32 %v1903, %v1888
  %vm1905 = vweird.f32 %v182
  %v1906 = vand.u32 %v1889, 3
  %vm1907 = vcmp.lt.s32.totalorder %v1906, 2
  %vm1908 = vcmp.eq.s32.totalorder %v1906, 0
  %v1909 = vxor.u32 %v1904, 2147483648
  %v1910 = vsel %vm1908, %v1896, %v1909
  %vm1911 = vcmp.eq.s32.totalorder %v1906, 2
  %v1912 = vxor.u32 %v1896, 2147483648
  %v1913 = vsel %vm1911, %v1912, %v1904
  %v1914 = vsel %vm1907, %v1910, %v1913
  %v1915 = vsel %vm1905, nan, %v1914
  %v1916 = vand.u32 2147483647, %v183
  %vm1917 = vcmp.le.f32.partialorder %v1916, 0.7853982
  %vm1918 = vcmp.lt.s32.totalorder %v183, 0
  %v1919 = vand.u32 %v183, 2139095040
  %v1920 = vshrl.u32 %v1919, 23
  %v1921 = vsub.s32 %v1920, 127
  %v1922 = vand.u32 2147483647, %v183
  %v1923 = vand.u32 %v1922, 8388607
  %v1924 = vor.u32 %v1923, 8388608
  %v1925 = vsub.s32 0, %v1924
  %v1926 = vadd.s32 %v1921, 1
  %vm1927 = vcmp.gt.s32.totalorder %v1926, 0
  %v1928 = vsel %vm1927, %v1926, 0
  %v1929 = vshrl.u32 %v1928, 5
  %v1930 = vand.u32 %v1928, 31
  %v1931 = vsub.s32 32, %v1930
  %v1932 = vshrl.u32 683565275, %v1931
  %v1933 = vshll.u32 683565275, %v1930
  %v1934 = vshrl.u32 2475754826, %v1931
  %v1935 = vor.u32 %v1933, %v1934
  %v1936 = vshll.u32 2475754826, %v1930
  %v1937 = vshrl.u32 2131351028, %v1931
  %v1938 = vor.u32 %v1936, %v1937
  %v1939 = vshll.u32 2131351028, %v1930
  %v1940 = vshrl.u32 2102212464, %v1931
  %v1941 = vor.u32 %v1939, %v1940
  %v1942 = vshll.u32 2102212464, %v1930
  %v1943 = vshrl.u32 920167782, %v1931
  %v1944 = vor.u32 %v1942, %v1943
  %v1945 = vshll.u32 920167782, %v1930
  %v1946 = vshrl.u32 1326507024, %v1931
  %v1947 = vor.u32 %v1945, %v1946
  %vm1948 = vcmp.lt.s32.totalorder %v1929, 1
  %vm1949 = vcmp.lt.s32.totalorder %v1929, 2
  %vm1950 = vcmp.lt.s32.totalorder %v1929, 3
  %vm1951 = vcmp.lt.s32.totalorder %v1929, 4
  %v1952 = vsel %vm1948, %v1932, %v1935
  %v1953 = vsel %vm1951, %v1941, 2102212464
  %v1954 = vsel %vm1950, %v1938, %v1953
  %v1955 = vsel %vm1949, %v1952, %v1954
  %v1956 = vsel %vm1948, %v1935, %v1938
  %v1957 = vsel %vm1951, %v1944, 920167782
  %v1958 = vsel %vm1950, %v1941, %v1957
  %v1959 = vsel %vm1949, %v1956, %v1958
  %v1960 = vsel %vm1948, %v1938, %v1941
  %v1961 = vsel %vm1951, %v1947, 1326507024
  %v1962 = vsel %vm1950, %v1944, %v1961
  %v1963 = vsel %vm1949, %v1960, %v1962
  %v1964 = vshll.u32 %v1924, 8
  %v1965 = vand.u32 %v1964, 65535
  %v1966 = vshrl.u32 %v1964, 16
  %v1967 = vand.u32 %v1963, 65535
  %v1968 = vshrl.u32 %v1963, 16
  %v1969 = vmul.u32 %v1965, %v1967
  %v1970 = vmul.u32 %v1965, %v1968
  %v1971 = vmul.u32 %v1966, %v1967
  %v1972 = vmul.u32 %v1966, %v1968
  %v1973 = vshll.u32 %v1970, 16
  %v1974 = vshrl.u32 %v1970, 16
  %v1975 = vshll.u32 %v1971, 16
  %v1976 = vshrl.u32 %v1971, 16
  %vm1977 = vc.u32 %v1969, %v1973
  %v1978 = vsel %vm1977, 1, 0
  %v1979 = vadd.s32 %v1969, %v1973
  %v1980 = vadd.s32 %v1972, %v1978
  %vm1981 = vc.u32 %v1979, %v1975
  %v1982 = vsel %vm1981, 1, 0
  %v1983 = vadd.s32 %v1979, %v1975
  %v1984 = vadd.s32 %v1980, %v1982
  %v1985 = vadd.s32 %v1984, %v1974
  %v1986 = vadd.s32 %v1985, %v1976
  %v1987 = vand.u32 %v1964, 65535
  %v1988 = vshrl.u32 %v1964, 16
  %v1989 = vand.u32 %v1959, 65535
  %v1990 = vshrl.u32 %v1959, 16
  %v1991 = vmul.u32 %v1987, %v1989
  %v1992 = vmul.u32 %v1987, %v1990
  %v1993 = vmul.u32 %v1988, %v1989
  %v1994 = vmul.u32 %v1988, %v1990
  %v1995 = vshll.u32 %v1992, 16
  %v1996 = vshrl.u32 %v1992, 16
  %v1997 = vshll.u32 %v1993, 16
  %v1998 = vshrl.u32 %v1993, 16
  %vm1999 = vc.u32 %v1991, %v1995
  %v2000 = vsel %vm1999, 1, 0
  %v2001 = vadd.s32 %v1991, %v1995
  %v2002 = vadd.s32 %v1994, %v2000
  %vm2003 = vc.u32 %v2001, %v1997
  %v2004 = vsel %vm2003, 1, 0
  %v2005 = vadd.s32 %v2001, %v1997
  %v2006 = vadd.s32 %v2002, %v2004
  %v2007 = vadd.s32 %v2006, %v1996
  %v2008 = vadd.s32 %v2007, %v1998
  %v2009 = vmul.u32 %v1964, %v1955
  %v2010 = vadd.s32 %v1986, %v2005
  %vm2011 = vc.u32 %v1986, %v2005
  %v2012 = vadd.s32 %v2008, 1
  %v2013 = vsel %vm2011, %v2012, %v2008
  %v2014 = vadd.s32 %v2009, %v2013
  %v2015 = vadd.s32 %v2014, 536870912
  %v2016 = vshrl.u32 %v2015, 30
  %v2017 = vshll.u32 %v2016, 30
  %v2018 = vsub.s32 %v2014, %v2017
  %vm2019 = vcmp.lt.s32.totalorder %v2018, 0
  %v2020 = vsub.s32 0, %v2018
  %v2021 = vsel %vm2019, %v2020, %v2018
  %v2022 = vclz %v2021
  %v2023 = vsub.s32 %v2022, 2
  %vm2024 = vcmp.gt.s32.totalorder 0, %v2023
  %v2025 = vsel %vm2024, 0, %v2023
  %v2026 = vsub.s32 32, %v2025
  %v2027 = vshll.u32 %v2018, %v2025
  %v2028 = vshrl.u32 %v2010, %v2026
  %v2029 = vor.u32 %v2027, %v2028
  %v2030 = vsub.s32 4294967266, %v2025
  %v2031 = vadd.s32 %v2030, 127
  %v2032 = vshll.u32 %v2031, 23
  %v2033 = vor.u32 4788187, %v2032
  %v2034 = vand.u32 2147483647, %v2033
  %v2036 = vcvt.s32.f32 %v2029
  %v2037 = vmul.f32 %v2036, %v2034
  %v2038 = vxor.u32 %v2037, 2147483648
  %v2039 = vsel %vm1918, %v2038, %v2037
  %v2040 = vsub.s32 4, %v2016
  %v2041 = vsel %vm1918, %v2040, %v2016
  %v2042 = vsel %vm1917, %v183, %v2039
  %v2043 = vsel %vm1917, 0, %v2041
  %v2044 = vmul.f32 %v2042, %v2042
  %v2045 = vmul.f32 %v2044, -0.001358992
  %v2046 = vadd.f32 %v2045, 0.041655596
  %v2047 = vmul.f32 %v2044, %v2046
  %v2048 = vadd.f32 %v2047, -0.4999988
  %v2049 = vmul.f32 %v2044, %v2048
  %v2050 = vadd.f32 1.0, %v2049
  %v2051 = vmul.f32 %v2042, %v2042
  %v2052 = vmul.f32 %v2051, -0.00019511016
  %v2053 = vadd.f32 %v2052, 0.008332121
  %v2054 = vmul.f32 %v2051, %v2053
  %v2055 = vadd.f32 %v2054, -0.16666654
  %v2056 = vmul.f32 %v2051, %v2055
  %v2057 = vadd.f32 %v2056, 1.0
  %v2058 = vmul.f32 %v2057, %v2042
  %vm2059 = vweird.f32 %v183
  %v2060 = vand.u32 %v2043, 3
  %vm2061 = vcmp.lt.s32.totalorder %v2060, 2
  %vm2062 = vcmp.eq.s32.totalorder %v2060, 0
  %v2063 = vxor.u32 %v2058, 2147483648
  %v2064 = vsel %vm2062, %v2050, %v2063
  %vm2065 = vcmp.eq.s32.totalorder %v2060, 2
  %v2066 = vxor.u32 %v2050, 2147483648
  %v2067 = vsel %vm2065, %v2066, %v2058
  %v2068 = vsel %vm2061, %v2064, %v2067
  %v2069 = vsel %vm2059, nan, %v2068
  %v2070 = vand.u32 2147483647, %v184
  %vm2071 = vcmp.le.f32.partialorder %v2070, 0.7853982
  %vm2072 = vcmp.lt.s32.totalorder %v184, 0
  %v2073 = vand.u32 %v184, 2139095040
  %v2074 = vshrl.u32 %v2073, 23
  %v2075 = vsub.s32 %v2074, 127
  %v2076 = vand.u32 2147483647, %v184
  %v2077 = vand.u32 %v2076, 8388607
  %v2078 = vor.u32 %v2077, 8388608
  %v2079 = vsub.s32 0, %v2078
  %v2080 = vadd.s32 %v2075, 1
  %vm2081 = vcmp.gt.s32.totalorder %v2080, 0
  %v2082 = vsel %vm2081, %v2080, 0
  %v2083 = vshrl.u32 %v2082, 5
  %v2084 = vand.u32 %v2082, 31
  %v2085 = vsub.s32 32, %v2084
  %v2086 = vshrl.u32 683565275, %v2085
  %v2087 = vshll.u32 683565275, %v2084
  %v2088 = vshrl.u32 2475754826, %v2085
  %v2089 = vor.u32 %v2087, %v2088
  %v2090 = vshll.u32 2475754826, %v2084
  %v2091 = vshrl.u32 2131351028, %v2085
  %v2092 = vor.u32 %v2090, %v2091
  %v2093 = vshll.u32 2131351028, %v2084
  %v2094 = vshrl.u32 2102212464, %v2085
  %v2095 = vor.u32 %v2093, %v2094
  %v2096 = vshll.u32 2102212464, %v2084
  %v2097 = vshrl.u32 920167782, %v2085
  %v2098 = vor.u32 %v2096, %v2097
  %v2099 = vshll.u32 920167782, %v2084
  %v2100 = vshrl.u32 1326507024, %v2085
  %v2101 = vor.u32 %v2099, %v2100
  %vm2102 = vcmp.lt.s32.totalorder %v2083, 1
  %vm2103 = vcmp.lt.s32.totalorder %v2083, 2
  %vm2104 = vcmp.lt.s32.totalorder %v2083, 3
  %vm2105 = vcmp.lt.s32.totalorder %v2083, 4
  %v2106 = vsel %vm2102, %v2086, %v2089
  %v2107 = vsel %vm2105, %v2095, 2102212464
  %v2108 = vsel %vm2104, %v2092, %v2107
  %v2109 = vsel %vm2103, %v2106, %v2108
  %v2110 = vsel %vm2102, %v2089, %v2092
  %v2111 = vsel %vm2105, %v2098, 920167782
  %v2112 = vsel %vm2104, %v2095, %v2111
  %v2113 = vsel %vm2103, %v2110, %v2112
  %v2114 = vsel %vm2102, %v2092, %v2095
  %v2115 = vsel %vm2105, %v2101, 1326507024
  %v2116 = vsel %vm2104, %v2098, %v2115
  %v2117 = vsel %vm2103, %v2114, %v2116
  %v2118 = vshll.u32 %v2078, 8
  %v2119 = vand.u32 %v2118, 65535
  %v2120 = vshrl.u32 %v2118, 16
  %v2121 = vand.u32 %v2117, 65535
  %v2122 = vshrl.u32 %v2117, 16
  %v2123 = vmul.u32 %v2119, %v2121
  %v2124 = vmul.u32 %v2119, %v2122
  %v2125 = vmul.u32 %v2120, %v2121
  %v2126 = vmul.u32 %v2120, %v2122
  %v2127 = vshll.u32 %v2124, 16
  %v2128 = vshrl.u32 %v2124, 16
  %v2129 = vshll.u32 %v2125, 16
  %v2130 = vshrl.u32 %v2125, 16
  %vm2131 = vc.u32 %v2123, %v2127
  %v2132 = vsel %vm2131, 1, 0
  %v2133 = vadd.s32 %v2123, %v2127
  %v2134 = vadd.s32 %v2126, %v2132
  %vm2135 = vc.u32 %v2133, %v2129
  %v2136 = vsel %vm2135, 1, 0
  %v2137 = vadd.s32 %v2133, %v2129
  %v2138 = vadd.s32 %v2134, %v2136
  %v2139 = vadd.s32 %v2138, %v2128
  %v2140 = vadd.s32 %v2139, %v2130
  %v2141 = vand.u32 %v2118, 65535
  %v2142 = vshrl.u32 %v2118, 16
  %v2143 = vand.u32 %v2113, 65535
  %v2144 = vshrl.u32 %v2113, 16
  %v2145 = vmul.u32 %v2141, %v2143
  %v2146 = vmul.u32 %v2141, %v2144
  %v2147 = vmul.u32 %v2142, %v2143
  %v2148 = vmul.u32 %v2142, %v2144
  %v2149 = vshll.u32 %v2146, 16
  %v2150 = vshrl.u32 %v2146, 16
  %v2151 = vshll.u32 %v2147, 16
  %v2152 = vshrl.u32 %v2147, 16
  %vm2153 = vc.u32 %v2145, %v2149
  %v2154 = vsel %vm2153, 1, 0
  %v2155 = vadd.s32 %v2145, %v2149
  %v2156 = vadd.s32 %v2148, %v2154
  %vm2157 = vc.u32 %v2155, %v2151
  %v2158 = vsel %vm2157, 1, 0
  %v2159 = vadd.s32 %v2155, %v2151
  %v2160 = vadd.s32 %v2156, %v2158
  %v2161 = vadd.s32 %v2160, %v2150
  %v2162 = vadd.s32 %v2161, %v2152
  %v2163 = vmul.u32 %v2118, %v2109
  %v2164 = vadd.s32 %v2140, %v2159
  %vm2165 = vc.u32 %v2140, %v2159
  %v2166 = vadd.s32 %v2162, 1
  %v2167 = vsel %vm2165, %v2166, %v2162
  %v2168 = vadd.s32 %v2163, %v2167
  %v2169 = vadd.s32 %v2168, 536870912
  %v2170 = vshrl.u32 %v2169, 30
  %v2171 = vshll.u32 %v2170, 30
  %v2172 = vsub.s32 %v2168, %v2171
  %vm2173 = vcmp.lt.s32.totalorder %v2172, 0
  %v2174 = vsub.s32 0, %v2172
  %v2175 = vsel %vm2173, %v2174, %v2172
  %v2176 = vclz %v2175
  %v2177 = vsub.s32 %v2176, 2
  %vm2178 = vcmp.gt.s32.totalorder 0, %v2177
  %v2179 = vsel %vm2178, 0, %v2177
  %v2180 = vsub.s32 32, %v2179
  %v2181 = vshll.u32 %v2172, %v2179
  %v2182 = vshrl.u32 %v2164, %v2180
  %v2183 = vor.u32 %v2181, %v2182
  %v2184 = vsub.s32 4294967266, %v2179
  %v2185 = vadd.s32 %v2184, 127
  %v2186 = vshll.u32 %v2185, 23
  %v2187 = vor.u32 4788187, %v2186
  %v2188 = vand.u32 2147483647, %v2187
  %v2190 = vcvt.s32.f32 %v2183
  %v2191 = vmul.f32 %v2190, %v2188
  %v2192 = vxor.u32 %v2191, 2147483648
  %v2193 = vsel %vm2072, %v2192, %v2191
  %v2194 = vsub.s32 4, %v2170
  %v2195 = vsel %vm2072, %v2194, %v2170
  %v2196 = vsel %vm2071, %v184, %v2193
  %v2197 = vsel %vm2071, 0, %v2195
  %v2198 = vmul.f32 %v2196, %v2196
  %v2199 = vmul.f32 %v2198, -0.001358992
  %v2200 = vadd.f32 %v2199, 0.041655596
  %v2201 = vmul.f32 %v2198, %v2200
  %v2202 = vadd.f32 %v2201, -0.4999988
  %v2203 = vmul.f32 %v2198, %v2202
  %v2204 = vadd.f32 1.0, %v2203
  %v2205 = vmul.f32 %v2196, %v2196
  %v2206 = vmul.f32 %v2205, -0.00019511016
  %v2207 = vadd.f32 %v2206, 0.008332121
  %v2208 = vmul.f32 %v2205, %v2207
  %v2209 = vadd.f32 %v2208, -0.16666654
  %v2210 = vmul.f32 %v2205, %v2209
  %v2211 = vadd.f32 %v2210, 1.0
  %v2212 = vmul.f32 %v2211, %v2196
  %vm2213 = vweird.f32 %v184
  %v2214 = vand.u32 %v2197, 3
  %vm2215 = vcmp.lt.s32.totalorder %v2214, 2
  %vm2216 = vcmp.eq.s32.totalorder %v2214, 0
  %v2217 = vxor.u32 %v2212, 2147483648
  %v2218 = vsel %vm2216, %v2204, %v2217
  %vm2219 = vcmp.eq.s32.totalorder %v2214, 2
  %v2220 = vxor.u32 %v2204, 2147483648
  %v2221 = vsel %vm2219, %v2220, %v2212
  %v2222 = vsel %vm2215, %v2218, %v2221
  %v2223 = vsel %vm2213, nan, %v2222
  %v2224 = vand.u32 2147483647, %v185
  %vm2225 = vcmp.le.f32.partialorder %v2224, 0.7853982
  %vm2226 = vcmp.lt.s32.totalorder %v185, 0
  %v2227 = vand.u32 %v185, 2139095040
  %v2228 = vshrl.u32 %v2227, 23
  %v2229 = vsub.s32 %v2228, 127
  %v2230 = vand.u32 2147483647, %v185
  %v2231 = vand.u32 %v2230, 8388607
  %v2232 = vor.u32 %v2231, 8388608
  %v2233 = vsub.s32 0, %v2232
  %v2234 = vadd.s32 %v2229, 1
  %vm2235 = vcmp.gt.s32.totalorder %v2234, 0
  %v2236 = vsel %vm2235, %v2234, 0
  %v2237 = vshrl.u32 %v2236, 5
  %v2238 = vand.u32 %v2236, 31
  %v2239 = vsub.s32 32, %v2238
  %v2240 = vshrl.u32 683565275, %v2239
  %v2241 = vshll.u32 683565275, %v2238
  %v2242 = vshrl.u32 2475754826, %v2239
  %v2243 = vor.u32 %v2241, %v2242
  %v2244 = vshll.u32 2475754826, %v2238
  %v2245 = vshrl.u32 2131351028, %v2239
  %v2246 = vor.u32 %v2244, %v2245
  %v2247 = vshll.u32 2131351028, %v2238
  %v2248 = vshrl.u32 2102212464, %v2239
  %v2249 = vor.u32 %v2247, %v2248
  %v2250 = vshll.u32 2102212464, %v2238
  %v2251 = vshrl.u32 920167782, %v2239
  %v2252 = vor.u32 %v2250, %v2251
  %v2253 = vshll.u32 920167782, %v2238
  %v2254 = vshrl.u32 1326507024, %v2239
  %v2255 = vor.u32 %v2253, %v2254
  %vm2256 = vcmp.lt.s32.totalorder %v2237, 1
  %vm2257 = vcmp.lt.s32.totalorder %v2237, 2
  %vm2258 = vcmp.lt.s32.totalorder %v2237, 3
  %vm2259 = vcmp.lt.s32.totalorder %v2237, 4
  %v2260 = vsel %vm2256, %v2240, %v2243
  %v2261 = vsel %vm2259, %v2249, 2102212464
  %v2262 = vsel %vm2258, %v2246, %v2261
  %v2263 = vsel %vm2257, %v2260, %v2262
  %v2264 = vsel %vm2256, %v2243, %v2246
  %v2265 = vsel %vm2259, %v2252, 920167782
  %v2266 = vsel %vm2258, %v2249, %v2265
  %v2267 = vsel %vm2257, %v2264, %v2266
  %v2268 = vsel %vm2256, %v2246, %v2249
  %v2269 = vsel %vm2259, %v2255, 1326507024
  %v2270 = vsel %vm2258, %v2252, %v2269
  %v2271 = vsel %vm2257, %v2268, %v2270
  %v2272 = vshll.u32 %v2232, 8
  %v2273 = vand.u32 %v2272, 65535
  %v2274 = vshrl.u32 %v2272, 16
  %v2275 = vand.u32 %v2271, 65535
  %v2276 = vshrl.u32 %v2271, 16
  %v2277 = vmul.u32 %v2273, %v2275
  %v2278 = vmul.u32 %v2273, %v2276
  %v2279 = vmul.u32 %v2274, %v2275
  %v2280 = vmul.u32 %v2274, %v2276
  %v2281 = vshll.u32 %v2278, 16
  %v2282 = vshrl.u32 %v2278, 16
  %v2283 = vshll.u32 %v2279, 16
  %v2284 = vshrl.u32 %v2279, 16
  %vm2285 = vc.u32 %v2277, %v2281
  %v2286 = vsel %vm2285, 1, 0
  %v2287 = vadd.s32 %v2277, %v2281
  %v2288 = vadd.s32 %v2280, %v2286
  %vm2289 = vc.u32 %v2287, %v2283
  %v2290 = vsel %vm2289, 1, 0
  %v2291 = vadd.s32 %v2287, %v2283
  %v2292 = vadd.s32 %v2288, %v2290
  %v2293 = vadd.s32 %v2292, %v2282
  %v2294 = vadd.s32 %v2293, %v2284
  %v2295 = vand.u32 %v2272, 65535
  %v2296 = vshrl.u32 %v2272, 16
  %v2297 = vand.u32 %v2267, 65535
  %v2298 = vshrl.u32 %v2267, 16
  %v2299 = vmul.u32 %v2295, %v2297
  %v2300 = vmul.u32 %v2295, %v2298
  %v2301 = vmul.u32 %v2296, %v2297
  %v2302 = vmul.u32 %v2296, %v2298
  %v2303 = vshll.u32 %v2300, 16
  %v2304 = vshrl.u32 %v2300, 16
  %v2305 = vshll.u32 %v2301, 16
  %v2306 = vshrl.u32 %v2301, 16
  %vm2307 = vc.u32 %v2299, %v2303
  %v2308 = vsel %vm2307, 1, 0
  %v2309 = vadd.s32 %v2299, %v2303
  %v2310 = vadd.s32 %v2302, %v2308
  %vm2311 = vc.u32 %v2309, %v2305
  %v2312 = vsel %vm2311, 1, 0
  %v2313 = vadd.s32 %v2309, %v2305
  %v2314 = vadd.s32 %v2310, %v2312
  %v2315 = vadd.s32 %v2314, %v2304
  %v2316 = vadd.s32 %v2315, %v2306
  %v2317 = vmul.u32 %v2272, %v2263
  %v2318 = vadd.s32 %v2294, %v2313
  %vm2319 = vc.u32 %v2294, %v2313
  %v2320 = vadd.s32 %v2316, 1
  %v2321 = vsel %vm2319, %v2320, %v2316
  %v2322 = vadd.s32 %v2317, %v2321
  %v2323 = vadd.s32 %v2322, 536870912
  %v2324 = vshrl.u32 %v2323, 30
  %v2325 = vshll.u32 %v2324, 30
  %v2326 = vsub.s32 %v2322, %v2325
  %vm2327 = vcmp.lt.s32.totalorder %v2326, 0
  %v2328 = vsub.s32 0, %v2326
  %v2329 = vsel %vm2327, %v2328, %v2326
  %v2330 = vclz %v2329
  %v2331 = vsub.s32 %v2330, 2
  %vm2332 = vcmp.gt.s32.totalorder 0, %v2331
  %v2333 = vsel %vm2332, 0, %v2331
  %v2334 = vsub.s32 32, %v2333
  %v2335 = vshll.u32 %v2326, %v2333
  %v2336 = vshrl.u32 %v2318, %v2334
  %v2337 = vor.u32 %v2335, %v2336
  %v2338 = vsub.s32 4294967266, %v2333
  %v2339 = vadd.s32 %v2338, 127
  %v2340 = vshll.u32 %v2339, 23
  %v2341 = vor.u32 4788187, %v2340
  %v2342 = vand.u32 2147483647, %v2341
  %v2344 = vcvt.s32.f32 %v2337
  %v2345 = vmul.f32 %v2344, %v2342
  %v2346 = vxor.u32 %v2345, 2147483648
  %v2347 = vsel %vm2226, %v2346, %v2345
  %v2348 = vsub.s32 4, %v2324
  %v2349 = vsel %vm2226, %v2348, %v2324
  %v2350 = vsel %vm2225, %v185, %v2347
  %v2351 = vsel %vm2225, 0, %v2349
  %v2352 = vmul.f32 %v2350, %v2350
  %v2353 = vmul.f32 %v2352, -0.001358992
  %v2354 = vadd.f32 %v2353, 0.041655596
  %v2355 = vmul.f32 %v2352, %v2354
  %v2356 = vadd.f32 %v2355, -0.4999988
  %v2357 = vmul.f32 %v2352, %v2356
  %v2358 = vadd.f32 1.0, %v2357
  %v2359 = vmul.f32 %v2350, %v2350
  %v2360 = vmul.f32 %v2359, -0.00019511016
  %v2361 = vadd.f32 %v2360, 0.008332121
  %v2362 = vmul.f32 %v2359, %v2361
  %v2363 = vadd.f32 %v2362, -0.16666654
  %v2364 = vmul.f32 %v2359, %v2363
  %v2365 = vadd.f32 %v2364, 1.0
  %v2366 = vmul.f32 %v2365, %v2350
  %vm2367 = vweird.f32 %v185
  %v2368 = vand.u32 %v2351, 3
  %vm2369 = vcmp.lt.s32.totalorder %v2368, 2
  %vm2370 = vcmp.eq.s32.totalorder %v2368, 0
  %v2371 = vxor.u32 %v2366, 2147483648
  %v2372 = vsel %vm2370, %v2358, %v2371
  %vm2373 = vcmp.eq.s32.totalorder %v2368, 2
  %v2374 = vxor.u32 %v2358, 2147483648
  %v2375 = vsel %vm2373, %v2374, %v2366
  %v2376 = vsel %vm2369, %v2372, %v2375
  %v2377 = vsel %vm2367, nan, %v2376
  %v2378 = vand.u32 2147483647, %v186
  %vm2379 = vcmp.le.f32.partialorder %v2378, 0.7853982
  %vm2380 = vcmp.lt.s32.totalorder %v186, 0
  %v2381 = vand.u32 %v186, 2139095040
  %v2382 = vshrl.u32 %v2381, 23
  %v2383 = vsub.s32 %v2382, 127
  %v2384 = vand.u32 2147483647, %v186
  %v2385 = vand.u32 %v2384, 8388607
  %v2386 = vor.u32 %v2385, 8388608
  %v2387 = vsub.s32 0, %v2386
  %v2388 = vadd.s32 %v2383, 1
  %vm2389 = vcmp.gt.s32.totalorder %v2388, 0
  %v2390 = vsel %vm2389, %v2388, 0
  %v2391 = vshrl.u32 %v2390, 5
  %v2392 = vand.u32 %v2390, 31
  %v2393 = vsub.s32 32, %v2392
  %v2394 = vshrl.u32 683565275, %v2393
  %v2395 = vshll.u32 683565275, %v2392
  %v2396 = vshrl.u32 2475754826, %v2393
  %v2397 = vor.u32 %v2395, %v2396
  %v2398 = vshll.u32 2475754826, %v2392
  %v2399 = vshrl.u32 2131351028, %v2393
  %v2400 = vor.u32 %v2398, %v2399
  %v2401 = vshll.u32 2131351028, %v2392
  %v2402 = vshrl.u32 2102212464, %v2393
  %v2403 = vor.u32 %v2401, %v2402
  %v2404 = vshll.u32 2102212464, %v2392
  %v2405 = vshrl.u32 920167782, %v2393
  %v2406 = vor.u32 %v2404, %v2405
  %v2407 = vshll.u32 920167782, %v2392
  %v2408 = vshrl.u32 1326507024, %v2393
  %v2409 = vor.u32 %v2407, %v2408
  %vm2410 = vcmp.lt.s32.totalorder %v2391, 1
  %vm2411 = vcmp.lt.s32.totalorder %v2391, 2
  %vm2412 = vcmp.lt.s32.totalorder %v2391, 3
  %vm2413 = vcmp.lt.s32.totalorder %v2391, 4
  %v2414 = vsel %vm2410, %v2394, %v2397
  %v2415 = vsel %vm2413, %v2403, 2102212464
  %v2416 = vsel %vm2412, %v2400, %v2415
  %v2417 = vsel %vm2411, %v2414, %v2416
  %v2418 = vsel %vm2410, %v2397, %v2400
  %v2419 = vsel %vm2413, %v2406, 920167782
  %v2420 = vsel %vm2412, %v2403, %v2419
  %v2421 = vsel %vm2411, %v2418, %v2420
  %v2422 = vsel %vm2410, %v2400, %v2403
  %v2423 = vsel %vm2413, %v2409, 1326507024
  %v2424 = vsel %vm2412, %v2406, %v2423
  %v2425 = vsel %vm2411, %v2422, %v2424
  %v2426 = vshll.u32 %v2386, 8
  %v2427 = vand.u32 %v2426, 65535
  %v2428 = vshrl.u32 %v2426, 16
  %v2429 = vand.u32 %v2425, 65535
  %v2430 = vshrl.u32 %v2425, 16
  %v2431 = vmul.u32 %v2427, %v2429
  %v2432 = vmul.u32 %v2427, %v2430
  %v2433 = vmul.u32 %v2428, %v2429
  %v2434 = vmul.u32 %v2428, %v2430
  %v2435 = vshll.u32 %v2432, 16
  %v2436 = vshrl.u32 %v2432, 16
  %v2437 = vshll.u32 %v2433, 16
  %v2438 = vshrl.u32 %v2433, 16
  %vm2439 = vc.u32 %v2431, %v2435
  %v2440 = vsel %vm2439, 1, 0
  %v2441 = vadd.s32 %v2431, %v2435
  %v2442 = vadd.s32 %v2434, %v2440
  %vm2443 = vc.u32 %v2441, %v2437
  %v2444 = vsel %vm2443, 1, 0
  %v2445 = vadd.s32 %v2441, %v2437
  %v2446 = vadd.s32 %v2442, %v2444
  %v2447 = vadd.s32 %v2446, %v2436
  %v2448 = vadd.s32 %v2447, %v2438
  %v2449 = vand.u32 %v2426, 65535
  %v2450 = vshrl.u32 %v2426, 16
  %v2451 = vand.u32 %v2421, 65535
  %v2452 = vshrl.u32 %v2421, 16
  %v2453 = vmul.u32 %v2449, %v2451
  %v2454 = vmul.u32 %v2449, %v2452
  %v2455 = vmul.u32 %v2450, %v2451
  %v2456 = vmul.u32 %v2450, %v2452
  %v2457 = vshll.u32 %v2454, 16
  %v2458 = vshrl.u32 %v2454, 16
  %v2459 = vshll.u32 %v2455, 16
  %v2460 = vshrl.u32 %v2455, 16
  %vm2461 = vc.u32 %v2453, %v2457
  %v2462 = vsel %vm2461, 1, 0
  %v2463 = vadd.s32 %v2453, %v2457
  %v2464 = vadd.s32 %v2456, %v2462
  %vm2465 = vc.u32 %v2463, %v2459
  %v2466 = vsel %vm2465, 1, 0
  %v2467 = vadd.s32 %v2463, %v2459
  %v2468 = vadd.s32 %v2464, %v2466
  %v2469 = vadd.s32 %v2468, %v2458
  %v2470 = vadd.s32 %v2469, %v2460
  %v2471 = vmul.u32 %v2426, %v2417
  %v2472 = vadd.s32 %v2448, %v2467
  %vm2473 = vc.u32 %v2448, %v2467
  %v2474 = vadd.s32 %v2470, 1
  %v2475 = vsel %vm2473, %v2474, %v2470
  %v2476 = vadd.s32 %v2471, %v2475
  %v2477 = vadd.s32 %v2476, 536870912
  %v2478 = vshrl.u32 %v2477, 30
  %v2479 = vshll.u32 %v2478, 30
  %v2480 = vsub.s32 %v2476, %v2479
  %vm2481 = vcmp.lt.s32.totalorder %v2480, 0
  %v2482 = vsub.s32 0, %v2480
  %v2483 = vsel %vm2481, %v2482, %v2480
  %v2484 = vclz %v2483
  %v2485 = vsub.s32 %v2484, 2
  %vm2486 = vcmp.gt.s32.totalorder 0, %v2485
  %v2487 = vsel %vm2486, 0, %v2485
  %v2488 = vsub.s32 32, %v2487
  %v2489 = vshll.u32 %v2480, %v2487
  %v2490 = vshrl.u32 %v2472, %v2488
  %v2491 = vor.u32 %v2489, %v2490
  %v2492 = vsub.s32 4294967266, %v2487
  %v2493 = vadd.s32 %v2492, 127
  %v2494 = vshll.u32 %v2493, 23
  %v2495 = vor.u32 4788187, %v2494
  %v2496 = vand.u32 2147483647, %v2495
  %v2498 = vcvt.s32.f32 %v2491
  %v2499 = vmul.f32 %v2498, %v2496
  %v2500 = vxor.u32 %v2499, 2147483648
  %v2501 = vsel %vm2380, %v2500, %v2499
  %v2502 = vsub.s32 4, %v2478
  %v2503 = vsel %vm2380, %v2502, %v2478
  %v2504 = vsel %vm2379, %v186, %v2501
  %v2505 = vsel %vm2379, 0, %v2503
  %v2506 = vmul.f32 %v2504, %v2504
  %v2507 = vmul.f32 %v2506, -0.001358992
  %v2508 = vadd.f32 %v2507, 0.041655596
  %v2509 = vmul.f32 %v2506, %v2508
  %v2510 = vadd.f32 %v2509, -0.4999988
  %v2511 = vmul.f32 %v2506, %v2510
  %v2512 = vadd.f32 1.0, %v2511
  %v2513 = vmul.f32 %v2504, %v2504
  %v2514 = vmul.f32 %v2513, -0.00019511016
  %v2515 = vadd.f32 %v2514, 0.008332121
  %v2516 = vmul.f32 %v2513, %v2515
  %v2517 = vadd.f32 %v2516, -0.16666654
  %v2518 = vmul.f32 %v2513, %v2517
  %v2519 = vadd.f32 %v2518, 1.0
  %v2520 = vmul.f32 %v2519, %v2504
  %vm2521 = vweird.f32 %v186
  %v2522 = vand.u32 %v2505, 3
  %vm2523 = vcmp.lt.s32.totalorder %v2522, 2
  %vm2524 = vcmp.eq.s32.totalorder %v2522, 0
  %v2525 = vxor.u32 %v2520, 2147483648
  %v2526 = vsel %vm2524, %v2512, %v2525
  %vm2527 = vcmp.eq.s32.totalorder %v2522, 2
  %v2528 = vxor.u32 %v2512, 2147483648
  %v2529 = vsel %vm2527, %v2528, %v2520
  %v2530 = vsel %vm2523, %v2526, %v2529
  %v2531 = vsel %vm2521, nan, %v2530
  %v2532 = vand.u32 2147483647, %v187
  %vm2533 = vcmp.le.f32.partialorder %v2532, 0.7853982
  %vm2534 = vcmp.lt.s32.totalorder %v187, 0
  %v2535 = vand.u32 %v187, 2139095040
  %v2536 = vshrl.u32 %v2535, 23
  %v2537 = vsub.s32 %v2536, 127
  %v2538 = vand.u32 2147483647, %v187
  %v2539 = vand.u32 %v2538, 8388607
  %v2540 = vor.u32 %v2539, 8388608
  %v2541 = vsub.s32 0, %v2540
  %v2542 = vadd.s32 %v2537, 1
  %vm2543 = vcmp.gt.s32.totalorder %v2542, 0
  %v2544 = vsel %vm2543, %v2542, 0
  %v2545 = vshrl.u32 %v2544, 5
  %v2546 = vand.u32 %v2544, 31
  %v2547 = vsub.s32 32, %v2546
  %v2548 = vshrl.u32 683565275, %v2547
  %v2549 = vshll.u32 683565275, %v2546
  %v2550 = vshrl.u32 2475754826, %v2547
  %v2551 = vor.u32 %v2549, %v2550
  %v2552 = vshll.u32 2475754826, %v2546
  %v2553 = vshrl.u32 2131351028, %v2547
  %v2554 = vor.u32 %v2552, %v2553
  %v2555 = vshll.u32 2131351028, %v2546
  %v2556 = vshrl.u32 2102212464, %v2547
  %v2557 = vor.u32 %v2555, %v2556
  %v2558 = vshll.u32 2102212464, %v2546
  %v2559 = vshrl.u32 920167782, %v2547
  %v2560 = vor.u32 %v2558, %v2559
  %v2561 = vshll.u32 920167782, %v2546
  %v2562 = vshrl.u32 1326507024, %v2547
  %v2563 = vor.u32 %v2561, %v2562
  %vm2564 = vcmp.lt.s32.totalorder %v2545, 1
  %vm2565 = vcmp.lt.s32.totalorder %v2545, 2
  %vm2566 = vcmp.lt.s32.totalorder %v2545, 3
  %vm2567 = vcmp.lt.s32.totalorder %v2545, 4
  %v2568 = vsel %vm2564, %v2548, %v2551
  %v2569 = vsel %vm2567, %v2557, 2102212464
  %v2570 = vsel %vm2566, %v2554, %v2569
  %v2571 = vsel %vm2565, %v2568, %v2570
  %v2572 = vsel %vm2564, %v2551, %v2554
  %v2573 = vsel %vm2567, %v2560, 920167782
  %v2574 = vsel %vm2566, %v2557, %v2573
  %v2575 = vsel %vm2565, %v2572, %v2574
  %v2576 = vsel %vm2564, %v2554, %v2557
  %v2577 = vsel %vm2567, %v2563, 1326507024
  %v2578 = vsel %vm2566, %v2560, %v2577
  %v2579 = vsel %vm2565, %v2576, %v2578
  %v2580 = vshll.u32 %v2540, 8
  %v2581 = vand.u32 %v2580, 65535
  %v2582 = vshrl.u32 %v2580, 16
  %v2583 = vand.u32 %v2579, 65535
  %v2584 = vshrl.u32 %v2579, 16
  %v2585 = vmul.u32 %v2581, %v2583
  %v2586 = vmul.u32 %v2581, %v2584
  %v2587 = vmul.u32 %v2582, %v2583
  %v2588 = vmul.u32 %v2582, %v2584
  %v2589 = vshll.u32 %v2586, 16
  %v2590 = vshrl.u32 %v2586, 16
  %v2591 = vshll.u32 %v2587, 16
  %v2592 = vshrl.u32 %v2587, 16
  %vm2593 = vc.u32 %v2585, %v2589
  %v2594 = vsel %vm2593, 1, 0
  %v2595 = vadd.s32 %v2585, %v2589
  %v2596 = vadd.s32 %v2588, %v2594
  %vm2597 = vc.u32 %v2595, %v2591
  %v2598 = vsel %vm2597, 1, 0
  %v2599 = vadd.s32 %v2595, %v2591
  %v2600 = vadd.s32 %v2596, %v2598
  %v2601 = vadd.s32 %v2600, %v2590
  %v2602 = vadd.s32 %v2601, %v2592
  %v2603 = vand.u32 %v2580, 65535
  %v2604 = vshrl.u32 %v2580, 16
  %v2605 = vand.u32 %v2575, 65535
  %v2606 = vshrl.u32 %v2575, 16
  %v2607 = vmul.u32 %v2603, %v2605
  %v2608 = vmul.u32 %v2603, %v2606
  %v2609 = vmul.u32 %v2604, %v2605
  %v2610 = vmul.u32 %v2604, %v2606
  %v2611 = vshll.u32 %v2608, 16
  %v2612 = vshrl.u32 %v2608, 16
  %v2613 = vshll.u32 %v2609, 16
  %v2614 = vshrl.u32 %v2609, 16
  %vm2615 = vc.u32 %v2607, %v2611
  %v2616 = vsel %vm2615, 1, 0
  %v2617 = vadd.s32 %v2607, %v2611
  %v2618 = vadd.s32 %v2610, %v2616
  %vm2619 = vc.u32 %v2617, %v2613
  %v2620 = vsel %vm2619, 1, 0
  %v2621 = vadd.s32 %v2617, %v2613
  %v2622 = vadd.s32 %v2618, %v2620
  %v2623 = vadd.s32 %v2622, %v2612
  %v2624 = vadd.s32 %v2623, %v2614
  %v2625 = vmul.u32 %v2580, %v2571
  %v2626 = vadd.s32 %v2602, %v2621
  %vm2627 = vc.u32 %v2602, %v2621
  %v2628 = vadd.s32 %v2624, 1
  %v2629 = vsel %vm2627, %v2628, %v2624
  %v2630 = vadd.s32 %v2625, %v2629
  %v2631 = vadd.s32 %v2630, 536870912
  %v2632 = vshrl.u32 %v2631, 30
  %v2633 = vshll.u32 %v2632, 30
  %v2634 = vsub.s32 %v2630, %v2633
  %vm2635 = vcmp.lt.s32.totalorder %v2634, 0
  %v2636 = vsub.s32 0, %v2634
  %v2637 = vsel %vm2635, %v2636, %v2634
  %v2638 = vclz %v2637
  %v2639 = vsub.s32 %v2638, 2
  %vm2640 = vcmp.gt.s32.totalorder 0, %v2639
  %v2641 = vsel %vm2640, 0, %v2639
  %v2642 = vsub.s32 32, %v2641
  %v2643 = vshll.u32 %v2634, %v2641
  %v2644 = vshrl.u32 %v2626, %v2642
  %v2645 = vor.u32 %v2643, %v2644
  %v2646 = vsub.s32 4294967266, %v2641
  %v2647 = vadd.s32 %v2646, 127
  %v2648 = vshll.u32 %v2647, 23
  %v2649 = vor.u32 4788187, %v2648
  %v2650 = vand.u32 2147483647, %v2649
  %v2652 = vcvt.s32.f32 %v2645
  %v2653 = vmul.f32 %v2652, %v2650
  %v2654 = vxor.u32 %v2653, 2147483648
  %v2655 = vsel %vm2534, %v2654, %v2653
  %v2656 = vsub.s32 4, %v2632
  %v2657 = vsel %vm2534, %v2656, %v2632
  %v2658 = vsel %vm2533, %v187, %v2655
  %v2659 = vsel %vm2533, 0, %v2657
  %v2660 = vmul.f32 %v2658, %v2658
  %v2661 = vmul.f32 %v2660, -0.001358992
  %v2662 = vadd.f32 %v2661, 0.041655596
  %v2663 = vmul.f32 %v2660, %v2662
  %v2664 = vadd.f32 %v2663, -0.4999988
  %v2665 = vmul.f32 %v2660, %v2664
  %v2666 = vadd.f32 1.0, %v2665
  %v2667 = vmul.f32 %v2658, %v2658
  %v2668 = vmul.f32 %v2667, -0.00019511016
  %v2669 = vadd.f32 %v2668, 0.008332121
  %v2670 = vmul.f32 %v2667, %v2669
  %v2671 = vadd.f32 %v2670, -0.16666654
  %v2672 = vmul.f32 %v2667, %v2671
  %v2673 = vadd.f32 %v2672, 1.0
  %v2674 = vmul.f32 %v2673, %v2658
  %vm2675 = vweird.f32 %v187
  %v2676 = vand.u32 %v2659, 3
  %vm2677 = vcmp.lt.s32.totalorder %v2676, 2
  %vm2678 = vcmp.eq.s32.totalorder %v2676, 0
  %v2679 = vxor.u32 %v2674, 2147483648
  %v2680 = vsel %vm2678, %v2666, %v2679
  %vm2681 = vcmp.eq.s32.totalorder %v2676, 2
  %v2682 = vxor.u32 %v2666, 2147483648
  %v2683 = vsel %vm2681, %v2682, %v2674
  %v2684 = vsel %vm2677, %v2680, %v2683
  %v2685 = vsel %vm2675, nan, %v2684
  %v2686 = vperm.slane %v30, 2
  %v2687 = vmul.f32 %v2686, %v1607
  %v2688 = vmul.f32 %v2686, %v1761
  %v2689 = vmul.f32 %v2686, %v1915
  %v2690 = vmul.f32 %v2686, %v2069
  %v2691 = vmul.f32 %v2686, %v2223
  %v2692 = vmul.f32 %v2686, %v2377
  %v2693 = vmul.f32 %v2686, %v2531
  %v2694 = vmul.f32 %v2686, %v2685
  %v2695 = vadd.f32 %v1446, %v2687
  %v2696 = vadd.f32 %v1447, %v2688
  %v2697 = vadd.f32 %v1448, %v2689
  %v2698 = vadd.f32 %v1449, %v2690
  %v2699 = vadd.f32 %v1450, %v2691
  %v2700 = vadd.f32 %v1451, %v2692
  %v2701 = vadd.f32 %v1452, %v2693
  %v2702 = vadd.f32 %v1453, %v2694
  %v2703 = vpack.c.bf16 %v2696, %v2695
  %v2704 = vpack.c.bf16 %v2698, %v2697
  %v2705 = vpack.c.bf16 %v2700, %v2699
  %v2706 = vpack.c.bf16 %v2702, %v2701
  %v2707 = vld [vmem:[%s2] sm:$0xf]
  %v2708 = vld [vmem:[%s2 + $0x4] sm:$0xf]
  %v2709 = vld [vmem:[%s2 + $0x8] sm:$0xf]
  %v2710 = vld [vmem:[%s2 + $0xc] sm:$0xf]
  %v2711 = vld [vmem:[%s2 + $0x10] sm:$0xf]
  %v2712 = vld [vmem:[%s2 + $0x14] sm:$0xf]
  %v2713 = vld [vmem:[%s2 + $0x18] sm:$0xf]
  %v2714 = vld [vmem:[%s2 + $0x1c] sm:$0xf]
  %v2715 = vld [vmem:[%s2 + $0x20] sm:$0xf]
  %v2716 = vld [vmem:[%s2 + $0x24] sm:$0xf]
  %v2717 = vld [vmem:[%s2 + $0x28] sm:$0xf]
  %v2718 = vld [vmem:[%s2 + $0x2c] sm:$0xf]
  %v2719 = vld [vmem:[%s2 + $0x30] sm:$0xf]
  %v2720 = vld [vmem:[%s2 + $0x34] sm:$0xf]
  %v2721 = vld [vmem:[%s2 + $0x38] sm:$0xf]
  %v2722 = vld [vmem:[%s2 + $0x3c] sm:$0xf]
  %v2723 = vperm.slane %v31, 0
  %v2740 = vunpack.c.l.b16 %v2707
  %v2741 = vunpack.c.l.b16 %v2708
  %v2742 = vunpack.c.l.b16 %v2709
  %v2743 = vunpack.c.l.b16 %v2710
  %v2744 = vunpack.c.l.b16 %v2711
  %v2745 = vunpack.c.l.b16 %v2712
  %v2746 = vunpack.c.l.b16 %v2713
  %v2747 = vunpack.c.l.b16 %v2714
  %v2748 = vunpack.c.l.b16 %v2715
  %v2749 = vunpack.c.l.b16 %v2716
  %v2750 = vunpack.c.l.b16 %v2717
  %v2751 = vunpack.c.l.b16 %v2718
  %v2752 = vunpack.c.l.b16 %v2719
  %v2753 = vunpack.c.l.b16 %v2720
  %v2754 = vunpack.c.l.b16 %v2721
  %v2755 = vunpack.c.l.b16 %v2722
  %v2756 = vpack.c.b16 %v2741, %v2740
  %v2757 = vpack.c.b16 %v2743, %v2742
  %v2758 = vpack.c.b16 %v2745, %v2744
  %v2759 = vpack.c.b16 %v2747, %v2746
  %v2760 = vpack.c.b16 %v2749, %v2748
  %v2761 = vpack.c.b16 %v2751, %v2750
  %v2762 = vpack.c.b16 %v2753, %v2752
  %v2763 = vpack.c.b16 %v2755, %v2754
  %2772 = vmatpush.bf16.msra.mxu0 %v2763
  %2773 = vmatpush.bf16.msra.mxu0 %v2762
  %2774 = vmatpush.bf16.msra.mxu0 %v2761
  %2775 = vmatpush.bf16.msra.mxu0 %v2760
  %2776 = vmatpush.bf16.msra.mxu0 %v2759
  %2777 = vmatpush.bf16.msra.mxu0 %v2758
  %2778 = vmatpush.bf16.msra.mxu0 %v2757
  %2779 = vmatpush.bf16.msra.mxu0 %v2756
  %2780 = vmatmul.bf16.gmra.mxu0 %v2703
  %v2781 = vpop.f32.mrf.mxu0
  %v2782 = vadd.f32 %v2723, %v2781
  %v2783 = vpop.f32.mrf.mxu0
  %v2784 = vadd.f32 %v2723, %v2783
  %2785 = vmatmul.bf16.gmra.mxu0 %v2704
  %v2786 = vpop.f32.mrf.mxu0
  %v2787 = vadd.f32 %v2723, %v2786
  %v2788 = vpop.f32.mrf.mxu0
  %v2789 = vadd.f32 %v2723, %v2788
  %2790 = vmatmul.bf16.gmra.mxu0 %v2705
  %v2791 = vpop.f32.mrf.mxu0
  %v2792 = vadd.f32 %v2723, %v2791
  %v2793 = vpop.f32.mrf.mxu0
  %v2794 = vadd.f32 %v2723, %v2793
  %2795 = vmatmul.bf16.gmra.mxu0 %v2706
  %v2796 = vpop.f32.mrf.mxu0
  %v2797 = vadd.f32 %v2723, %v2796
  %v2798 = vpop.f32.mrf.mxu0
  %v2799 = vadd.f32 %v2723, %v2798
  %2800 = vdwg.mxu0
  %v2801 = vmax.f32 %v2782, 0.0
  %v2802 = vmax.f32 %v2784, 0.0
  %v2803 = vmax.f32 %v2787, 0.0
  %v2804 = vmax.f32 %v2789, 0.0
  %v2805 = vmax.f32 %v2792, 0.0
  %v2806 = vmax.f32 %v2794, 0.0
  %v2807 = vmax.f32 %v2797, 0.0
  %v2808 = vmax.f32 %v2799, 0.0
  %v2809 = vpack.c.bf16 %v2802, %v2801
  %v2810 = vpack.c.bf16 %v2804, %v2803
  %v2811 = vpack.c.bf16 %v2806, %v2805
  %v2812 = vpack.c.bf16 %v2808, %v2807
  %s2813 = scalar_lea.vmem %s2, 64
  %v2814 = vld [vmem:[%s2813] sm:$0xf]
  %v2815 = vld [vmem:[%s2813 + $0x4] sm:$0xf]
  %v2816 = vld [vmem:[%s2813 + $0x8] sm:$0xf]
  %v2817 = vld [vmem:[%s2813 + $0xc] sm:$0xf]
  %v2818 = vld [vmem:[%s2813 + $0x10] sm:$0xf]
  %v2819 = vld [vmem:[%s2813 + $0x14] sm:$0xf]
  %v2820 = vld [vmem:[%s2813 + $0x18] sm:$0xf]
  %v2821 = vld [vmem:[%s2813 + $0x1c] sm:$0xf]
  %v2822 = vld [vmem:[%s2813 + $0x20] sm:$0xf]
  %v2823 = vld [vmem:[%s2813 + $0x24] sm:$0xf]
  %v2824 = vld [vmem:[%s2813 + $0x28] sm:$0xf]
  %v2825 = vld [vmem:[%s2813 + $0x2c] sm:$0xf]
  %v2826 = vld [vmem:[%s2813 + $0x30] sm:$0xf]
  %v2827 = vld [vmem:[%s2813 + $0x34] sm:$0xf]
  %v2828 = vld [vmem:[%s2813 + $0x38] sm:$0xf]
  %v2829 = vld [vmem:[%s2813 + $0x3c] sm:$0xf]
  %v2830 = vperm.slane %v31, 1
  %v2847 = vunpack.c.l.b16 %v2814
  %v2848 = vunpack.c.l.b16 %v2815
  %v2849 = vunpack.c.l.b16 %v2816
  %v2850 = vunpack.c.l.b16 %v2817
  %v2851 = vunpack.c.l.b16 %v2818
  %v2852 = vunpack.c.l.b16 %v2819
  %v2853 = vunpack.c.l.b16 %v2820
  %v2854 = vunpack.c.l.b16 %v2821
  %v2855 = vunpack.c.l.b16 %v2822
  %v2856 = vunpack.c.l.b16 %v2823
  %v2857 = vunpack.c.l.b16 %v2824
  %v2858 = vunpack.c.l.b16 %v2825
  %v2859 = vunpack.c.l.b16 %v2826
  %v2860 = vunpack.c.l.b16 %v2827
  %v2861 = vunpack.c.l.b16 %v2828
  %v2862 = vunpack.c.l.b16 %v2829
  %v2863 = vpack.c.b16 %v2848, %v2847
  %v2864 = vpack.c.b16 %v2850, %v2849
  %v2865 = vpack.c.b16 %v2852, %v2851
  %v2866 = vpack.c.b16 %v2854, %v2853
  %v2867 = vpack.c.b16 %v2856, %v2855
  %v2868 = vpack.c.b16 %v2858, %v2857
  %v2869 = vpack.c.b16 %v2860, %v2859
  %v2870 = vpack.c.b16 %v2862, %v2861
  %2879 = vmatpush.bf16.msra.mxu0 %v2870
  %2880 = vmatpush.bf16.msra.mxu0 %v2869
  %2881 = vmatpush.bf16.msra.mxu0 %v2868
  %2882 = vmatpush.bf16.msra.mxu0 %v2867
  %2883 = vmatpush.bf16.msra.mxu0 %v2866
  %2884 = vmatpush.bf16.msra.mxu0 %v2865
  %2885 = vmatpush.bf16.msra.mxu0 %v2864
  %2886 = vmatpush.bf16.msra.mxu0 %v2863
  %2887 = vmatmul.bf16.gmra.mxu0 %v2809
  %v2888 = vpop.f32.mrf.mxu0
  %v2889 = vadd.f32 %v2830, %v2888
  %v2890 = vpop.f32.mrf.mxu0
  %v2891 = vadd.f32 %v2830, %v2890
  %2892 = vmatmul.bf16.gmra.mxu0 %v2810
  %v2893 = vpop.f32.mrf.mxu0
  %v2894 = vadd.f32 %v2830, %v2893
  %v2895 = vpop.f32.mrf.mxu0
  %v2896 = vadd.f32 %v2830, %v2895
  %2897 = vmatmul.bf16.gmra.mxu0 %v2811
  %v2898 = vpop.f32.mrf.mxu0
  %v2899 = vadd.f32 %v2830, %v2898
  %v2900 = vpop.f32.mrf.mxu0
  %v2901 = vadd.f32 %v2830, %v2900
  %2902 = vmatmul.bf16.gmra.mxu0 %v2812
  %v2903 = vpop.f32.mrf.mxu0
  %v2904 = vadd.f32 %v2830, %v2903
  %v2905 = vpop.f32.mrf.mxu0
  %v2906 = vadd.f32 %v2830, %v2905
  %2907 = vdwg.mxu0
  %v2908 = vmax.f32 %v2889, 0.0
  %v2909 = vmax.f32 %v2891, 0.0
  %v2910 = vmax.f32 %v2894, 0.0
  %v2911 = vmax.f32 %v2896, 0.0
  %v2912 = vmax.f32 %v2899, 0.0
  %v2913 = vmax.f32 %v2901, 0.0
  %v2914 = vmax.f32 %v2904, 0.0
  %v2915 = vmax.f32 %v2906, 0.0
  %v2916 = vpack.c.bf16 %v2909, %v2908
  %v2917 = vpack.c.bf16 %v2911, %v2910
  %v2918 = vpack.c.bf16 %v2913, %v2912
  %v2919 = vpack.c.bf16 %v2915, %v2914
  %s2920 = scalar_lea.vmem %s2, 128
  %v2921 = vld [vmem:[%s2920] sm:$0xf]
  %v2922 = vld [vmem:[%s2920 + $0x4] sm:$0xf]
  %v2923 = vld [vmem:[%s2920 + $0x8] sm:$0xf]
  %v2924 = vld [vmem:[%s2920 + $0xc] sm:$0xf]
  %v2925 = vld [vmem:[%s2920 + $0x10] sm:$0xf]
  %v2926 = vld [vmem:[%s2920 + $0x14] sm:$0xf]
  %v2927 = vld [vmem:[%s2920 + $0x18] sm:$0xf]
  %v2928 = vld [vmem:[%s2920 + $0x1c] sm:$0xf]
  %v2929 = vld [vmem:[%s2920 + $0x20] sm:$0xf]
  %v2930 = vld [vmem:[%s2920 + $0x24] sm:$0xf]
  %v2931 = vld [vmem:[%s2920 + $0x28] sm:$0xf]
  %v2932 = vld [vmem:[%s2920 + $0x2c] sm:$0xf]
  %v2933 = vld [vmem:[%s2920 + $0x30] sm:$0xf]
  %v2934 = vld [vmem:[%s2920 + $0x34] sm:$0xf]
  %v2935 = vld [vmem:[%s2920 + $0x38] sm:$0xf]
  %v2936 = vld [vmem:[%s2920 + $0x3c] sm:$0xf]
  %v2937 = vperm.slane %v31, 2
  %v2954 = vunpack.c.l.b16 %v2921
  %v2955 = vunpack.c.l.b16 %v2922
  %v2956 = vunpack.c.l.b16 %v2923
  %v2957 = vunpack.c.l.b16 %v2924
  %v2958 = vunpack.c.l.b16 %v2925
  %v2959 = vunpack.c.l.b16 %v2926
  %v2960 = vunpack.c.l.b16 %v2927
  %v2961 = vunpack.c.l.b16 %v2928
  %v2962 = vunpack.c.l.b16 %v2929
  %v2963 = vunpack.c.l.b16 %v2930
  %v2964 = vunpack.c.l.b16 %v2931
  %v2965 = vunpack.c.l.b16 %v2932
  %v2966 = vunpack.c.l.b16 %v2933
  %v2967 = vunpack.c.l.b16 %v2934
  %v2968 = vunpack.c.l.b16 %v2935
  %v2969 = vunpack.c.l.b16 %v2936
  %v2970 = vpack.c.b16 %v2955, %v2954
  %v2971 = vpack.c.b16 %v2957, %v2956
  %v2972 = vpack.c.b16 %v2959, %v2958
  %v2973 = vpack.c.b16 %v2961, %v2960
  %v2974 = vpack.c.b16 %v2963, %v2962
  %v2975 = vpack.c.b16 %v2965, %v2964
  %v2976 = vpack.c.b16 %v2967, %v2966
  %v2977 = vpack.c.b16 %v2969, %v2968
  %2986 = vmatpush.bf16.msra.mxu0 %v2977
  %2987 = vmatpush.bf16.msra.mxu0 %v2976
  %2988 = vmatpush.bf16.msra.mxu0 %v2975
  %2989 = vmatpush.bf16.msra.mxu0 %v2974
  %2990 = vmatpush.bf16.msra.mxu0 %v2973
  %2991 = vmatpush.bf16.msra.mxu0 %v2972
  %2992 = vmatpush.bf16.msra.mxu0 %v2971
  %2993 = vmatpush.bf16.msra.mxu0 %v2970
  %2994 = vmatmul.bf16.gmra.mxu0 %v2916
  %v2995 = vpop.f32.mrf.mxu0
  %v2996 = vadd.f32 %v2937, %v2995
  %v2997 = vpop.f32.mrf.mxu0
  %v2998 = vadd.f32 %v2937, %v2997
  %2999 = vmatmul.bf16.gmra.mxu0 %v2917
  %v3000 = vpop.f32.mrf.mxu0
  %v3001 = vadd.f32 %v2937, %v3000
  %v3002 = vpop.f32.mrf.mxu0
  %v3003 = vadd.f32 %v2937, %v3002
  %3004 = vmatmul.bf16.gmra.mxu0 %v2918
  %v3005 = vpop.f32.mrf.mxu0
  %v3006 = vadd.f32 %v2937, %v3005
  %v3007 = vpop.f32.mrf.mxu0
  %v3008 = vadd.f32 %v2937, %v3007
  %3009 = vmatmul.bf16.gmra.mxu0 %v2919
  %v3010 = vpop.f32.mrf.mxu0
  %v3011 = vadd.f32 %v2937, %v3010
  %v3012 = vpop.f32.mrf.mxu0
  %v3013 = vadd.f32 %v2937, %v3012
  %3014 = vdwg.mxu0
  %v3015 = vmax.f32 %v2996, 0.0
  %v3016 = vmax.f32 %v2998, 0.0
  %v3017 = vmax.f32 %v3001, 0.0
  %v3018 = vmax.f32 %v3003, 0.0
  %v3019 = vmax.f32 %v3006, 0.0
  %v3020 = vmax.f32 %v3008, 0.0
  %v3021 = vmax.f32 %v3011, 0.0
  %v3022 = vmax.f32 %v3013, 0.0
  %v3023 = vpack.c.bf16 %v3016, %v3015
  %v3024 = vpack.c.bf16 %v3018, %v3017
  %v3025 = vpack.c.bf16 %v3020, %v3019
  %v3026 = vpack.c.bf16 %v3022, %v3021
  %s3027 = scalar_lea.vmem %s2, 192
  %v3028 = vld [vmem:[%s3027] sm:$0xf]
  %v3029 = vld [vmem:[%s3027 + $0x4] sm:$0xf]
  %v3030 = vld [vmem:[%s3027 + $0x8] sm:$0xf]
  %v3031 = vld [vmem:[%s3027 + $0xc] sm:$0xf]
  %v3032 = vld [vmem:[%s3027 + $0x10] sm:$0xf]
  %v3033 = vld [vmem:[%s3027 + $0x14] sm:$0xf]
  %v3034 = vld [vmem:[%s3027 + $0x18] sm:$0xf]
  %v3035 = vld [vmem:[%s3027 + $0x1c] sm:$0xf]
  %v3036 = vld [vmem:[%s3027 + $0x20] sm:$0xf]
  %v3037 = vld [vmem:[%s3027 + $0x24] sm:$0xf]
  %v3038 = vld [vmem:[%s3027 + $0x28] sm:$0xf]
  %v3039 = vld [vmem:[%s3027 + $0x2c] sm:$0xf]
  %v3040 = vld [vmem:[%s3027 + $0x30] sm:$0xf]
  %v3041 = vld [vmem:[%s3027 + $0x34] sm:$0xf]
  %v3042 = vld [vmem:[%s3027 + $0x38] sm:$0xf]
  %v3043 = vld [vmem:[%s3027 + $0x3c] sm:$0xf]
  %v3044 = vperm.slane %v31, 3
  %v3061 = vunpack.c.l.b16 %v3028
  %v3062 = vunpack.c.l.b16 %v3029
  %v3063 = vunpack.c.l.b16 %v3030
  %v3064 = vunpack.c.l.b16 %v3031
  %v3065 = vunpack.c.l.b16 %v3032
  %v3066 = vunpack.c.l.b16 %v3033
  %v3067 = vunpack.c.l.b16 %v3034
  %v3068 = vunpack.c.l.b16 %v3035
  %v3069 = vunpack.c.l.b16 %v3036
  %v3070 = vunpack.c.l.b16 %v3037
  %v3071 = vunpack.c.l.b16 %v3038
  %v3072 = vunpack.c.l.b16 %v3039
  %v3073 = vunpack.c.l.b16 %v3040
  %v3074 = vunpack.c.l.b16 %v3041
  %v3075 = vunpack.c.l.b16 %v3042
  %v3076 = vunpack.c.l.b16 %v3043
  %v3077 = vpack.c.b16 %v3062, %v3061
  %v3078 = vpack.c.b16 %v3064, %v3063
  %v3079 = vpack.c.b16 %v3066, %v3065
  %v3080 = vpack.c.b16 %v3068, %v3067
  %v3081 = vpack.c.b16 %v3070, %v3069
  %v3082 = vpack.c.b16 %v3072, %v3071
  %v3083 = vpack.c.b16 %v3074, %v3073
  %v3084 = vpack.c.b16 %v3076, %v3075
  %3093 = vmatpush.bf16.msra.mxu0 %v3084
  %3094 = vmatpush.bf16.msra.mxu0 %v3083
  %3095 = vmatpush.bf16.msra.mxu0 %v3082
  %3096 = vmatpush.bf16.msra.mxu0 %v3081
  %3097 = vmatpush.bf16.msra.mxu0 %v3080
  %3098 = vmatpush.bf16.msra.mxu0 %v3079
  %3099 = vmatpush.bf16.msra.mxu0 %v3078
  %3100 = vmatpush.bf16.msra.mxu0 %v3077
  %3101 = vmatmul.bf16.gmra.mxu0 %v3023
  %v3102 = vpop.f32.mrf.mxu0
  %v3103 = vadd.f32 %v3044, %v3102
  %v3104 = vpop.f32.mrf.mxu0
  %v3105 = vadd.f32 %v3044, %v3104
  %3106 = vmatmul.bf16.gmra.mxu0 %v3024
  %v3107 = vpop.f32.mrf.mxu0
  %v3108 = vadd.f32 %v3044, %v3107
  %v3109 = vpop.f32.mrf.mxu0
  %v3110 = vadd.f32 %v3044, %v3109
  %3111 = vmatmul.bf16.gmra.mxu0 %v3025
  %v3112 = vpop.f32.mrf.mxu0
  %v3113 = vadd.f32 %v3044, %v3112
  %v3114 = vpop.f32.mrf.mxu0
  %v3115 = vadd.f32 %v3044, %v3114
  %3116 = vmatmul.bf16.gmra.mxu0 %v3026
  %v3117 = vpop.f32.mrf.mxu0
  %v3118 = vadd.f32 %v3044, %v3117
  %v3119 = vpop.f32.mrf.mxu0
  %v3120 = vadd.f32 %v3044, %v3119
  %3121 = vdwg.mxu0
  %v3122 = vmax.f32 %v3103, 0.0
  %v3123 = vmax.f32 %v3105, 0.0
  %v3124 = vmax.f32 %v3108, 0.0
  %v3125 = vmax.f32 %v3110, 0.0
  %v3126 = vmax.f32 %v3113, 0.0
  %v3127 = vmax.f32 %v3115, 0.0
  %v3128 = vmax.f32 %v3118, 0.0
  %v3129 = vmax.f32 %v3120, 0.0
  %v3130 = vpack.c.bf16 %v3123, %v3122
  %v3131 = vpack.c.bf16 %v3125, %v3124
  %v3132 = vpack.c.bf16 %v3127, %v3126
  %v3133 = vpack.c.bf16 %v3129, %v3128
  %v3134 = vld [vmem:[%s4] sm:$0xf]
  %v3135 = vld [vmem:[%s4 + $0x4] sm:$0xf]
  %v3136 = vld [vmem:[%s4 + $0x8] sm:$0xf]
  %v3137 = vld [vmem:[%s4 + $0xc] sm:$0xf]
  %v3138 = vld [vmem:[%s4 + $0x10] sm:$0xf]
  %v3139 = vld [vmem:[%s4 + $0x14] sm:$0xf]
  %v3140 = vld [vmem:[%s4 + $0x18] sm:$0xf]
  %v3141 = vld [vmem:[%s4 + $0x1c] sm:$0xf]
  %v3142 = vld [vmem:[%s4 + $0x20] sm:$0xf]
  %v3143 = vld [vmem:[%s4 + $0x24] sm:$0xf]
  %v3144 = vld [vmem:[%s4 + $0x28] sm:$0xf]
  %v3145 = vld [vmem:[%s4 + $0x2c] sm:$0xf]
  %v3146 = vld [vmem:[%s4 + $0x30] sm:$0xf]
  %v3147 = vld [vmem:[%s4 + $0x34] sm:$0xf]
  %v3148 = vld [vmem:[%s4 + $0x38] sm:$0xf]
  %v3149 = vld [vmem:[%s4 + $0x3c] sm:$0xf]
  %v3150 = vperm.slane %v32, 0
  %v3167 = vunpack.c.l.b16 %v3134
  %v3168 = vunpack.c.l.b16 %v3135
  %v3169 = vunpack.c.l.b16 %v3136
  %v3170 = vunpack.c.l.b16 %v3137
  %v3171 = vunpack.c.l.b16 %v3138
  %v3172 = vunpack.c.l.b16 %v3139
  %v3173 = vunpack.c.l.b16 %v3140
  %v3174 = vunpack.c.l.b16 %v3141
  %v3175 = vunpack.c.l.b16 %v3142
  %v3176 = vunpack.c.l.b16 %v3143
  %v3177 = vunpack.c.l.b16 %v3144
  %v3178 = vunpack.c.l.b16 %v3145
  %v3179 = vunpack.c.l.b16 %v3146
  %v3180 = vunpack.c.l.b16 %v3147
  %v3181 = vunpack.c.l.b16 %v3148
  %v3182 = vunpack.c.l.b16 %v3149
  %v3183 = vpack.c.b16 %v3168, %v3167
  %v3184 = vpack.c.b16 %v3170, %v3169
  %v3185 = vpack.c.b16 %v3172, %v3171
  %v3186 = vpack.c.b16 %v3174, %v3173
  %v3187 = vpack.c.b16 %v3176, %v3175
  %v3188 = vpack.c.b16 %v3178, %v3177
  %v3189 = vpack.c.b16 %v3180, %v3179
  %v3190 = vpack.c.b16 %v3182, %v3181
  %3199 = vmatpush.bf16.msra.mxu0 %v3190
  %3200 = vmatpush.bf16.msra.mxu0 %v3189
  %3201 = vmatpush.bf16.msra.mxu0 %v3188
  %3202 = vmatpush.bf16.msra.mxu0 %v3187
  %3203 = vmatpush.bf16.msra.mxu0 %v3186
  %3204 = vmatpush.bf16.msra.mxu0 %v3185
  %3205 = vmatpush.bf16.msra.mxu0 %v3184
  %3206 = vmatpush.bf16.msra.mxu0 %v3183
  %3207 = vmatmul.bf16.gmra.mxu0 %v3130
  %v3208 = vpop.f32.mrf.mxu0
  %v3209 = vadd.f32 %v3150, %v3208
  %v3210 = vpop.f32.mrf.mxu0
  %v3211 = vadd.f32 %v3150, %v3210
  %3212 = vmatmul.bf16.gmra.mxu0 %v3131
  %v3213 = vpop.f32.mrf.mxu0
  %v3214 = vadd.f32 %v3150, %v3213
  %v3215 = vpop.f32.mrf.mxu0
  %v3216 = vadd.f32 %v3150, %v3215
  %3217 = vmatmul.bf16.gmra.mxu0 %v3132
  %v3218 = vpop.f32.mrf.mxu0
  %v3219 = vadd.f32 %v3150, %v3218
  %v3220 = vpop.f32.mrf.mxu0
  %v3221 = vadd.f32 %v3150, %v3220
  %3222 = vmatmul.bf16.gmra.mxu0 %v3133
  %v3223 = vpop.f32.mrf.mxu0
  %v3224 = vadd.f32 %v3150, %v3223
  %v3225 = vpop.f32.mrf.mxu0
  %v3226 = vadd.f32 %v3150, %v3225
  %3227 = vdwg.mxu0
  %v3228 = vpack.c.bf16 %v3211, %v3209
  %v3229 = vpack.c.bf16 %v3216, %v3214
  %v3230 = vpack.c.bf16 %v3221, %v3219
  %v3231 = vpack.c.bf16 %v3226, %v3224
  %v3232 = vperm.slane %v32, 3
  %v3233 = vmul.f32 %v3209, %v3232
  %v3234 = vmul.f32 %v3211, %v3232
  %v3235 = vmul.f32 %v3214, %v3232
  %v3236 = vmul.f32 %v3216, %v3232
  %v3237 = vmul.f32 %v3219, %v3232
  %v3238 = vmul.f32 %v3221, %v3232
  %v3239 = vmul.f32 %v3224, %v3232
  %v3240 = vmul.f32 %v3226, %v3232
  %v3241 = vld [vmem:[%s1] sm:$0xff]
  %3243 = vset.pattern.permute.xlu0 0
  %3244 = vperm.xlu0 %3243, %v3241
  %v3245 = vpop.permute.xlu0 %3244
  %v3247 = vperm.slane %v29, 3
  %v3248 = vmul.f32 %v3245, %v3247
  %3249 = vset.pattern.permute.xlu0 1
  %3250 = vperm.xlu0 %3249, %v3241
  %v3251 = vpop.permute.xlu0 %3250
  %v3253 = vperm.slane %v29, 4
  %v3254 = vmul.f32 %v3251, %v3253
  %v3255 = vadd.f32 %v3248, %v3254
  %3256 = vset.pattern.permute.xlu0 2
  %3257 = vperm.xlu0 %3256, %v3241
  %v3258 = vpop.permute.xlu0 %3257
  %v3260 = vperm.slane %v29, 5
  %v3261 = vmul.f32 %v3258, %v3260
  %v3262 = vadd.f32 %v3255, %v3261
  %v3263 = vperm.slane %v30, 3
  %v3264 = vmul.f32 %v3263, %v3262
  %v3265 = vand.u32 2147483647, %v3262
  %vm3266 = vcmp.le.f32.partialorder %v3265, 0.7853982
  %vm3267 = vcmp.lt.s32.totalorder %v3262, 0
  %v3268 = vand.u32 %v3262, 2139095040
  %v3269 = vshrl.u32 %v3268, 23
  %v3270 = vsub.s32 %v3269, 127
  %v3271 = vand.u32 2147483647, %v3262
  %v3272 = vand.u32 %v3271, 8388607
  %v3273 = vor.u32 %v3272, 8388608
  %v3274 = vsub.s32 0, %v3273
  %v3275 = vadd.s32 %v3270, 1
  %vm3276 = vcmp.gt.s32.totalorder %v3275, 0
  %v3277 = vsel %vm3276, %v3275, 0
  %v3278 = vshrl.u32 %v3277, 5
  %v3279 = vand.u32 %v3277, 31
  %v3280 = vsub.s32 32, %v3279
  %v3281 = vshrl.u32 683565275, %v3280
  %v3282 = vshll.u32 683565275, %v3279
  %v3283 = vshrl.u32 2475754826, %v3280
  %v3284 = vor.u32 %v3282, %v3283
  %v3285 = vshll.u32 2475754826, %v3279
  %v3286 = vshrl.u32 2131351028, %v3280
  %v3287 = vor.u32 %v3285, %v3286
  %v3288 = vshll.u32 2131351028, %v3279
  %v3289 = vshrl.u32 2102212464, %v3280
  %v3290 = vor.u32 %v3288, %v3289
  %v3291 = vshll.u32 2102212464, %v3279
  %v3292 = vshrl.u32 920167782, %v3280
  %v3293 = vor.u32 %v3291, %v3292
  %v3294 = vshll.u32 920167782, %v3279
  %v3295 = vshrl.u32 1326507024, %v3280
  %v3296 = vor.u32 %v3294, %v3295
  %vm3297 = vcmp.lt.s32.totalorder %v3278, 1
  %vm3298 = vcmp.lt.s32.totalorder %v3278, 2
  %vm3299 = vcmp.lt.s32.totalorder %v3278, 3
  %vm3300 = vcmp.lt.s32.totalorder %v3278, 4
  %v3301 = vsel %vm3297, %v3281, %v3284
  %v3302 = vsel %vm3300, %v3290, 2102212464
  %v3303 = vsel %vm3299, %v3287, %v3302
  %v3304 = vsel %vm3298, %v3301, %v3303
  %v3305 = vsel %vm3297, %v3284, %v3287
  %v3306 = vsel %vm3300, %v3293, 920167782
  %v3307 = vsel %vm3299, %v3290, %v3306
  %v3308 = vsel %vm3298, %v3305, %v3307
  %v3309 = vsel %vm3297, %v3287, %v3290
  %v3310 = vsel %vm3300, %v3296, 1326507024
  %v3311 = vsel %vm3299, %v3293, %v3310
  %v3312 = vsel %vm3298, %v3309, %v3311
  %v3313 = vshll.u32 %v3273, 8
  %v3314 = vand.u32 %v3313, 65535
  %v3315 = vshrl.u32 %v3313, 16
  %v3316 = vand.u32 %v3312, 65535
  %v3317 = vshrl.u32 %v3312, 16
  %v3318 = vmul.u32 %v3314, %v3316
  %v3319 = vmul.u32 %v3314, %v3317
  %v3320 = vmul.u32 %v3315, %v3316
  %v3321 = vmul.u32 %v3315, %v3317
  %v3322 = vshll.u32 %v3319, 16
  %v3323 = vshrl.u32 %v3319, 16
  %v3324 = vshll.u32 %v3320, 16
  %v3325 = vshrl.u32 %v3320, 16
  %vm3326 = vc.u32 %v3318, %v3322
  %v3327 = vsel %vm3326, 1, 0
  %v3328 = vadd.s32 %v3318, %v3322
  %v3329 = vadd.s32 %v3321, %v3327
  %vm3330 = vc.u32 %v3328, %v3324
  %v3331 = vsel %vm3330, 1, 0
  %v3332 = vadd.s32 %v3328, %v3324
  %v3333 = vadd.s32 %v3329, %v3331
  %v3334 = vadd.s32 %v3333, %v3323
  %v3335 = vadd.s32 %v3334, %v3325
  %v3336 = vand.u32 %v3313, 65535
  %v3337 = vshrl.u32 %v3313, 16
  %v3338 = vand.u32 %v3308, 65535
  %v3339 = vshrl.u32 %v3308, 16
  %v3340 = vmul.u32 %v3336, %v3338
  %v3341 = vmul.u32 %v3336, %v3339
  %v3342 = vmul.u32 %v3337, %v3338
  %v3343 = vmul.u32 %v3337, %v3339
  %v3344 = vshll.u32 %v3341, 16
  %v3345 = vshrl.u32 %v3341, 16
  %v3346 = vshll.u32 %v3342, 16
  %v3347 = vshrl.u32 %v3342, 16
  %vm3348 = vc.u32 %v3340, %v3344
  %v3349 = vsel %vm3348, 1, 0
  %v3350 = vadd.s32 %v3340, %v3344
  %v3351 = vadd.s32 %v3343, %v3349
  %vm3352 = vc.u32 %v3350, %v3346
  %v3353 = vsel %vm3352, 1, 0
  %v3354 = vadd.s32 %v3350, %v3346
  %v3355 = vadd.s32 %v3351, %v3353
  %v3356 = vadd.s32 %v3355, %v3345
  %v3357 = vadd.s32 %v3356, %v3347
  %v3358 = vmul.u32 %v3313, %v3304
  %v3359 = vadd.s32 %v3335, %v3354
  %vm3360 = vc.u32 %v3335, %v3354
  %v3361 = vadd.s32 %v3357, 1
  %v3362 = vsel %vm3360, %v3361, %v3357
  %v3363 = vadd.s32 %v3358, %v3362
  %v3364 = vadd.s32 %v3363, 536870912
  %v3365 = vshrl.u32 %v3364, 30
  %v3366 = vshll.u32 %v3365, 30
  %v3367 = vsub.s32 %v3363, %v3366
  %vm3368 = vcmp.lt.s32.totalorder %v3367, 0
  %v3369 = vsub.s32 0, %v3367
  %v3370 = vsel %vm3368, %v3369, %v3367
  %v3371 = vclz %v3370
  %v3372 = vsub.s32 %v3371, 2
  %vm3373 = vcmp.gt.s32.totalorder 0, %v3372
  %v3374 = vsel %vm3373, 0, %v3372
  %v3375 = vsub.s32 32, %v3374
  %v3376 = vshll.u32 %v3367, %v3374
  %v3377 = vshrl.u32 %v3359, %v3375
  %v3378 = vor.u32 %v3376, %v3377
  %v3379 = vsub.s32 4294967266, %v3374
  %v3380 = vadd.s32 %v3379, 127
  %v3381 = vshll.u32 %v3380, 23
  %v3382 = vor.u32 4788187, %v3381
  %v3383 = vand.u32 2147483647, %v3382
  %v3385 = vcvt.s32.f32 %v3378
  %v3386 = vmul.f32 %v3385, %v3383
  %v3387 = vxor.u32 %v3386, 2147483648
  %v3388 = vsel %vm3267, %v3387, %v3386
  %v3389 = vsub.s32 4, %v3365
  %v3390 = vsel %vm3267, %v3389, %v3365
  %v3391 = vsel %vm3266, %v3262, %v3388
  %v3392 = vsel %vm3266, 0, %v3390
  %v3393 = vmul.f32 %v3391, %v3391
  %v3394 = vmul.f32 %v3393, -0.001358992
  %v3395 = vadd.f32 %v3394, 0.041655596
  %v3396 = vmul.f32 %v3393, %v3395
  %v3397 = vadd.f32 %v3396, -0.4999988
  %v3398 = vmul.f32 %v3393, %v3397
  %v3399 = vadd.f32 1.0, %v3398
  %v3400 = vmul.f32 %v3391, %v3391
  %v3401 = vmul.f32 %v3400, -0.00019511016
  %v3402 = vadd.f32 %v3401, 0.008332121
  %v3403 = vmul.f32 %v3400, %v3402
  %v3404 = vadd.f32 %v3403, -0.16666654
  %v3405 = vmul.f32 %v3400, %v3404
  %v3406 = vadd.f32 %v3405, 1.0
  %v3407 = vmul.f32 %v3406, %v3391
  %vm3408 = vweird.f32 %v3262
  %v3409 = vadd.s32 %v3392, 3
  %v3410 = vand.u32 %v3409, 3
  %vm3411 = vcmp.lt.s32.totalorder %v3410, 2
  %vm3412 = vcmp.eq.s32.totalorder %v3410, 0
  %v3413 = vxor.u32 %v3407, 2147483648
  %v3414 = vsel %vm3412, %v3399, %v3413
  %vm3415 = vcmp.eq.s32.totalorder %v3410, 2
  %v3416 = vxor.u32 %v3399, 2147483648
  %v3417 = vsel %vm3415, %v3416, %v3407
  %v3418 = vsel %vm3411, %v3414, %v3417
  %v3419 = vsel %vm3408, nan, %v3418
  %v3420 = vperm.slane %v30, 4
  %v3421 = vmul.f32 %v3420, %v3419
  %v3422 = vadd.f32 %v3264, %v3421
  %v3423 = vand.u32 2147483647, %v3262
  %vm3424 = vcmp.le.f32.partialorder %v3423, 0.7853982
  %vm3425 = vcmp.lt.s32.totalorder %v3262, 0
  %v3426 = vand.u32 %v3262, 2139095040
  %v3427 = vshrl.u32 %v3426, 23
  %v3428 = vsub.s32 %v3427, 127
  %v3429 = vand.u32 2147483647, %v3262
  %v3430 = vand.u32 %v3429, 8388607
  %v3431 = vor.u32 %v3430, 8388608
  %v3432 = vsub.s32 0, %v3431
  %v3433 = vadd.s32 %v3428, 1
  %vm3434 = vcmp.gt.s32.totalorder %v3433, 0
  %v3435 = vsel %vm3434, %v3433, 0
  %v3436 = vshrl.u32 %v3435, 5
  %v3437 = vand.u32 %v3435, 31
  %v3438 = vsub.s32 32, %v3437
  %v3439 = vshrl.u32 683565275, %v3438
  %v3440 = vshll.u32 683565275, %v3437
  %v3441 = vshrl.u32 2475754826, %v3438
  %v3442 = vor.u32 %v3440, %v3441
  %v3443 = vshll.u32 2475754826, %v3437
  %v3444 = vshrl.u32 2131351028, %v3438
  %v3445 = vor.u32 %v3443, %v3444
  %v3446 = vshll.u32 2131351028, %v3437
  %v3447 = vshrl.u32 2102212464, %v3438
  %v3448 = vor.u32 %v3446, %v3447
  %v3449 = vshll.u32 2102212464, %v3437
  %v3450 = vshrl.u32 920167782, %v3438
  %v3451 = vor.u32 %v3449, %v3450
  %v3452 = vshll.u32 920167782, %v3437
  %v3453 = vshrl.u32 1326507024, %v3438
  %v3454 = vor.u32 %v3452, %v3453
  %vm3455 = vcmp.lt.s32.totalorder %v3436, 1
  %vm3456 = vcmp.lt.s32.totalorder %v3436, 2
  %vm3457 = vcmp.lt.s32.totalorder %v3436, 3
  %vm3458 = vcmp.lt.s32.totalorder %v3436, 4
  %v3459 = vsel %vm3455, %v3439, %v3442
  %v3460 = vsel %vm3458, %v3448, 2102212464
  %v3461 = vsel %vm3457, %v3445, %v3460
  %v3462 = vsel %vm3456, %v3459, %v3461
  %v3463 = vsel %vm3455, %v3442, %v3445
  %v3464 = vsel %vm3458, %v3451, 920167782
  %v3465 = vsel %vm3457, %v3448, %v3464
  %v3466 = vsel %vm3456, %v3463, %v3465
  %v3467 = vsel %vm3455, %v3445, %v3448
  %v3468 = vsel %vm3458, %v3454, 1326507024
  %v3469 = vsel %vm3457, %v3451, %v3468
  %v3470 = vsel %vm3456, %v3467, %v3469
  %v3471 = vshll.u32 %v3431, 8
  %v3472 = vand.u32 %v3471, 65535
  %v3473 = vshrl.u32 %v3471, 16
  %v3474 = vand.u32 %v3470, 65535
  %v3475 = vshrl.u32 %v3470, 16
  %v3476 = vmul.u32 %v3472, %v3474
  %v3477 = vmul.u32 %v3472, %v3475
  %v3478 = vmul.u32 %v3473, %v3474
  %v3479 = vmul.u32 %v3473, %v3475
  %v3480 = vshll.u32 %v3477, 16
  %v3481 = vshrl.u32 %v3477, 16
  %v3482 = vshll.u32 %v3478, 16
  %v3483 = vshrl.u32 %v3478, 16
  %vm3484 = vc.u32 %v3476, %v3480
  %v3485 = vsel %vm3484, 1, 0
  %v3486 = vadd.s32 %v3476, %v3480
  %v3487 = vadd.s32 %v3479, %v3485
  %vm3488 = vc.u32 %v3486, %v3482
  %v3489 = vsel %vm3488, 1, 0
  %v3490 = vadd.s32 %v3486, %v3482
  %v3491 = vadd.s32 %v3487, %v3489
  %v3492 = vadd.s32 %v3491, %v3481
  %v3493 = vadd.s32 %v3492, %v3483
  %v3494 = vand.u32 %v3471, 65535
  %v3495 = vshrl.u32 %v3471, 16
  %v3496 = vand.u32 %v3466, 65535
  %v3497 = vshrl.u32 %v3466, 16
  %v3498 = vmul.u32 %v3494, %v3496
  %v3499 = vmul.u32 %v3494, %v3497
  %v3500 = vmul.u32 %v3495, %v3496
  %v3501 = vmul.u32 %v3495, %v3497
  %v3502 = vshll.u32 %v3499, 16
  %v3503 = vshrl.u32 %v3499, 16
  %v3504 = vshll.u32 %v3500, 16
  %v3505 = vshrl.u32 %v3500, 16
  %vm3506 = vc.u32 %v3498, %v3502
  %v3507 = vsel %vm3506, 1, 0
  %v3508 = vadd.s32 %v3498, %v3502
  %v3509 = vadd.s32 %v3501, %v3507
  %vm3510 = vc.u32 %v3508, %v3504
  %v3511 = vsel %vm3510, 1, 0
  %v3512 = vadd.s32 %v3508, %v3504
  %v3513 = vadd.s32 %v3509, %v3511
  %v3514 = vadd.s32 %v3513, %v3503
  %v3515 = vadd.s32 %v3514, %v3505
  %v3516 = vmul.u32 %v3471, %v3462
  %v3517 = vadd.s32 %v3493, %v3512
  %vm3518 = vc.u32 %v3493, %v3512
  %v3519 = vadd.s32 %v3515, 1
  %v3520 = vsel %vm3518, %v3519, %v3515
  %v3521 = vadd.s32 %v3516, %v3520
  %v3522 = vadd.s32 %v3521, 536870912
  %v3523 = vshrl.u32 %v3522, 30
  %v3524 = vshll.u32 %v3523, 30
  %v3525 = vsub.s32 %v3521, %v3524
  %vm3526 = vcmp.lt.s32.totalorder %v3525, 0
  %v3527 = vsub.s32 0, %v3525
  %v3528 = vsel %vm3526, %v3527, %v3525
  %v3529 = vclz %v3528
  %v3530 = vsub.s32 %v3529, 2
  %vm3531 = vcmp.gt.s32.totalorder 0, %v3530
  %v3532 = vsel %vm3531, 0, %v3530
  %v3533 = vsub.s32 32, %v3532
  %v3534 = vshll.u32 %v3525, %v3532
  %v3535 = vshrl.u32 %v3517, %v3533
  %v3536 = vor.u32 %v3534, %v3535
  %v3537 = vsub.s32 4294967266, %v3532
  %v3538 = vadd.s32 %v3537, 127
  %v3539 = vshll.u32 %v3538, 23
  %v3540 = vor.u32 4788187, %v3539
  %v3541 = vand.u32 2147483647, %v3540
  %v3543 = vcvt.s32.f32 %v3536
  %v3544 = vmul.f32 %v3543, %v3541
  %v3545 = vxor.u32 %v3544, 2147483648
  %v3546 = vsel %vm3425, %v3545, %v3544
  %v3547 = vsub.s32 4, %v3523
  %v3548 = vsel %vm3425, %v3547, %v3523
  %v3549 = vsel %vm3424, %v3262, %v3546
  %v3550 = vsel %vm3424, 0, %v3548
  %v3551 = vmul.f32 %v3549, %v3549
  %v3552 = vmul.f32 %v3551, -0.001358992
  %v3553 = vadd.f32 %v3552, 0.041655596
  %v3554 = vmul.f32 %v3551, %v3553
  %v3555 = vadd.f32 %v3554, -0.4999988
  %v3556 = vmul.f32 %v3551, %v3555
  %v3557 = vadd.f32 1.0, %v3556
  %v3558 = vmul.f32 %v3549, %v3549
  %v3559 = vmul.f32 %v3558, -0.00019511016
  %v3560 = vadd.f32 %v3559, 0.008332121
  %v3561 = vmul.f32 %v3558, %v3560
  %v3562 = vadd.f32 %v3561, -0.16666654
  %v3563 = vmul.f32 %v3558, %v3562
  %v3564 = vadd.f32 %v3563, 1.0
  %v3565 = vmul.f32 %v3564, %v3549
  %vm3566 = vweird.f32 %v3262
  %v3567 = vand.u32 %v3550, 3
  %vm3568 = vcmp.lt.s32.totalorder %v3567, 2
  %vm3569 = vcmp.eq.s32.totalorder %v3567, 0
  %v3570 = vxor.u32 %v3565, 2147483648
  %v3571 = vsel %vm3569, %v3557, %v3570
  %vm3572 = vcmp.eq.s32.totalorder %v3567, 2
  %v3573 = vxor.u32 %v3557, 2147483648
  %v3574 = vsel %vm3572, %v3573, %v3565
  %v3575 = vsel %vm3568, %v3571, %v3574
  %v3576 = vsel %vm3566, nan, %v3575
  %v3577 = vperm.slane %v30, 5
  %v3578 = vmul.f32 %v3577, %v3576
  %v3579 = vadd.f32 %v3422, %v3578
  %v3580 = vpack.c.bf16 %v3579, %v3579
  %s3581 = scalar_lea.vmem %s4, 128
  %v3582 = vld [vmem:[%s3581] sm:$0xf]
  %v3583 = vld [vmem:[%s3581 + $0x4] sm:$0xf]
  %v3584 = vld [vmem:[%s3581 + $0x8] sm:$0xf]
  %v3585 = vld [vmem:[%s3581 + $0xc] sm:$0xf]
  %v3586 = vld [vmem:[%s3581 + $0x10] sm:$0xf]
  %v3587 = vld [vmem:[%s3581 + $0x14] sm:$0xf]
  %v3588 = vld [vmem:[%s3581 + $0x18] sm:$0xf]
  %v3589 = vld [vmem:[%s3581 + $0x1c] sm:$0xf]
  %v3590 = vld [vmem:[%s3581 + $0x20] sm:$0xf]
  %v3591 = vld [vmem:[%s3581 + $0x24] sm:$0xf]
  %v3592 = vld [vmem:[%s3581 + $0x28] sm:$0xf]
  %v3593 = vld [vmem:[%s3581 + $0x2c] sm:$0xf]
  %v3594 = vld [vmem:[%s3581 + $0x30] sm:$0xf]
  %v3595 = vld [vmem:[%s3581 + $0x34] sm:$0xf]
  %v3596 = vld [vmem:[%s3581 + $0x38] sm:$0xf]
  %v3597 = vld [vmem:[%s3581 + $0x3c] sm:$0xf]
  %v3614 = vunpack.c.l.b16 %v3582
  %v3615 = vunpack.c.l.b16 %v3583
  %v3616 = vunpack.c.l.b16 %v3584
  %v3617 = vunpack.c.l.b16 %v3585
  %v3618 = vunpack.c.l.b16 %v3586
  %v3619 = vunpack.c.l.b16 %v3587
  %v3620 = vunpack.c.l.b16 %v3588
  %v3621 = vunpack.c.l.b16 %v3589
  %v3622 = vunpack.c.l.b16 %v3590
  %v3623 = vunpack.c.l.b16 %v3591
  %v3624 = vunpack.c.l.b16 %v3592
  %v3625 = vunpack.c.l.b16 %v3593
  %v3626 = vunpack.c.l.b16 %v3594
  %v3627 = vunpack.c.l.b16 %v3595
  %v3628 = vunpack.c.l.b16 %v3596
  %v3629 = vunpack.c.l.b16 %v3597
  %v3630 = vpack.c.b16 %v3615, %v3614
  %v3631 = vpack.c.b16 %v3617, %v3616
  %v3632 = vpack.c.b16 %v3619, %v3618
  %v3633 = vpack.c.b16 %v3621, %v3620
  %v3634 = vpack.c.b16 %v3623, %v3622
  %v3635 = vpack.c.b16 %v3625, %v3624
  %v3636 = vpack.c.b16 %v3627, %v3626
  %v3637 = vpack.c.b16 %v3629, %v3628
  %3646 = vmatpush.bf16.msra.mxu0 %v3637
  %3647 = vmatpush.bf16.msra.mxu0 %v3636
  %3648 = vmatpush.bf16.msra.mxu0 %v3635
  %3649 = vmatpush.bf16.msra.mxu0 %v3634
  %3650 = vmatpush.bf16.msra.mxu0 %v3633
  %3651 = vmatpush.bf16.msra.mxu0 %v3632
  %3652 = vmatpush.bf16.msra.mxu0 %v3631
  %3653 = vmatpush.bf16.msra.mxu0 %v3630
  %3654 = vmatmul.bf16.gmra.mxu0 %v3580
  %v3655 = vpop.f32.mrf.mxu0
  %v3656 = vadd.f32 0.0, %v3655
  %v3657 = vpop.f32.mrf.mxu0
  %3658 = vdwg.mxu0
  %s3659 = scalar_lea.vmem %s4, 64
  %v3660 = vld [vmem:[%s3659] sm:$0xf]
  %v3661 = vld [vmem:[%s3659 + $0x4] sm:$0xf]
  %v3662 = vld [vmem:[%s3659 + $0x8] sm:$0xf]
  %v3663 = vld [vmem:[%s3659 + $0xc] sm:$0xf]
  %v3664 = vld [vmem:[%s3659 + $0x10] sm:$0xf]
  %v3665 = vld [vmem:[%s3659 + $0x14] sm:$0xf]
  %v3666 = vld [vmem:[%s3659 + $0x18] sm:$0xf]
  %v3667 = vld [vmem:[%s3659 + $0x1c] sm:$0xf]
  %v3668 = vld [vmem:[%s3659 + $0x20] sm:$0xf]
  %v3669 = vld [vmem:[%s3659 + $0x24] sm:$0xf]
  %v3670 = vld [vmem:[%s3659 + $0x28] sm:$0xf]
  %v3671 = vld [vmem:[%s3659 + $0x2c] sm:$0xf]
  %v3672 = vld [vmem:[%s3659 + $0x30] sm:$0xf]
  %v3673 = vld [vmem:[%s3659 + $0x34] sm:$0xf]
  %v3674 = vld [vmem:[%s3659 + $0x38] sm:$0xf]
  %v3675 = vld [vmem:[%s3659 + $0x3c] sm:$0xf]
  %v3676 = vperm.slane %v32, 1
  %v3693 = vunpack.c.l.b16 %v3660
  %v3694 = vunpack.c.l.b16 %v3661
  %v3695 = vunpack.c.l.b16 %v3662
  %v3696 = vunpack.c.l.b16 %v3663
  %v3697 = vunpack.c.l.b16 %v3664
  %v3698 = vunpack.c.l.b16 %v3665
  %v3699 = vunpack.c.l.b16 %v3666
  %v3700 = vunpack.c.l.b16 %v3667
  %v3701 = vunpack.c.l.b16 %v3668
  %v3702 = vunpack.c.l.b16 %v3669
  %v3703 = vunpack.c.l.b16 %v3670
  %v3704 = vunpack.c.l.b16 %v3671
  %v3705 = vunpack.c.l.b16 %v3672
  %v3706 = vunpack.c.l.b16 %v3673
  %v3707 = vunpack.c.l.b16 %v3674
  %v3708 = vunpack.c.l.b16 %v3675
  %v3709 = vpack.c.b16 %v3694, %v3693
  %v3710 = vpack.c.b16 %v3696, %v3695
  %v3711 = vpack.c.b16 %v3698, %v3697
  %v3712 = vpack.c.b16 %v3700, %v3699
  %v3713 = vpack.c.b16 %v3702, %v3701
  %v3714 = vpack.c.b16 %v3704, %v3703
  %v3715 = vpack.c.b16 %v3706, %v3705
  %v3716 = vpack.c.b16 %v3708, %v3707
  %3725 = vmatpush.bf16.msra.mxu0 %v3716
  %3726 = vmatpush.bf16.msra.mxu0 %v3715
  %3727 = vmatpush.bf16.msra.mxu0 %v3714
  %3728 = vmatpush.bf16.msra.mxu0 %v3713
  %3729 = vmatpush.bf16.msra.mxu0 %v3712
  %3730 = vmatpush.bf16.msra.mxu0 %v3711
  %3731 = vmatpush.bf16.msra.mxu0 %v3710
  %3732 = vmatpush.bf16.msra.mxu0 %v3709
  %3733 = vmatmul.bf16.gmra.mxu0 %v3228
  %v3734 = vpop.f32.mrf.mxu0
  %v3735 = vadd.f32 %v3676, %v3734
  %v3736 = vpop.f32.mrf.mxu0
  %v3737 = vadd.f32 %v3676, %v3736
  %3738 = vmatmul.bf16.gmra.mxu0 %v3229
  %v3739 = vpop.f32.mrf.mxu0
  %v3740 = vadd.f32 %v3676, %v3739
  %v3741 = vpop.f32.mrf.mxu0
  %v3742 = vadd.f32 %v3676, %v3741
  %3743 = vmatmul.bf16.gmra.mxu0 %v3230
  %v3744 = vpop.f32.mrf.mxu0
  %v3745 = vadd.f32 %v3676, %v3744
  %v3746 = vpop.f32.mrf.mxu0
  %v3747 = vadd.f32 %v3676, %v3746
  %3748 = vmatmul.bf16.gmra.mxu0 %v3231
  %v3749 = vpop.f32.mrf.mxu0
  %v3750 = vadd.f32 %v3676, %v3749
  %v3751 = vpop.f32.mrf.mxu0
  %v3752 = vadd.f32 %v3676, %v3751
  %3753 = vdwg.mxu0
  %v3755 = vrot.slane %v3656, 1
  %v3756 = vrot.slane %v3656, 2
  %v3757 = vrot.slane %v3656, 3
  %v3758 = vrot.slane %v3656, 4
  %v3759 = vrot.slane %v3656, 5
  %v3760 = vrot.slane %v3656, 6
  %v3761 = vrot.slane %v3656, 7
  %v3762 = vperm.slane %v3656, 0
  %v3763 = vperm.slane %v3755, 0
  %v3764 = vperm.slane %v3756, 0
  %v3765 = vperm.slane %v3757, 0
  %v3766 = vperm.slane %v3758, 0
  %v3767 = vperm.slane %v3759, 0
  %v3768 = vperm.slane %v3760, 0
  %v3769 = vperm.slane %v3761, 0
  %v3778 = vadd.f32 %v3735, %v3762
  %v3779 = vadd.f32 %v3737, %v3763
  %v3780 = vadd.f32 %v3740, %v3764
  %v3781 = vadd.f32 %v3742, %v3765
  %v3782 = vadd.f32 %v3745, %v3766
  %v3783 = vadd.f32 %v3747, %v3767
  %v3784 = vadd.f32 %v3750, %v3768
  %v3785 = vadd.f32 %v3752, %v3769
  %v3786 = vmax.f32 %v3778, 0.0
  %v3787 = vmax.f32 %v3779, 0.0
  %v3788 = vmax.f32 %v3780, 0.0
  %v3789 = vmax.f32 %v3781, 0.0
  %v3790 = vmax.f32 %v3782, 0.0
  %v3791 = vmax.f32 %v3783, 0.0
  %v3792 = vmax.f32 %v3784, 0.0
  %v3793 = vmax.f32 %v3785, 0.0
  %v3794 = vpack.c.bf16 %v3787, %v3786
  %v3795 = vpack.c.bf16 %v3789, %v3788
  %v3796 = vpack.c.bf16 %v3791, %v3790
  %v3797 = vpack.c.bf16 %v3793, %v3792
  %s3798 = scalar_lea.vmem %s4, 192
  %v3799 = vld [vmem:[%s3798] sm:$0xf]
  %v3800 = vld [vmem:[%s3798 + $0x4] sm:$0xf]
  %v3801 = vld [vmem:[%s3798 + $0x8] sm:$0xf]
  %v3802 = vld [vmem:[%s3798 + $0xc] sm:$0xf]
  %v3803 = vld [vmem:[%s3798 + $0x10] sm:$0xf]
  %v3804 = vld [vmem:[%s3798 + $0x14] sm:$0xf]
  %v3805 = vld [vmem:[%s3798 + $0x18] sm:$0xf]
  %v3806 = vld [vmem:[%s3798 + $0x1c] sm:$0xf]
  %v3807 = vld [vmem:[%s3798 + $0x20] sm:$0xf]
  %v3808 = vld [vmem:[%s3798 + $0x24] sm:$0xf]
  %v3809 = vld [vmem:[%s3798 + $0x28] sm:$0xf]
  %v3810 = vld [vmem:[%s3798 + $0x2c] sm:$0xf]
  %v3811 = vld [vmem:[%s3798 + $0x30] sm:$0xf]
  %v3812 = vld [vmem:[%s3798 + $0x34] sm:$0xf]
  %v3813 = vld [vmem:[%s3798 + $0x38] sm:$0xf]
  %v3814 = vld [vmem:[%s3798 + $0x3c] sm:$0xf]
  %v3831 = vunpack.c.l.b16 %v3799
  %v3832 = vunpack.c.l.b16 %v3800
  %v3833 = vunpack.c.l.b16 %v3801
  %v3834 = vunpack.c.l.b16 %v3802
  %v3835 = vunpack.c.l.b16 %v3803
  %v3836 = vunpack.c.l.b16 %v3804
  %v3837 = vunpack.c.l.b16 %v3805
  %v3838 = vunpack.c.l.b16 %v3806
  %v3839 = vunpack.c.l.b16 %v3807
  %v3840 = vunpack.c.l.b16 %v3808
  %v3841 = vunpack.c.l.b16 %v3809
  %v3842 = vunpack.c.l.b16 %v3810
  %v3843 = vunpack.c.l.b16 %v3811
  %v3844 = vunpack.c.l.b16 %v3812
  %v3845 = vunpack.c.l.b16 %v3813
  %v3846 = vunpack.c.l.b16 %v3814
  %v3847 = vpack.c.b16 %v3832, %v3831
  %v3848 = vpack.c.b16 %v3834, %v3833
  %v3849 = vpack.c.b16 %v3836, %v3835
  %v3850 = vpack.c.b16 %v3838, %v3837
  %v3851 = vpack.c.b16 %v3840, %v3839
  %v3852 = vpack.c.b16 %v3842, %v3841
  %v3853 = vpack.c.b16 %v3844, %v3843
  %v3854 = vpack.c.b16 %v3846, %v3845
  %3863 = vmatpush.bf16.msra.mxu0 %v3854
  %3864 = vmatpush.bf16.msra.mxu0 %v3853
  %3865 = vmatpush.bf16.msra.mxu0 %v3852
  %3866 = vmatpush.bf16.msra.mxu0 %v3851
  %3867 = vmatpush.bf16.msra.mxu0 %v3850
  %3868 = vmatpush.bf16.msra.mxu0 %v3849
  %3869 = vmatpush.bf16.msra.mxu0 %v3848
  %3870 = vmatpush.bf16.msra.mxu0 %v3847
  %3871 = vmatmul.bf16.gmra.mxu0 %v3794
  %v3872 = vpop.f32.mrf.mxu0
  %v3873 = vadd.f32 0.0, %v3872
  %v3874 = vpop.f32.mrf.mxu0
  %v3875 = vadd.f32 0.0, %v3874
  %3876 = vmatmul.bf16.gmra.mxu0 %v3795
  %v3877 = vpop.f32.mrf.mxu0
  %v3878 = vadd.f32 0.0, %v3877
  %v3879 = vpop.f32.mrf.mxu0
  %v3880 = vadd.f32 0.0, %v3879
  %3881 = vmatmul.bf16.gmra.mxu0 %v3796
  %v3882 = vpop.f32.mrf.mxu0
  %v3883 = vadd.f32 0.0, %v3882
  %v3884 = vpop.f32.mrf.mxu0
  %v3885 = vadd.f32 0.0, %v3884
  %3886 = vmatmul.bf16.gmra.mxu0 %v3797
  %v3887 = vpop.f32.mrf.mxu0
  %v3888 = vadd.f32 0.0, %v3887
  %v3889 = vpop.f32.mrf.mxu0
  %v3890 = vadd.f32 0.0, %v3889
  %3891 = vdwg.mxu0
  %v3892 = vperm.slane %v32, 2
  %v3893 = vadd.f32 %v3873, %v3892
  %v3894 = vadd.f32 %v3875, %v3892
  %v3895 = vadd.f32 %v3878, %v3892
  %v3896 = vadd.f32 %v3880, %v3892
  %v3897 = vadd.f32 %v3883, %v3892
  %v3898 = vadd.f32 %v3885, %v3892
  %v3899 = vadd.f32 %v3888, %v3892
  %v3900 = vadd.f32 %v3890, %v3892
  %v3901 = vadd.f32 %v3893, %v3233
  %v3902 = vadd.f32 %v3894, %v3234
  %v3903 = vadd.f32 %v3895, %v3235
  %v3904 = vadd.f32 %v3896, %v3236
  %v3905 = vadd.f32 %v3897, %v3237
  %v3906 = vadd.f32 %v3898, %v3238
  %v3907 = vadd.f32 %v3899, %v3239
  %v3908 = vadd.f32 %v3900, %v3240
  %vm3909 = vcmask 64512
  %3910 = vst.msk [vmem:[%s8] sm:$0xff] %vm3909, %v3901
  %3911 = vst.msk [vmem:[%s8 + $0x8] sm:$0xff] %vm3909, %v3902
  %3912 = vst.msk [vmem:[%s8 + $0x10] sm:$0xff] %vm3909, %v3903
  %3913 = vst.msk [vmem:[%s8 + $0x18] sm:$0xff] %vm3909, %v3904
  %3914 = vst.msk [vmem:[%s8 + $0x20] sm:$0xff] %vm3909, %v3905
  %3915 = vst.msk [vmem:[%s8 + $0x28] sm:$0xff] %vm3909, %v3906
  %3916 = vst.msk [vmem:[%s8 + $0x30] sm:$0xff] %vm3909, %v3907
  %3917 = vst.msk [vmem:[%s8 + $0x38] sm:$0xff] %vm3909, %v3908
  // Predicated region
  $region34: #{_star_forward_chunk.2} parent=0 // pred_check
    _
  $region35: #{_star_forward_chunk.2} parent=0 // pred_check_branch
    %3919 = sbr.rel (0) target = $region37
  $region36: #{_star_forward_chunk.2} parent=0 // pred_region
    _
  $region37: #{_star_forward_chunk.2} parent=0 // pred_fallthru
    _
  // Predicated region
  $region38: #{_star_forward_chunk.2} parent=0 // pred_check
    _
  $region39: #{_star_forward_chunk.2} parent=0 // pred_check_branch
    %3921 = sbr.rel (0) target = $region41
  $region40: #{_star_forward_chunk.2} parent=0 // pred_region
    _
  $region41: #{_star_forward_chunk.2} parent=0 // pred_fallthru
    _

// kernel: _star_forward_chunk.3
$region0: #{_star_forward_chunk.3}
  #allocation0 [shape = 'u32[]', space=smem, size = 0x4, offset = 0x4, fixed_abs, tag = 'smem constant byte address 0x4 - core index']
  #allocation1 [shape = 'u32[72,128]{1,0:T(1,128)}', space=vmem, size = 0x9000, scoped, tag = 'internal scratch']
  %s0 = inlined_call_operand.vmem [shape: f32[2,64,3], index: 0, kind: input, shape index: {}]
  %s1 = inlined_call_operand.vmem [shape: f32[2,8,3], index: 1, kind: input, shape index: {}]
  %s2 = inlined_call_operand.hbm [shape: bf16[2,2,128,128], index: 2, kind: input, shape index: {}]
  %s3 = inlined_call_operand.vmem [shape: f32[2,2,128], index: 3, kind: input, shape index: {}]
  %s4 = inlined_call_operand.hbm [shape: bf16[2,4,128,128], index: 4, kind: input, shape index: {}]
  %s5 = inlined_call_operand.vmem [shape: f32[2,4,128], index: 5, kind: input, shape index: {}]
  %s6 = inlined_call_operand.vmem [shape: f32[8,128], index: 6, kind: input, shape index: {}]
  %s7 = inlined_call_operand.vmem [shape: f32[6,128], index: 7, kind: input, shape index: {}]
  %s8 = inlined_call_operand.vmem [shape: f32[2,64,8], index: 8, kind: output, shape index: {}]
  %s9 = sld [smem:[#allocation0]]
  $region73: #{_star_forward_chunk.3} parent=0
    _
  %s11 = ssub.s32 1, %s9
  %s12 = scalar_select 0, %s11, %s9
  $region1: #{_star_forward_chunk.3} parent=0
    #allocation2 [shape = 'u8[131072]{0}', space=vmem, size = 0x20000, scoped, tag = 'input window, operand 2']
    #allocation3 [shape = 's32[2]{0}', space=sflag, size = 0x8, scoped, tag = 'scoped memory for _star_forward_chunk.3']
    #allocation4 [shape = 'u8[262144]{0}', space=vmem, size = 0x40000, scoped, tag = 'input window, operand 4']
    #allocation5 [shape = 's32[2]{0}', space=sflag, size = 0x8, scoped, tag = 'scoped memory for _star_forward_chunk.3']
    %13 = vsyncpa [#allocation3], 0
    %s14 = scalar_lea.sflag [#allocation3], 1
    %15 = vsyncpa %s14, 0
    %16 = vsyncpa [#allocation5], 0
    %s17 = scalar_lea.sflag [#allocation5], 1
    %18 = vsyncpa %s17, 0
    loop: start=0, step=1, limit=4
    $region2: #{_star_forward_chunk.3} parent=1 // loop_pre_header
      _
    $region3: #{_star_forward_chunk.3} parent=1 // loop_header
      %s20 = sphi 0, %s24
      %p21 = scmp.ge.s32.totalorder %s20, 4
      %s27 = sphi 0, %s39
      %s28 = sphi 0, %s35
      %s29 = sphi 0, %s27
      %s30 = sphi 0, %s28
      %s31 = sphi 0, %s29
      %s32 = sphi 0, %s30
      %s44 = sphi 0, %s46
      %s47 = sphi 0, %s44
      %s48 = sphi 0, %s47
      %s64 = sphi 0, %s48
      %s72 = sphi 0, %s74
      %s75 = sphi 0, %s72
      %s76 = sphi 0, %s75
      %s92 = sphi 0, %s76
      %s98 = sphi 0, %s100
      %s101 = sphi 0, %s98
      %s102 = sphi 0, %s101
      %s118 = sphi 0, %s102
      %s124 = sphi 0, %s126
      %s127 = sphi 0, %s124
      %s128 = sphi 0, %s127
      %s144 = sphi 0, %s128
      %s150 = sphi 0, %s152
      %s153 = sphi 0, %s150
      %s154 = sphi 0, %s153
      %s170 = sphi 0, %s154
      %s176 = sphi 0, %s178
      %s179 = sphi 0, %s176
      %s180 = sphi 0, %s179
      %s196 = sphi 0, %s180
      %s200 = sphi 0, %s200
      %s202 = sphi 0, %s200
      %s203 = sphi 0, %s202
      %s217 = sphi 0, %s203
      %s221 = sphi 0, %s221
      %s223 = sphi 0, %s221
      %s224 = sphi 0, %s223
      %s238 = sphi 0, %s224
      %s246 = sphi 0, %s248
      %s249 = sphi 0, %s246
      %s250 = sphi 0, %s249
      %s266 = sphi 0, %s250
    $region4: #{_star_forward_chunk.3} parent=1 // loop_header_branch
      %23 = sbr.rel (%p21) target = $region8
    $region5: #{_star_forward_chunk.3} parent=1 // loop_body
      %s25 = ssub.s32 %s20, 1
      %s26 = ssub.s32 %s20, 2
      %s33 = sadd.s32 1, %s28
      %p34 = scmp.ge.s32.totalorder %s33, 1
      %s35 = scalar_select %p34, 0, %s33
      %s36 = sadd.s32 1, %s27
      %s37 = scalar_select %p34, %s36, %s27
      %p38 = scmp.ge.s32.totalorder %s37, 2
      %s39 = scalar_select %p38, 0, %s37
      %s40 = ssub.s32 %s27, %s39
      %s41 = ssub.s32 %s28, %s35
      %s42 = sor.u32 %s40, %s41
      %p43 = scmp.eq.s32.totalorder %s42, 0
      %s45 = sadd.s32 %s44, 1
      %s46 = scalar_select %p43, %s44, %s45
      %p49 = pneg %p43
      %p50 = scmp.eq.s32.totalorder %s20, 1
      %p51 = por %p49, %p50
      %p52 = scmp.ne.s32.totalorder %s44, %s47
      %p53 = scmp.eq.s32.totalorder %s20, 0
      %p54 = por %p52, %p53
      %p55 = scmp.ne.s32.totalorder %s44, %s47
      %p56 = scmp.eq.s32.totalorder %s25, 1
      %p57 = por %p55, %p56
      %p58 = scmp.ne.s32.totalorder %s47, %s48
      %p59 = scmp.eq.s32.totalorder %s25, 0
      %p60 = por %p58, %p59
      %p61 = scmp.ne.s32.totalorder %s47, %s48
      %p62 = scmp.eq.s32.totalorder %s26, 1
      %p63 = por %p61, %p62
      %p65 = scmp.ne.s32.totalorder %s48, %s64
      %p66 = scmp.eq.s32.totalorder %s26, 0
      %p67 = por %p65, %p66
      %s68 = ssub.s32 %s27, %s39
      %s69 = ssub.s32 %s28, %s35
      %s70 = sor.u32 %s68, %s69
      %p71 = scmp.eq.s32.totalorder %s70, 0
      %s73 = sadd.s32 %s72, 1
      %s74 = scalar_select %p71, %s72, %s73
      %p77 = pneg %p71
      %p78 = scmp.eq.s32.totalorder %s20, 1
      %p79 = por %p77, %p78
      %p80 = scmp.ne.s32.totalorder %s72, %s75
      %p81 = scmp.eq.s32.totalorder %s20, 0
      %p82 = por %p80, %p81
      %p83 = scmp.ne.s32.totalorder %s72, %s75
      %p84 = scmp.eq.s32.totalorder %s25, 1
      %p85 = por %p83, %p84
      %p86 = scmp.ne.s32.totalorder %s75, %s76
      %p87 = scmp.eq.s32.totalorder %s25, 0
      %p88 = por %p86, %p87
      %p89 = scmp.ne.s32.totalorder %s75, %s76
      %p90 = scmp.eq.s32.totalorder %s26, 1
      %p91 = por %p89, %p90
      %p93 = scmp.ne.s32.totalorder %s76, %s92
      %p94 = scmp.eq.s32.totalorder %s26, 0
      %p95 = por %p93, %p94
      %s96 = ssub.s32 %s27, %s39
      %p97 = scmp.eq.s32.totalorder %s96, 0
      %s99 = sadd.s32 %s98, 1
      %s100 = scalar_select %p97, %s98, %s99
      %p103 = pneg %p97
      %p104 = scmp.eq.s32.totalorder %s20, 1
      %p105 = por %p103, %p104
      %p106 = scmp.ne.s32.totalorder %s98, %s101
      %p107 = scmp.eq.s32.totalorder %s20, 0
      %p108 = por %p106, %p107
      %p109 = scmp.ne.s32.totalorder %s98, %s101
      %p110 = scmp.eq.s32.totalorder %s25, 1
      %p111 = por %p109, %p110
      %p112 = scmp.ne.s32.totalorder %s101, %s102
      %p113 = scmp.eq.s32.totalorder %s25, 0
      %p114 = por %p112, %p113
      %p115 = scmp.ne.s32.totalorder %s101, %s102
      %p116 = scmp.eq.s32.totalorder %s26, 1
      %p117 = por %p115, %p116
      %p119 = scmp.ne.s32.totalorder %s102, %s118
      %p120 = scmp.eq.s32.totalorder %s26, 0
      %p121 = por %p119, %p120
      %s122 = ssub.s32 %s27, %s39
      %p123 = scmp.eq.s32.totalorder %s122, 0
      %s125 = sadd.s32 %s124, 1
      %s126 = scalar_select %p123, %s124, %s125
      %p129 = pneg %p123
      %p130 = scmp.eq.s32.totalorder %s20, 1
      %p131 = por %p129, %p130
      %p132 = scmp.ne.s32.totalorder %s124, %s127
      %p133 = scmp.eq.s32.totalorder %s20, 0
      %p134 = por %p132, %p133
      %p135 = scmp.ne.s32.totalorder %s124, %s127
      %p136 = scmp.eq.s32.totalorder %s25, 1
      %p137 = por %p135, %p136
      %p138 = scmp.ne.s32.totalorder %s127, %s128
      %p139 = scmp.eq.s32.totalorder %s25, 0
      %p140 = por %p138, %p139
      %p141 = scmp.ne.s32.totalorder %s127, %s128
      %p142 = scmp.eq.s32.totalorder %s26, 1
      %p143 = por %p141, %p142
      %p145 = scmp.ne.s32.totalorder %s128, %s144
      %p146 = scmp.eq.s32.totalorder %s26, 0
      %p147 = por %p145, %p146
      %s148 = ssub.s32 %s27, %s39
      %p149 = scmp.eq.s32.totalorder %s148, 0
      %s151 = sadd.s32 %s150, 1
      %s152 = scalar_select %p149, %s150, %s151
      %p155 = pneg %p149
      %p156 = scmp.eq.s32.totalorder %s20, 1
      %p157 = por %p155, %p156
      %p158 = scmp.ne.s32.totalorder %s150, %s153
      %p159 = scmp.eq.s32.totalorder %s20, 0
      %p160 = por %p158, %p159
      %p161 = scmp.ne.s32.totalorder %s150, %s153
      %p162 = scmp.eq.s32.totalorder %s25, 1
      %p163 = por %p161, %p162
      %p164 = scmp.ne.s32.totalorder %s153, %s154
      %p165 = scmp.eq.s32.totalorder %s25, 0
      %p166 = por %p164, %p165
      %p167 = scmp.ne.s32.totalorder %s153, %s154
      %p168 = scmp.eq.s32.totalorder %s26, 1
      %p169 = por %p167, %p168
      %p171 = scmp.ne.s32.totalorder %s154, %s170
      %p172 = scmp.eq.s32.totalorder %s26, 0
      %p173 = por %p171, %p172
      %s174 = ssub.s32 %s27, %s39
      %p175 = scmp.eq.s32.totalorder %s174, 0
      %s177 = sadd.s32 %s176, 1
      %s178 = scalar_select %p175, %s176, %s177
      %p181 = pneg %p175
      %p182 = scmp.eq.s32.totalorder %s20, 1
      %p183 = por %p181, %p182
      %p184 = scmp.ne.s32.totalorder %s176, %s179
      %p185 = scmp.eq.s32.totalorder %s20, 0
      %p186 = por %p184, %p185
      %p187 = scmp.ne.s32.totalorder %s176, %s179
      %p188 = scmp.eq.s32.totalorder %s25, 1
      %p189 = por %p187, %p188
      %p190 = scmp.ne.s32.totalorder %s179, %s180
      %p191 = scmp.eq.s32.totalorder %s25, 0
      %p192 = por %p190, %p191
      %p193 = scmp.ne.s32.totalorder %s179, %s180
      %p194 = scmp.eq.s32.totalorder %s26, 1
      %p195 = por %p193, %p194
      %p197 = scmp.ne.s32.totalorder %s180, %s196
      %p198 = scmp.eq.s32.totalorder %s26, 0
      %p199 = por %p197, %p198
      %s201 = sadd.s32 %s200, 1
      %p204 = scmp.eq.s32.totalorder %s20, 1
      %p205 = scmp.ne.s32.totalorder %s200, %s202
      %p206 = scmp.eq.s32.totalorder %s20, 0
      %p207 = por %p205, %p206
      %p208 = scmp.ne.s32.totalorder %s200, %s202
      %p209 = scmp.eq.s32.totalorder %s25, 1
      %p210 = por %p208, %p209
      %p211 = scmp.ne.s32.totalorder %s202, %s203
      %p212 = scmp.eq.s32.totalorder %s25, 0
      %p213 = por %p211, %p212
      %p214 = scmp.ne.s32.totalorder %s202, %s203
      %p215 = scmp.eq.s32.totalorder %s26, 1
      %p216 = por %p214, %p215
      %p218 = scmp.ne.s32.totalorder %s203, %s217
      %p219 = scmp.eq.s32.totalorder %s26, 0
      %p220 = por %p218, %p219
      %s222 = sadd.s32 %s221, 1
      %p225 = scmp.eq.s32.totalorder %s20, 1
      %p226 = scmp.ne.s32.totalorder %s221, %s223
      %p227 = scmp.eq.s32.totalorder %s20, 0
      %p228 = por %p226, %p227
      %p229 = scmp.ne.s32.totalorder %s221, %s223
      %p230 = scmp.eq.s32.totalorder %s25, 1
      %p231 = por %p229, %p230
      %p232 = scmp.ne.s32.totalorder %s223, %s224
      %p233 = scmp.eq.s32.totalorder %s25, 0
      %p234 = por %p232, %p233
      %p235 = scmp.ne.s32.totalorder %s223, %s224
      %p236 = scmp.eq.s32.totalorder %s26, 1
      %p237 = por %p235, %p236
      %p239 = scmp.ne.s32.totalorder %s224, %s238
      %p240 = scmp.eq.s32.totalorder %s26, 0
      %p241 = por %p239, %p240
      %s242 = ssub.s32 %s27, %s39
      %s243 = ssub.s32 %s28, %s35
      %s244 = sor.u32 %s242, %s243
      %p245 = scmp.eq.s32.totalorder %s244, 0
      %s247 = sadd.s32 %s246, 1
      %s248 = scalar_select %p245, %s246, %s247
      %p251 = pneg %p245
      %p252 = scmp.eq.s32.totalorder %s20, 1
      %p253 = por %p251, %p252
      %p254 = scmp.ne.s32.totalorder %s246, %s249
      %p255 = scmp.eq.s32.totalorder %s20, 0
      %p256 = por %p254, %p255
      %p257 = scmp.ne.s32.totalorder %s246, %s249
      %p258 = scmp.eq.s32.totalorder %s25, 1
      %p259 = por %p257, %p258
      %p260 = scmp.ne.s32.totalorder %s249, %s250
      %p261 = scmp.eq.s32.totalorder %s25, 0
      %p262 = por %p260, %p261
      %p263 = scmp.ne.s32.totalorder %s249, %s250
      %p264 = scmp.eq.s32.totalorder %s26, 1
      %p265 = por %p263, %p264
      %p267 = scmp.ne.s32.totalorder %s250, %s266
      %p268 = scmp.eq.s32.totalorder %s26, 0
      %p269 = por %p267, %p268
      %p270 = scmp.le.s32.totalorder 1, %s20
      %p271 = scmp.lt.s32.totalorder %s20, 3
      %p272 = pnand %p270, %p271
      %p273 = pneg %p272
      // Predicated region
      $region9: #{_star_forward_chunk.3} parent=5 // pred_check
        _
      $region10: #{_star_forward_chunk.3} parent=5 // pred_check_branch
        %275 = sbr.rel (%p272) target = $region12
      $region11: #{_star_forward_chunk.3} parent=5 // pred_region
        %s276 = ssub.s32 %s20, 1
        // Predicated region
        $region13: #{_star_forward_chunk.3} parent=11 // pred_check
          %p277 = pneg %p213
        $region14: #{_star_forward_chunk.3} parent=11 // pred_check_branch
          %279 = sbr.rel (%p277) target = $region16
        $region15: #{_star_forward_chunk.3} parent=11 // pred_region
          _
        $region16: #{_star_forward_chunk.3} parent=11 // pred_fallthru
          _
        // Predicated region
        $region17: #{_star_forward_chunk.3} parent=11 // pred_check
          %p280 = pneg %p234
        $region18: #{_star_forward_chunk.3} parent=11 // pred_check_branch
          %282 = sbr.rel (%p280) target = $region20
        $region19: #{_star_forward_chunk.3} parent=11 // pred_region
          _
        $region20: #{_star_forward_chunk.3} parent=11 // pred_fallthru
          _
      $region12: #{_star_forward_chunk.3} parent=5 // pred_fallthru
        _
      %p283 = scmp.lt.s32.totalorder %s20, 2
      // Predicated region
      $region21: #{_star_forward_chunk.3} parent=5 // pred_check
        %p284 = pneg %p283
      $region22: #{_star_forward_chunk.3} parent=5 // pred_check_branch
        %286 = sbr.rel (%p284) target = $region24
      $region23: #{_star_forward_chunk.3} parent=5 // pred_region
        // Predicated region
        $region25: #{_star_forward_chunk.3} parent=23 // pred_check
          %p287 = pneg %p54
        $region26: #{_star_forward_chunk.3} parent=23 // pred_check_branch
          %289 = sbr.rel (%p287) target = $region28
        $region27: #{_star_forward_chunk.3} parent=23 // pred_region
          %s290 = smul.u32 8, %s28
          %p291 = scmp.lt.s32.totalorder %s27, 1
          %s292 = scalar_select %p291, %s27, 1
          %p293 = scmp.lt.s32.totalorder %s290, 7
          %s294 = scalar_select %p293, %s290, 7
          %s295 = smul.addr %s292, 8
          %s296 = sadd.s32 %s294, %s295
          %s297 = smul.addr %s296, 8
          %s298 = scalar_lea.vmem %s0, %s297
          %s299 = smul.u32 8, %s28
        $region28: #{_star_forward_chunk.3} parent=23 // pred_fallthru
          _
        // Predicated region
        $region29: #{_star_forward_chunk.3} parent=23 // pred_check
          %p300 = pneg %p82
        $region30: #{_star_forward_chunk.3} parent=23 // pred_check_branch
          %302 = sbr.rel (%p300) target = $region32
        $region31: #{_star_forward_chunk.3} parent=23 // pred_region
          %p303 = scmp.lt.s32.totalorder %s27, 1
          %s304 = scalar_select %p303, %s27, 1
          %p305 = scmp.lt.s32.totalorder %s28, 0
          %s306 = scalar_select %p305, %s28, 0
          %s307 = sadd.s32 %s306, %s304
          %s308 = smul.addr %s307, 8
          %s309 = scalar_lea.vmem %s1, %s308
        $region32: #{_star_forward_chunk.3} parent=23 // pred_fallthru
          _
        // Predicated region
        $region33: #{_star_forward_chunk.3} parent=23 // pred_check
          %p310 = pneg %p108
        $region34: #{_star_forward_chunk.3} parent=23 // pred_check_branch
          %312 = sbr.rel (%p310) target = $region36
        $region35: #{_star_forward_chunk.3} parent=23 // pred_region
          %s313 = sand.u32 %s98, 1
          %s314 = scalar_lea.sflag [#allocation3], %s313
          %s315 = sand.u32 %s98, 1
          %s316 = smul.addr %s315, 128
          %s317 = scalar_lea.vmem [#allocation2], %s316
          %319 = vsyncadd %s314, 0
          %s320 = smul.addr %s27, 32
          %s321 = smul.addr %s320, 4
          %s322 = scalar_lea.hbm %s2, %s321
          %s323 = sshll.u32 %s322, 4
          %s324 = int_to_ptr.hbm [resolvable:$true] %s323
          %s325 = sshll.u32 %s317, 4
          %s326 = int_to_ptr.vmem [resolvable:$true] %s325
          %331 = dma.hbm_to_vmem [thread:$0]  %s324, 2048, %s326, %s314, 64, 64, 4
        $region36: #{_star_forward_chunk.3} parent=23 // pred_fallthru
          _
        // Predicated region
        $region37: #{_star_forward_chunk.3} parent=23 // pred_check
          %p332 = pneg %p134
        $region38: #{_star_forward_chunk.3} parent=23 // pred_check_branch
          %334 = sbr.rel (%p332) target = $region40
        $region39: #{_star_forward_chunk.3} parent=23 // pred_region
          %p335 = scmp.lt.s32.totalorder %s27, 1
          %s336 = scalar_select %p335, %s27, 1
          %s337 = smul.addr %s336, 2
          %s338 = scalar_lea.vmem %s3, %s337
        $region40: #{_star_forward_chunk.3} parent=23 // pred_fallthru
          _
        // Predicated region
        $region41: #{_star_forward_chunk.3} parent=23 // pred_check
          %p339 = pneg %p160
        $region42: #{_star_forward_chunk.3} parent=23 // pred_check_branch
          %341 = sbr.rel (%p339) target = $region44
        $region43: #{_star_forward_chunk.3} parent=23 // pred_region
          %s342 = sand.u32 %s150, 1
          %s343 = scalar_lea.sflag [#allocation5], %s342
          %s344 = sand.u32 %s150, 1
          %s345 = smul.addr %s344, 256
          %s346 = scalar_lea.vmem [#allocation4], %s345
          %348 = vsyncadd %s343, 0
          %s349 = smul.addr %s27, 64
          %s350 = smul.addr %s349, 4
          %s351 = scalar_lea.hbm %s4, %s350
          %s352 = sshll.u32 %s351, 4
          %s353 = int_to_ptr.hbm [resolvable:$true] %s352
          %s354 = sshll.u32 %s346, 4
          %s355 = int_to_ptr.vmem [resolvable:$true] %s354
          %360 = dma.hbm_to_vmem [thread:$0]  %s353, 4096, %s355, %s343, 64, 64, 4
        $region44: #{_star_forward_chunk.3} parent=23 // pred_fallthru
          _
        // Predicated region
        $region45: #{_star_forward_chunk.3} parent=23 // pred_check
          %p361 = pneg %p186
        $region46: #{_star_forward_chunk.3} parent=23 // pred_check_branch
          %363 = sbr.rel (%p361) target = $region48
        $region47: #{_star_forward_chunk.3} parent=23 // pred_region
          %p364 = scmp.lt.s32.totalorder %s27, 1
          %s365 = scalar_select %p364, %s27, 1
          %s366 = smul.addr %s365, 4
          %s367 = scalar_lea.vmem %s5, %s366
        $region48: #{_star_forward_chunk.3} parent=23 // pred_fallthru
          _
      $region24: #{_star_forward_chunk.3} parent=5 // pred_fallthru
        _
      %p368 = scmp.le.s32.totalorder 1, %s20
      %p369 = scmp.lt.s32.totalorder %s20, 3
      %p370 = pnand %p368, %p369
      %p371 = pneg %p370
      // Predicated region
      $region49: #{_star_forward_chunk.3} parent=5 // pred_check
        _
      $region50: #{_star_forward_chunk.3} parent=5 // pred_check_branch
        %373 = sbr.rel (%p370) target = $region52
      $region51: #{_star_forward_chunk.3} parent=5 // pred_region
        %s374 = ssub.s32 %s20, 1
        %s375 = sand.u32 %s101, 1
        %s376 = scalar_lea.sflag [#allocation3], %s375
        %s377 = sand.u32 %s101, 1
        %s378 = smul.addr %s377, 128
        %s379 = scalar_lea.vmem [#allocation2], %s378
        // Predicated region
        $region53: #{_star_forward_chunk.3} parent=51 // pred_check
          %p380 = pneg %p114
        $region54: #{_star_forward_chunk.3} parent=51 // pred_check_branch
          %382 = sbr.rel (%p380) target = $region56
        $region55: #{_star_forward_chunk.3} parent=51 // pred_region
          %384 = dma.done %s376, 2048
        $region56: #{_star_forward_chunk.3} parent=51 // pred_fallthru
          _
        %s385 = sand.u32 %s153, 1
        %s386 = scalar_lea.sflag [#allocation5], %s385
        %s387 = sand.u32 %s153, 1
        %s388 = smul.addr %s387, 256
        %s389 = scalar_lea.vmem [#allocation4], %s388
        // Predicated region
        $region57: #{_star_forward_chunk.3} parent=51 // pred_check
          %p390 = pneg %p166
        $region58: #{_star_forward_chunk.3} parent=51 // pred_check_branch
          %392 = sbr.rel (%p390) target = $region60
        $region59: #{_star_forward_chunk.3} parent=51 // pred_region
          %394 = dma.done %s386, 4096
        $region60: #{_star_forward_chunk.3} parent=51 // pred_fallthru
          _
        %s395 = smul.u32 8, %s30
        %p396 = scmp.lt.s32.totalorder %s29, 1
        %s397 = scalar_select %p396, %s29, 1
        %p398 = scmp.lt.s32.totalorder %s395, 7
        %s399 = scalar_select %p398, %s395, 7
        %s400 = smul.addr %s397, 8
        %s401 = sadd.s32 %s399, %s400
        %s402 = smul.addr %s401, 8
        %s403 = scalar_lea.vmem %s0, %s402
        %p404 = pneg %p60
        %p405 = pneg %p57
        %p406 = scmp.lt.s32.totalorder %s29, 1
        %s407 = scalar_select %p406, %s29, 1
        %p408 = scmp.lt.s32.totalorder %s30, 0
        %s409 = scalar_select %p408, %s30, 0
        %s410 = sadd.s32 %s409, %s407
        %s411 = smul.addr %s410, 8
        %s412 = scalar_lea.vmem %s1, %s411
        %p413 = pneg %p88
        %p414 = pneg %p85
        %s415 = sand.u32 %s101, 1
        %s416 = scalar_lea.sflag [#allocation3], %s415
        %s417 = sand.u32 %s101, 1
        %s418 = smul.addr %s417, 128
        %s419 = scalar_lea.vmem [#allocation2], %s418
        %p420 = pneg %p114
        %p421 = pneg %p111
        %p422 = scmp.lt.s32.totalorder %s29, 1
        %s423 = scalar_select %p422, %s29, 1
        %s424 = smul.addr %s423, 2
        %s425 = scalar_lea.vmem %s3, %s424
        %p426 = pneg %p140
        %p427 = pneg %p137
        %s428 = sand.u32 %s153, 1
        %s429 = scalar_lea.sflag [#allocation5], %s428
        %s430 = sand.u32 %s153, 1
        %s431 = smul.addr %s430, 256
        %s432 = scalar_lea.vmem [#allocation4], %s431
        %p433 = pneg %p166
        %p434 = pneg %p163
        %p435 = scmp.lt.s32.totalorder %s29, 1
        %s436 = scalar_select %p435, %s29, 1
        %s437 = smul.addr %s436, 4
        %s438 = scalar_lea.vmem %s5, %s437
        %p439 = pneg %p192
        %p440 = pneg %p189
        %p441 = pneg %p213
        %p442 = pneg %p210
        %p443 = pneg %p234
        %p444 = pneg %p231
        %p445 = pneg %p262
        %p446 = pneg %p259
        %s447 = smul.u32 8, %s30
        %p448 = scmp.lt.s32.totalorder %s29, 1
        %s449 = scalar_select %p448, %s29, 1
        %p450 = scmp.lt.s32.totalorder %s447, 7
        %s451 = scalar_select %p450, %s447, 7
        %s452 = smul.addr %s449, 8
        %s453 = sadd.s32 %s451, %s452
        %s454 = smul.addr %s453, 8
        %s455 = scalar_lea.vmem %s8, %s454
        %s456 = smul.u32 8, %s30
        %p457 = scmp.lt.s32.totalorder %s29, 1
        %s458 = scalar_select %p457, %s29, 1
        %p459 = scmp.lt.s32.totalorder %s456, 7
        %s460 = scalar_select %p459, %s456, 7
        %s461 = smul.addr %s458, 8
        %s462 = sadd.s32 %s460, %s461
        %s463 = smul.addr %s462, 8
        %s464 = scalar_lea.vmem %s0, %s463
        %s465 = smul.u32 8, %s30
        %p466 = scmp.lt.s32.totalorder %s29, 1
        %s467 = scalar_select %p466, %s29, 1
        %p468 = scmp.lt.s32.totalorder %s30, 0
        %s469 = scalar_select %p468, %s30, 0
        %s470 = sadd.s32 %s469, %s467
        %s471 = smul.addr %s470, 8
        %s472 = scalar_lea.vmem %s1, %s471
        %p473 = scmp.lt.s32.totalorder %s29, 1
        %s474 = scalar_select %p473, %s29, 1
        %s475 = smul.addr %s474, 2
        %s476 = scalar_lea.vmem %s3, %s475
        %p477 = scmp.lt.s32.totalorder %s29, 1
        %s478 = scalar_select %p477, %s29, 1
        %s479 = smul.addr %s478, 4
        %s480 = scalar_lea.vmem %s5, %s479
        %s481 = smul.u32 8, %s30
        %p482 = scmp.lt.s32.totalorder %s29, 1
        %s483 = scalar_select %p482, %s29, 1
        %p484 = scmp.lt.s32.totalorder %s481, 7
        %s485 = scalar_select %p484, %s481, 7
        %s486 = smul.addr %s483, 8
        %s487 = sadd.s32 %s485, %s486
        %s488 = smul.addr %s487, 8
        %s489 = scalar_lea.vmem %s8, %s488
        %s490 = smul.u32 8, %s30
        %v491 = vld [vmem:[%s6] sm:$0xff]
        %v492 = vld [vmem:[%s7] sm:$0x3f]
        %v493 = vld [vmem:[%s476] sm:$0x3]
        %v494 = vld [vmem:[%s480] sm:$0xf]
        %v495 = vld [vmem:[%s464] sm:$0xff]
        %v496 = vld [vmem:[%s464 + $0x8] sm:$0xff]
        %v497 = vld [vmem:[%s464 + $0x10] sm:$0xff]
        %v498 = vld [vmem:[%s464 + $0x18] sm:$0xff]
        %v499 = vld [vmem:[%s464 + $0x20] sm:$0xff]
        %v500 = vld [vmem:[%s464 + $0x28] sm:$0xff]
        %v501 = vld [vmem:[%s464 + $0x30] sm:$0xff]
        %v502 = vld [vmem:[%s464 + $0x38] sm:$0xff]
        %504 = vset.pattern.permute.xlu0 0
        %505 = vperm.xlu0 %504, %v495
        %v506 = vpop.permute.xlu0 %505
        %509 = vset.pattern.permute.xlu0 0
        %510 = vperm.xlu0 %509, %v496
        %v511 = vpop.permute.xlu0 %510
        %514 = vset.pattern.permute.xlu0 0
        %515 = vperm.xlu0 %514, %v497
        %v516 = vpop.permute.xlu0 %515
        %519 = vset.pattern.permute.xlu0 0
        %520 = vperm.xlu0 %519, %v498
        %v521 = vpop.permute.xlu0 %520
        %524 = vset.pattern.permute.xlu0 0
        %525 = vperm.xlu0 %524, %v499
        %v526 = vpop.permute.xlu0 %525
        %529 = vset.pattern.permute.xlu0 0
        %530 = vperm.xlu0 %529, %v500
        %v531 = vpop.permute.xlu0 %530
        %534 = vset.pattern.permute.xlu0 0
        %535 = vperm.xlu0 %534, %v501
        %v536 = vpop.permute.xlu0 %535
        %539 = vset.pattern.permute.xlu0 0
        %540 = vperm.xlu0 %539, %v502
        %v541 = vpop.permute.xlu0 %540
        %v543 = vperm.slane %v491, 0
        %v544 = vmul.f32 %v506, %v543
        %v545 = vmul.f32 %v511, %v543
        %v546 = vmul.f32 %v516, %v543
        %v547 = vmul.f32 %v521, %v543
        %v548 = vmul.f32 %v526, %v543
        %v549 = vmul.f32 %v531, %v543
        %v550 = vmul.f32 %v536, %v543
        %v551 = vmul.f32 %v541, %v543
        %552 = vset.pattern.permute.xlu0 1
        %553 = vperm.xlu0 %552, %v495
        %v554 = vpop.permute.xlu0 %553
        %556 = vset.pattern.permute.xlu0 1
        %557 = vperm.xlu0 %556, %v496
        %v558 = vpop.permute.xlu0 %557
        %560 = vset.pattern.permute.xlu0 1
        %561 = vperm.xlu0 %560, %v497
        %v562 = vpop.permute.xlu0 %561
        %564 = vset.pattern.permute.xlu0 1
        %565 = vperm.xlu0 %564, %v498
        %v566 = vpop.permute.xlu0 %565
        %568 = vset.pattern.permute.xlu0 1
        %569 = vperm.xlu0 %568, %v499
        %v570 = vpop.permute.xlu0 %569
        %572 = vset.pattern.permute.xlu0 1
        %573 = vperm.xlu0 %572, %v500
        %v574 = vpop.permute.xlu0 %573
        %576 = vset.pattern.permute.xlu0 1
        %577 = vperm.xlu0 %576, %v501
        %v578 = vpop.permute.xlu0 %577
        %580 = vset.pattern.permute.xlu0 1
        %581 = vperm.xlu0 %580, %v502
        %v582 = vpop.permute.xlu0 %581
        %v584 = vperm.slane %v491, 1
        %v585 = vmul.f32 %v554, %v584
        %v586 = vmul.f32 %v558, %v584
        %v587 = vmul.f32 %v562, %v584
        %v588 = vmul.f32 %v566, %v584
        %v589 = vmul.f32 %v570, %v584
        %v590 = vmul.f32 %v574, %v584
        %v591 = vmul.f32 %v578, %v584
        %v592 = vmul.f32 %v582, %v584
        %v593 = vadd.f32 %v544, %v585
        %v594 = vadd.f32 %v545, %v586
        %v595 = vadd.f32 %v546, %v587
        %v596 = vadd.f32 %v547, %v588
        %v597 = vadd.f32 %v548, %v589
        %v598 = vadd.f32 %v549, %v590
        %v599 = vadd.f32 %v550, %v591
        %v600 = vadd.f32 %v551, %v592
        %601 = vset.pattern.permute.xlu0 2
        %602 = vperm.xlu0 %601, %v495
        %v603 = vpop.permute.xlu0 %602
        %605 = vset.pattern.permute.xlu0 2
        %606 = vperm.xlu0 %605, %v496
        %v607 = vpop.permute.xlu0 %606
        %609 = vset.pattern.permute.xlu0 2
        %610 = vperm.xlu0 %609, %v497
        %v611 = vpop.permute.xlu0 %610
        %613 = vset.pattern.permute.xlu0 2
        %614 = vperm.xlu0 %613, %v498
        %v615 = vpop.permute.xlu0 %614
        %617 = vset.pattern.permute.xlu0 2
        %618 = vperm.xlu0 %617, %v499
        %v619 = vpop.permute.xlu0 %618
        %621 = vset.pattern.permute.xlu0 2
        %622 = vperm.xlu0 %621, %v500
        %v623 = vpop.permute.xlu0 %622
        %625 = vset.pattern.permute.xlu0 2
        %626 = vperm.xlu0 %625, %v501
        %v627 = vpop.permute.xlu0 %626
        %629 = vset.pattern.permute.xlu0 2
        %630 = vperm.xlu0 %629, %v502
        %v631 = vpop.permute.xlu0 %630
        %v633 = vperm.slane %v491, 2
        %v634 = vmul.f32 %v603, %v633
        %v635 = vmul.f32 %v607, %v633
        %v636 = vmul.f32 %v611, %v633
        %v637 = vmul.f32 %v615, %v633
        %v638 = vmul.f32 %v619, %v633
        %v639 = vmul.f32 %v623, %v633
        %v640 = vmul.f32 %v627, %v633
        %v641 = vmul.f32 %v631, %v633
        %v642 = vadd.f32 %v593, %v634
        %v643 = vadd.f32 %v594, %v635
        %v644 = vadd.f32 %v595, %v636
        %v645 = vadd.f32 %v596, %v637
        %v646 = vadd.f32 %v597, %v638
        %v647 = vadd.f32 %v598, %v639
        %v648 = vadd.f32 %v599, %v640
        %v649 = vadd.f32 %v600, %v641
        %v650 = vperm.slane %v492, 0
        %v651 = vmul.f32 %v650, %v642
        %v652 = vmul.f32 %v650, %v643
        %v653 = vmul.f32 %v650, %v644
        %v654 = vmul.f32 %v650, %v645
        %v655 = vmul.f32 %v650, %v646
        %v656 = vmul.f32 %v650, %v647
        %v657 = vmul.f32 %v650, %v648
        %v658 = vmul.f32 %v650, %v649
        %v659 = vand.u32 2147483647, %v642
        %vm660 = vcmp.le.f32.partialorder %v659, 0.7853982
        %vm661 = vcmp.lt.s32.totalorder %v642, 0
        %v662 = vand.u32 %v642, 2139095040
        %v663 = vshrl.u32 %v662, 23
        %v664 = vsub.s32 %v663, 127
        %v665 = vand.u32 2147483647, %v642
        %v666 = vand.u32 %v665, 8388607
        %v667 = vor.u32 %v666, 8388608
        %v668 = vsub.s32 0, %v667
        %v669 = vadd.s32 %v664, 1
        %vm670 = vcmp.gt.s32.totalorder %v669, 0
        %v671 = vsel %vm670, %v669, 0
        %v672 = vshrl.u32 %v671, 5
        %v673 = vand.u32 %v671, 31
        %v674 = vsub.s32 32, %v673
        %v675 = vshrl.u32 683565275, %v674
        %v676 = vshll.u32 683565275, %v673
        %v677 = vshrl.u32 2475754826, %v674
        %v678 = vor.u32 %v676, %v677
        %v679 = vshll.u32 2475754826, %v673
        %v680 = vshrl.u32 2131351028, %v674
        %v681 = vor.u32 %v679, %v680
        %v682 = vshll.u32 2131351028, %v673
        %v683 = vshrl.u32 2102212464, %v674
        %v684 = vor.u32 %v682, %v683
        %v685 = vshll.u32 2102212464, %v673
        %v686 = vshrl.u32 920167782, %v674
        %v687 = vor.u32 %v685, %v686
        %v688 = vshll.u32 920167782, %v673
        %v689 = vshrl.u32 1326507024, %v674
        %v690 = vor.u32 %v688, %v689
        %vm691 = vcmp.lt.s32.totalorder %v672, 1
        %vm692 = vcmp.lt.s32.totalorder %v672, 2
        %vm693 = vcmp.lt.s32.totalorder %v672, 3
        %vm694 = vcmp.lt.s32.totalorder %v672, 4
        %v695 = vsel %vm691, %v675, %v678
        %v696 = vsel %vm694, %v684, 2102212464
        %v697 = vsel %vm693, %v681, %v696
        %v698 = vsel %vm692, %v695, %v697
        %v699 = vsel %vm691, %v678, %v681
        %v700 = vsel %vm694, %v687, 920167782
        %v701 = vsel %vm693, %v684, %v700
        %v702 = vsel %vm692, %v699, %v701
        %v703 = vsel %vm691, %v681, %v684
        %v704 = vsel %vm694, %v690, 1326507024
        %v705 = vsel %vm693, %v687, %v704
        %v706 = vsel %vm692, %v703, %v705
        %v707 = vshll.u32 %v667, 8
        %v708 = vand.u32 %v707, 65535
        %v709 = vshrl.u32 %v707, 16
        %v710 = vand.u32 %v706, 65535
        %v711 = vshrl.u32 %v706, 16
        %v712 = vmul.u32 %v708, %v710
        %v713 = vmul.u32 %v708, %v711
        %v714 = vmul.u32 %v709, %v710
        %v715 = vmul.u32 %v709, %v711
        %v716 = vshll.u32 %v713, 16
        %v717 = vshrl.u32 %v713, 16
        %v718 = vshll.u32 %v714, 16
        %v719 = vshrl.u32 %v714, 16
        %vm720 = vc.u32 %v712, %v716
        %v721 = vsel %vm720, 1, 0
        %v722 = vadd.s32 %v712, %v716
        %v723 = vadd.s32 %v715, %v721
        %vm724 = vc.u32 %v722, %v718
        %v725 = vsel %vm724, 1, 0
        %v726 = vadd.s32 %v722, %v718
        %v727 = vadd.s32 %v723, %v725
        %v728 = vadd.s32 %v727, %v717
        %v729 = vadd.s32 %v728, %v719
        %v730 = vand.u32 %v707, 65535
        %v731 = vshrl.u32 %v707, 16
        %v732 = vand.u32 %v702, 65535
        %v733 = vshrl.u32 %v702, 16
        %v734 = vmul.u32 %v730, %v732
        %v735 = vmul.u32 %v730, %v733
        %v736 = vmul.u32 %v731, %v732
        %v737 = vmul.u32 %v731, %v733
        %v738 = vshll.u32 %v735, 16
        %v739 = vshrl.u32 %v735, 16
        %v740 = vshll.u32 %v736, 16
        %v741 = vshrl.u32 %v736, 16
        %vm742 = vc.u32 %v734, %v738
        %v743 = vsel %vm742, 1, 0
        %v744 = vadd.s32 %v734, %v738
        %v745 = vadd.s32 %v737, %v743
        %vm746 = vc.u32 %v744, %v740
        %v747 = vsel %vm746, 1, 0
        %v748 = vadd.s32 %v744, %v740
        %v749 = vadd.s32 %v745, %v747
        %v750 = vadd.s32 %v749, %v739
        %v751 = vadd.s32 %v750, %v741
        %v752 = vmul.u32 %v707, %v698
        %v753 = vadd.s32 %v729, %v748
        %vm754 = vc.u32 %v729, %v748
        %v755 = vadd.s32 %v751, 1
        %v756 = vsel %vm754, %v755, %v751
        %v757 = vadd.s32 %v752, %v756
        %v758 = vadd.s32 %v757, 536870912
        %v759 = vshrl.u32 %v758, 30
        %v760 = vshll.u32 %v759, 30
        %v761 = vsub.s32 %v757, %v760
        %vm762 = vcmp.lt.s32.totalorder %v761, 0
        %v763 = vsub.s32 0, %v761
        %v764 = vsel %vm762, %v763, %v761
        %v765 = vclz %v764
        %v766 = vsub.s32 %v765, 2
        %vm767 = vcmp.gt.s32.totalorder 0, %v766
        %v768 = vsel %vm767, 0, %v766
        %v769 = vsub.s32 32, %v768
        %v770 = vshll.u32 %v761, %v768
        %v771 = vshrl.u32 %v753, %v769
        %v772 = vor.u32 %v770, %v771
        %v773 = vsub.s32 4294967266, %v768
        %v774 = vadd.s32 %v773, 127
        %v775 = vshll.u32 %v774, 23
        %v776 = vor.u32 4788187, %v775
        %v777 = vand.u32 2147483647, %v776
        %v779 = vcvt.s32.f32 %v772
        %v780 = vmul.f32 %v779, %v777
        %v781 = vxor.u32 %v780, 2147483648
        %v782 = vsel %vm661, %v781, %v780
        %v783 = vsub.s32 4, %v759
        %v784 = vsel %vm661, %v783, %v759
        %v785 = vsel %vm660, %v642, %v782
        %v786 = vsel %vm660, 0, %v784
        %v787 = vmul.f32 %v785, %v785
        %v788 = vmul.f32 %v787, -0.001358992
        %v789 = vadd.f32 %v788, 0.041655596
        %v790 = vmul.f32 %v787, %v789
        %v791 = vadd.f32 %v790, -0.4999988
        %v792 = vmul.f32 %v787, %v791
        %v793 = vadd.f32 1.0, %v792
        %v794 = vmul.f32 %v785, %v785
        %v795 = vmul.f32 %v794, -0.00019511016
        %v796 = vadd.f32 %v795, 0.008332121
        %v797 = vmul.f32 %v794, %v796
        %v798 = vadd.f32 %v797, -0.16666654
        %v799 = vmul.f32 %v794, %v798
        %v800 = vadd.f32 %v799, 1.0
        %v801 = vmul.f32 %v800, %v785
        %vm802 = vweird.f32 %v642
        %v803 = vadd.s32 %v786, 3
        %v804 = vand.u32 %v803, 3
        %vm805 = vcmp.lt.s32.totalorder %v804, 2
        %vm806 = vcmp.eq.s32.totalorder %v804, 0
        %v807 = vxor.u32 %v801, 2147483648
        %v808 = vsel %vm806, %v793, %v807
        %vm809 = vcmp.eq.s32.totalorder %v804, 2
        %v810 = vxor.u32 %v793, 2147483648
        %v811 = vsel %vm809, %v810, %v801
        %v812 = vsel %vm805, %v808, %v811
        %v813 = vsel %vm802, nan, %v812
        %v814 = vand.u32 2147483647, %v643
        %vm815 = vcmp.le.f32.partialorder %v814, 0.7853982
        %vm816 = vcmp.lt.s32.totalorder %v643, 0
        %v817 = vand.u32 %v643, 2139095040
        %v818 = vshrl.u32 %v817, 23
        %v819 = vsub.s32 %v818, 127
        %v820 = vand.u32 2147483647, %v643
        %v821 = vand.u32 %v820, 8388607
        %v822 = vor.u32 %v821, 8388608
        %v823 = vsub.s32 0, %v822
        %v824 = vadd.s32 %v819, 1
        %vm825 = vcmp.gt.s32.totalorder %v824, 0
        %v826 = vsel %vm825, %v824, 0
        %v827 = vshrl.u32 %v826, 5
        %v828 = vand.u32 %v826, 31
        %v829 = vsub.s32 32, %v828
        %v830 = vshrl.u32 683565275, %v829
        %v831 = vshll.u32 683565275, %v828
        %v832 = vshrl.u32 2475754826, %v829
        %v833 = vor.u32 %v831, %v832
        %v834 = vshll.u32 2475754826, %v828
        %v835 = vshrl.u32 2131351028, %v829
        %v836 = vor.u32 %v834, %v835
        %v837 = vshll.u32 2131351028, %v828
        %v838 = vshrl.u32 2102212464, %v829
        %v839 = vor.u32 %v837, %v838
        %v840 = vshll.u32 2102212464, %v828
        %v841 = vshrl.u32 920167782, %v829
        %v842 = vor.u32 %v840, %v841
        %v843 = vshll.u32 920167782, %v828
        %v844 = vshrl.u32 1326507024, %v829
        %v845 = vor.u32 %v843, %v844
        %vm846 = vcmp.lt.s32.totalorder %v827, 1
        %vm847 = vcmp.lt.s32.totalorder %v827, 2
        %vm848 = vcmp.lt.s32.totalorder %v827, 3
        %vm849 = vcmp.lt.s32.totalorder %v827, 4
        %v850 = vsel %vm846, %v830, %v833
        %v851 = vsel %vm849, %v839, 2102212464
        %v852 = vsel %vm848, %v836, %v851
        %v853 = vsel %vm847, %v850, %v852
        %v854 = vsel %vm846, %v833, %v836
        %v855 = vsel %vm849, %v842, 920167782
        %v856 = vsel %vm848, %v839, %v855
        %v857 = vsel %vm847, %v854, %v856
        %v858 = vsel %vm846, %v836, %v839
        %v859 = vsel %vm849, %v845, 1326507024
        %v860 = vsel %vm848, %v842, %v859
        %v861 = vsel %vm847, %v858, %v860
        %v862 = vshll.u32 %v822, 8
        %v863 = vand.u32 %v862, 65535
        %v864 = vshrl.u32 %v862, 16
        %v865 = vand.u32 %v861, 65535
        %v866 = vshrl.u32 %v861, 16
        %v867 = vmul.u32 %v863, %v865
        %v868 = vmul.u32 %v863, %v866
        %v869 = vmul.u32 %v864, %v865
        %v870 = vmul.u32 %v864, %v866
        %v871 = vshll.u32 %v868, 16
        %v872 = vshrl.u32 %v868, 16
        %v873 = vshll.u32 %v869, 16
        %v874 = vshrl.u32 %v869, 16
        %vm875 = vc.u32 %v867, %v871
        %v876 = vsel %vm875, 1, 0
        %v877 = vadd.s32 %v867, %v871
        %v878 = vadd.s32 %v870, %v876
        %vm879 = vc.u32 %v877, %v873
        %v880 = vsel %vm879, 1, 0
        %v881 = vadd.s32 %v877, %v873
        %v882 = vadd.s32 %v878, %v880
        %v883 = vadd.s32 %v882, %v872
        %v884 = vadd.s32 %v883, %v874
        %v885 = vand.u32 %v862, 65535
        %v886 = vshrl.u32 %v862, 16
        %v887 = vand.u32 %v857, 65535
        %v888 = vshrl.u32 %v857, 16
        %v889 = vmul.u32 %v885, %v887
        %v890 = vmul.u32 %v885, %v888
        %v891 = vmul.u32 %v886, %v887
        %v892 = vmul.u32 %v886, %v888
        %v893 = vshll.u32 %v890, 16
        %v894 = vshrl.u32 %v890, 16
        %v895 = vshll.u32 %v891, 16
        %v896 = vshrl.u32 %v891, 16
        %vm897 = vc.u32 %v889, %v893
        %v898 = vsel %vm897, 1, 0
        %v899 = vadd.s32 %v889, %v893
        %v900 = vadd.s32 %v892, %v898
        %vm901 = vc.u32 %v899, %v895
        %v902 = vsel %vm901, 1, 0
        %v903 = vadd.s32 %v899, %v895
        %v904 = vadd.s32 %v900, %v902
        %v905 = vadd.s32 %v904, %v894
        %v906 = vadd.s32 %v905, %v896
        %v907 = vmul.u32 %v862, %v853
        %v908 = vadd.s32 %v884, %v903
        %vm909 = vc.u32 %v884, %v903
        %v910 = vadd.s32 %v906, 1
        %v911 = vsel %vm909, %v910, %v906
        %v912 = vadd.s32 %v907, %v911
        %v913 = vadd.s32 %v912, 536870912
        %v914 = vshrl.u32 %v913, 30
        %v915 = vshll.u32 %v914, 30
        %v916 = vsub.s32 %v912, %v915
        %vm917 = vcmp.lt.s32.totalorder %v916, 0
        %v918 = vsub.s32 0, %v916
        %v919 = vsel %vm917, %v918, %v916
        %v920 = vclz %v919
        %v921 = vsub.s32 %v920, 2
        %vm922 = vcmp.gt.s32.totalorder 0, %v921
        %v923 = vsel %vm922, 0, %v921
        %v924 = vsub.s32 32, %v923
        %v925 = vshll.u32 %v916, %v923
        %v926 = vshrl.u32 %v908, %v924
        %v927 = vor.u32 %v925, %v926
        %v928 = vsub.s32 4294967266, %v923
        %v929 = vadd.s32 %v928, 127
        %v930 = vshll.u32 %v929, 23
        %v931 = vor.u32 4788187, %v930
        %v932 = vand.u32 2147483647, %v931
        %v934 = vcvt.s32.f32 %v927
        %v935 = vmul.f32 %v934, %v932
        %v936 = vxor.u32 %v935, 2147483648
        %v937 = vsel %vm816, %v936, %v935
        %v938 = vsub.s32 4, %v914
        %v939 = vsel %vm816, %v938, %v914
        %v940 = vsel %vm815, %v643, %v937
        %v941 = vsel %vm815, 0, %v939
        %v942 = vmul.f32 %v940, %v940
        %v943 = vmul.f32 %v942, -0.001358992
        %v944 = vadd.f32 %v943, 0.041655596
        %v945 = vmul.f32 %v942, %v944
        %v946 = vadd.f32 %v945, -0.4999988
        %v947 = vmul.f32 %v942, %v946
        %v948 = vadd.f32 1.0, %v947
        %v949 = vmul.f32 %v940, %v940
        %v950 = vmul.f32 %v949, -0.00019511016
        %v951 = vadd.f32 %v950, 0.008332121
        %v952 = vmul.f32 %v949, %v951
        %v953 = vadd.f32 %v952, -0.16666654
        %v954 = vmul.f32 %v949, %v953
        %v955 = vadd.f32 %v954, 1.0
        %v956 = vmul.f32 %v955, %v940
        %vm957 = vweird.f32 %v643
        %v958 = vadd.s32 %v941, 3
        %v959 = vand.u32 %v958, 3
        %vm960 = vcmp.lt.s32.totalorder %v959, 2
        %vm961 = vcmp.eq.s32.totalorder %v959, 0
        %v962 = vxor.u32 %v956, 2147483648
        %v963 = vsel %vm961, %v948, %v962
        %vm964 = vcmp.eq.s32.totalorder %v959, 2
        %v965 = vxor.u32 %v948, 2147483648
        %v966 = vsel %vm964, %v965, %v956
        %v967 = vsel %vm960, %v963, %v966
        %v968 = vsel %vm957, nan, %v967
        %v969 = vand.u32 2147483647, %v644
        %vm970 = vcmp.le.f32.partialorder %v969, 0.7853982
        %vm971 = vcmp.lt.s32.totalorder %v644, 0
        %v972 = vand.u32 %v644, 2139095040
        %v973 = vshrl.u32 %v972, 23
        %v974 = vsub.s32 %v973, 127
        %v975 = vand.u32 2147483647, %v644
        %v976 = vand.u32 %v975, 8388607
        %v977 = vor.u32 %v976, 8388608
        %v978 = vsub.s32 0, %v977
        %v979 = vadd.s32 %v974, 1
        %vm980 = vcmp.gt.s32.totalorder %v979, 0
        %v981 = vsel %vm980, %v979, 0
        %v982 = vshrl.u32 %v981, 5
        %v983 = vand.u32 %v981, 31
        %v984 = vsub.s32 32, %v983
        %v985 = vshrl.u32 683565275, %v984
        %v986 = vshll.u32 683565275, %v983
        %v987 = vshrl.u32 2475754826, %v984
        %v988 = vor.u32 %v986, %v987
        %v989 = vshll.u32 2475754826, %v983
        %v990 = vshrl.u32 2131351028, %v984
        %v991 = vor.u32 %v989, %v990
        %v992 = vshll.u32 2131351028, %v983
        %v993 = vshrl.u32 2102212464, %v984
        %v994 = vor.u32 %v992, %v993
        %v995 = vshll.u32 2102212464, %v983
        %v996 = vshrl.u32 920167782, %v984
        %v997 = vor.u32 %v995, %v996
        %v998 = vshll.u32 920167782, %v983
        %v999 = vshrl.u32 1326507024, %v984
        %v1000 = vor.u32 %v998, %v999
        %vm1001 = vcmp.lt.s32.totalorder %v982, 1
        %vm1002 = vcmp.lt.s32.totalorder %v982, 2
        %vm1003 = vcmp.lt.s32.totalorder %v982, 3
        %vm1004 = vcmp.lt.s32.totalorder %v982, 4
        %v1005 = vsel %vm1001, %v985, %v988
        %v1006 = vsel %vm1004, %v994, 2102212464
        %v1007 = vsel %vm1003, %v991, %v1006
        %v1008 = vsel %vm1002, %v1005, %v1007
        %v1009 = vsel %vm1001, %v988, %v991
        %v1010 = vsel %vm1004, %v997, 920167782
        %v1011 = vsel %vm1003, %v994, %v1010
        %v1012 = vsel %vm1002, %v1009, %v1011
        %v1013 = vsel %vm1001, %v991, %v994
        %v1014 = vsel %vm1004, %v1000, 1326507024
        %v1015 = vsel %vm1003, %v997, %v1014
        %v1016 = vsel %vm1002, %v1013, %v1015
        %v1017 = vshll.u32 %v977, 8
        %v1018 = vand.u32 %v1017, 65535
        %v1019 = vshrl.u32 %v1017, 16
        %v1020 = vand.u32 %v1016, 65535
        %v1021 = vshrl.u32 %v1016, 16
        %v1022 = vmul.u32 %v1018, %v1020
        %v1023 = vmul.u32 %v1018, %v1021
        %v1024 = vmul.u32 %v1019, %v1020
        %v1025 = vmul.u32 %v1019, %v1021
        %v1026 = vshll.u32 %v1023, 16
        %v1027 = vshrl.u32 %v1023, 16
        %v1028 = vshll.u32 %v1024, 16
        %v1029 = vshrl.u32 %v1024, 16
        %vm1030 = vc.u32 %v1022, %v1026
        %v1031 = vsel %vm1030, 1, 0
        %v1032 = vadd.s32 %v1022, %v1026
        %v1033 = vadd.s32 %v1025, %v1031
        %vm1034 = vc.u32 %v1032, %v1028
        %v1035 = vsel %vm1034, 1, 0
        %v1036 = vadd.s32 %v1032, %v1028
        %v1037 = vadd.s32 %v1033, %v1035
        %v1038 = vadd.s32 %v1037, %v1027
        %v1039 = vadd.s32 %v1038, %v1029
        %v1040 = vand.u32 %v1017, 65535
        %v1041 = vshrl.u32 %v1017, 16
        %v1042 = vand.u32 %v1012, 65535
        %v1043 = vshrl.u32 %v1012, 16
        %v1044 = vmul.u32 %v1040, %v1042
        %v1045 = vmul.u32 %v1040, %v1043
        %v1046 = vmul.u32 %v1041, %v1042
        %v1047 = vmul.u32 %v1041, %v1043
        %v1048 = vshll.u32 %v1045, 16
        %v1049 = vshrl.u32 %v1045, 16
        %v1050 = vshll.u32 %v1046, 16
        %v1051 = vshrl.u32 %v1046, 16
        %vm1052 = vc.u32 %v1044, %v1048
        %v1053 = vsel %vm1052, 1, 0
        %v1054 = vadd.s32 %v1044, %v1048
        %v1055 = vadd.s32 %v1047, %v1053
        %vm1056 = vc.u32 %v1054, %v1050
        %v1057 = vsel %vm1056, 1, 0
        %v1058 = vadd.s32 %v1054, %v1050
        %v1059 = vadd.s32 %v1055, %v1057
        %v1060 = vadd.s32 %v1059, %v1049
        %v1061 = vadd.s32 %v1060, %v1051
        %v1062 = vmul.u32 %v1017, %v1008
        %v1063 = vadd.s32 %v1039, %v1058
        %vm1064 = vc.u32 %v1039, %v1058
        %v1065 = vadd.s32 %v1061, 1
        %v1066 = vsel %vm1064, %v1065, %v1061
        %v1067 = vadd.s32 %v1062, %v1066
        %v1068 = vadd.s32 %v1067, 536870912
        %v1069 = vshrl.u32 %v1068, 30
        %v1070 = vshll.u32 %v1069, 30
        %v1071 = vsub.s32 %v1067, %v1070
        %vm1072 = vcmp.lt.s32.totalorder %v1071, 0
        %v1073 = vsub.s32 0, %v1071
        %v1074 = vsel %vm1072, %v1073, %v1071
        %v1075 = vclz %v1074
        %v1076 = vsub.s32 %v1075, 2
        %vm1077 = vcmp.gt.s32.totalorder 0, %v1076
        %v1078 = vsel %vm1077, 0, %v1076
        %v1079 = vsub.s32 32, %v1078
        %v1080 = vshll.u32 %v1071, %v1078
        %v1081 = vshrl.u32 %v1063, %v1079
        %v1082 = vor.u32 %v1080, %v1081
        %v1083 = vsub.s32 4294967266, %v1078
        %v1084 = vadd.s32 %v1083, 127
        %v1085 = vshll.u32 %v1084, 23
        %v1086 = vor.u32 4788187, %v1085
        %v1087 = vand.u32 2147483647, %v1086
        %v1089 = vcvt.s32.f32 %v1082
        %v1090 = vmul.f32 %v1089, %v1087
        %v1091 = vxor.u32 %v1090, 2147483648
        %v1092 = vsel %vm971, %v1091, %v1090
        %v1093 = vsub.s32 4, %v1069
        %v1094 = vsel %vm971, %v1093, %v1069
        %v1095 = vsel %vm970, %v644, %v1092
        %v1096 = vsel %vm970, 0, %v1094
        %v1097 = vmul.f32 %v1095, %v1095
        %v1098 = vmul.f32 %v1097, -0.001358992
        %v1099 = vadd.f32 %v1098, 0.041655596
        %v1100 = vmul.f32 %v1097, %v1099
        %v1101 = vadd.f32 %v1100, -0.4999988
        %v1102 = vmul.f32 %v1097, %v1101
        %v1103 = vadd.f32 1.0, %v1102
        %v1104 = vmul.f32 %v1095, %v1095
        %v1105 = vmul.f32 %v1104, -0.00019511016
        %v1106 = vadd.f32 %v1105, 0.008332121
        %v1107 = vmul.f32 %v1104, %v1106
        %v1108 = vadd.f32 %v1107, -0.16666654
        %v1109 = vmul.f32 %v1104, %v1108
        %v1110 = vadd.f32 %v1109, 1.0
        %v1111 = vmul.f32 %v1110, %v1095
        %vm1112 = vweird.f32 %v644
        %v1113 = vadd.s32 %v1096, 3
        %v1114 = vand.u32 %v1113, 3
        %vm1115 = vcmp.lt.s32.totalorder %v1114, 2
        %vm1116 = vcmp.eq.s32.totalorder %v1114, 0
        %v1117 = vxor.u32 %v1111, 2147483648
        %v1118 = vsel %vm1116, %v1103, %v1117
        %vm1119 = vcmp.eq.s32.totalorder %v1114, 2
        %v1120 = vxor.u32 %v1103, 2147483648
        %v1121 = vsel %vm1119, %v1120, %v1111
        %v1122 = vsel %vm1115, %v1118, %v1121
        %v1123 = vsel %vm1112, nan, %v1122
        %v1124 = vand.u32 2147483647, %v645
        %vm1125 = vcmp.le.f32.partialorder %v1124, 0.7853982
        %vm1126 = vcmp.lt.s32.totalorder %v645, 0
        %v1127 = vand.u32 %v645, 2139095040
        %v1128 = vshrl.u32 %v1127, 23
        %v1129 = vsub.s32 %v1128, 127
        %v1130 = vand.u32 2147483647, %v645
        %v1131 = vand.u32 %v1130, 8388607
        %v1132 = vor.u32 %v1131, 8388608
        %v1133 = vsub.s32 0, %v1132
        %v1134 = vadd.s32 %v1129, 1
        %vm1135 = vcmp.gt.s32.totalorder %v1134, 0
        %v1136 = vsel %vm1135, %v1134, 0
        %v1137 = vshrl.u32 %v1136, 5
        %v1138 = vand.u32 %v1136, 31
        %v1139 = vsub.s32 32, %v1138
        %v1140 = vshrl.u32 683565275, %v1139
        %v1141 = vshll.u32 683565275, %v1138
        %v1142 = vshrl.u32 2475754826, %v1139
        %v1143 = vor.u32 %v1141, %v1142
        %v1144 = vshll.u32 2475754826, %v1138
        %v1145 = vshrl.u32 2131351028, %v1139
        %v1146 = vor.u32 %v1144, %v1145
        %v1147 = vshll.u32 2131351028, %v1138
        %v1148 = vshrl.u32 2102212464, %v1139
        %v1149 = vor.u32 %v1147, %v1148
        %v1150 = vshll.u32 2102212464, %v1138
        %v1151 = vshrl.u32 920167782, %v1139
        %v1152 = vor.u32 %v1150, %v1151
        %v1153 = vshll.u32 920167782, %v1138
        %v1154 = vshrl.u32 1326507024, %v1139
        %v1155 = vor.u32 %v1153, %v1154
        %vm1156 = vcmp.lt.s32.totalorder %v1137, 1
        %vm1157 = vcmp.lt.s32.totalorder %v1137, 2
        %vm1158 = vcmp.lt.s32.totalorder %v1137, 3
        %vm1159 = vcmp.lt.s32.totalorder %v1137, 4
        %v1160 = vsel %vm1156, %v1140, %v1143
        %v1161 = vsel %vm1159, %v1149, 2102212464
        %v1162 = vsel %vm1158, %v1146, %v1161
        %v1163 = vsel %vm1157, %v1160, %v1162
        %v1164 = vsel %vm1156, %v1143, %v1146
        %v1165 = vsel %vm1159, %v1152, 920167782
        %v1166 = vsel %vm1158, %v1149, %v1165
        %v1167 = vsel %vm1157, %v1164, %v1166
        %v1168 = vsel %vm1156, %v1146, %v1149
        %v1169 = vsel %vm1159, %v1155, 1326507024
        %v1170 = vsel %vm1158, %v1152, %v1169
        %v1171 = vsel %vm1157, %v1168, %v1170
        %v1172 = vshll.u32 %v1132, 8
        %v1173 = vand.u32 %v1172, 65535
        %v1174 = vshrl.u32 %v1172, 16
        %v1175 = vand.u32 %v1171, 65535
        %v1176 = vshrl.u32 %v1171, 16
        %v1177 = vmul.u32 %v1173, %v1175
        %v1178 = vmul.u32 %v1173, %v1176
        %v1179 = vmul.u32 %v1174, %v1175
        %v1180 = vmul.u32 %v1174, %v1176
        %v1181 = vshll.u32 %v1178, 16
        %v1182 = vshrl.u32 %v1178, 16
        %v1183 = vshll.u32 %v1179, 16
        %v1184 = vshrl.u32 %v1179, 16
        %vm1185 = vc.u32 %v1177, %v1181
        %v1186 = vsel %vm1185, 1, 0
        %v1187 = vadd.s32 %v1177, %v1181
        %v1188 = vadd.s32 %v1180, %v1186
        %vm1189 = vc.u32 %v1187, %v1183
        %v1190 = vsel %vm1189, 1, 0
        %v1191 = vadd.s32 %v1187, %v1183
        %v1192 = vadd.s32 %v1188, %v1190
        %v1193 = vadd.s32 %v1192, %v1182
        %v1194 = vadd.s32 %v1193, %v1184
        %v1195 = vand.u32 %v1172, 65535
        %v1196 = vshrl.u32 %v1172, 16
        %v1197 = vand.u32 %v1167, 65535
        %v1198 = vshrl.u32 %v1167, 16
        %v1199 = vmul.u32 %v1195, %v1197
        %v1200 = vmul.u32 %v1195, %v1198
        %v1201 = vmul.u32 %v1196, %v1197
        %v1202 = vmul.u32 %v1196, %v1198
        %v1203 = vshll.u32 %v1200, 16
        %v1204 = vshrl.u32 %v1200, 16
        %v1205 = vshll.u32 %v1201, 16
        %v1206 = vshrl.u32 %v1201, 16
        %vm1207 = vc.u32 %v1199, %v1203
        %v1208 = vsel %vm1207, 1, 0
        %v1209 = vadd.s32 %v1199, %v1203
        %v1210 = vadd.s32 %v1202, %v1208
        %vm1211 = vc.u32 %v1209, %v1205
        %v1212 = vsel %vm1211, 1, 0
        %v1213 = vadd.s32 %v1209, %v1205
        %v1214 = vadd.s32 %v1210, %v1212
        %v1215 = vadd.s32 %v1214, %v1204
        %v1216 = vadd.s32 %v1215, %v1206
        %v1217 = vmul.u32 %v1172, %v1163
        %v1218 = vadd.s32 %v1194, %v1213
        %vm1219 = vc.u32 %v1194, %v1213
        %v1220 = vadd.s32 %v1216, 1
        %v1221 = vsel %vm1219, %v1220, %v1216
        %v1222 = vadd.s32 %v1217, %v1221
        %v1223 = vadd.s32 %v1222, 536870912
        %v1224 = vshrl.u32 %v1223, 30
        %v1225 = vshll.u32 %v1224, 30
        %v1226 = vsub.s32 %v1222, %v1225
        %vm1227 = vcmp.lt.s32.totalorder %v1226, 0
        %v1228 = vsub.s32 0, %v1226
        %v1229 = vsel %vm1227, %v1228, %v1226
        %v1230 = vclz %v1229
        %v1231 = vsub.s32 %v1230, 2
        %vm1232 = vcmp.gt.s32.totalorder 0, %v1231
        %v1233 = vsel %vm1232, 0, %v1231
        %v1234 = vsub.s32 32, %v1233
        %v1235 = vshll.u32 %v1226, %v1233
        %v1236 = vshrl.u32 %v1218, %v1234
        %v1237 = vor.u32 %v1235, %v1236
        %v1238 = vsub.s32 4294967266, %v1233
        %v1239 = vadd.s32 %v1238, 127
        %v1240 = vshll.u32 %v1239, 23
        %v1241 = vor.u32 4788187, %v1240
        %v1242 = vand.u32 2147483647, %v1241
        %v1244 = vcvt.s32.f32 %v1237
        %v1245 = vmul.f32 %v1244, %v1242
        %v1246 = vxor.u32 %v1245, 2147483648
        %v1247 = vsel %vm1126, %v1246, %v1245
        %v1248 = vsub.s32 4, %v1224
        %v1249 = vsel %vm1126, %v1248, %v1224
        %v1250 = vsel %vm1125, %v645, %v1247
        %v1251 = vsel %vm1125, 0, %v1249
        %v1252 = vmul.f32 %v1250, %v1250
        %v1253 = vmul.f32 %v1252, -0.001358992
        %v1254 = vadd.f32 %v1253, 0.041655596
        %v1255 = vmul.f32 %v1252, %v1254
        %v1256 = vadd.f32 %v1255, -0.4999988
        %v1257 = vmul.f32 %v1252, %v1256
        %v1258 = vadd.f32 1.0, %v1257
        %v1259 = vmul.f32 %v1250, %v1250
        %v1260 = vmul.f32 %v1259, -0.00019511016
        %v1261 = vadd.f32 %v1260, 0.008332121
        %v1262 = vmul.f32 %v1259, %v1261
        %v1263 = vadd.f32 %v1262, -0.16666654
        %v1264 = vmul.f32 %v1259, %v1263
        %v1265 = vadd.f32 %v1264, 1.0
        %v1266 = vmul.f32 %v1265, %v1250
        %vm1267 = vweird.f32 %v645
        %v1268 = vadd.s32 %v1251, 3
        %v1269 = vand.u32 %v1268, 3
        %vm1270 = vcmp.lt.s32.totalorder %v1269, 2
        %vm1271 = vcmp.eq.s32.totalorder %v1269, 0
        %v1272 = vxor.u32 %v1266, 2147483648
        %v1273 = vsel %vm1271, %v1258, %v1272
        %vm1274 = vcmp.eq.s32.totalorder %v1269, 2
        %v1275 = vxor.u32 %v1258, 2147483648
        %v1276 = vsel %vm1274, %v1275, %v1266
        %v1277 = vsel %vm1270, %v1273, %v1276
        %v1278 = vsel %vm1267, nan, %v1277
        %v1279 = vand.u32 2147483647, %v646
        %vm1280 = vcmp.le.f32.partialorder %v1279, 0.7853982
        %vm1281 = vcmp.lt.s32.totalorder %v646, 0
        %v1282 = vand.u32 %v646, 2139095040
        %v1283 = vshrl.u32 %v1282, 23
        %v1284 = vsub.s32 %v1283, 127
        %v1285 = vand.u32 2147483647, %v646
        %v1286 = vand.u32 %v1285, 8388607
        %v1287 = vor.u32 %v1286, 8388608
        %v1288 = vsub.s32 0, %v1287
        %v1289 = vadd.s32 %v1284, 1
        %vm1290 = vcmp.gt.s32.totalorder %v1289, 0
        %v1291 = vsel %vm1290, %v1289, 0
        %v1292 = vshrl.u32 %v1291, 5
        %v1293 = vand.u32 %v1291, 31
        %v1294 = vsub.s32 32, %v1293
        %v1295 = vshrl.u32 683565275, %v1294
        %v1296 = vshll.u32 683565275, %v1293
        %v1297 = vshrl.u32 2475754826, %v1294
        %v1298 = vor.u32 %v1296, %v1297
        %v1299 = vshll.u32 2475754826, %v1293
        %v1300 = vshrl.u32 2131351028, %v1294
        %v1301 = vor.u32 %v1299, %v1300
        %v1302 = vshll.u32 2131351028, %v1293
        %v1303 = vshrl.u32 2102212464, %v1294
        %v1304 = vor.u32 %v1302, %v1303
        %v1305 = vshll.u32 2102212464, %v1293
        %v1306 = vshrl.u32 920167782, %v1294
        %v1307 = vor.u32 %v1305, %v1306
        %v1308 = vshll.u32 920167782, %v1293
        %v1309 = vshrl.u32 1326507024, %v1294
        %v1310 = vor.u32 %v1308, %v1309
        %vm1311 = vcmp.lt.s32.totalorder %v1292, 1
        %vm1312 = vcmp.lt.s32.totalorder %v1292, 2
        %vm1313 = vcmp.lt.s32.totalorder %v1292, 3
        %vm1314 = vcmp.lt.s32.totalorder %v1292, 4
        %v1315 = vsel %vm1311, %v1295, %v1298
        %v1316 = vsel %vm1314, %v1304, 2102212464
        %v1317 = vsel %vm1313, %v1301, %v1316
        %v1318 = vsel %vm1312, %v1315, %v1317
        %v1319 = vsel %vm1311, %v1298, %v1301
        %v1320 = vsel %vm1314, %v1307, 920167782
        %v1321 = vsel %vm1313, %v1304, %v1320
        %v1322 = vsel %vm1312, %v1319, %v1321
        %v1323 = vsel %vm1311, %v1301, %v1304
        %v1324 = vsel %vm1314, %v1310, 1326507024
        %v1325 = vsel %vm1313, %v1307, %v1324
        %v1326 = vsel %vm1312, %v1323, %v1325
        %v1327 = vshll.u32 %v1287, 8
        %v1328 = vand.u32 %v1327, 65535
        %v1329 = vshrl.u32 %v1327, 16
        %v1330 = vand.u32 %v1326, 65535
        %v1331 = vshrl.u32 %v1326, 16
        %v1332 = vmul.u32 %v1328, %v1330
        %v1333 = vmul.u32 %v1328, %v1331
        %v1334 = vmul.u32 %v1329, %v1330
        %v1335 = vmul.u32 %v1329, %v1331
        %v1336 = vshll.u32 %v1333, 16
        %v1337 = vshrl.u32 %v1333, 16
        %v1338 = vshll.u32 %v1334, 16
        %v1339 = vshrl.u32 %v1334, 16
        %vm1340 = vc.u32 %v1332, %v1336
        %v1341 = vsel %vm1340, 1, 0
        %v1342 = vadd.s32 %v1332, %v1336
        %v1343 = vadd.s32 %v1335, %v1341
        %vm1344 = vc.u32 %v1342, %v1338
        %v1345 = vsel %vm1344, 1, 0
        %v1346 = vadd.s32 %v1342, %v1338
        %v1347 = vadd.s32 %v1343, %v1345
        %v1348 = vadd.s32 %v1347, %v1337
        %v1349 = vadd.s32 %v1348, %v1339
        %v1350 = vand.u32 %v1327, 65535
        %v1351 = vshrl.u32 %v1327, 16
        %v1352 = vand.u32 %v1322, 65535
        %v1353 = vshrl.u32 %v1322, 16
        %v1354 = vmul.u32 %v1350, %v1352
        %v1355 = vmul.u32 %v1350, %v1353
        %v1356 = vmul.u32 %v1351, %v1352
        %v1357 = vmul.u32 %v1351, %v1353
        %v1358 = vshll.u32 %v1355, 16
        %v1359 = vshrl.u32 %v1355, 16
        %v1360 = vshll.u32 %v1356, 16
        %v1361 = vshrl.u32 %v1356, 16
        %vm1362 = vc.u32 %v1354, %v1358
        %v1363 = vsel %vm1362, 1, 0
        %v1364 = vadd.s32 %v1354, %v1358
        %v1365 = vadd.s32 %v1357, %v1363
        %vm1366 = vc.u32 %v1364, %v1360
        %v1367 = vsel %vm1366, 1, 0
        %v1368 = vadd.s32 %v1364, %v1360
        %v1369 = vadd.s32 %v1365, %v1367
        %v1370 = vadd.s32 %v1369, %v1359
        %v1371 = vadd.s32 %v1370, %v1361
        %v1372 = vmul.u32 %v1327, %v1318
        %v1373 = vadd.s32 %v1349, %v1368
        %vm1374 = vc.u32 %v1349, %v1368
        %v1375 = vadd.s32 %v1371, 1
        %v1376 = vsel %vm1374, %v1375, %v1371
        %v1377 = vadd.s32 %v1372, %v1376
        %v1378 = vadd.s32 %v1377, 536870912
        %v1379 = vshrl.u32 %v1378, 30
        %v1380 = vshll.u32 %v1379, 30
        %v1381 = vsub.s32 %v1377, %v1380
        %vm1382 = vcmp.lt.s32.totalorder %v1381, 0
        %v1383 = vsub.s32 0, %v1381
        %v1384 = vsel %vm1382, %v1383, %v1381
        %v1385 = vclz %v1384
        %v1386 = vsub.s32 %v1385, 2
        %vm1387 = vcmp.gt.s32.totalorder 0, %v1386
        %v1388 = vsel %vm1387, 0, %v1386
        %v1389 = vsub.s32 32, %v1388
        %v1390 = vshll.u32 %v1381, %v1388
        %v1391 = vshrl.u32 %v1373, %v1389
        %v1392 = vor.u32 %v1390, %v1391
        %v1393 = vsub.s32 4294967266, %v1388
        %v1394 = vadd.s32 %v1393, 127
        %v1395 = vshll.u32 %v1394, 23
        %v1396 = vor.u32 4788187, %v1395
        %v1397 = vand.u32 2147483647, %v1396
        %v1399 = vcvt.s32.f32 %v1392
        %v1400 = vmul.f32 %v1399, %v1397
        %v1401 = vxor.u32 %v1400, 2147483648
        %v1402 = vsel %vm1281, %v1401, %v1400
        %v1403 = vsub.s32 4, %v1379
        %v1404 = vsel %vm1281, %v1403, %v1379
        %v1405 = vsel %vm1280, %v646, %v1402
        %v1406 = vsel %vm1280, 0, %v1404
        %v1407 = vmul.f32 %v1405, %v1405
        %v1408 = vmul.f32 %v1407, -0.001358992
        %v1409 = vadd.f32 %v1408, 0.041655596
        %v1410 = vmul.f32 %v1407, %v1409
        %v1411 = vadd.f32 %v1410, -0.4999988
        %v1412 = vmul.f32 %v1407, %v1411
        %v1413 = vadd.f32 1.0, %v1412
        %v1414 = vmul.f32 %v1405, %v1405
        %v1415 = vmul.f32 %v1414, -0.00019511016
        %v1416 = vadd.f32 %v1415, 0.008332121
        %v1417 = vmul.f32 %v1414, %v1416
        %v1418 = vadd.f32 %v1417, -0.16666654
        %v1419 = vmul.f32 %v1414, %v1418
        %v1420 = vadd.f32 %v1419, 1.0
        %v1421 = vmul.f32 %v1420, %v1405
        %vm1422 = vweird.f32 %v646
        %v1423 = vadd.s32 %v1406, 3
        %v1424 = vand.u32 %v1423, 3
        %vm1425 = vcmp.lt.s32.totalorder %v1424, 2
        %vm1426 = vcmp.eq.s32.totalorder %v1424, 0
        %v1427 = vxor.u32 %v1421, 2147483648
        %v1428 = vsel %vm1426, %v1413, %v1427
        %vm1429 = vcmp.eq.s32.totalorder %v1424, 2
        %v1430 = vxor.u32 %v1413, 2147483648
        %v1431 = vsel %vm1429, %v1430, %v1421
        %v1432 = vsel %vm1425, %v1428, %v1431
        %v1433 = vsel %vm1422, nan, %v1432
        %v1434 = vand.u32 2147483647, %v647
        %vm1435 = vcmp.le.f32.partialorder %v1434, 0.7853982
        %vm1436 = vcmp.lt.s32.totalorder %v647, 0
        %v1437 = vand.u32 %v647, 2139095040
        %v1438 = vshrl.u32 %v1437, 23
        %v1439 = vsub.s32 %v1438, 127
        %v1440 = vand.u32 2147483647, %v647
        %v1441 = vand.u32 %v1440, 8388607
        %v1442 = vor.u32 %v1441, 8388608
        %v1443 = vsub.s32 0, %v1442
        %v1444 = vadd.s32 %v1439, 1
        %vm1445 = vcmp.gt.s32.totalorder %v1444, 0
        %v1446 = vsel %vm1445, %v1444, 0
        %v1447 = vshrl.u32 %v1446, 5
        %v1448 = vand.u32 %v1446, 31
        %v1449 = vsub.s32 32, %v1448
        %v1450 = vshrl.u32 683565275, %v1449
        %v1451 = vshll.u32 683565275, %v1448
        %v1452 = vshrl.u32 2475754826, %v1449
        %v1453 = vor.u32 %v1451, %v1452
        %v1454 = vshll.u32 2475754826, %v1448
        %v1455 = vshrl.u32 2131351028, %v1449
        %v1456 = vor.u32 %v1454, %v1455
        %v1457 = vshll.u32 2131351028, %v1448
        %v1458 = vshrl.u32 2102212464, %v1449
        %v1459 = vor.u32 %v1457, %v1458
        %v1460 = vshll.u32 2102212464, %v1448
        %v1461 = vshrl.u32 920167782, %v1449
        %v1462 = vor.u32 %v1460, %v1461
        %v1463 = vshll.u32 920167782, %v1448
        %v1464 = vshrl.u32 1326507024, %v1449
        %v1465 = vor.u32 %v1463, %v1464
        %vm1466 = vcmp.lt.s32.totalorder %v1447, 1
        %vm1467 = vcmp.lt.s32.totalorder %v1447, 2
        %vm1468 = vcmp.lt.s32.totalorder %v1447, 3
        %vm1469 = vcmp.lt.s32.totalorder %v1447, 4
        %v1470 = vsel %vm1466, %v1450, %v1453
        %v1471 = vsel %vm1469, %v1459, 2102212464
        %v1472 = vsel %vm1468, %v1456, %v1471
        %v1473 = vsel %vm1467, %v1470, %v1472
        %v1474 = vsel %vm1466, %v1453, %v1456
        %v1475 = vsel %vm1469, %v1462, 920167782
        %v1476 = vsel %vm1468, %v1459, %v1475
        %v1477 = vsel %vm1467, %v1474, %v1476
        %v1478 = vsel %vm1466, %v1456, %v1459
        %v1479 = vsel %vm1469, %v1465, 1326507024
        %v1480 = vsel %vm1468, %v1462, %v1479
        %v1481 = vsel %vm1467, %v1478, %v1480
        %v1482 = vshll.u32 %v1442, 8
        %v1483 = vand.u32 %v1482, 65535
        %v1484 = vshrl.u32 %v1482, 16
        %v1485 = vand.u32 %v1481, 65535
        %v1486 = vshrl.u32 %v1481, 16
        %v1487 = vmul.u32 %v1483, %v1485
        %v1488 = vmul.u32 %v1483, %v1486
        %v1489 = vmul.u32 %v1484, %v1485
        %v1490 = vmul.u32 %v1484, %v1486
        %v1491 = vshll.u32 %v1488, 16
        %v1492 = vshrl.u32 %v1488, 16
        %v1493 = vshll.u32 %v1489, 16
        %v1494 = vshrl.u32 %v1489, 16
        %vm1495 = vc.u32 %v1487, %v1491
        %v1496 = vsel %vm1495, 1, 0
        %v1497 = vadd.s32 %v1487, %v1491
        %v1498 = vadd.s32 %v1490, %v1496
        %vm1499 = vc.u32 %v1497, %v1493
        %v1500 = vsel %vm1499, 1, 0
        %v1501 = vadd.s32 %v1497, %v1493
        %v1502 = vadd.s32 %v1498, %v1500
        %v1503 = vadd.s32 %v1502, %v1492
        %v1504 = vadd.s32 %v1503, %v1494
        %v1505 = vand.u32 %v1482, 65535
        %v1506 = vshrl.u32 %v1482, 16
        %v1507 = vand.u32 %v1477, 65535
        %v1508 = vshrl.u32 %v1477, 16
        %v1509 = vmul.u32 %v1505, %v1507
        %v1510 = vmul.u32 %v1505, %v1508
        %v1511 = vmul.u32 %v1506, %v1507
        %v1512 = vmul.u32 %v1506, %v1508
        %v1513 = vshll.u32 %v1510, 16
        %v1514 = vshrl.u32 %v1510, 16
        %v1515 = vshll.u32 %v1511, 16
        %v1516 = vshrl.u32 %v1511, 16
        %vm1517 = vc.u32 %v1509, %v1513
        %v1518 = vsel %vm1517, 1, 0
        %v1519 = vadd.s32 %v1509, %v1513
        %v1520 = vadd.s32 %v1512, %v1518
        %vm1521 = vc.u32 %v1519, %v1515
        %v1522 = vsel %vm1521, 1, 0
        %v1523 = vadd.s32 %v1519, %v1515
        %v1524 = vadd.s32 %v1520, %v1522
        %v1525 = vadd.s32 %v1524, %v1514
        %v1526 = vadd.s32 %v1525, %v1516
        %v1527 = vmul.u32 %v1482, %v1473
        %v1528 = vadd.s32 %v1504, %v1523
        %vm1529 = vc.u32 %v1504, %v1523
        %v1530 = vadd.s32 %v1526, 1
        %v1531 = vsel %vm1529, %v1530, %v1526
        %v1532 = vadd.s32 %v1527, %v1531
        %v1533 = vadd.s32 %v1532, 536870912
        %v1534 = vshrl.u32 %v1533, 30
        %v1535 = vshll.u32 %v1534, 30
        %v1536 = vsub.s32 %v1532, %v1535
        %vm1537 = vcmp.lt.s32.totalorder %v1536, 0
        %v1538 = vsub.s32 0, %v1536
        %v1539 = vsel %vm1537, %v1538, %v1536
        %v1540 = vclz %v1539
        %v1541 = vsub.s32 %v1540, 2
        %vm1542 = vcmp.gt.s32.totalorder 0, %v1541
        %v1543 = vsel %vm1542, 0, %v1541
        %v1544 = vsub.s32 32, %v1543
        %v1545 = vshll.u32 %v1536, %v1543
        %v1546 = vshrl.u32 %v1528, %v1544
        %v1547 = vor.u32 %v1545, %v1546
        %v1548 = vsub.s32 4294967266, %v1543
        %v1549 = vadd.s32 %v1548, 127
        %v1550 = vshll.u32 %v1549, 23
        %v1551 = vor.u32 4788187, %v1550
        %v1552 = vand.u32 2147483647, %v1551
        %v1554 = vcvt.s32.f32 %v1547
        %v1555 = vmul.f32 %v1554, %v1552
        %v1556 = vxor.u32 %v1555, 2147483648
        %v1557 = vsel %vm1436, %v1556, %v1555
        %v1558 = vsub.s32 4, %v1534
        %v1559 = vsel %vm1436, %v1558, %v1534
        %v1560 = vsel %vm1435, %v647, %v1557
        %v1561 = vsel %vm1435, 0, %v1559
        %v1562 = vmul.f32 %v1560, %v1560
        %v1563 = vmul.f32 %v1562, -0.001358992
        %v1564 = vadd.f32 %v1563, 0.041655596
        %v1565 = vmul.f32 %v1562, %v1564
        %v1566 = vadd.f32 %v1565, -0.4999988
        %v1567 = vmul.f32 %v1562, %v1566
        %v1568 = vadd.f32 1.0, %v1567
        %v1569 = vmul.f32 %v1560, %v1560
        %v1570 = vmul.f32 %v1569, -0.00019511016
        %v1571 = vadd.f32 %v1570, 0.008332121
        %v1572 = vmul.f32 %v1569, %v1571
        %v1573 = vadd.f32 %v1572, -0.16666654
        %v1574 = vmul.f32 %v1569, %v1573
        %v1575 = vadd.f32 %v1574, 1.0
        %v1576 = vmul.f32 %v1575, %v1560
        %vm1577 = vweird.f32 %v647
        %v1578 = vadd.s32 %v1561, 3
        %v1579 = vand.u32 %v1578, 3
        %vm1580 = vcmp.lt.s32.totalorder %v1579, 2
        %vm1581 = vcmp.eq.s32.totalorder %v1579, 0
        %v1582 = vxor.u32 %v1576, 2147483648
        %v1583 = vsel %vm1581, %v1568, %v1582
        %vm1584 = vcmp.eq.s32.totalorder %v1579, 2
        %v1585 = vxor.u32 %v1568, 2147483648
        %v1586 = vsel %vm1584, %v1585, %v1576
        %v1587 = vsel %vm1580, %v1583, %v1586
        %v1588 = vsel %vm1577, nan, %v1587
        %v1589 = vand.u32 2147483647, %v648
        %vm1590 = vcmp.le.f32.partialorder %v1589, 0.7853982
        %vm1591 = vcmp.lt.s32.totalorder %v648, 0
        %v1592 = vand.u32 %v648, 2139095040
        %v1593 = vshrl.u32 %v1592, 23
        %v1594 = vsub.s32 %v1593, 127
        %v1595 = vand.u32 2147483647, %v648
        %v1596 = vand.u32 %v1595, 8388607
        %v1597 = vor.u32 %v1596, 8388608
        %v1598 = vsub.s32 0, %v1597
        %v1599 = vadd.s32 %v1594, 1
        %vm1600 = vcmp.gt.s32.totalorder %v1599, 0
        %v1601 = vsel %vm1600, %v1599, 0
        %v1602 = vshrl.u32 %v1601, 5
        %v1603 = vand.u32 %v1601, 31
        %v1604 = vsub.s32 32, %v1603
        %v1605 = vshrl.u32 683565275, %v1604
        %v1606 = vshll.u32 683565275, %v1603
        %v1607 = vshrl.u32 2475754826, %v1604
        %v1608 = vor.u32 %v1606, %v1607
        %v1609 = vshll.u32 2475754826, %v1603
        %v1610 = vshrl.u32 2131351028, %v1604
        %v1611 = vor.u32 %v1609, %v1610
        %v1612 = vshll.u32 2131351028, %v1603
        %v1613 = vshrl.u32 2102212464, %v1604
        %v1614 = vor.u32 %v1612, %v1613
        %v1615 = vshll.u32 2102212464, %v1603
        %v1616 = vshrl.u32 920167782, %v1604
        %v1617 = vor.u32 %v1615, %v1616
        %v1618 = vshll.u32 920167782, %v1603
        %v1619 = vshrl.u32 1326507024, %v1604
        %v1620 = vor.u32 %v1618, %v1619
        %vm1621 = vcmp.lt.s32.totalorder %v1602, 1
        %vm1622 = vcmp.lt.s32.totalorder %v1602, 2
        %vm1623 = vcmp.lt.s32.totalorder %v1602, 3
        %vm1624 = vcmp.lt.s32.totalorder %v1602, 4
        %v1625 = vsel %vm1621, %v1605, %v1608
        %v1626 = vsel %vm1624, %v1614, 2102212464
        %v1627 = vsel %vm1623, %v1611, %v1626
        %v1628 = vsel %vm1622, %v1625, %v1627
        %v1629 = vsel %vm1621, %v1608, %v1611
        %v1630 = vsel %vm1624, %v1617, 920167782
        %v1631 = vsel %vm1623, %v1614, %v1630
        %v1632 = vsel %vm1622, %v1629, %v1631
        %v1633 = vsel %vm1621, %v1611, %v1614
        %v1634 = vsel %vm1624, %v1620, 1326507024
        %v1635 = vsel %vm1623, %v1617, %v1634
        %v1636 = vsel %vm1622, %v1633, %v1635
        %v1637 = vshll.u32 %v1597, 8
        %v1638 = vand.u32 %v1637, 65535
        %v1639 = vshrl.u32 %v1637, 16
        %v1640 = vand.u32 %v1636, 65535
        %v1641 = vshrl.u32 %v1636, 16
        %v1642 = vmul.u32 %v1638, %v1640
        %v1643 = vmul.u32 %v1638, %v1641
        %v1644 = vmul.u32 %v1639, %v1640
        %v1645 = vmul.u32 %v1639, %v1641
        %v1646 = vshll.u32 %v1643, 16
        %v1647 = vshrl.u32 %v1643, 16
        %v1648 = vshll.u32 %v1644, 16
        %v1649 = vshrl.u32 %v1644, 16
        %vm1650 = vc.u32 %v1642, %v1646
        %v1651 = vsel %vm1650, 1, 0
        %v1652 = vadd.s32 %v1642, %v1646
        %v1653 = vadd.s32 %v1645, %v1651
        %vm1654 = vc.u32 %v1652, %v1648
        %v1655 = vsel %vm1654, 1, 0
        %v1656 = vadd.s32 %v1652, %v1648
        %v1657 = vadd.s32 %v1653, %v1655
        %v1658 = vadd.s32 %v1657, %v1647
        %v1659 = vadd.s32 %v1658, %v1649
        %v1660 = vand.u32 %v1637, 65535
        %v1661 = vshrl.u32 %v1637, 16
        %v1662 = vand.u32 %v1632, 65535
        %v1663 = vshrl.u32 %v1632, 16
        %v1664 = vmul.u32 %v1660, %v1662
        %v1665 = vmul.u32 %v1660, %v1663
        %v1666 = vmul.u32 %v1661, %v1662
        %v1667 = vmul.u32 %v1661, %v1663
        %v1668 = vshll.u32 %v1665, 16
        %v1669 = vshrl.u32 %v1665, 16
        %v1670 = vshll.u32 %v1666, 16
        %v1671 = vshrl.u32 %v1666, 16
        %vm1672 = vc.u32 %v1664, %v1668
        %v1673 = vsel %vm1672, 1, 0
        %v1674 = vadd.s32 %v1664, %v1668
        %v1675 = vadd.s32 %v1667, %v1673
        %vm1676 = vc.u32 %v1674, %v1670
        %v1677 = vsel %vm1676, 1, 0
        %v1678 = vadd.s32 %v1674, %v1670
        %v1679 = vadd.s32 %v1675, %v1677
        %v1680 = vadd.s32 %v1679, %v1669
        %v1681 = vadd.s32 %v1680, %v1671
        %v1682 = vmul.u32 %v1637, %v1628
        %v1683 = vadd.s32 %v1659, %v1678
        %vm1684 = vc.u32 %v1659, %v1678
        %v1685 = vadd.s32 %v1681, 1
        %v1686 = vsel %vm1684, %v1685, %v1681
        %v1687 = vadd.s32 %v1682, %v1686
        %v1688 = vadd.s32 %v1687, 536870912
        %v1689 = vshrl.u32 %v1688, 30
        %v1690 = vshll.u32 %v1689, 30
        %v1691 = vsub.s32 %v1687, %v1690
        %vm1692 = vcmp.lt.s32.totalorder %v1691, 0
        %v1693 = vsub.s32 0, %v1691
        %v1694 = vsel %vm1692, %v1693, %v1691
        %v1695 = vclz %v1694
        %v1696 = vsub.s32 %v1695, 2
        %vm1697 = vcmp.gt.s32.totalorder 0, %v1696
        %v1698 = vsel %vm1697, 0, %v1696
        %v1699 = vsub.s32 32, %v1698
        %v1700 = vshll.u32 %v1691, %v1698
        %v1701 = vshrl.u32 %v1683, %v1699
        %v1702 = vor.u32 %v1700, %v1701
        %v1703 = vsub.s32 4294967266, %v1698
        %v1704 = vadd.s32 %v1703, 127
        %v1705 = vshll.u32 %v1704, 23
        %v1706 = vor.u32 4788187, %v1705
        %v1707 = vand.u32 2147483647, %v1706
        %v1709 = vcvt.s32.f32 %v1702
        %v1710 = vmul.f32 %v1709, %v1707
        %v1711 = vxor.u32 %v1710, 2147483648
        %v1712 = vsel %vm1591, %v1711, %v1710
        %v1713 = vsub.s32 4, %v1689
        %v1714 = vsel %vm1591, %v1713, %v1689
        %v1715 = vsel %vm1590, %v648, %v1712
        %v1716 = vsel %vm1590, 0, %v1714
        %v1717 = vmul.f32 %v1715, %v1715
        %v1718 = vmul.f32 %v1717, -0.001358992
        %v1719 = vadd.f32 %v1718, 0.041655596
        %v1720 = vmul.f32 %v1717, %v1719
        %v1721 = vadd.f32 %v1720, -0.4999988
        %v1722 = vmul.f32 %v1717, %v1721
        %v1723 = vadd.f32 1.0, %v1722
        %v1724 = vmul.f32 %v1715, %v1715
        %v1725 = vmul.f32 %v1724, -0.00019511016
        %v1726 = vadd.f32 %v1725, 0.008332121
        %v1727 = vmul.f32 %v1724, %v1726
        %v1728 = vadd.f32 %v1727, -0.16666654
        %v1729 = vmul.f32 %v1724, %v1728
        %v1730 = vadd.f32 %v1729, 1.0
        %v1731 = vmul.f32 %v1730, %v1715
        %vm1732 = vweird.f32 %v648
        %v1733 = vadd.s32 %v1716, 3
        %v1734 = vand.u32 %v1733, 3
        %vm1735 = vcmp.lt.s32.totalorder %v1734, 2
        %vm1736 = vcmp.eq.s32.totalorder %v1734, 0
        %v1737 = vxor.u32 %v1731, 2147483648
        %v1738 = vsel %vm1736, %v1723, %v1737
        %vm1739 = vcmp.eq.s32.totalorder %v1734, 2
        %v1740 = vxor.u32 %v1723, 2147483648
        %v1741 = vsel %vm1739, %v1740, %v1731
        %v1742 = vsel %vm1735, %v1738, %v1741
        %v1743 = vsel %vm1732, nan, %v1742
        %v1744 = vand.u32 2147483647, %v649
        %vm1745 = vcmp.le.f32.partialorder %v1744, 0.7853982
        %vm1746 = vcmp.lt.s32.totalorder %v649, 0
        %v1747 = vand.u32 %v649, 2139095040
        %v1748 = vshrl.u32 %v1747, 23
        %v1749 = vsub.s32 %v1748, 127
        %v1750 = vand.u32 2147483647, %v649
        %v1751 = vand.u32 %v1750, 8388607
        %v1752 = vor.u32 %v1751, 8388608
        %v1753 = vsub.s32 0, %v1752
        %v1754 = vadd.s32 %v1749, 1
        %vm1755 = vcmp.gt.s32.totalorder %v1754, 0
        %v1756 = vsel %vm1755, %v1754, 0
        %v1757 = vshrl.u32 %v1756, 5
        %v1758 = vand.u32 %v1756, 31
        %v1759 = vsub.s32 32, %v1758
        %v1760 = vshrl.u32 683565275, %v1759
        %v1761 = vshll.u32 683565275, %v1758
        %v1762 = vshrl.u32 2475754826, %v1759
        %v1763 = vor.u32 %v1761, %v1762
        %v1764 = vshll.u32 2475754826, %v1758
        %v1765 = vshrl.u32 2131351028, %v1759
        %v1766 = vor.u32 %v1764, %v1765
        %v1767 = vshll.u32 2131351028, %v1758
        %v1768 = vshrl.u32 2102212464, %v1759
        %v1769 = vor.u32 %v1767, %v1768
        %v1770 = vshll.u32 2102212464, %v1758
        %v1771 = vshrl.u32 920167782, %v1759
        %v1772 = vor.u32 %v1770, %v1771
        %v1773 = vshll.u32 920167782, %v1758
        %v1774 = vshrl.u32 1326507024, %v1759
        %v1775 = vor.u32 %v1773, %v1774
        %vm1776 = vcmp.lt.s32.totalorder %v1757, 1
        %vm1777 = vcmp.lt.s32.totalorder %v1757, 2
        %vm1778 = vcmp.lt.s32.totalorder %v1757, 3
        %vm1779 = vcmp.lt.s32.totalorder %v1757, 4
        %v1780 = vsel %vm1776, %v1760, %v1763
        %v1781 = vsel %vm1779, %v1769, 2102212464
        %v1782 = vsel %vm1778, %v1766, %v1781
        %v1783 = vsel %vm1777, %v1780, %v1782
        %v1784 = vsel %vm1776, %v1763, %v1766
        %v1785 = vsel %vm1779, %v1772, 920167782
        %v1786 = vsel %vm1778, %v1769, %v1785
        %v1787 = vsel %vm1777, %v1784, %v1786
        %v1788 = vsel %vm1776, %v1766, %v1769
        %v1789 = vsel %vm1779, %v1775, 1326507024
        %v1790 = vsel %vm1778, %v1772, %v1789
        %v1791 = vsel %vm1777, %v1788, %v1790
        %v1792 = vshll.u32 %v1752, 8
        %v1793 = vand.u32 %v1792, 65535
        %v1794 = vshrl.u32 %v1792, 16
        %v1795 = vand.u32 %v1791, 65535
        %v1796 = vshrl.u32 %v1791, 16
        %v1797 = vmul.u32 %v1793, %v1795
        %v1798 = vmul.u32 %v1793, %v1796
        %v1799 = vmul.u32 %v1794, %v1795
        %v1800 = vmul.u32 %v1794, %v1796
        %v1801 = vshll.u32 %v1798, 16
        %v1802 = vshrl.u32 %v1798, 16
        %v1803 = vshll.u32 %v1799, 16
        %v1804 = vshrl.u32 %v1799, 16
        %vm1805 = vc.u32 %v1797, %v1801
        %v1806 = vsel %vm1805, 1, 0
        %v1807 = vadd.s32 %v1797, %v1801
        %v1808 = vadd.s32 %v1800, %v1806
        %vm1809 = vc.u32 %v1807, %v1803
        %v1810 = vsel %vm1809, 1, 0
        %v1811 = vadd.s32 %v1807, %v1803
        %v1812 = vadd.s32 %v1808, %v1810
        %v1813 = vadd.s32 %v1812, %v1802
        %v1814 = vadd.s32 %v1813, %v1804
        %v1815 = vand.u32 %v1792, 65535
        %v1816 = vshrl.u32 %v1792, 16
        %v1817 = vand.u32 %v1787, 65535
        %v1818 = vshrl.u32 %v1787, 16
        %v1819 = vmul.u32 %v1815, %v1817
        %v1820 = vmul.u32 %v1815, %v1818
        %v1821 = vmul.u32 %v1816, %v1817
        %v1822 = vmul.u32 %v1816, %v1818
        %v1823 = vshll.u32 %v1820, 16
        %v1824 = vshrl.u32 %v1820, 16
        %v1825 = vshll.u32 %v1821, 16
        %v1826 = vshrl.u32 %v1821, 16
        %vm1827 = vc.u32 %v1819, %v1823
        %v1828 = vsel %vm1827, 1, 0
        %v1829 = vadd.s32 %v1819, %v1823
        %v1830 = vadd.s32 %v1822, %v1828
        %vm1831 = vc.u32 %v1829, %v1825
        %v1832 = vsel %vm1831, 1, 0
        %v1833 = vadd.s32 %v1829, %v1825
        %v1834 = vadd.s32 %v1830, %v1832
        %v1835 = vadd.s32 %v1834, %v1824
        %v1836 = vadd.s32 %v1835, %v1826
        %v1837 = vmul.u32 %v1792, %v1783
        %v1838 = vadd.s32 %v1814, %v1833
        %vm1839 = vc.u32 %v1814, %v1833
        %v1840 = vadd.s32 %v1836, 1
        %v1841 = vsel %vm1839, %v1840, %v1836
        %v1842 = vadd.s32 %v1837, %v1841
        %v1843 = vadd.s32 %v1842, 536870912
        %v1844 = vshrl.u32 %v1843, 30
        %v1845 = vshll.u32 %v1844, 30
        %v1846 = vsub.s32 %v1842, %v1845
        %vm1847 = vcmp.lt.s32.totalorder %v1846, 0
        %v1848 = vsub.s32 0, %v1846
        %v1849 = vsel %vm1847, %v1848, %v1846
        %v1850 = vclz %v1849
        %v1851 = vsub.s32 %v1850, 2
        %vm1852 = vcmp.gt.s32.totalorder 0, %v1851
        %v1853 = vsel %vm1852, 0, %v1851
        %v1854 = vsub.s32 32, %v1853
        %v1855 = vshll.u32 %v1846, %v1853
        %v1856 = vshrl.u32 %v1838, %v1854
        %v1857 = vor.u32 %v1855, %v1856
        %v1858 = vsub.s32 4294967266, %v1853
        %v1859 = vadd.s32 %v1858, 127
        %v1860 = vshll.u32 %v1859, 23
        %v1861 = vor.u32 4788187, %v1860
        %v1862 = vand.u32 2147483647, %v1861
        %v1864 = vcvt.s32.f32 %v1857
        %v1865 = vmul.f32 %v1864, %v1862
        %v1866 = vxor.u32 %v1865, 2147483648
        %v1867 = vsel %vm1746, %v1866, %v1865
        %v1868 = vsub.s32 4, %v1844
        %v1869 = vsel %vm1746, %v1868, %v1844
        %v1870 = vsel %vm1745, %v649, %v1867
        %v1871 = vsel %vm1745, 0, %v1869
        %v1872 = vmul.f32 %v1870, %v1870
        %v1873 = vmul.f32 %v1872, -0.001358992
        %v1874 = vadd.f32 %v1873, 0.041655596
        %v1875 = vmul.f32 %v1872, %v1874
        %v1876 = vadd.f32 %v1875, -0.4999988
        %v1877 = vmul.f32 %v1872, %v1876
        %v1878 = vadd.f32 1.0, %v1877
        %v1879 = vmul.f32 %v1870, %v1870
        %v1880 = vmul.f32 %v1879, -0.00019511016
        %v1881 = vadd.f32 %v1880, 0.008332121
        %v1882 = vmul.f32 %v1879, %v1881
        %v1883 = vadd.f32 %v1882, -0.16666654
        %v1884 = vmul.f32 %v1879, %v1883
        %v1885 = vadd.f32 %v1884, 1.0
        %v1886 = vmul.f32 %v1885, %v1870
        %vm1887 = vweird.f32 %v649
        %v1888 = vadd.s32 %v1871, 3
        %v1889 = vand.u32 %v1888, 3
        %vm1890 = vcmp.lt.s32.totalorder %v1889, 2
        %vm1891 = vcmp.eq.s32.totalorder %v1889, 0
        %v1892 = vxor.u32 %v1886, 2147483648
        %v1893 = vsel %vm1891, %v1878, %v1892
        %vm1894 = vcmp.eq.s32.totalorder %v1889, 2
        %v1895 = vxor.u32 %v1878, 2147483648
        %v1896 = vsel %vm1894, %v1895, %v1886
        %v1897 = vsel %vm1890, %v1893, %v1896
        %v1898 = vsel %vm1887, nan, %v1897
        %v1899 = vperm.slane %v492, 1
        %v1900 = vmul.f32 %v1899, %v813
        %v1901 = vmul.f32 %v1899, %v968
        %v1902 = vmul.f32 %v1899, %v1123
        %v1903 = vmul.f32 %v1899, %v1278
        %v1904 = vmul.f32 %v1899, %v1433
        %v1905 = vmul.f32 %v1899, %v1588
        %v1906 = vmul.f32 %v1899, %v1743
        %v1907 = vmul.f32 %v1899, %v1898
        %v1908 = vadd.f32 %v651, %v1900
        %v1909 = vadd.f32 %v652, %v1901
        %v1910 = vadd.f32 %v653, %v1902
        %v1911 = vadd.f32 %v654, %v1903
        %v1912 = vadd.f32 %v655, %v1904
        %v1913 = vadd.f32 %v656, %v1905
        %v1914 = vadd.f32 %v657, %v1906
        %v1915 = vadd.f32 %v658, %v1907
        %v1916 = vand.u32 2147483647, %v642
        %vm1917 = vcmp.le.f32.partialorder %v1916, 0.7853982
        %vm1918 = vcmp.lt.s32.totalorder %v642, 0
        %v1919 = vand.u32 %v642, 2139095040
        %v1920 = vshrl.u32 %v1919, 23
        %v1921 = vsub.s32 %v1920, 127
        %v1922 = vand.u32 2147483647, %v642
        %v1923 = vand.u32 %v1922, 8388607
        %v1924 = vor.u32 %v1923, 8388608
        %v1925 = vsub.s32 0, %v1924
        %v1926 = vadd.s32 %v1921, 1
        %vm1927 = vcmp.gt.s32.totalorder %v1926, 0
        %v1928 = vsel %vm1927, %v1926, 0
        %v1929 = vshrl.u32 %v1928, 5
        %v1930 = vand.u32 %v1928, 31
        %v1931 = vsub.s32 32, %v1930
        %v1932 = vshrl.u32 683565275, %v1931
        %v1933 = vshll.u32 683565275, %v1930
        %v1934 = vshrl.u32 2475754826, %v1931
        %v1935 = vor.u32 %v1933, %v1934
        %v1936 = vshll.u32 2475754826, %v1930
        %v1937 = vshrl.u32 2131351028, %v1931
        %v1938 = vor.u32 %v1936, %v1937
        %v1939 = vshll.u32 2131351028, %v1930
        %v1940 = vshrl.u32 2102212464, %v1931
        %v1941 = vor.u32 %v1939, %v1940
        %v1942 = vshll.u32 2102212464, %v1930
        %v1943 = vshrl.u32 920167782, %v1931
        %v1944 = vor.u32 %v1942, %v1943
        %v1945 = vshll.u32 920167782, %v1930
        %v1946 = vshrl.u32 1326507024, %v1931
        %v1947 = vor.u32 %v1945, %v1946
        %vm1948 = vcmp.lt.s32.totalorder %v1929, 1
        %vm1949 = vcmp.lt.s32.totalorder %v1929, 2
        %vm1950 = vcmp.lt.s32.totalorder %v1929, 3
        %vm1951 = vcmp.lt.s32.totalorder %v1929, 4
        %v1952 = vsel %vm1948, %v1932, %v1935
        %v1953 = vsel %vm1951, %v1941, 2102212464
        %v1954 = vsel %vm1950, %v1938, %v1953
        %v1955 = vsel %vm1949, %v1952, %v1954
        %v1956 = vsel %vm1948, %v1935, %v1938
        %v1957 = vsel %vm1951, %v1944, 920167782
        %v1958 = vsel %vm1950, %v1941, %v1957
        %v1959 = vsel %vm1949, %v1956, %v1958
        %v1960 = vsel %vm1948, %v1938, %v1941
        %v1961 = vsel %vm1951, %v1947, 1326507024
        %v1962 = vsel %vm1950, %v1944, %v1961
        %v1963 = vsel %vm1949, %v1960, %v1962
        %v1964 = vshll.u32 %v1924, 8
        %v1965 = vand.u32 %v1964, 65535
        %v1966 = vshrl.u32 %v1964, 16
        %v1967 = vand.u32 %v1963, 65535
        %v1968 = vshrl.u32 %v1963, 16
        %v1969 = vmul.u32 %v1965, %v1967
        %v1970 = vmul.u32 %v1965, %v1968
        %v1971 = vmul.u32 %v1966, %v1967
        %v1972 = vmul.u32 %v1966, %v1968
        %v1973 = vshll.u32 %v1970, 16
        %v1974 = vshrl.u32 %v1970, 16
        %v1975 = vshll.u32 %v1971, 16
        %v1976 = vshrl.u32 %v1971, 16
        %vm1977 = vc.u32 %v1969, %v1973
        %v1978 = vsel %vm1977, 1, 0
        %v1979 = vadd.s32 %v1969, %v1973
        %v1980 = vadd.s32 %v1972, %v1978
        %vm1981 = vc.u32 %v1979, %v1975
        %v1982 = vsel %vm1981, 1, 0
        %v1983 = vadd.s32 %v1979, %v1975
        %v1984 = vadd.s32 %v1980, %v1982
        %v1985 = vadd.s32 %v1984, %v1974
        %v1986 = vadd.s32 %v1985, %v1976
        %v1987 = vand.u32 %v1964, 65535
        %v1988 = vshrl.u32 %v1964, 16
        %v1989 = vand.u32 %v1959, 65535
        %v1990 = vshrl.u32 %v1959, 16
        %v1991 = vmul.u32 %v1987, %v1989
        %v1992 = vmul.u32 %v1987, %v1990
        %v1993 = vmul.u32 %v1988, %v1989
        %v1994 = vmul.u32 %v1988, %v1990
        %v1995 = vshll.u32 %v1992, 16
        %v1996 = vshrl.u32 %v1992, 16
        %v1997 = vshll.u32 %v1993, 16
        %v1998 = vshrl.u32 %v1993, 16
        %vm1999 = vc.u32 %v1991, %v1995
        %v2000 = vsel %vm1999, 1, 0
        %v2001 = vadd.s32 %v1991, %v1995
        %v2002 = vadd.s32 %v1994, %v2000
        %vm2003 = vc.u32 %v2001, %v1997
        %v2004 = vsel %vm2003, 1, 0
        %v2005 = vadd.s32 %v2001, %v1997
        %v2006 = vadd.s32 %v2002, %v2004
        %v2007 = vadd.s32 %v2006, %v1996
        %v2008 = vadd.s32 %v2007, %v1998
        %v2009 = vmul.u32 %v1964, %v1955
        %v2010 = vadd.s32 %v1986, %v2005
        %vm2011 = vc.u32 %v1986, %v2005
        %v2012 = vadd.s32 %v2008, 1
        %v2013 = vsel %vm2011, %v2012, %v2008
        %v2014 = vadd.s32 %v2009, %v2013
        %v2015 = vadd.s32 %v2014, 536870912
        %v2016 = vshrl.u32 %v2015, 30
        %v2017 = vshll.u32 %v2016, 30
        %v2018 = vsub.s32 %v2014, %v2017
        %vm2019 = vcmp.lt.s32.totalorder %v2018, 0
        %v2020 = vsub.s32 0, %v2018
        %v2021 = vsel %vm2019, %v2020, %v2018
        %v2022 = vclz %v2021
        %v2023 = vsub.s32 %v2022, 2
        %vm2024 = vcmp.gt.s32.totalorder 0, %v2023
        %v2025 = vsel %vm2024, 0, %v2023
        %v2026 = vsub.s32 32, %v2025
        %v2027 = vshll.u32 %v2018, %v2025
        %v2028 = vshrl.u32 %v2010, %v2026
        %v2029 = vor.u32 %v2027, %v2028
        %v2030 = vsub.s32 4294967266, %v2025
        %v2031 = vadd.s32 %v2030, 127
        %v2032 = vshll.u32 %v2031, 23
        %v2033 = vor.u32 4788187, %v2032
        %v2034 = vand.u32 2147483647, %v2033
        %v2036 = vcvt.s32.f32 %v2029
        %v2037 = vmul.f32 %v2036, %v2034
        %v2038 = vxor.u32 %v2037, 2147483648
        %v2039 = vsel %vm1918, %v2038, %v2037
        %v2040 = vsub.s32 4, %v2016
        %v2041 = vsel %vm1918, %v2040, %v2016
        %v2042 = vsel %vm1917, %v642, %v2039
        %v2043 = vsel %vm1917, 0, %v2041
        %v2044 = vmul.f32 %v2042, %v2042
        %v2045 = vmul.f32 %v2044, -0.001358992
        %v2046 = vadd.f32 %v2045, 0.041655596
        %v2047 = vmul.f32 %v2044, %v2046
        %v2048 = vadd.f32 %v2047, -0.4999988
        %v2049 = vmul.f32 %v2044, %v2048
        %v2050 = vadd.f32 1.0, %v2049
        %v2051 = vmul.f32 %v2042, %v2042
        %v2052 = vmul.f32 %v2051, -0.00019511016
        %v2053 = vadd.f32 %v2052, 0.008332121
        %v2054 = vmul.f32 %v2051, %v2053
        %v2055 = vadd.f32 %v2054, -0.16666654
        %v2056 = vmul.f32 %v2051, %v2055
        %v2057 = vadd.f32 %v2056, 1.0
        %v2058 = vmul.f32 %v2057, %v2042
        %vm2059 = vweird.f32 %v642
        %v2060 = vand.u32 %v2043, 3
        %vm2061 = vcmp.lt.s32.totalorder %v2060, 2
        %vm2062 = vcmp.eq.s32.totalorder %v2060, 0
        %v2063 = vxor.u32 %v2058, 2147483648
        %v2064 = vsel %vm2062, %v2050, %v2063
        %vm2065 = vcmp.eq.s32.totalorder %v2060, 2
        %v2066 = vxor.u32 %v2050, 2147483648
        %v2067 = vsel %vm2065, %v2066, %v2058
        %v2068 = vsel %vm2061, %v2064, %v2067
        %v2069 = vsel %vm2059, nan, %v2068
        %v2070 = vand.u32 2147483647, %v643
        %vm2071 = vcmp.le.f32.partialorder %v2070, 0.7853982
        %vm2072 = vcmp.lt.s32.totalorder %v643, 0
        %v2073 = vand.u32 %v643, 2139095040
        %v2074 = vshrl.u32 %v2073, 23
        %v2075 = vsub.s32 %v2074, 127
        %v2076 = vand.u32 2147483647, %v643
        %v2077 = vand.u32 %v2076, 8388607
        %v2078 = vor.u32 %v2077, 8388608
        %v2079 = vsub.s32 0, %v2078
        %v2080 = vadd.s32 %v2075, 1
        %vm2081 = vcmp.gt.s32.totalorder %v2080, 0
        %v2082 = vsel %vm2081, %v2080, 0
        %v2083 = vshrl.u32 %v2082, 5
        %v2084 = vand.u32 %v2082, 31
        %v2085 = vsub.s32 32, %v2084
        %v2086 = vshrl.u32 683565275, %v2085
        %v2087 = vshll.u32 683565275, %v2084
        %v2088 = vshrl.u32 2475754826, %v2085
        %v2089 = vor.u32 %v2087, %v2088
        %v2090 = vshll.u32 2475754826, %v2084
        %v2091 = vshrl.u32 2131351028, %v2085
        %v2092 = vor.u32 %v2090, %v2091
        %v2093 = vshll.u32 2131351028, %v2084
        %v2094 = vshrl.u32 2102212464, %v2085
        %v2095 = vor.u32 %v2093, %v2094
        %v2096 = vshll.u32 2102212464, %v2084
        %v2097 = vshrl.u32 920167782, %v2085
        %v2098 = vor.u32 %v2096, %v2097
        %v2099 = vshll.u32 920167782, %v2084
        %v2100 = vshrl.u32 1326507024, %v2085
        %v2101 = vor.u32 %v2099, %v2100
        %vm2102 = vcmp.lt.s32.totalorder %v2083, 1
        %vm2103 = vcmp.lt.s32.totalorder %v2083, 2
        %vm2104 = vcmp.lt.s32.totalorder %v2083, 3
        %vm2105 = vcmp.lt.s32.totalorder %v2083, 4
        %v2106 = vsel %vm2102, %v2086, %v2089
        %v2107 = vsel %vm2105, %v2095, 2102212464
        %v2108 = vsel %vm2104, %v2092, %v2107
        %v2109 = vsel %vm2103, %v2106, %v2108
        %v2110 = vsel %vm2102, %v2089, %v2092
        %v2111 = vsel %vm2105, %v2098, 920167782
        %v2112 = vsel %vm2104, %v2095, %v2111
        %v2113 = vsel %vm2103, %v2110, %v2112
        %v2114 = vsel %vm2102, %v2092, %v2095
        %v2115 = vsel %vm2105, %v2101, 1326507024
        %v2116 = vsel %vm2104, %v2098, %v2115
        %v2117 = vsel %vm2103, %v2114, %v2116
        %v2118 = vshll.u32 %v2078, 8
        %v2119 = vand.u32 %v2118, 65535
        %v2120 = vshrl.u32 %v2118, 16
        %v2121 = vand.u32 %v2117, 65535
        %v2122 = vshrl.u32 %v2117, 16
        %v2123 = vmul.u32 %v2119, %v2121
        %v2124 = vmul.u32 %v2119, %v2122
        %v2125 = vmul.u32 %v2120, %v2121
        %v2126 = vmul.u32 %v2120, %v2122
        %v2127 = vshll.u32 %v2124, 16
        %v2128 = vshrl.u32 %v2124, 16
        %v2129 = vshll.u32 %v2125, 16
        %v2130 = vshrl.u32 %v2125, 16
        %vm2131 = vc.u32 %v2123, %v2127
        %v2132 = vsel %vm2131, 1, 0
        %v2133 = vadd.s32 %v2123, %v2127
        %v2134 = vadd.s32 %v2126, %v2132
        %vm2135 = vc.u32 %v2133, %v2129
        %v2136 = vsel %vm2135, 1, 0
        %v2137 = vadd.s32 %v2133, %v2129
        %v2138 = vadd.s32 %v2134, %v2136
        %v2139 = vadd.s32 %v2138, %v2128
        %v2140 = vadd.s32 %v2139, %v2130
        %v2141 = vand.u32 %v2118, 65535
        %v2142 = vshrl.u32 %v2118, 16
        %v2143 = vand.u32 %v2113, 65535
        %v2144 = vshrl.u32 %v2113, 16
        %v2145 = vmul.u32 %v2141, %v2143
        %v2146 = vmul.u32 %v2141, %v2144
        %v2147 = vmul.u32 %v2142, %v2143
        %v2148 = vmul.u32 %v2142, %v2144
        %v2149 = vshll.u32 %v2146, 16
        %v2150 = vshrl.u32 %v2146, 16
        %v2151 = vshll.u32 %v2147, 16
        %v2152 = vshrl.u32 %v2147, 16
        %vm2153 = vc.u32 %v2145, %v2149
        %v2154 = vsel %vm2153, 1, 0
        %v2155 = vadd.s32 %v2145, %v2149
        %v2156 = vadd.s32 %v2148, %v2154
        %vm2157 = vc.u32 %v2155, %v2151
        %v2158 = vsel %vm2157, 1, 0
        %v2159 = vadd.s32 %v2155, %v2151
        %v2160 = vadd.s32 %v2156, %v2158
        %v2161 = vadd.s32 %v2160, %v2150
        %v2162 = vadd.s32 %v2161, %v2152
        %v2163 = vmul.u32 %v2118, %v2109
        %v2164 = vadd.s32 %v2140, %v2159
        %vm2165 = vc.u32 %v2140, %v2159
        %v2166 = vadd.s32 %v2162, 1
        %v2167 = vsel %vm2165, %v2166, %v2162
        %v2168 = vadd.s32 %v2163, %v2167
        %v2169 = vadd.s32 %v2168, 536870912
        %v2170 = vshrl.u32 %v2169, 30
        %v2171 = vshll.u32 %v2170, 30
        %v2172 = vsub.s32 %v2168, %v2171
        %vm2173 = vcmp.lt.s32.totalorder %v2172, 0
        %v2174 = vsub.s32 0, %v2172
        %v2175 = vsel %vm2173, %v2174, %v2172
        %v2176 = vclz %v2175
        %v2177 = vsub.s32 %v2176, 2
        %vm2178 = vcmp.gt.s32.totalorder 0, %v2177
        %v2179 = vsel %vm2178, 0, %v2177
        %v2180 = vsub.s32 32, %v2179
        %v2181 = vshll.u32 %v2172, %v2179
        %v2182 = vshrl.u32 %v2164, %v2180
        %v2183 = vor.u32 %v2181, %v2182
        %v2184 = vsub.s32 4294967266, %v2179
        %v2185 = vadd.s32 %v2184, 127
        %v2186 = vshll.u32 %v2185, 23
        %v2187 = vor.u32 4788187, %v2186
        %v2188 = vand.u32 2147483647, %v2187
        %v2190 = vcvt.s32.f32 %v2183
        %v2191 = vmul.f32 %v2190, %v2188
        %v2192 = vxor.u32 %v2191, 2147483648
        %v2193 = vsel %vm2072, %v2192, %v2191
        %v2194 = vsub.s32 4, %v2170
        %v2195 = vsel %vm2072, %v2194, %v2170
        %v2196 = vsel %vm2071, %v643, %v2193
        %v2197 = vsel %vm2071, 0, %v2195
        %v2198 = vmul.f32 %v2196, %v2196
        %v2199 = vmul.f32 %v2198, -0.001358992
        %v2200 = vadd.f32 %v2199, 0.041655596
        %v2201 = vmul.f32 %v2198, %v2200
        %v2202 = vadd.f32 %v2201, -0.4999988
        %v2203 = vmul.f32 %v2198, %v2202
        %v2204 = vadd.f32 1.0, %v2203
        %v2205 = vmul.f32 %v2196, %v2196
        %v2206 = vmul.f32 %v2205, -0.00019511016
        %v2207 = vadd.f32 %v2206, 0.008332121
        %v2208 = vmul.f32 %v2205, %v2207
        %v2209 = vadd.f32 %v2208, -0.16666654
        %v2210 = vmul.f32 %v2205, %v2209
        %v2211 = vadd.f32 %v2210, 1.0
        %v2212 = vmul.f32 %v2211, %v2196
        %vm2213 = vweird.f32 %v643
        %v2214 = vand.u32 %v2197, 3
        %vm2215 = vcmp.lt.s32.totalorder %v2214, 2
        %vm2216 = vcmp.eq.s32.totalorder %v2214, 0
        %v2217 = vxor.u32 %v2212, 2147483648
        %v2218 = vsel %vm2216, %v2204, %v2217
        %vm2219 = vcmp.eq.s32.totalorder %v2214, 2
        %v2220 = vxor.u32 %v2204, 2147483648
        %v2221 = vsel %vm2219, %v2220, %v2212
        %v2222 = vsel %vm2215, %v2218, %v2221
        %v2223 = vsel %vm2213, nan, %v2222
        %v2224 = vand.u32 2147483647, %v644
        %vm2225 = vcmp.le.f32.partialorder %v2224, 0.7853982
        %vm2226 = vcmp.lt.s32.totalorder %v644, 0
        %v2227 = vand.u32 %v644, 2139095040
        %v2228 = vshrl.u32 %v2227, 23
        %v2229 = vsub.s32 %v2228, 127
        %v2230 = vand.u32 2147483647, %v644
        %v2231 = vand.u32 %v2230, 8388607
        %v2232 = vor.u32 %v2231, 8388608
        %v2233 = vsub.s32 0, %v2232
        %v2234 = vadd.s32 %v2229, 1
        %vm2235 = vcmp.gt.s32.totalorder %v2234, 0
        %v2236 = vsel %vm2235, %v2234, 0
        %v2237 = vshrl.u32 %v2236, 5
        %v2238 = vand.u32 %v2236, 31
        %v2239 = vsub.s32 32, %v2238
        %v2240 = vshrl.u32 683565275, %v2239
        %v2241 = vshll.u32 683565275, %v2238
        %v2242 = vshrl.u32 2475754826, %v2239
        %v2243 = vor.u32 %v2241, %v2242
        %v2244 = vshll.u32 2475754826, %v2238
        %v2245 = vshrl.u32 2131351028, %v2239
        %v2246 = vor.u32 %v2244, %v2245
        %v2247 = vshll.u32 2131351028, %v2238
        %v2248 = vshrl.u32 2102212464, %v2239
        %v2249 = vor.u32 %v2247, %v2248
        %v2250 = vshll.u32 2102212464, %v2238
        %v2251 = vshrl.u32 920167782, %v2239
        %v2252 = vor.u32 %v2250, %v2251
        %v2253 = vshll.u32 920167782, %v2238
        %v2254 = vshrl.u32 1326507024, %v2239
        %v2255 = vor.u32 %v2253, %v2254
        %vm2256 = vcmp.lt.s32.totalorder %v2237, 1
        %vm2257 = vcmp.lt.s32.totalorder %v2237, 2
        %vm2258 = vcmp.lt.s32.totalorder %v2237, 3
        %vm2259 = vcmp.lt.s32.totalorder %v2237, 4
        %v2260 = vsel %vm2256, %v2240, %v2243
        %v2261 = vsel %vm2259, %v2249, 2102212464
        %v2262 = vsel %vm2258, %v2246, %v2261
        %v2263 = vsel %vm2257, %v2260, %v2262
        %v2264 = vsel %vm2256, %v2243, %v2246
        %v2265 = vsel %vm2259, %v2252, 920167782
        %v2266 = vsel %vm2258, %v2249, %v2265
        %v2267 = vsel %vm2257, %v2264, %v2266
        %v2268 = vsel %vm2256, %v2246, %v2249
        %v2269 = vsel %vm2259, %v2255, 1326507024
        %v2270 = vsel %vm2258, %v2252, %v2269
        %v2271 = vsel %vm2257, %v2268, %v2270
        %v2272 = vshll.u32 %v2232, 8
        %v2273 = vand.u32 %v2272, 65535
        %v2274 = vshrl.u32 %v2272, 16
        %v2275 = vand.u32 %v2271, 65535
        %v2276 = vshrl.u32 %v2271, 16
        %v2277 = vmul.u32 %v2273, %v2275
        %v2278 = vmul.u32 %v2273, %v2276
        %v2279 = vmul.u32 %v2274, %v2275
        %v2280 = vmul.u32 %v2274, %v2276
        %v2281 = vshll.u32 %v2278, 16
        %v2282 = vshrl.u32 %v2278, 16
        %v2283 = vshll.u32 %v2279, 16
        %v2284 = vshrl.u32 %v2279, 16
        %vm2285 = vc.u32 %v2277, %v2281
        %v2286 = vsel %vm2285, 1, 0
        %v2287 = vadd.s32 %v2277, %v2281
        %v2288 = vadd.s32 %v2280, %v2286
        %vm2289 = vc.u32 %v2287, %v2283
        %v2290 = vsel %vm2289, 1, 0
        %v2291 = vadd.s32 %v2287, %v2283
        %v2292 = vadd.s32 %v2288, %v2290
        %v2293 = vadd.s32 %v2292, %v2282
        %v2294 = vadd.s32 %v2293, %v2284
        %v2295 = vand.u32 %v2272, 65535
        %v2296 = vshrl.u32 %v2272, 16
        %v2297 = vand.u32 %v2267, 65535
        %v2298 = vshrl.u32 %v2267, 16
        %v2299 = vmul.u32 %v2295, %v2297
        %v2300 = vmul.u32 %v2295, %v2298
        %v2301 = vmul.u32 %v2296, %v2297
        %v2302 = vmul.u32 %v2296, %v2298
        %v2303 = vshll.u32 %v2300, 16
        %v2304 = vshrl.u32 %v2300, 16
        %v2305 = vshll.u32 %v2301, 16
        %v2306 = vshrl.u32 %v2301, 16
        %vm2307 = vc.u32 %v2299, %v2303
        %v2308 = vsel %vm2307, 1, 0
        %v2309 = vadd.s32 %v2299, %v2303
        %v2310 = vadd.s32 %v2302, %v2308
        %vm2311 = vc.u32 %v2309, %v2305
        %v2312 = vsel %vm2311, 1, 0
        %v2313 = vadd.s32 %v2309, %v2305
        %v2314 = vadd.s32 %v2310, %v2312
        %v2315 = vadd.s32 %v2314, %v2304
        %v2316 = vadd.s32 %v2315, %v2306
        %v2317 = vmul.u32 %v2272, %v2263
        %v2318 = vadd.s32 %v2294, %v2313
        %vm2319 = vc.u32 %v2294, %v2313
        %v2320 = vadd.s32 %v2316, 1
        %v2321 = vsel %vm2319, %v2320, %v2316
        %v2322 = vadd.s32 %v2317, %v2321
        %v2323 = vadd.s32 %v2322, 536870912
        %v2324 = vshrl.u32 %v2323, 30
        %v2325 = vshll.u32 %v2324, 30
        %v2326 = vsub.s32 %v2322, %v2325
        %vm2327 = vcmp.lt.s32.totalorder %v2326, 0
        %v2328 = vsub.s32 0, %v2326
        %v2329 = vsel %vm2327, %v2328, %v2326
        %v2330 = vclz %v2329
        %v2331 = vsub.s32 %v2330, 2
        %vm2332 = vcmp.gt.s32.totalorder 0, %v2331
        %v2333 = vsel %vm2332, 0, %v2331
        %v2334 = vsub.s32 32, %v2333
        %v2335 = vshll.u32 %v2326, %v2333
        %v2336 = vshrl.u32 %v2318, %v2334
        %v2337 = vor.u32 %v2335, %v2336
        %v2338 = vsub.s32 4294967266, %v2333
        %v2339 = vadd.s32 %v2338, 127
        %v2340 = vshll.u32 %v2339, 23
        %v2341 = vor.u32 4788187, %v2340
        %v2342 = vand.u32 2147483647, %v2341
        %v2344 = vcvt.s32.f32 %v2337
        %v2345 = vmul.f32 %v2344, %v2342
        %v2346 = vxor.u32 %v2345, 2147483648
        %v2347 = vsel %vm2226, %v2346, %v2345
        %v2348 = vsub.s32 4, %v2324
        %v2349 = vsel %vm2226, %v2348, %v2324
        %v2350 = vsel %vm2225, %v644, %v2347
        %v2351 = vsel %vm2225, 0, %v2349
        %v2352 = vmul.f32 %v2350, %v2350
        %v2353 = vmul.f32 %v2352, -0.001358992
        %v2354 = vadd.f32 %v2353, 0.041655596
        %v2355 = vmul.f32 %v2352, %v2354
        %v2356 = vadd.f32 %v2355, -0.4999988
        %v2357 = vmul.f32 %v2352, %v2356
        %v2358 = vadd.f32 1.0, %v2357
        %v2359 = vmul.f32 %v2350, %v2350
        %v2360 = vmul.f32 %v2359, -0.00019511016
        %v2361 = vadd.f32 %v2360, 0.008332121
        %v2362 = vmul.f32 %v2359, %v2361
        %v2363 = vadd.f32 %v2362, -0.16666654
        %v2364 = vmul.f32 %v2359, %v2363
        %v2365 = vadd.f32 %v2364, 1.0
        %v2366 = vmul.f32 %v2365, %v2350
        %vm2367 = vweird.f32 %v644
        %v2368 = vand.u32 %v2351, 3
        %vm2369 = vcmp.lt.s32.totalorder %v2368, 2
        %vm2370 = vcmp.eq.s32.totalorder %v2368, 0
        %v2371 = vxor.u32 %v2366, 2147483648
        %v2372 = vsel %vm2370, %v2358, %v2371
        %vm2373 = vcmp.eq.s32.totalorder %v2368, 2
        %v2374 = vxor.u32 %v2358, 2147483648
        %v2375 = vsel %vm2373, %v2374, %v2366
        %v2376 = vsel %vm2369, %v2372, %v2375
        %v2377 = vsel %vm2367, nan, %v2376
        %v2378 = vand.u32 2147483647, %v645
        %vm2379 = vcmp.le.f32.partialorder %v2378, 0.7853982
        %vm2380 = vcmp.lt.s32.totalorder %v645, 0
        %v2381 = vand.u32 %v645, 2139095040
        %v2382 = vshrl.u32 %v2381, 23
        %v2383 = vsub.s32 %v2382, 127
        %v2384 = vand.u32 2147483647, %v645
        %v2385 = vand.u32 %v2384, 8388607
        %v2386 = vor.u32 %v2385, 8388608
        %v2387 = vsub.s32 0, %v2386
        %v2388 = vadd.s32 %v2383, 1
        %vm2389 = vcmp.gt.s32.totalorder %v2388, 0
        %v2390 = vsel %vm2389, %v2388, 0
        %v2391 = vshrl.u32 %v2390, 5
        %v2392 = vand.u32 %v2390, 31
        %v2393 = vsub.s32 32, %v2392
        %v2394 = vshrl.u32 683565275, %v2393
        %v2395 = vshll.u32 683565275, %v2392
        %v2396 = vshrl.u32 2475754826, %v2393
        %v2397 = vor.u32 %v2395, %v2396
        %v2398 = vshll.u32 2475754826, %v2392
        %v2399 = vshrl.u32 2131351028, %v2393
        %v2400 = vor.u32 %v2398, %v2399
        %v2401 = vshll.u32 2131351028, %v2392
        %v2402 = vshrl.u32 2102212464, %v2393
        %v2403 = vor.u32 %v2401, %v2402
        %v2404 = vshll.u32 2102212464, %v2392
        %v2405 = vshrl.u32 920167782, %v2393
        %v2406 = vor.u32 %v2404, %v2405
        %v2407 = vshll.u32 920167782, %v2392
        %v2408 = vshrl.u32 1326507024, %v2393
        %v2409 = vor.u32 %v2407, %v2408
        %vm2410 = vcmp.lt.s32.totalorder %v2391, 1
        %vm2411 = vcmp.lt.s32.totalorder %v2391, 2
        %vm2412 = vcmp.lt.s32.totalorder %v2391, 3
        %vm2413 = vcmp.lt.s32.totalorder %v2391, 4
        %v2414 = vsel %vm2410, %v2394, %v2397
        %v2415 = vsel %vm2413, %v2403, 2102212464
        %v2416 = vsel %vm2412, %v2400, %v2415
        %v2417 = vsel %vm2411, %v2414, %v2416
        %v2418 = vsel %vm2410, %v2397, %v2400
        %v2419 = vsel %vm2413, %v2406, 920167782
        %v2420 = vsel %vm2412, %v2403, %v2419
        %v2421 = vsel %vm2411, %v2418, %v2420
        %v2422 = vsel %vm2410, %v2400, %v2403
        %v2423 = vsel %vm2413, %v2409, 1326507024
        %v2424 = vsel %vm2412, %v2406, %v2423
        %v2425 = vsel %vm2411, %v2422, %v2424
        %v2426 = vshll.u32 %v2386, 8
        %v2427 = vand.u32 %v2426, 65535
        %v2428 = vshrl.u32 %v2426, 16
        %v2429 = vand.u32 %v2425, 65535
        %v2430 = vshrl.u32 %v2425, 16
        %v2431 = vmul.u32 %v2427, %v2429
        %v2432 = vmul.u32 %v2427, %v2430
        %v2433 = vmul.u32 %v2428, %v2429
        %v2434 = vmul.u32 %v2428, %v2430
        %v2435 = vshll.u32 %v2432, 16
        %v2436 = vshrl.u32 %v2432, 16
        %v2437 = vshll.u32 %v2433, 16
        %v2438 = vshrl.u32 %v2433, 16
        %vm2439 = vc.u32 %v2431, %v2435
        %v2440 = vsel %vm2439, 1, 0
        %v2441 = vadd.s32 %v2431, %v2435
        %v2442 = vadd.s32 %v2434, %v2440
        %vm2443 = vc.u32 %v2441, %v2437
        %v2444 = vsel %vm2443, 1, 0
        %v2445 = vadd.s32 %v2441, %v2437
        %v2446 = vadd.s32 %v2442, %v2444
        %v2447 = vadd.s32 %v2446, %v2436
        %v2448 = vadd.s32 %v2447, %v2438
        %v2449 = vand.u32 %v2426, 65535
        %v2450 = vshrl.u32 %v2426, 16
        %v2451 = vand.u32 %v2421, 65535
        %v2452 = vshrl.u32 %v2421, 16
        %v2453 = vmul.u32 %v2449, %v2451
        %v2454 = vmul.u32 %v2449, %v2452
        %v2455 = vmul.u32 %v2450, %v2451
        %v2456 = vmul.u32 %v2450, %v2452
        %v2457 = vshll.u32 %v2454, 16
        %v2458 = vshrl.u32 %v2454, 16
        %v2459 = vshll.u32 %v2455, 16
        %v2460 = vshrl.u32 %v2455, 16
        %vm2461 = vc.u32 %v2453, %v2457
        %v2462 = vsel %vm2461, 1, 0
        %v2463 = vadd.s32 %v2453, %v2457
        %v2464 = vadd.s32 %v2456, %v2462
        %vm2465 = vc.u32 %v2463, %v2459
        %v2466 = vsel %vm2465, 1, 0
        %v2467 = vadd.s32 %v2463, %v2459
        %v2468 = vadd.s32 %v2464, %v2466
        %v2469 = vadd.s32 %v2468, %v2458
        %v2470 = vadd.s32 %v2469, %v2460
        %v2471 = vmul.u32 %v2426, %v2417
        %v2472 = vadd.s32 %v2448, %v2467
        %vm2473 = vc.u32 %v2448, %v2467
        %v2474 = vadd.s32 %v2470, 1
        %v2475 = vsel %vm2473, %v2474, %v2470
        %v2476 = vadd.s32 %v2471, %v2475
        %v2477 = vadd.s32 %v2476, 536870912
        %v2478 = vshrl.u32 %v2477, 30
        %v2479 = vshll.u32 %v2478, 30
        %v2480 = vsub.s32 %v2476, %v2479
        %vm2481 = vcmp.lt.s32.totalorder %v2480, 0
        %v2482 = vsub.s32 0, %v2480
        %v2483 = vsel %vm2481, %v2482, %v2480
        %v2484 = vclz %v2483
        %v2485 = vsub.s32 %v2484, 2
        %vm2486 = vcmp.gt.s32.totalorder 0, %v2485
        %v2487 = vsel %vm2486, 0, %v2485
        %v2488 = vsub.s32 32, %v2487
        %v2489 = vshll.u32 %v2480, %v2487
        %v2490 = vshrl.u32 %v2472, %v2488
        %v2491 = vor.u32 %v2489, %v2490
        %v2492 = vsub.s32 4294967266, %v2487
        %v2493 = vadd.s32 %v2492, 127
        %v2494 = vshll.u32 %v2493, 23
        %v2495 = vor.u32 4788187, %v2494
        %v2496 = vand.u32 2147483647, %v2495
        %v2498 = vcvt.s32.f32 %v2491
        %v2499 = vmul.f32 %v2498, %v2496
        %v2500 = vxor.u32 %v2499, 2147483648
        %v2501 = vsel %vm2380, %v2500, %v2499
        %v2502 = vsub.s32 4, %v2478
        %v2503 = vsel %vm2380, %v2502, %v2478
        %v2504 = vsel %vm2379, %v645, %v2501
        %v2505 = vsel %vm2379, 0, %v2503
        %v2506 = vmul.f32 %v2504, %v2504
        %v2507 = vmul.f32 %v2506, -0.001358992
        %v2508 = vadd.f32 %v2507, 0.041655596
        %v2509 = vmul.f32 %v2506, %v2508
        %v2510 = vadd.f32 %v2509, -0.4999988
        %v2511 = vmul.f32 %v2506, %v2510
        %v2512 = vadd.f32 1.0, %v2511
        %v2513 = vmul.f32 %v2504, %v2504
        %v2514 = vmul.f32 %v2513, -0.00019511016
        %v2515 = vadd.f32 %v2514, 0.008332121
        %v2516 = vmul.f32 %v2513, %v2515
        %v2517 = vadd.f32 %v2516, -0.16666654
        %v2518 = vmul.f32 %v2513, %v2517
        %v2519 = vadd.f32 %v2518, 1.0
        %v2520 = vmul.f32 %v2519, %v2504
        %vm2521 = vweird.f32 %v645
        %v2522 = vand.u32 %v2505, 3
        %vm2523 = vcmp.lt.s32.totalorder %v2522, 2
        %vm2524 = vcmp.eq.s32.totalorder %v2522, 0
        %v2525 = vxor.u32 %v2520, 2147483648
        %v2526 = vsel %vm2524, %v2512, %v2525
        %vm2527 = vcmp.eq.s32.totalorder %v2522, 2
        %v2528 = vxor.u32 %v2512, 2147483648
        %v2529 = vsel %vm2527, %v2528, %v2520
        %v2530 = vsel %vm2523, %v2526, %v2529
        %v2531 = vsel %vm2521, nan, %v2530
        %v2532 = vand.u32 2147483647, %v646
        %vm2533 = vcmp.le.f32.partialorder %v2532, 0.7853982
        %vm2534 = vcmp.lt.s32.totalorder %v646, 0
        %v2535 = vand.u32 %v646, 2139095040
        %v2536 = vshrl.u32 %v2535, 23
        %v2537 = vsub.s32 %v2536, 127
        %v2538 = vand.u32 2147483647, %v646
        %v2539 = vand.u32 %v2538, 8388607
        %v2540 = vor.u32 %v2539, 8388608
        %v2541 = vsub.s32 0, %v2540
        %v2542 = vadd.s32 %v2537, 1
        %vm2543 = vcmp.gt.s32.totalorder %v2542, 0
        %v2544 = vsel %vm2543, %v2542, 0
        %v2545 = vshrl.u32 %v2544, 5
        %v2546 = vand.u32 %v2544, 31
        %v2547 = vsub.s32 32, %v2546
        %v2548 = vshrl.u32 683565275, %v2547
        %v2549 = vshll.u32 683565275, %v2546
        %v2550 = vshrl.u32 2475754826, %v2547
        %v2551 = vor.u32 %v2549, %v2550
        %v2552 = vshll.u32 2475754826, %v2546
        %v2553 = vshrl.u32 2131351028, %v2547
        %v2554 = vor.u32 %v2552, %v2553
        %v2555 = vshll.u32 2131351028, %v2546
        %v2556 = vshrl.u32 2102212464, %v2547
        %v2557 = vor.u32 %v2555, %v2556
        %v2558 = vshll.u32 2102212464, %v2546
        %v2559 = vshrl.u32 920167782, %v2547
        %v2560 = vor.u32 %v2558, %v2559
        %v2561 = vshll.u32 920167782, %v2546
        %v2562 = vshrl.u32 1326507024, %v2547
        %v2563 = vor.u32 %v2561, %v2562
        %vm2564 = vcmp.lt.s32.totalorder %v2545, 1
        %vm2565 = vcmp.lt.s32.totalorder %v2545, 2
        %vm2566 = vcmp.lt.s32.totalorder %v2545, 3
        %vm2567 = vcmp.lt.s32.totalorder %v2545, 4
        %v2568 = vsel %vm2564, %v2548, %v2551
        %v2569 = vsel %vm2567, %v2557, 2102212464
        %v2570 = vsel %vm2566, %v2554, %v2569
        %v2571 = vsel %vm2565, %v2568, %v2570
        %v2572 = vsel %vm2564, %v2551, %v2554
        %v2573 = vsel %vm2567, %v2560, 920167782
        %v2574 = vsel %vm2566, %v2557, %v2573
        %v2575 = vsel %vm2565, %v2572, %v2574
        %v2576 = vsel %vm2564, %v2554, %v2557
        %v2577 = vsel %vm2567, %v2563, 1326507024
        %v2578 = vsel %vm2566, %v2560, %v2577
        %v2579 = vsel %vm2565, %v2576, %v2578
        %v2580 = vshll.u32 %v2540, 8
        %v2581 = vand.u32 %v2580, 65535
        %v2582 = vshrl.u32 %v2580, 16
        %v2583 = vand.u32 %v2579, 65535
        %v2584 = vshrl.u32 %v2579, 16
        %v2585 = vmul.u32 %v2581, %v2583
        %v2586 = vmul.u32 %v2581, %v2584
        %v2587 = vmul.u32 %v2582, %v2583
        %v2588 = vmul.u32 %v2582, %v2584
        %v2589 = vshll.u32 %v2586, 16
        %v2590 = vshrl.u32 %v2586, 16
        %v2591 = vshll.u32 %v2587, 16
        %v2592 = vshrl.u32 %v2587, 16
        %vm2593 = vc.u32 %v2585, %v2589
        %v2594 = vsel %vm2593, 1, 0
        %v2595 = vadd.s32 %v2585, %v2589
        %v2596 = vadd.s32 %v2588, %v2594
        %vm2597 = vc.u32 %v2595, %v2591
        %v2598 = vsel %vm2597, 1, 0
        %v2599 = vadd.s32 %v2595, %v2591
        %v2600 = vadd.s32 %v2596, %v2598
        %v2601 = vadd.s32 %v2600, %v2590
        %v2602 = vadd.s32 %v2601, %v2592
        %v2603 = vand.u32 %v2580, 65535
        %v2604 = vshrl.u32 %v2580, 16
        %v2605 = vand.u32 %v2575, 65535
        %v2606 = vshrl.u32 %v2575, 16
        %v2607 = vmul.u32 %v2603, %v2605
        %v2608 = vmul.u32 %v2603, %v2606
        %v2609 = vmul.u32 %v2604, %v2605
        %v2610 = vmul.u32 %v2604, %v2606
        %v2611 = vshll.u32 %v2608, 16
        %v2612 = vshrl.u32 %v2608, 16
        %v2613 = vshll.u32 %v2609, 16
        %v2614 = vshrl.u32 %v2609, 16
        %vm2615 = vc.u32 %v2607, %v2611
        %v2616 = vsel %vm2615, 1, 0
        %v2617 = vadd.s32 %v2607, %v2611
        %v2618 = vadd.s32 %v2610, %v2616
        %vm2619 = vc.u32 %v2617, %v2613
        %v2620 = vsel %vm2619, 1, 0
        %v2621 = vadd.s32 %v2617, %v2613
        %v2622 = vadd.s32 %v2618, %v2620
        %v2623 = vadd.s32 %v2622, %v2612
        %v2624 = vadd.s32 %v2623, %v2614
        %v2625 = vmul.u32 %v2580, %v2571
        %v2626 = vadd.s32 %v2602, %v2621
        %vm2627 = vc.u32 %v2602, %v2621
        %v2628 = vadd.s32 %v2624, 1
        %v2629 = vsel %vm2627, %v2628, %v2624
        %v2630 = vadd.s32 %v2625, %v2629
        %v2631 = vadd.s32 %v2630, 536870912
        %v2632 = vshrl.u32 %v2631, 30
        %v2633 = vshll.u32 %v2632, 30
        %v2634 = vsub.s32 %v2630, %v2633
        %vm2635 = vcmp.lt.s32.totalorder %v2634, 0
        %v2636 = vsub.s32 0, %v2634
        %v2637 = vsel %vm2635, %v2636, %v2634
        %v2638 = vclz %v2637
        %v2639 = vsub.s32 %v2638, 2
        %vm2640 = vcmp.gt.s32.totalorder 0, %v2639
        %v2641 = vsel %vm2640, 0, %v2639
        %v2642 = vsub.s32 32, %v2641
        %v2643 = vshll.u32 %v2634, %v2641
        %v2644 = vshrl.u32 %v2626, %v2642
        %v2645 = vor.u32 %v2643, %v2644
        %v2646 = vsub.s32 4294967266, %v2641
        %v2647 = vadd.s32 %v2646, 127
        %v2648 = vshll.u32 %v2647, 23
        %v2649 = vor.u32 4788187, %v2648
        %v2650 = vand.u32 2147483647, %v2649
        %v2652 = vcvt.s32.f32 %v2645
        %v2653 = vmul.f32 %v2652, %v2650
        %v2654 = vxor.u32 %v2653, 2147483648
        %v2655 = vsel %vm2534, %v2654, %v2653
        %v2656 = vsub.s32 4, %v2632
        %v2657 = vsel %vm2534, %v2656, %v2632
        %v2658 = vsel %vm2533, %v646, %v2655
        %v2659 = vsel %vm2533, 0, %v2657
        %v2660 = vmul.f32 %v2658, %v2658
        %v2661 = vmul.f32 %v2660, -0.001358992
        %v2662 = vadd.f32 %v2661, 0.041655596
        %v2663 = vmul.f32 %v2660, %v2662
        %v2664 = vadd.f32 %v2663, -0.4999988
        %v2665 = vmul.f32 %v2660, %v2664
        %v2666 = vadd.f32 1.0, %v2665
        %v2667 = vmul.f32 %v2658, %v2658
        %v2668 = vmul.f32 %v2667, -0.00019511016
        %v2669 = vadd.f32 %v2668, 0.008332121
        %v2670 = vmul.f32 %v2667, %v2669
        %v2671 = vadd.f32 %v2670, -0.16666654
        %v2672 = vmul.f32 %v2667, %v2671
        %v2673 = vadd.f32 %v2672, 1.0
        %v2674 = vmul.f32 %v2673, %v2658
        %vm2675 = vweird.f32 %v646
        %v2676 = vand.u32 %v2659, 3
        %vm2677 = vcmp.lt.s32.totalorder %v2676, 2
        %vm2678 = vcmp.eq.s32.totalorder %v2676, 0
        %v2679 = vxor.u32 %v2674, 2147483648
        %v2680 = vsel %vm2678, %v2666, %v2679
        %vm2681 = vcmp.eq.s32.totalorder %v2676, 2
        %v2682 = vxor.u32 %v2666, 2147483648
        %v2683 = vsel %vm2681, %v2682, %v2674
        %v2684 = vsel %vm2677, %v2680, %v2683
        %v2685 = vsel %vm2675, nan, %v2684
        %v2686 = vand.u32 2147483647, %v647
        %vm2687 = vcmp.le.f32.partialorder %v2686, 0.7853982
        %vm2688 = vcmp.lt.s32.totalorder %v647, 0
        %v2689 = vand.u32 %v647, 2139095040
        %v2690 = vshrl.u32 %v2689, 23
        %v2691 = vsub.s32 %v2690, 127
        %v2692 = vand.u32 2147483647, %v647
        %v2693 = vand.u32 %v2692, 8388607
        %v2694 = vor.u32 %v2693, 8388608
        %v2695 = vsub.s32 0, %v2694
        %v2696 = vadd.s32 %v2691, 1
        %vm2697 = vcmp.gt.s32.totalorder %v2696, 0
        %v2698 = vsel %vm2697, %v2696, 0
        %v2699 = vshrl.u32 %v2698, 5
        %v2700 = vand.u32 %v2698, 31
        %v2701 = vsub.s32 32, %v2700
        %v2702 = vshrl.u32 683565275, %v2701
        %v2703 = vshll.u32 683565275, %v2700
        %v2704 = vshrl.u32 2475754826, %v2701
        %v2705 = vor.u32 %v2703, %v2704
        %v2706 = vshll.u32 2475754826, %v2700
        %v2707 = vshrl.u32 2131351028, %v2701
        %v2708 = vor.u32 %v2706, %v2707
        %v2709 = vshll.u32 2131351028, %v2700
        %v2710 = vshrl.u32 2102212464, %v2701
        %v2711 = vor.u32 %v2709, %v2710
        %v2712 = vshll.u32 2102212464, %v2700
        %v2713 = vshrl.u32 920167782, %v2701
        %v2714 = vor.u32 %v2712, %v2713
        %v2715 = vshll.u32 920167782, %v2700
        %v2716 = vshrl.u32 1326507024, %v2701
        %v2717 = vor.u32 %v2715, %v2716
        %vm2718 = vcmp.lt.s32.totalorder %v2699, 1
        %vm2719 = vcmp.lt.s32.totalorder %v2699, 2
        %vm2720 = vcmp.lt.s32.totalorder %v2699, 3
        %vm2721 = vcmp.lt.s32.totalorder %v2699, 4
        %v2722 = vsel %vm2718, %v2702, %v2705
        %v2723 = vsel %vm2721, %v2711, 2102212464
        %v2724 = vsel %vm2720, %v2708, %v2723
        %v2725 = vsel %vm2719, %v2722, %v2724
        %v2726 = vsel %vm2718, %v2705, %v2708
        %v2727 = vsel %vm2721, %v2714, 920167782
        %v2728 = vsel %vm2720, %v2711, %v2727
        %v2729 = vsel %vm2719, %v2726, %v2728
        %v2730 = vsel %vm2718, %v2708, %v2711
        %v2731 = vsel %vm2721, %v2717, 1326507024
        %v2732 = vsel %vm2720, %v2714, %v2731
        %v2733 = vsel %vm2719, %v2730, %v2732
        %v2734 = vshll.u32 %v2694, 8
        %v2735 = vand.u32 %v2734, 65535
        %v2736 = vshrl.u32 %v2734, 16
        %v2737 = vand.u32 %v2733, 65535
        %v2738 = vshrl.u32 %v2733, 16
        %v2739 = vmul.u32 %v2735, %v2737
        %v2740 = vmul.u32 %v2735, %v2738
        %v2741 = vmul.u32 %v2736, %v2737
        %v2742 = vmul.u32 %v2736, %v2738
        %v2743 = vshll.u32 %v2740, 16
        %v2744 = vshrl.u32 %v2740, 16
        %v2745 = vshll.u32 %v2741, 16
        %v2746 = vshrl.u32 %v2741, 16
        %vm2747 = vc.u32 %v2739, %v2743
        %v2748 = vsel %vm2747, 1, 0
        %v2749 = vadd.s32 %v2739, %v2743
        %v2750 = vadd.s32 %v2742, %v2748
        %vm2751 = vc.u32 %v2749, %v2745
        %v2752 = vsel %vm2751, 1, 0
        %v2753 = vadd.s32 %v2749, %v2745
        %v2754 = vadd.s32 %v2750, %v2752
        %v2755 = vadd.s32 %v2754, %v2744
        %v2756 = vadd.s32 %v2755, %v2746
        %v2757 = vand.u32 %v2734, 65535
        %v2758 = vshrl.u32 %v2734, 16
        %v2759 = vand.u32 %v2729, 65535
        %v2760 = vshrl.u32 %v2729, 16
        %v2761 = vmul.u32 %v2757, %v2759
        %v2762 = vmul.u32 %v2757, %v2760
        %v2763 = vmul.u32 %v2758, %v2759
        %v2764 = vmul.u32 %v2758, %v2760
        %v2765 = vshll.u32 %v2762, 16
        %v2766 = vshrl.u32 %v2762, 16
        %v2767 = vshll.u32 %v2763, 16
        %v2768 = vshrl.u32 %v2763, 16
        %vm2769 = vc.u32 %v2761, %v2765
        %v2770 = vsel %vm2769, 1, 0
        %v2771 = vadd.s32 %v2761, %v2765
        %v2772 = vadd.s32 %v2764, %v2770
        %vm2773 = vc.u32 %v2771, %v2767
        %v2774 = vsel %vm2773, 1, 0
        %v2775 = vadd.s32 %v2771, %v2767
        %v2776 = vadd.s32 %v2772, %v2774
        %v2777 = vadd.s32 %v2776, %v2766
        %v2778 = vadd.s32 %v2777, %v2768
        %v2779 = vmul.u32 %v2734, %v2725
        %v2780 = vadd.s32 %v2756, %v2775
        %vm2781 = vc.u32 %v2756, %v2775
        %v2782 = vadd.s32 %v2778, 1
        %v2783 = vsel %vm2781, %v2782, %v2778
        %v2784 = vadd.s32 %v2779, %v2783
        %v2785 = vadd.s32 %v2784, 536870912
        %v2786 = vshrl.u32 %v2785, 30
        %v2787 = vshll.u32 %v2786, 30
        %v2788 = vsub.s32 %v2784, %v2787
        %vm2789 = vcmp.lt.s32.totalorder %v2788, 0
        %v2790 = vsub.s32 0, %v2788
        %v2791 = vsel %vm2789, %v2790, %v2788
        %v2792 = vclz %v2791
        %v2793 = vsub.s32 %v2792, 2
        %vm2794 = vcmp.gt.s32.totalorder 0, %v2793
        %v2795 = vsel %vm2794, 0, %v2793
        %v2796 = vsub.s32 32, %v2795
        %v2797 = vshll.u32 %v2788, %v2795
        %v2798 = vshrl.u32 %v2780, %v2796
        %v2799 = vor.u32 %v2797, %v2798
        %v2800 = vsub.s32 4294967266, %v2795
        %v2801 = vadd.s32 %v2800, 127
        %v2802 = vshll.u32 %v2801, 23
        %v2803 = vor.u32 4788187, %v2802
        %v2804 = vand.u32 2147483647, %v2803
        %v2806 = vcvt.s32.f32 %v2799
        %v2807 = vmul.f32 %v2806, %v2804
        %v2808 = vxor.u32 %v2807, 2147483648
        %v2809 = vsel %vm2688, %v2808, %v2807
        %v2810 = vsub.s32 4, %v2786
        %v2811 = vsel %vm2688, %v2810, %v2786
        %v2812 = vsel %vm2687, %v647, %v2809
        %v2813 = vsel %vm2687, 0, %v2811
        %v2814 = vmul.f32 %v2812, %v2812
        %v2815 = vmul.f32 %v2814, -0.001358992
        %v2816 = vadd.f32 %v2815, 0.041655596
        %v2817 = vmul.f32 %v2814, %v2816
        %v2818 = vadd.f32 %v2817, -0.4999988
        %v2819 = vmul.f32 %v2814, %v2818
        %v2820 = vadd.f32 1.0, %v2819
        %v2821 = vmul.f32 %v2812, %v2812
        %v2822 = vmul.f32 %v2821, -0.00019511016
        %v2823 = vadd.f32 %v2822, 0.008332121
        %v2824 = vmul.f32 %v2821, %v2823
        %v2825 = vadd.f32 %v2824, -0.16666654
        %v2826 = vmul.f32 %v2821, %v2825
        %v2827 = vadd.f32 %v2826, 1.0
        %v2828 = vmul.f32 %v2827, %v2812
        %vm2829 = vweird.f32 %v647
        %v2830 = vand.u32 %v2813, 3
        %vm2831 = vcmp.lt.s32.totalorder %v2830, 2
        %vm2832 = vcmp.eq.s32.totalorder %v2830, 0
        %v2833 = vxor.u32 %v2828, 2147483648
        %v2834 = vsel %vm2832, %v2820, %v2833
        %vm2835 = vcmp.eq.s32.totalorder %v2830, 2
        %v2836 = vxor.u32 %v2820, 2147483648
        %v2837 = vsel %vm2835, %v2836, %v2828
        %v2838 = vsel %vm2831, %v2834, %v2837
        %v2839 = vsel %vm2829, nan, %v2838
        %v2840 = vand.u32 2147483647, %v648
        %vm2841 = vcmp.le.f32.partialorder %v2840, 0.7853982
        %vm2842 = vcmp.lt.s32.totalorder %v648, 0
        %v2843 = vand.u32 %v648, 2139095040
        %v2844 = vshrl.u32 %v2843, 23
        %v2845 = vsub.s32 %v2844, 127
        %v2846 = vand.u32 2147483647, %v648
        %v2847 = vand.u32 %v2846, 8388607
        %v2848 = vor.u32 %v2847, 8388608
        %v2849 = vsub.s32 0, %v2848
        %v2850 = vadd.s32 %v2845, 1
        %vm2851 = vcmp.gt.s32.totalorder %v2850, 0
        %v2852 = vsel %vm2851, %v2850, 0
        %v2853 = vshrl.u32 %v2852, 5
        %v2854 = vand.u32 %v2852, 31
        %v2855 = vsub.s32 32, %v2854
        %v2856 = vshrl.u32 683565275, %v2855
        %v2857 = vshll.u32 683565275, %v2854
        %v2858 = vshrl.u32 2475754826, %v2855
        %v2859 = vor.u32 %v2857, %v2858
        %v2860 = vshll.u32 2475754826, %v2854
        %v2861 = vshrl.u32 2131351028, %v2855
        %v2862 = vor.u32 %v2860, %v2861
        %v2863 = vshll.u32 2131351028, %v2854
        %v2864 = vshrl.u32 2102212464, %v2855
        %v2865 = vor.u32 %v2863, %v2864
        %v2866 = vshll.u32 2102212464, %v2854
        %v2867 = vshrl.u32 920167782, %v2855
        %v2868 = vor.u32 %v2866, %v2867
        %v2869 = vshll.u32 920167782, %v2854
        %v2870 = vshrl.u32 1326507024, %v2855
        %v2871 = vor.u32 %v2869, %v2870
        %vm2872 = vcmp.lt.s32.totalorder %v2853, 1
        %vm2873 = vcmp.lt.s32.totalorder %v2853, 2
        %vm2874 = vcmp.lt.s32.totalorder %v2853, 3
        %vm2875 = vcmp.lt.s32.totalorder %v2853, 4
        %v2876 = vsel %vm2872, %v2856, %v2859
        %v2877 = vsel %vm2875, %v2865, 2102212464
        %v2878 = vsel %vm2874, %v2862, %v2877
        %v2879 = vsel %vm2873, %v2876, %v2878
        %v2880 = vsel %vm2872, %v2859, %v2862
        %v2881 = vsel %vm2875, %v2868, 920167782
        %v2882 = vsel %vm2874, %v2865, %v2881
        %v2883 = vsel %vm2873, %v2880, %v2882
        %v2884 = vsel %vm2872, %v2862, %v2865
        %v2885 = vsel %vm2875, %v2871, 1326507024
        %v2886 = vsel %vm2874, %v2868, %v2885
        %v2887 = vsel %vm2873, %v2884, %v2886
        %v2888 = vshll.u32 %v2848, 8
        %v2889 = vand.u32 %v2888, 65535
        %v2890 = vshrl.u32 %v2888, 16
        %v2891 = vand.u32 %v2887, 65535
        %v2892 = vshrl.u32 %v2887, 16
        %v2893 = vmul.u32 %v2889, %v2891
        %v2894 = vmul.u32 %v2889, %v2892
        %v2895 = vmul.u32 %v2890, %v2891
        %v2896 = vmul.u32 %v2890, %v2892
        %v2897 = vshll.u32 %v2894, 16
        %v2898 = vshrl.u32 %v2894, 16
        %v2899 = vshll.u32 %v2895, 16
        %v2900 = vshrl.u32 %v2895, 16
        %vm2901 = vc.u32 %v2893, %v2897
        %v2902 = vsel %vm2901, 1, 0
        %v2903 = vadd.s32 %v2893, %v2897
        %v2904 = vadd.s32 %v2896, %v2902
        %vm2905 = vc.u32 %v2903, %v2899
        %v2906 = vsel %vm2905, 1, 0
        %v2907 = vadd.s32 %v2903, %v2899
        %v2908 = vadd.s32 %v2904, %v2906
        %v2909 = vadd.s32 %v2908, %v2898
        %v2910 = vadd.s32 %v2909, %v2900
        %v2911 = vand.u32 %v2888, 65535
        %v2912 = vshrl.u32 %v2888, 16
        %v2913 = vand.u32 %v2883, 65535
        %v2914 = vshrl.u32 %v2883, 16
        %v2915 = vmul.u32 %v2911, %v2913
        %v2916 = vmul.u32 %v2911, %v2914
        %v2917 = vmul.u32 %v2912, %v2913
        %v2918 = vmul.u32 %v2912, %v2914
        %v2919 = vshll.u32 %v2916, 16
        %v2920 = vshrl.u32 %v2916, 16
        %v2921 = vshll.u32 %v2917, 16
        %v2922 = vshrl.u32 %v2917, 16
        %vm2923 = vc.u32 %v2915, %v2919
        %v2924 = vsel %vm2923, 1, 0
        %v2925 = vadd.s32 %v2915, %v2919
        %v2926 = vadd.s32 %v2918, %v2924
        %vm2927 = vc.u32 %v2925, %v2921
        %v2928 = vsel %vm2927, 1, 0
        %v2929 = vadd.s32 %v2925, %v2921
        %v2930 = vadd.s32 %v2926, %v2928
        %v2931 = vadd.s32 %v2930, %v2920
        %v2932 = vadd.s32 %v2931, %v2922
        %v2933 = vmul.u32 %v2888, %v2879
        %v2934 = vadd.s32 %v2910, %v2929
        %vm2935 = vc.u32 %v2910, %v2929
        %v2936 = vadd.s32 %v2932, 1
        %v2937 = vsel %vm2935, %v2936, %v2932
        %v2938 = vadd.s32 %v2933, %v2937
        %v2939 = vadd.s32 %v2938, 536870912
        %v2940 = vshrl.u32 %v2939, 30
        %v2941 = vshll.u32 %v2940, 30
        %v2942 = vsub.s32 %v2938, %v2941
        %vm2943 = vcmp.lt.s32.totalorder %v2942, 0
        %v2944 = vsub.s32 0, %v2942
        %v2945 = vsel %vm2943, %v2944, %v2942
        %v2946 = vclz %v2945
        %v2947 = vsub.s32 %v2946, 2
        %vm2948 = vcmp.gt.s32.totalorder 0, %v2947
        %v2949 = vsel %vm2948, 0, %v2947
        %v2950 = vsub.s32 32, %v2949
        %v2951 = vshll.u32 %v2942, %v2949
        %v2952 = vshrl.u32 %v2934, %v2950
        %v2953 = vor.u32 %v2951, %v2952
        %v2954 = vsub.s32 4294967266, %v2949
        %v2955 = vadd.s32 %v2954, 127
        %v2956 = vshll.u32 %v2955, 23
        %v2957 = vor.u32 4788187, %v2956
        %v2958 = vand.u32 2147483647, %v2957
        %v2960 = vcvt.s32.f32 %v2953
        %v2961 = vmul.f32 %v2960, %v2958
        %v2962 = vxor.u32 %v2961, 2147483648
        %v2963 = vsel %vm2842, %v2962, %v2961
        %v2964 = vsub.s32 4, %v2940
        %v2965 = vsel %vm2842, %v2964, %v2940
        %v2966 = vsel %vm2841, %v648, %v2963
        %v2967 = vsel %vm2841, 0, %v2965
        %v2968 = vmul.f32 %v2966, %v2966
        %v2969 = vmul.f32 %v2968, -0.001358992
        %v2970 = vadd.f32 %v2969, 0.041655596
        %v2971 = vmul.f32 %v2968, %v2970
        %v2972 = vadd.f32 %v2971, -0.4999988
        %v2973 = vmul.f32 %v2968, %v2972
        %v2974 = vadd.f32 1.0, %v2973
        %v2975 = vmul.f32 %v2966, %v2966
        %v2976 = vmul.f32 %v2975, -0.00019511016
        %v2977 = vadd.f32 %v2976, 0.008332121
        %v2978 = vmul.f32 %v2975, %v2977
        %v2979 = vadd.f32 %v2978, -0.16666654
        %v2980 = vmul.f32 %v2975, %v2979
        %v2981 = vadd.f32 %v2980, 1.0
        %v2982 = vmul.f32 %v2981, %v2966
        %vm2983 = vweird.f32 %v648
        %v2984 = vand.u32 %v2967, 3
        %vm2985 = vcmp.lt.s32.totalorder %v2984, 2
        %vm2986 = vcmp.eq.s32.totalorder %v2984, 0
        %v2987 = vxor.u32 %v2982, 2147483648
        %v2988 = vsel %vm2986, %v2974, %v2987
        %vm2989 = vcmp.eq.s32.totalorder %v2984, 2
        %v2990 = vxor.u32 %v2974, 2147483648
        %v2991 = vsel %vm2989, %v2990, %v2982
        %v2992 = vsel %vm2985, %v2988, %v2991
        %v2993 = vsel %vm2983, nan, %v2992
        %v2994 = vand.u32 2147483647, %v649
        %vm2995 = vcmp.le.f32.partialorder %v2994, 0.7853982
        %vm2996 = vcmp.lt.s32.totalorder %v649, 0
        %v2997 = vand.u32 %v649, 2139095040
        %v2998 = vshrl.u32 %v2997, 23
        %v2999 = vsub.s32 %v2998, 127
        %v3000 = vand.u32 2147483647, %v649
        %v3001 = vand.u32 %v3000, 8388607
        %v3002 = vor.u32 %v3001, 8388608
        %v3003 = vsub.s32 0, %v3002
        %v3004 = vadd.s32 %v2999, 1
        %vm3005 = vcmp.gt.s32.totalorder %v3004, 0
        %v3006 = vsel %vm3005, %v3004, 0
        %v3007 = vshrl.u32 %v3006, 5
        %v3008 = vand.u32 %v3006, 31
        %v3009 = vsub.s32 32, %v3008
        %v3010 = vshrl.u32 683565275, %v3009
        %v3011 = vshll.u32 683565275, %v3008
        %v3012 = vshrl.u32 2475754826, %v3009
        %v3013 = vor.u32 %v3011, %v3012
        %v3014 = vshll.u32 2475754826, %v3008
        %v3015 = vshrl.u32 2131351028, %v3009
        %v3016 = vor.u32 %v3014, %v3015
        %v3017 = vshll.u32 2131351028, %v3008
        %v3018 = vshrl.u32 2102212464, %v3009
        %v3019 = vor.u32 %v3017, %v3018
        %v3020 = vshll.u32 2102212464, %v3008
        %v3021 = vshrl.u32 920167782, %v3009
        %v3022 = vor.u32 %v3020, %v3021
        %v3023 = vshll.u32 920167782, %v3008
        %v3024 = vshrl.u32 1326507024, %v3009
        %v3025 = vor.u32 %v3023, %v3024
        %vm3026 = vcmp.lt.s32.totalorder %v3007, 1
        %vm3027 = vcmp.lt.s32.totalorder %v3007, 2
        %vm3028 = vcmp.lt.s32.totalorder %v3007, 3
        %vm3029 = vcmp.lt.s32.totalorder %v3007, 4
        %v3030 = vsel %vm3026, %v3010, %v3013
        %v3031 = vsel %vm3029, %v3019, 2102212464
        %v3032 = vsel %vm3028, %v3016, %v3031
        %v3033 = vsel %vm3027, %v3030, %v3032
        %v3034 = vsel %vm3026, %v3013, %v3016
        %v3035 = vsel %vm3029, %v3022, 920167782
        %v3036 = vsel %vm3028, %v3019, %v3035
        %v3037 = vsel %vm3027, %v3034, %v3036
        %v3038 = vsel %vm3026, %v3016, %v3019
        %v3039 = vsel %vm3029, %v3025, 1326507024
        %v3040 = vsel %vm3028, %v3022, %v3039
        %v3041 = vsel %vm3027, %v3038, %v3040
        %v3042 = vshll.u32 %v3002, 8
        %v3043 = vand.u32 %v3042, 65535
        %v3044 = vshrl.u32 %v3042, 16
        %v3045 = vand.u32 %v3041, 65535
        %v3046 = vshrl.u32 %v3041, 16
        %v3047 = vmul.u32 %v3043, %v3045
        %v3048 = vmul.u32 %v3043, %v3046
        %v3049 = vmul.u32 %v3044, %v3045
        %v3050 = vmul.u32 %v3044, %v3046
        %v3051 = vshll.u32 %v3048, 16
        %v3052 = vshrl.u32 %v3048, 16
        %v3053 = vshll.u32 %v3049, 16
        %v3054 = vshrl.u32 %v3049, 16
        %vm3055 = vc.u32 %v3047, %v3051
        %v3056 = vsel %vm3055, 1, 0
        %v3057 = vadd.s32 %v3047, %v3051
        %v3058 = vadd.s32 %v3050, %v3056
        %vm3059 = vc.u32 %v3057, %v3053
        %v3060 = vsel %vm3059, 1, 0
        %v3061 = vadd.s32 %v3057, %v3053
        %v3062 = vadd.s32 %v3058, %v3060
        %v3063 = vadd.s32 %v3062, %v3052
        %v3064 = vadd.s32 %v3063, %v3054
        %v3065 = vand.u32 %v3042, 65535
        %v3066 = vshrl.u32 %v3042, 16
        %v3067 = vand.u32 %v3037, 65535
        %v3068 = vshrl.u32 %v3037, 16
        %v3069 = vmul.u32 %v3065, %v3067
        %v3070 = vmul.u32 %v3065, %v3068
        %v3071 = vmul.u32 %v3066, %v3067
        %v3072 = vmul.u32 %v3066, %v3068
        %v3073 = vshll.u32 %v3070, 16
        %v3074 = vshrl.u32 %v3070, 16
        %v3075 = vshll.u32 %v3071, 16
        %v3076 = vshrl.u32 %v3071, 16
        %vm3077 = vc.u32 %v3069, %v3073
        %v3078 = vsel %vm3077, 1, 0
        %v3079 = vadd.s32 %v3069, %v3073
        %v3080 = vadd.s32 %v3072, %v3078
        %vm3081 = vc.u32 %v3079, %v3075
        %v3082 = vsel %vm3081, 1, 0
        %v3083 = vadd.s32 %v3079, %v3075
        %v3084 = vadd.s32 %v3080, %v3082
        %v3085 = vadd.s32 %v3084, %v3074
        %v3086 = vadd.s32 %v3085, %v3076
        %v3087 = vmul.u32 %v3042, %v3033
        %v3088 = vadd.s32 %v3064, %v3083
        %vm3089 = vc.u32 %v3064, %v3083
        %v3090 = vadd.s32 %v3086, 1
        %v3091 = vsel %vm3089, %v3090, %v3086
        %v3092 = vadd.s32 %v3087, %v3091
        %v3093 = vadd.s32 %v3092, 536870912
        %v3094 = vshrl.u32 %v3093, 30
        %v3095 = vshll.u32 %v3094, 30
        %v3096 = vsub.s32 %v3092, %v3095
        %vm3097 = vcmp.lt.s32.totalorder %v3096, 0
        %v3098 = vsub.s32 0, %v3096
        %v3099 = vsel %vm3097, %v3098, %v3096
        %v3100 = vclz %v3099
        %v3101 = vsub.s32 %v3100, 2
        %vm3102 = vcmp.gt.s32.totalorder 0, %v3101
        %v3103 = vsel %vm3102, 0, %v3101
        %v3104 = vsub.s32 32, %v3103
        %v3105 = vshll.u32 %v3096, %v3103
        %v3106 = vshrl.u32 %v3088, %v3104
        %v3107 = vor.u32 %v3105, %v3106
        %v3108 = vsub.s32 4294967266, %v3103
        %v3109 = vadd.s32 %v3108, 127
        %v3110 = vshll.u32 %v3109, 23
        %v3111 = vor.u32 4788187, %v3110
        %v3112 = vand.u32 2147483647, %v3111
        %v3114 = vcvt.s32.f32 %v3107
        %v3115 = vmul.f32 %v3114, %v3112
        %v3116 = vxor.u32 %v3115, 2147483648
        %v3117 = vsel %vm2996, %v3116, %v3115
        %v3118 = vsub.s32 4, %v3094
        %v3119 = vsel %vm2996, %v3118, %v3094
        %v3120 = vsel %vm2995, %v649, %v3117
        %v3121 = vsel %vm2995, 0, %v3119
        %v3122 = vmul.f32 %v3120, %v3120
        %v3123 = vmul.f32 %v3122, -0.001358992
        %v3124 = vadd.f32 %v3123, 0.041655596
        %v3125 = vmul.f32 %v3122, %v3124
        %v3126 = vadd.f32 %v3125, -0.4999988
        %v3127 = vmul.f32 %v3122, %v3126
        %v3128 = vadd.f32 1.0, %v3127
        %v3129 = vmul.f32 %v3120, %v3120
        %v3130 = vmul.f32 %v3129, -0.00019511016
        %v3131 = vadd.f32 %v3130, 0.008332121
        %v3132 = vmul.f32 %v3129, %v3131
        %v3133 = vadd.f32 %v3132, -0.16666654
        %v3134 = vmul.f32 %v3129, %v3133
        %v3135 = vadd.f32 %v3134, 1.0
        %v3136 = vmul.f32 %v3135, %v3120
        %vm3137 = vweird.f32 %v649
        %v3138 = vand.u32 %v3121, 3
        %vm3139 = vcmp.lt.s32.totalorder %v3138, 2
        %vm3140 = vcmp.eq.s32.totalorder %v3138, 0
        %v3141 = vxor.u32 %v3136, 2147483648
        %v3142 = vsel %vm3140, %v3128, %v3141
        %vm3143 = vcmp.eq.s32.totalorder %v3138, 2
        %v3144 = vxor.u32 %v3128, 2147483648
        %v3145 = vsel %vm3143, %v3144, %v3136
        %v3146 = vsel %vm3139, %v3142, %v3145
        %v3147 = vsel %vm3137, nan, %v3146
        %v3148 = vperm.slane %v492, 2
        %v3149 = vmul.f32 %v3148, %v2069
        %v3150 = vmul.f32 %v3148, %v2223
        %v3151 = vmul.f32 %v3148, %v2377
        %v3152 = vmul.f32 %v3148, %v2531
        %v3153 = vmul.f32 %v3148, %v2685
        %v3154 = vmul.f32 %v3148, %v2839
        %v3155 = vmul.f32 %v3148, %v2993
        %v3156 = vmul.f32 %v3148, %v3147
        %v3157 = vadd.f32 %v1908, %v3149
        %v3158 = vadd.f32 %v1909, %v3150
        %v3159 = vadd.f32 %v1910, %v3151
        %v3160 = vadd.f32 %v1911, %v3152
        %v3161 = vadd.f32 %v1912, %v3153
        %v3162 = vadd.f32 %v1913, %v3154
        %v3163 = vadd.f32 %v1914, %v3155
        %v3164 = vadd.f32 %v1915, %v3156
        %v3165 = vpack.c.bf16 %v3158, %v3157
        %v3166 = vpack.c.bf16 %v3160, %v3159
        %v3167 = vpack.c.bf16 %v3162, %v3161
        %v3168 = vpack.c.bf16 %v3164, %v3163
        %v3169 = vld [vmem:[%s379] sm:$0xf]
        %v3170 = vld [vmem:[%s379 + $0x4] sm:$0xf]
        %v3171 = vld [vmem:[%s379 + $0x8] sm:$0xf]
        %v3172 = vld [vmem:[%s379 + $0xc] sm:$0xf]
        %v3173 = vld [vmem:[%s379 + $0x10] sm:$0xf]
        %v3174 = vld [vmem:[%s379 + $0x14] sm:$0xf]
        %v3175 = vld [vmem:[%s379 + $0x18] sm:$0xf]
        %v3176 = vld [vmem:[%s379 + $0x1c] sm:$0xf]
        %v3177 = vld [vmem:[%s379 + $0x20] sm:$0xf]
        %v3178 = vld [vmem:[%s379 + $0x24] sm:$0xf]
        %v3179 = vld [vmem:[%s379 + $0x28] sm:$0xf]
        %v3180 = vld [vmem:[%s379 + $0x2c] sm:$0xf]
        %v3181 = vld [vmem:[%s379 + $0x30] sm:$0xf]
        %v3182 = vld [vmem:[%s379 + $0x34] sm:$0xf]
        %v3183 = vld [vmem:[%s379 + $0x38] sm:$0xf]
        %v3184 = vld [vmem:[%s379 + $0x3c] sm:$0xf]
        %v3185 = vperm.slane %v493, 0
        %v3202 = vunpack.c.l.b16 %v3169
        %v3203 = vunpack.c.l.b16 %v3170
        %v3204 = vunpack.c.l.b16 %v3171
        %v3205 = vunpack.c.l.b16 %v3172
        %v3206 = vunpack.c.l.b16 %v3173
        %v3207 = vunpack.c.l.b16 %v3174
        %v3208 = vunpack.c.l.b16 %v3175
        %v3209 = vunpack.c.l.b16 %v3176
        %v3210 = vunpack.c.l.b16 %v3177
        %v3211 = vunpack.c.l.b16 %v3178
        %v3212 = vunpack.c.l.b16 %v3179
        %v3213 = vunpack.c.l.b16 %v3180
        %v3214 = vunpack.c.l.b16 %v3181
        %v3215 = vunpack.c.l.b16 %v3182
        %v3216 = vunpack.c.l.b16 %v3183
        %v3217 = vunpack.c.l.b16 %v3184
        %v3218 = vpack.c.b16 %v3203, %v3202
        %v3219 = vpack.c.b16 %v3205, %v3204
        %v3220 = vpack.c.b16 %v3207, %v3206
        %v3221 = vpack.c.b16 %v3209, %v3208
        %v3222 = vpack.c.b16 %v3211, %v3210
        %v3223 = vpack.c.b16 %v3213, %v3212
        %v3224 = vpack.c.b16 %v3215, %v3214
        %v3225 = vpack.c.b16 %v3217, %v3216
        %3234 = vmatpush.bf16.msra.mxu0 %v3225
        %3235 = vmatpush.bf16.msra.mxu0 %v3224
        %3236 = vmatpush.bf16.msra.mxu0 %v3223
        %3237 = vmatpush.bf16.msra.mxu0 %v3222
        %3238 = vmatpush.bf16.msra.mxu0 %v3221
        %3239 = vmatpush.bf16.msra.mxu0 %v3220
        %3240 = vmatpush.bf16.msra.mxu0 %v3219
        %3241 = vmatpush.bf16.msra.mxu0 %v3218
        %3242 = vmatmul.bf16.gmra.mxu0 %v3165
        %v3243 = vpop.f32.mrf.mxu0
        %v3244 = vadd.f32 %v3185, %v3243
        %v3245 = vpop.f32.mrf.mxu0
        %v3246 = vadd.f32 %v3185, %v3245
        %3247 = vmatmul.bf16.gmra.mxu0 %v3166
        %v3248 = vpop.f32.mrf.mxu0
        %v3249 = vadd.f32 %v3185, %v3248
        %v3250 = vpop.f32.mrf.mxu0
        %v3251 = vadd.f32 %v3185, %v3250
        %3252 = vmatmul.bf16.gmra.mxu0 %v3167
        %v3253 = vpop.f32.mrf.mxu0
        %v3254 = vadd.f32 %v3185, %v3253
        %v3255 = vpop.f32.mrf.mxu0
        %v3256 = vadd.f32 %v3185, %v3255
        %3257 = vmatmul.bf16.gmra.mxu0 %v3168
        %v3258 = vpop.f32.mrf.mxu0
        %v3259 = vadd.f32 %v3185, %v3258
        %v3260 = vpop.f32.mrf.mxu0
        %v3261 = vadd.f32 %v3185, %v3260
        %3262 = vdwg.mxu0
        %v3263 = vmax.f32 %v3244, 0.0
        %v3264 = vmax.f32 %v3246, 0.0
        %v3265 = vmax.f32 %v3249, 0.0
        %v3266 = vmax.f32 %v3251, 0.0
        %v3267 = vmax.f32 %v3254, 0.0
        %v3268 = vmax.f32 %v3256, 0.0
        %v3269 = vmax.f32 %v3259, 0.0
        %v3270 = vmax.f32 %v3261, 0.0
        %v3271 = vpack.c.bf16 %v3264, %v3263
        %v3272 = vpack.c.bf16 %v3266, %v3265
        %v3273 = vpack.c.bf16 %v3268, %v3267
        %v3274 = vpack.c.bf16 %v3270, %v3269
        %s3275 = scalar_lea.vmem %s379, 64 [#allocation2]
        %v3276 = vld [vmem:[%s3275] sm:$0xf]
        %v3277 = vld [vmem:[%s3275 + $0x4] sm:$0xf]
        %v3278 = vld [vmem:[%s3275 + $0x8] sm:$0xf]
        %v3279 = vld [vmem:[%s3275 + $0xc] sm:$0xf]
        %v3280 = vld [vmem:[%s3275 + $0x10] sm:$0xf]
        %v3281 = vld [vmem:[%s3275 + $0x14] sm:$0xf]
        %v3282 = vld [vmem:[%s3275 + $0x18] sm:$0xf]
        %v3283 = vld [vmem:[%s3275 + $0x1c] sm:$0xf]
        %v3284 = vld [vmem:[%s3275 + $0x20] sm:$0xf]
        %v3285 = vld [vmem:[%s3275 + $0x24] sm:$0xf]
        %v3286 = vld [vmem:[%s3275 + $0x28] sm:$0xf]
        %v3287 = vld [vmem:[%s3275 + $0x2c] sm:$0xf]
        %v3288 = vld [vmem:[%s3275 + $0x30] sm:$0xf]
        %v3289 = vld [vmem:[%s3275 + $0x34] sm:$0xf]
        %v3290 = vld [vmem:[%s3275 + $0x38] sm:$0xf]
        %v3291 = vld [vmem:[%s3275 + $0x3c] sm:$0xf]
        %v3292 = vperm.slane %v493, 1
        %v3309 = vunpack.c.l.b16 %v3276
        %v3310 = vunpack.c.l.b16 %v3277
        %v3311 = vunpack.c.l.b16 %v3278
        %v3312 = vunpack.c.l.b16 %v3279
        %v3313 = vunpack.c.l.b16 %v3280
        %v3314 = vunpack.c.l.b16 %v3281
        %v3315 = vunpack.c.l.b16 %v3282
        %v3316 = vunpack.c.l.b16 %v3283
        %v3317 = vunpack.c.l.b16 %v3284
        %v3318 = vunpack.c.l.b16 %v3285
        %v3319 = vunpack.c.l.b16 %v3286
        %v3320 = vunpack.c.l.b16 %v3287
        %v3321 = vunpack.c.l.b16 %v3288
        %v3322 = vunpack.c.l.b16 %v3289
        %v3323 = vunpack.c.l.b16 %v3290
        %v3324 = vunpack.c.l.b16 %v3291
        %v3325 = vpack.c.b16 %v3310, %v3309
        %v3326 = vpack.c.b16 %v3312, %v3311
        %v3327 = vpack.c.b16 %v3314, %v3313
        %v3328 = vpack.c.b16 %v3316, %v3315
        %v3329 = vpack.c.b16 %v3318, %v3317
        %v3330 = vpack.c.b16 %v3320, %v3319
        %v3331 = vpack.c.b16 %v3322, %v3321
        %v3332 = vpack.c.b16 %v3324, %v3323
        %3341 = vmatpush.bf16.msra.mxu0 %v3332
        %3342 = vmatpush.bf16.msra.mxu0 %v3331
        %3343 = vmatpush.bf16.msra.mxu0 %v3330
        %3344 = vmatpush.bf16.msra.mxu0 %v3329
        %3345 = vmatpush.bf16.msra.mxu0 %v3328
        %3346 = vmatpush.bf16.msra.mxu0 %v3327
        %3347 = vmatpush.bf16.msra.mxu0 %v3326
        %3348 = vmatpush.bf16.msra.mxu0 %v3325
        %3349 = vmatmul.bf16.gmra.mxu0 %v3271
        %v3350 = vpop.f32.mrf.mxu0
        %v3351 = vadd.f32 %v3292, %v3350
        %v3352 = vpop.f32.mrf.mxu0
        %v3353 = vadd.f32 %v3292, %v3352
        %3354 = vmatmul.bf16.gmra.mxu0 %v3272
        %v3355 = vpop.f32.mrf.mxu0
        %v3356 = vadd.f32 %v3292, %v3355
        %v3357 = vpop.f32.mrf.mxu0
        %v3358 = vadd.f32 %v3292, %v3357
        %3359 = vmatmul.bf16.gmra.mxu0 %v3273
        %v3360 = vpop.f32.mrf.mxu0
        %v3361 = vadd.f32 %v3292, %v3360
        %v3362 = vpop.f32.mrf.mxu0
        %v3363 = vadd.f32 %v3292, %v3362
        %3364 = vmatmul.bf16.gmra.mxu0 %v3274
        %v3365 = vpop.f32.mrf.mxu0
        %v3366 = vadd.f32 %v3292, %v3365
        %v3367 = vpop.f32.mrf.mxu0
        %v3368 = vadd.f32 %v3292, %v3367
        %3369 = vdwg.mxu0
        %v3370 = vmax.f32 %v3351, 0.0
        %v3371 = vmax.f32 %v3353, 0.0
        %v3372 = vmax.f32 %v3356, 0.0
        %v3373 = vmax.f32 %v3358, 0.0
        %v3374 = vmax.f32 %v3361, 0.0
        %v3375 = vmax.f32 %v3363, 0.0
        %v3376 = vmax.f32 %v3366, 0.0
        %v3377 = vmax.f32 %v3368, 0.0
        %v3378 = vpack.c.bf16 %v3371, %v3370
        %v3379 = vpack.c.bf16 %v3373, %v3372
        %v3380 = vpack.c.bf16 %v3375, %v3374
        %v3381 = vpack.c.bf16 %v3377, %v3376
        %v3382 = vld [vmem:[%s389] sm:$0xf]
        %v3383 = vld [vmem:[%s389 + $0x4] sm:$0xf]
        %v3384 = vld [vmem:[%s389 + $0x8] sm:$0xf]
        %v3385 = vld [vmem:[%s389 + $0xc] sm:$0xf]
        %v3386 = vld [vmem:[%s389 + $0x10] sm:$0xf]
        %v3387 = vld [vmem:[%s389 + $0x14] sm:$0xf]
        %v3388 = vld [vmem:[%s389 + $0x18] sm:$0xf]
        %v3389 = vld [vmem:[%s389 + $0x1c] sm:$0xf]
        %v3390 = vld [vmem:[%s389 + $0x20] sm:$0xf]
        %v3391 = vld [vmem:[%s389 + $0x24] sm:$0xf]
        %v3392 = vld [vmem:[%s389 + $0x28] sm:$0xf]
        %v3393 = vld [vmem:[%s389 + $0x2c] sm:$0xf]
        %v3394 = vld [vmem:[%s389 + $0x30] sm:$0xf]
        %v3395 = vld [vmem:[%s389 + $0x34] sm:$0xf]
        %v3396 = vld [vmem:[%s389 + $0x38] sm:$0xf]
        %v3397 = vld [vmem:[%s389 + $0x3c] sm:$0xf]
        %v3398 = vperm.slane %v494, 0
        %v3415 = vunpack.c.l.b16 %v3382
        %v3416 = vunpack.c.l.b16 %v3383
        %v3417 = vunpack.c.l.b16 %v3384
        %v3418 = vunpack.c.l.b16 %v3385
        %v3419 = vunpack.c.l.b16 %v3386
        %v3420 = vunpack.c.l.b16 %v3387
        %v3421 = vunpack.c.l.b16 %v3388
        %v3422 = vunpack.c.l.b16 %v3389
        %v3423 = vunpack.c.l.b16 %v3390
        %v3424 = vunpack.c.l.b16 %v3391
        %v3425 = vunpack.c.l.b16 %v3392
        %v3426 = vunpack.c.l.b16 %v3393
        %v3427 = vunpack.c.l.b16 %v3394
        %v3428 = vunpack.c.l.b16 %v3395
        %v3429 = vunpack.c.l.b16 %v3396
        %v3430 = vunpack.c.l.b16 %v3397
        %v3431 = vpack.c.b16 %v3416, %v3415
        %v3432 = vpack.c.b16 %v3418, %v3417
        %v3433 = vpack.c.b16 %v3420, %v3419
        %v3434 = vpack.c.b16 %v3422, %v3421
        %v3435 = vpack.c.b16 %v3424, %v3423
        %v3436 = vpack.c.b16 %v3426, %v3425
        %v3437 = vpack.c.b16 %v3428, %v3427
        %v3438 = vpack.c.b16 %v3430, %v3429
        %3447 = vmatpush.bf16.msra.mxu0 %v3438
        %3448 = vmatpush.bf16.msra.mxu0 %v3437
        %3449 = vmatpush.bf16.msra.mxu0 %v3436
        %3450 = vmatpush.bf16.msra.mxu0 %v3435
        %3451 = vmatpush.bf16.msra.mxu0 %v3434
        %3452 = vmatpush.bf16.msra.mxu0 %v3433
        %3453 = vmatpush.bf16.msra.mxu0 %v3432
        %3454 = vmatpush.bf16.msra.mxu0 %v3431
        %3455 = vmatmul.bf16.gmra.mxu0 %v3378
        %v3456 = vpop.f32.mrf.mxu0
        %v3457 = vadd.f32 %v3398, %v3456
        %v3458 = vpop.f32.mrf.mxu0
        %v3459 = vadd.f32 %v3398, %v3458
        %3460 = vmatmul.bf16.gmra.mxu0 %v3379
        %v3461 = vpop.f32.mrf.mxu0
        %v3462 = vadd.f32 %v3398, %v3461
        %v3463 = vpop.f32.mrf.mxu0
        %v3464 = vadd.f32 %v3398, %v3463
        %3465 = vmatmul.bf16.gmra.mxu0 %v3380
        %v3466 = vpop.f32.mrf.mxu0
        %v3467 = vadd.f32 %v3398, %v3466
        %v3468 = vpop.f32.mrf.mxu0
        %v3469 = vadd.f32 %v3398, %v3468
        %3470 = vmatmul.bf16.gmra.mxu0 %v3381
        %v3471 = vpop.f32.mrf.mxu0
        %v3472 = vadd.f32 %v3398, %v3471
        %v3473 = vpop.f32.mrf.mxu0
        %v3474 = vadd.f32 %v3398, %v3473
        %3475 = vdwg.mxu0
        %v3476 = vpack.c.bf16 %v3459, %v3457
        %v3477 = vpack.c.bf16 %v3464, %v3462
        %v3478 = vpack.c.bf16 %v3469, %v3467
        %v3479 = vpack.c.bf16 %v3474, %v3472
        %v3480 = vperm.slane %v494, 3
        %v3481 = vmul.f32 %v3457, %v3480
        %v3482 = vmul.f32 %v3459, %v3480
        %v3483 = vmul.f32 %v3462, %v3480
        %v3484 = vmul.f32 %v3464, %v3480
        %v3485 = vmul.f32 %v3467, %v3480
        %v3486 = vmul.f32 %v3469, %v3480
        %v3487 = vmul.f32 %v3472, %v3480
        %v3488 = vmul.f32 %v3474, %v3480
        %v3489 = vld [vmem:[%s472] sm:$0xff]
        %3491 = vset.pattern.permute.xlu0 0
        %3492 = vperm.xlu0 %3491, %v3489
        %v3493 = vpop.permute.xlu0 %3492
        %v3495 = vperm.slane %v491, 3
        %v3496 = vmul.f32 %v3493, %v3495
        %3497 = vset.pattern.permute.xlu0 1
        %3498 = vperm.xlu0 %3497, %v3489
        %v3499 = vpop.permute.xlu0 %3498
        %v3501 = vperm.slane %v491, 4
        %v3502 = vmul.f32 %v3499, %v3501
        %v3503 = vadd.f32 %v3496, %v3502
        %3504 = vset.pattern.permute.xlu0 2
        %3505 = vperm.xlu0 %3504, %v3489
        %v3506 = vpop.permute.xlu0 %3505
        %v3508 = vperm.slane %v491, 5
        %v3509 = vmul.f32 %v3506, %v3508
        %v3510 = vadd.f32 %v3503, %v3509
        %v3511 = vperm.slane %v492, 3
        %v3512 = vmul.f32 %v3511, %v3510
        %v3513 = vand.u32 2147483647, %v3510
        %vm3514 = vcmp.le.f32.partialorder %v3513, 0.7853982
        %vm3515 = vcmp.lt.s32.totalorder %v3510, 0
        %v3516 = vand.u32 %v3510, 2139095040
        %v3517 = vshrl.u32 %v3516, 23
        %v3518 = vsub.s32 %v3517, 127
        %v3519 = vand.u32 2147483647, %v3510
        %v3520 = vand.u32 %v3519, 8388607
        %v3521 = vor.u32 %v3520, 8388608
        %v3522 = vsub.s32 0, %v3521
        %v3523 = vadd.s32 %v3518, 1
        %vm3524 = vcmp.gt.s32.totalorder %v3523, 0
        %v3525 = vsel %vm3524, %v3523, 0
        %v3526 = vshrl.u32 %v3525, 5
        %v3527 = vand.u32 %v3525, 31
        %v3528 = vsub.s32 32, %v3527
        %v3529 = vshrl.u32 683565275, %v3528
        %v3530 = vshll.u32 683565275, %v3527
        %v3531 = vshrl.u32 2475754826, %v3528
        %v3532 = vor.u32 %v3530, %v3531
        %v3533 = vshll.u32 2475754826, %v3527
        %v3534 = vshrl.u32 2131351028, %v3528
        %v3535 = vor.u32 %v3533, %v3534
        %v3536 = vshll.u32 2131351028, %v3527
        %v3537 = vshrl.u32 2102212464, %v3528
        %v3538 = vor.u32 %v3536, %v3537
        %v3539 = vshll.u32 2102212464, %v3527
        %v3540 = vshrl.u32 920167782, %v3528
        %v3541 = vor.u32 %v3539, %v3540
        %v3542 = vshll.u32 920167782, %v3527
        %v3543 = vshrl.u32 1326507024, %v3528
        %v3544 = vor.u32 %v3542, %v3543
        %vm3545 = vcmp.lt.s32.totalorder %v3526, 1
        %vm3546 = vcmp.lt.s32.totalorder %v3526, 2
        %vm3547 = vcmp.lt.s32.totalorder %v3526, 3
        %vm3548 = vcmp.lt.s32.totalorder %v3526, 4
        %v3549 = vsel %vm3545, %v3529, %v3532
        %v3550 = vsel %vm3548, %v3538, 2102212464
        %v3551 = vsel %vm3547, %v3535, %v3550
        %v3552 = vsel %vm3546, %v3549, %v3551
        %v3553 = vsel %vm3545, %v3532, %v3535
        %v3554 = vsel %vm3548, %v3541, 920167782
        %v3555 = vsel %vm3547, %v3538, %v3554
        %v3556 = vsel %vm3546, %v3553, %v3555
        %v3557 = vsel %vm3545, %v3535, %v3538
        %v3558 = vsel %vm3548, %v3544, 1326507024
        %v3559 = vsel %vm3547, %v3541, %v3558
        %v3560 = vsel %vm3546, %v3557, %v3559
        %v3561 = vshll.u32 %v3521, 8
        %v3562 = vand.u32 %v3561, 65535
        %v3563 = vshrl.u32 %v3561, 16
        %v3564 = vand.u32 %v3560, 65535
        %v3565 = vshrl.u32 %v3560, 16
        %v3566 = vmul.u32 %v3562, %v3564
        %v3567 = vmul.u32 %v3562, %v3565
        %v3568 = vmul.u32 %v3563, %v3564
        %v3569 = vmul.u32 %v3563, %v3565
        %v3570 = vshll.u32 %v3567, 16
        %v3571 = vshrl.u32 %v3567, 16
        %v3572 = vshll.u32 %v3568, 16
        %v3573 = vshrl.u32 %v3568, 16
        %vm3574 = vc.u32 %v3566, %v3570
        %v3575 = vsel %vm3574, 1, 0
        %v3576 = vadd.s32 %v3566, %v3570
        %v3577 = vadd.s32 %v3569, %v3575
        %vm3578 = vc.u32 %v3576, %v3572
        %v3579 = vsel %vm3578, 1, 0
        %v3580 = vadd.s32 %v3576, %v3572
        %v3581 = vadd.s32 %v3577, %v3579
        %v3582 = vadd.s32 %v3581, %v3571
        %v3583 = vadd.s32 %v3582, %v3573
        %v3584 = vand.u32 %v3561, 65535
        %v3585 = vshrl.u32 %v3561, 16
        %v3586 = vand.u32 %v3556, 65535
        %v3587 = vshrl.u32 %v3556, 16
        %v3588 = vmul.u32 %v3584, %v3586
        %v3589 = vmul.u32 %v3584, %v3587
        %v3590 = vmul.u32 %v3585, %v3586
        %v3591 = vmul.u32 %v3585, %v3587
        %v3592 = vshll.u32 %v3589, 16
        %v3593 = vshrl.u32 %v3589, 16
        %v3594 = vshll.u32 %v3590, 16
        %v3595 = vshrl.u32 %v3590, 16
        %vm3596 = vc.u32 %v3588, %v3592
        %v3597 = vsel %vm3596, 1, 0
        %v3598 = vadd.s32 %v3588, %v3592
        %v3599 = vadd.s32 %v3591, %v3597
        %vm3600 = vc.u32 %v3598, %v3594
        %v3601 = vsel %vm3600, 1, 0
        %v3602 = vadd.s32 %v3598, %v3594
        %v3603 = vadd.s32 %v3599, %v3601
        %v3604 = vadd.s32 %v3603, %v3593
        %v3605 = vadd.s32 %v3604, %v3595
        %v3606 = vmul.u32 %v3561, %v3552
        %v3607 = vadd.s32 %v3583, %v3602
        %vm3608 = vc.u32 %v3583, %v3602
        %v3609 = vadd.s32 %v3605, 1
        %v3610 = vsel %vm3608, %v3609, %v3605
        %v3611 = vadd.s32 %v3606, %v3610
        %v3612 = vadd.s32 %v3611, 536870912
        %v3613 = vshrl.u32 %v3612, 30
        %v3614 = vshll.u32 %v3613, 30
        %v3615 = vsub.s32 %v3611, %v3614
        %vm3616 = vcmp.lt.s32.totalorder %v3615, 0
        %v3617 = vsub.s32 0, %v3615
        %v3618 = vsel %vm3616, %v3617, %v3615
        %v3619 = vclz %v3618
        %v3620 = vsub.s32 %v3619, 2
        %vm3621 = vcmp.gt.s32.totalorder 0, %v3620
        %v3622 = vsel %vm3621, 0, %v3620
        %v3623 = vsub.s32 32, %v3622
        %v3624 = vshll.u32 %v3615, %v3622
        %v3625 = vshrl.u32 %v3607, %v3623
        %v3626 = vor.u32 %v3624, %v3625
        %v3627 = vsub.s32 4294967266, %v3622
        %v3628 = vadd.s32 %v3627, 127
        %v3629 = vshll.u32 %v3628, 23
        %v3630 = vor.u32 4788187, %v3629
        %v3631 = vand.u32 2147483647, %v3630
        %v3633 = vcvt.s32.f32 %v3626
        %v3634 = vmul.f32 %v3633, %v3631
        %v3635 = vxor.u32 %v3634, 2147483648
        %v3636 = vsel %vm3515, %v3635, %v3634
        %v3637 = vsub.s32 4, %v3613
        %v3638 = vsel %vm3515, %v3637, %v3613
        %v3639 = vsel %vm3514, %v3510, %v3636
        %v3640 = vsel %vm3514, 0, %v3638
        %v3641 = vmul.f32 %v3639, %v3639
        %v3642 = vmul.f32 %v3641, -0.001358992
        %v3643 = vadd.f32 %v3642, 0.041655596
        %v3644 = vmul.f32 %v3641, %v3643
        %v3645 = vadd.f32 %v3644, -0.4999988
        %v3646 = vmul.f32 %v3641, %v3645
        %v3647 = vadd.f32 1.0, %v3646
        %v3648 = vmul.f32 %v3639, %v3639
        %v3649 = vmul.f32 %v3648, -0.00019511016
        %v3650 = vadd.f32 %v3649, 0.008332121
        %v3651 = vmul.f32 %v3648, %v3650
        %v3652 = vadd.f32 %v3651, -0.16666654
        %v3653 = vmul.f32 %v3648, %v3652
        %v3654 = vadd.f32 %v3653, 1.0
        %v3655 = vmul.f32 %v3654, %v3639
        %vm3656 = vweird.f32 %v3510
        %v3657 = vadd.s32 %v3640, 3
        %v3658 = vand.u32 %v3657, 3
        %vm3659 = vcmp.lt.s32.totalorder %v3658, 2
        %vm3660 = vcmp.eq.s32.totalorder %v3658, 0
        %v3661 = vxor.u32 %v3655, 2147483648
        %v3662 = vsel %vm3660, %v3647, %v3661
        %vm3663 = vcmp.eq.s32.totalorder %v3658, 2
        %v3664 = vxor.u32 %v3647, 2147483648
        %v3665 = vsel %vm3663, %v3664, %v3655
        %v3666 = vsel %vm3659, %v3662, %v3665
        %v3667 = vsel %vm3656, nan, %v3666
        %v3668 = vperm.slane %v492, 4
        %v3669 = vmul.f32 %v3668, %v3667
        %v3670 = vadd.f32 %v3512, %v3669
        %v3671 = vand.u32 2147483647, %v3510
        %vm3672 = vcmp.le.f32.partialorder %v3671, 0.7853982
        %vm3673 = vcmp.lt.s32.totalorder %v3510, 0
        %v3674 = vand.u32 %v3510, 2139095040
        %v3675 = vshrl.u32 %v3674, 23
        %v3676 = vsub.s32 %v3675, 127
        %v3677 = vand.u32 2147483647, %v3510
        %v3678 = vand.u32 %v3677, 8388607
        %v3679 = vor.u32 %v3678, 8388608
        %v3680 = vsub.s32 0, %v3679
        %v3681 = vadd.s32 %v3676, 1
        %vm3682 = vcmp.gt.s32.totalorder %v3681, 0
        %v3683 = vsel %vm3682, %v3681, 0
        %v3684 = vshrl.u32 %v3683, 5
        %v3685 = vand.u32 %v3683, 31
        %v3686 = vsub.s32 32, %v3685
        %v3687 = vshrl.u32 683565275, %v3686
        %v3688 = vshll.u32 683565275, %v3685
        %v3689 = vshrl.u32 2475754826, %v3686
        %v3690 = vor.u32 %v3688, %v3689
        %v3691 = vshll.u32 2475754826, %v3685
        %v3692 = vshrl.u32 2131351028, %v3686
        %v3693 = vor.u32 %v3691, %v3692
        %v3694 = vshll.u32 2131351028, %v3685
        %v3695 = vshrl.u32 2102212464, %v3686
        %v3696 = vor.u32 %v3694, %v3695
        %v3697 = vshll.u32 2102212464, %v3685
        %v3698 = vshrl.u32 920167782, %v3686
        %v3699 = vor.u32 %v3697, %v3698
        %v3700 = vshll.u32 920167782, %v3685
        %v3701 = vshrl.u32 1326507024, %v3686
        %v3702 = vor.u32 %v3700, %v3701
        %vm3703 = vcmp.lt.s32.totalorder %v3684, 1
        %vm3704 = vcmp.lt.s32.totalorder %v3684, 2
        %vm3705 = vcmp.lt.s32.totalorder %v3684, 3
        %vm3706 = vcmp.lt.s32.totalorder %v3684, 4
        %v3707 = vsel %vm3703, %v3687, %v3690
        %v3708 = vsel %vm3706, %v3696, 2102212464
        %v3709 = vsel %vm3705, %v3693, %v3708
        %v3710 = vsel %vm3704, %v3707, %v3709
        %v3711 = vsel %vm3703, %v3690, %v3693
        %v3712 = vsel %vm3706, %v3699, 920167782
        %v3713 = vsel %vm3705, %v3696, %v3712
        %v3714 = vsel %vm3704, %v3711, %v3713
        %v3715 = vsel %vm3703, %v3693, %v3696
        %v3716 = vsel %vm3706, %v3702, 1326507024
        %v3717 = vsel %vm3705, %v3699, %v3716
        %v3718 = vsel %vm3704, %v3715, %v3717
        %v3719 = vshll.u32 %v3679, 8
        %v3720 = vand.u32 %v3719, 65535
        %v3721 = vshrl.u32 %v3719, 16
        %v3722 = vand.u32 %v3718, 65535
        %v3723 = vshrl.u32 %v3718, 16
        %v3724 = vmul.u32 %v3720, %v3722
        %v3725 = vmul.u32 %v3720, %v3723
        %v3726 = vmul.u32 %v3721, %v3722
        %v3727 = vmul.u32 %v3721, %v3723
        %v3728 = vshll.u32 %v3725, 16
        %v3729 = vshrl.u32 %v3725, 16
        %v3730 = vshll.u32 %v3726, 16
        %v3731 = vshrl.u32 %v3726, 16
        %vm3732 = vc.u32 %v3724, %v3728
        %v3733 = vsel %vm3732, 1, 0
        %v3734 = vadd.s32 %v3724, %v3728
        %v3735 = vadd.s32 %v3727, %v3733
        %vm3736 = vc.u32 %v3734, %v3730
        %v3737 = vsel %vm3736, 1, 0
        %v3738 = vadd.s32 %v3734, %v3730
        %v3739 = vadd.s32 %v3735, %v3737
        %v3740 = vadd.s32 %v3739, %v3729
        %v3741 = vadd.s32 %v3740, %v3731
        %v3742 = vand.u32 %v3719, 65535
        %v3743 = vshrl.u32 %v3719, 16
        %v3744 = vand.u32 %v3714, 65535
        %v3745 = vshrl.u32 %v3714, 16
        %v3746 = vmul.u32 %v3742, %v3744
        %v3747 = vmul.u32 %v3742, %v3745
        %v3748 = vmul.u32 %v3743, %v3744
        %v3749 = vmul.u32 %v3743, %v3745
        %v3750 = vshll.u32 %v3747, 16
        %v3751 = vshrl.u32 %v3747, 16
        %v3752 = vshll.u32 %v3748, 16
        %v3753 = vshrl.u32 %v3748, 16
        %vm3754 = vc.u32 %v3746, %v3750
        %v3755 = vsel %vm3754, 1, 0
        %v3756 = vadd.s32 %v3746, %v3750
        %v3757 = vadd.s32 %v3749, %v3755
        %vm3758 = vc.u32 %v3756, %v3752
        %v3759 = vsel %vm3758, 1, 0
        %v3760 = vadd.s32 %v3756, %v3752
        %v3761 = vadd.s32 %v3757, %v3759
        %v3762 = vadd.s32 %v3761, %v3751
        %v3763 = vadd.s32 %v3762, %v3753
        %v3764 = vmul.u32 %v3719, %v3710
        %v3765 = vadd.s32 %v3741, %v3760
        %vm3766 = vc.u32 %v3741, %v3760
        %v3767 = vadd.s32 %v3763, 1
        %v3768 = vsel %vm3766, %v3767, %v3763
        %v3769 = vadd.s32 %v3764, %v3768
        %v3770 = vadd.s32 %v3769, 536870912
        %v3771 = vshrl.u32 %v3770, 30
        %v3772 = vshll.u32 %v3771, 30
        %v3773 = vsub.s32 %v3769, %v3772
        %vm3774 = vcmp.lt.s32.totalorder %v3773, 0
        %v3775 = vsub.s32 0, %v3773
        %v3776 = vsel %vm3774, %v3775, %v3773
        %v3777 = vclz %v3776
        %v3778 = vsub.s32 %v3777, 2
        %vm3779 = vcmp.gt.s32.totalorder 0, %v3778
        %v3780 = vsel %vm3779, 0, %v3778
        %v3781 = vsub.s32 32, %v3780
        %v3782 = vshll.u32 %v3773, %v3780
        %v3783 = vshrl.u32 %v3765, %v3781
        %v3784 = vor.u32 %v3782, %v3783
        %v3785 = vsub.s32 4294967266, %v3780
        %v3786 = vadd.s32 %v3785, 127
        %v3787 = vshll.u32 %v3786, 23
        %v3788 = vor.u32 4788187, %v3787
        %v3789 = vand.u32 2147483647, %v3788
        %v3791 = vcvt.s32.f32 %v3784
        %v3792 = vmul.f32 %v3791, %v3789
        %v3793 = vxor.u32 %v3792, 2147483648
        %v3794 = vsel %vm3673, %v3793, %v3792
        %v3795 = vsub.s32 4, %v3771
        %v3796 = vsel %vm3673, %v3795, %v3771
        %v3797 = vsel %vm3672, %v3510, %v3794
        %v3798 = vsel %vm3672, 0, %v3796
        %v3799 = vmul.f32 %v3797, %v3797
        %v3800 = vmul.f32 %v3799, -0.001358992
        %v3801 = vadd.f32 %v3800, 0.041655596
        %v3802 = vmul.f32 %v3799, %v3801
        %v3803 = vadd.f32 %v3802, -0.4999988
        %v3804 = vmul.f32 %v3799, %v3803
        %v3805 = vadd.f32 1.0, %v3804
        %v3806 = vmul.f32 %v3797, %v3797
        %v3807 = vmul.f32 %v3806, -0.00019511016
        %v3808 = vadd.f32 %v3807, 0.008332121
        %v3809 = vmul.f32 %v3806, %v3808
        %v3810 = vadd.f32 %v3809, -0.16666654
        %v3811 = vmul.f32 %v3806, %v3810
        %v3812 = vadd.f32 %v3811, 1.0
        %v3813 = vmul.f32 %v3812, %v3797
        %vm3814 = vweird.f32 %v3510
        %v3815 = vand.u32 %v3798, 3
        %vm3816 = vcmp.lt.s32.totalorder %v3815, 2
        %vm3817 = vcmp.eq.s32.totalorder %v3815, 0
        %v3818 = vxor.u32 %v3813, 2147483648
        %v3819 = vsel %vm3817, %v3805, %v3818
        %vm3820 = vcmp.eq.s32.totalorder %v3815, 2
        %v3821 = vxor.u32 %v3805, 2147483648
        %v3822 = vsel %vm3820, %v3821, %v3813
        %v3823 = vsel %vm3816, %v3819, %v3822
        %v3824 = vsel %vm3814, nan, %v3823
        %v3825 = vperm.slane %v492, 5
        %v3826 = vmul.f32 %v3825, %v3824
        %v3827 = vadd.f32 %v3670, %v3826
        %v3828 = vpack.c.bf16 %v3827, %v3827
        %s3829 = scalar_lea.vmem %s389, 128 [#allocation4]
        %v3830 = vld [vmem:[%s3829] sm:$0xf]
        %v3831 = vld [vmem:[%s3829 + $0x4] sm:$0xf]
        %v3832 = vld [vmem:[%s3829 + $0x8] sm:$0xf]
        %v3833 = vld [vmem:[%s3829 + $0xc] sm:$0xf]
        %v3834 = vld [vmem:[%s3829 + $0x10] sm:$0xf]
        %v3835 = vld [vmem:[%s3829 + $0x14] sm:$0xf]
        %v3836 = vld [vmem:[%s3829 + $0x18] sm:$0xf]
        %v3837 = vld [vmem:[%s3829 + $0x1c] sm:$0xf]
        %v3838 = vld [vmem:[%s3829 + $0x20] sm:$0xf]
        %v3839 = vld [vmem:[%s3829 + $0x24] sm:$0xf]
        %v3840 = vld [vmem:[%s3829 + $0x28] sm:$0xf]
        %v3841 = vld [vmem:[%s3829 + $0x2c] sm:$0xf]
        %v3842 = vld [vmem:[%s3829 + $0x30] sm:$0xf]
        %v3843 = vld [vmem:[%s3829 + $0x34] sm:$0xf]
        %v3844 = vld [vmem:[%s3829 + $0x38] sm:$0xf]
        %v3845 = vld [vmem:[%s3829 + $0x3c] sm:$0xf]
        %v3862 = vunpack.c.l.b16 %v3830
        %v3863 = vunpack.c.l.b16 %v3831
        %v3864 = vunpack.c.l.b16 %v3832
        %v3865 = vunpack.c.l.b16 %v3833
        %v3866 = vunpack.c.l.b16 %v3834
        %v3867 = vunpack.c.l.b16 %v3835
        %v3868 = vunpack.c.l.b16 %v3836
        %v3869 = vunpack.c.l.b16 %v3837
        %v3870 = vunpack.c.l.b16 %v3838
        %v3871 = vunpack.c.l.b16 %v3839
        %v3872 = vunpack.c.l.b16 %v3840
        %v3873 = vunpack.c.l.b16 %v3841
        %v3874 = vunpack.c.l.b16 %v3842
        %v3875 = vunpack.c.l.b16 %v3843
        %v3876 = vunpack.c.l.b16 %v3844
        %v3877 = vunpack.c.l.b16 %v3845
        %v3878 = vpack.c.b16 %v3863, %v3862
        %v3879 = vpack.c.b16 %v3865, %v3864
        %v3880 = vpack.c.b16 %v3867, %v3866
        %v3881 = vpack.c.b16 %v3869, %v3868
        %v3882 = vpack.c.b16 %v3871, %v3870
        %v3883 = vpack.c.b16 %v3873, %v3872
        %v3884 = vpack.c.b16 %v3875, %v3874
        %v3885 = vpack.c.b16 %v3877, %v3876
        %3894 = vmatpush.bf16.msra.mxu0 %v3885
        %3895 = vmatpush.bf16.msra.mxu0 %v3884
        %3896 = vmatpush.bf16.msra.mxu0 %v3883
        %3897 = vmatpush.bf16.msra.mxu0 %v3882
        %3898 = vmatpush.bf16.msra.mxu0 %v3881
        %3899 = vmatpush.bf16.msra.mxu0 %v3880
        %3900 = vmatpush.bf16.msra.mxu0 %v3879
        %3901 = vmatpush.bf16.msra.mxu0 %v3878
        %3902 = vmatmul.bf16.gmra.mxu0 %v3828
        %v3903 = vpop.f32.mrf.mxu0
        %v3904 = vadd.f32 0.0, %v3903
        %v3905 = vpop.f32.mrf.mxu0
        %3906 = vdwg.mxu0
        %s3907 = scalar_lea.vmem %s389, 64 [#allocation4]
        %v3908 = vld [vmem:[%s3907] sm:$0xf]
        %v3909 = vld [vmem:[%s3907 + $0x4] sm:$0xf]
        %v3910 = vld [vmem:[%s3907 + $0x8] sm:$0xf]
        %v3911 = vld [vmem:[%s3907 + $0xc] sm:$0xf]
        %v3912 = vld [vmem:[%s3907 + $0x10] sm:$0xf]
        %v3913 = vld [vmem:[%s3907 + $0x14] sm:$0xf]
        %v3914 = vld [vmem:[%s3907 + $0x18] sm:$0xf]
        %v3915 = vld [vmem:[%s3907 + $0x1c] sm:$0xf]
        %v3916 = vld [vmem:[%s3907 + $0x20] sm:$0xf]
        %v3917 = vld [vmem:[%s3907 + $0x24] sm:$0xf]
        %v3918 = vld [vmem:[%s3907 + $0x28] sm:$0xf]
        %v3919 = vld [vmem:[%s3907 + $0x2c] sm:$0xf]
        %v3920 = vld [vmem:[%s3907 + $0x30] sm:$0xf]
        %v3921 = vld [vmem:[%s3907 + $0x34] sm:$0xf]
        %v3922 = vld [vmem:[%s3907 + $0x38] sm:$0xf]
        %v3923 = vld [vmem:[%s3907 + $0x3c] sm:$0xf]
        %v3924 = vperm.slane %v494, 1
        %v3941 = vunpack.c.l.b16 %v3908
        %v3942 = vunpack.c.l.b16 %v3909
        %v3943 = vunpack.c.l.b16 %v3910
        %v3944 = vunpack.c.l.b16 %v3911
        %v3945 = vunpack.c.l.b16 %v3912
        %v3946 = vunpack.c.l.b16 %v3913
        %v3947 = vunpack.c.l.b16 %v3914
        %v3948 = vunpack.c.l.b16 %v3915
        %v3949 = vunpack.c.l.b16 %v3916
        %v3950 = vunpack.c.l.b16 %v3917
        %v3951 = vunpack.c.l.b16 %v3918
        %v3952 = vunpack.c.l.b16 %v3919
        %v3953 = vunpack.c.l.b16 %v3920
        %v3954 = vunpack.c.l.b16 %v3921
        %v3955 = vunpack.c.l.b16 %v3922
        %v3956 = vunpack.c.l.b16 %v3923
        %v3957 = vpack.c.b16 %v3942, %v3941
        %v3958 = vpack.c.b16 %v3944, %v3943
        %v3959 = vpack.c.b16 %v3946, %v3945
        %v3960 = vpack.c.b16 %v3948, %v3947
        %v3961 = vpack.c.b16 %v3950, %v3949
        %v3962 = vpack.c.b16 %v3952, %v3951
        %v3963 = vpack.c.b16 %v3954, %v3953
        %v3964 = vpack.c.b16 %v3956, %v3955
        %3973 = vmatpush.bf16.msra.mxu0 %v3964
        %3974 = vmatpush.bf16.msra.mxu0 %v3963
        %3975 = vmatpush.bf16.msra.mxu0 %v3962
        %3976 = vmatpush.bf16.msra.mxu0 %v3961
        %3977 = vmatpush.bf16.msra.mxu0 %v3960
        %3978 = vmatpush.bf16.msra.mxu0 %v3959
        %3979 = vmatpush.bf16.msra.mxu0 %v3958
        %3980 = vmatpush.bf16.msra.mxu0 %v3957
        %3981 = vmatmul.bf16.gmra.mxu0 %v3476
        %v3982 = vpop.f32.mrf.mxu0
        %v3983 = vadd.f32 %v3924, %v3982
        %v3984 = vpop.f32.mrf.mxu0
        %v3985 = vadd.f32 %v3924, %v3984
        %3986 = vmatmul.bf16.gmra.mxu0 %v3477
        %v3987 = vpop.f32.mrf.mxu0
        %v3988 = vadd.f32 %v3924, %v3987
        %v3989 = vpop.f32.mrf.mxu0
        %v3990 = vadd.f32 %v3924, %v3989
        %3991 = vmatmul.bf16.gmra.mxu0 %v3478
        %v3992 = vpop.f32.mrf.mxu0
        %v3993 = vadd.f32 %v3924, %v3992
        %v3994 = vpop.f32.mrf.mxu0
        %v3995 = vadd.f32 %v3924, %v3994
        %3996 = vmatmul.bf16.gmra.mxu0 %v3479
        %v3997 = vpop.f32.mrf.mxu0
        %v3998 = vadd.f32 %v3924, %v3997
        %v3999 = vpop.f32.mrf.mxu0
        %v4000 = vadd.f32 %v3924, %v3999
        %4001 = vdwg.mxu0
        %v4003 = vrot.slane %v3904, 1
        %v4004 = vrot.slane %v3904, 2
        %v4005 = vrot.slane %v3904, 3
        %v4006 = vrot.slane %v3904, 4
        %v4007 = vrot.slane %v3904, 5
        %v4008 = vrot.slane %v3904, 6
        %v4009 = vrot.slane %v3904, 7
        %v4010 = vperm.slane %v3904, 0
        %v4011 = vperm.slane %v4003, 0
        %v4012 = vperm.slane %v4004, 0
        %v4013 = vperm.slane %v4005, 0
        %v4014 = vperm.slane %v4006, 0
        %v4015 = vperm.slane %v4007, 0
        %v4016 = vperm.slane %v4008, 0
        %v4017 = vperm.slane %v4009, 0
        %v4026 = vadd.f32 %v3983, %v4010
        %v4027 = vadd.f32 %v3985, %v4011
        %v4028 = vadd.f32 %v3988, %v4012
        %v4029 = vadd.f32 %v3990, %v4013
        %v4030 = vadd.f32 %v3993, %v4014
        %v4031 = vadd.f32 %v3995, %v4015
        %v4032 = vadd.f32 %v3998, %v4016
        %v4033 = vadd.f32 %v4000, %v4017
        %v4034 = vmax.f32 %v4026, 0.0
        %v4035 = vmax.f32 %v4027, 0.0
        %v4036 = vmax.f32 %v4028, 0.0
        %v4037 = vmax.f32 %v4029, 0.0
        %v4038 = vmax.f32 %v4030, 0.0
        %v4039 = vmax.f32 %v4031, 0.0
        %v4040 = vmax.f32 %v4032, 0.0
        %v4041 = vmax.f32 %v4033, 0.0
        %v4042 = vpack.c.bf16 %v4035, %v4034
        %v4043 = vpack.c.bf16 %v4037, %v4036
        %v4044 = vpack.c.bf16 %v4039, %v4038
        %v4045 = vpack.c.bf16 %v4041, %v4040
        %s4046 = scalar_lea.vmem %s389, 192 [#allocation4]
        %v4047 = vld [vmem:[%s4046] sm:$0xf]
        %v4048 = vld [vmem:[%s4046 + $0x4] sm:$0xf]
        %v4049 = vld [vmem:[%s4046 + $0x8] sm:$0xf]
        %v4050 = vld [vmem:[%s4046 + $0xc] sm:$0xf]
        %v4051 = vld [vmem:[%s4046 + $0x10] sm:$0xf]
        %v4052 = vld [vmem:[%s4046 + $0x14] sm:$0xf]
        %v4053 = vld [vmem:[%s4046 + $0x18] sm:$0xf]
        %v4054 = vld [vmem:[%s4046 + $0x1c] sm:$0xf]
        %v4055 = vld [vmem:[%s4046 + $0x20] sm:$0xf]
        %v4056 = vld [vmem:[%s4046 + $0x24] sm:$0xf]
        %v4057 = vld [vmem:[%s4046 + $0x28] sm:$0xf]
        %v4058 = vld [vmem:[%s4046 + $0x2c] sm:$0xf]
        %v4059 = vld [vmem:[%s4046 + $0x30] sm:$0xf]
        %v4060 = vld [vmem:[%s4046 + $0x34] sm:$0xf]
        %v4061 = vld [vmem:[%s4046 + $0x38] sm:$0xf]
        %v4062 = vld [vmem:[%s4046 + $0x3c] sm:$0xf]
        %v4079 = vunpack.c.l.b16 %v4047
        %v4080 = vunpack.c.l.b16 %v4048
        %v4081 = vunpack.c.l.b16 %v4049
        %v4082 = vunpack.c.l.b16 %v4050
        %v4083 = vunpack.c.l.b16 %v4051
        %v4084 = vunpack.c.l.b16 %v4052
        %v4085 = vunpack.c.l.b16 %v4053
        %v4086 = vunpack.c.l.b16 %v4054
        %v4087 = vunpack.c.l.b16 %v4055
        %v4088 = vunpack.c.l.b16 %v4056
        %v4089 = vunpack.c.l.b16 %v4057
        %v4090 = vunpack.c.l.b16 %v4058
        %v4091 = vunpack.c.l.b16 %v4059
        %v4092 = vunpack.c.l.b16 %v4060
        %v4093 = vunpack.c.l.b16 %v4061
        %v4094 = vunpack.c.l.b16 %v4062
        %v4095 = vpack.c.b16 %v4080, %v4079
        %v4096 = vpack.c.b16 %v4082, %v4081
        %v4097 = vpack.c.b16 %v4084, %v4083
        %v4098 = vpack.c.b16 %v4086, %v4085
        %v4099 = vpack.c.b16 %v4088, %v4087
        %v4100 = vpack.c.b16 %v4090, %v4089
        %v4101 = vpack.c.b16 %v4092, %v4091
        %v4102 = vpack.c.b16 %v4094, %v4093
        %4111 = vmatpush.bf16.msra.mxu0 %v4102
        %4112 = vmatpush.bf16.msra.mxu0 %v4101
        %4113 = vmatpush.bf16.msra.mxu0 %v4100
        %4114 = vmatpush.bf16.msra.mxu0 %v4099
        %4115 = vmatpush.bf16.msra.mxu0 %v4098
        %4116 = vmatpush.bf16.msra.mxu0 %v4097
        %4117 = vmatpush.bf16.msra.mxu0 %v4096
        %4118 = vmatpush.bf16.msra.mxu0 %v4095
        %4119 = vmatmul.bf16.gmra.mxu0 %v4042
        %v4120 = vpop.f32.mrf.mxu0
        %v4121 = vadd.f32 0.0, %v4120
        %v4122 = vpop.f32.mrf.mxu0
        %v4123 = vadd.f32 0.0, %v4122
        %4124 = vmatmul.bf16.gmra.mxu0 %v4043
        %v4125 = vpop.f32.mrf.mxu0
        %v4126 = vadd.f32 0.0, %v4125
        %v4127 = vpop.f32.mrf.mxu0
        %v4128 = vadd.f32 0.0, %v4127
        %4129 = vmatmul.bf16.gmra.mxu0 %v4044
        %v4130 = vpop.f32.mrf.mxu0
        %v4131 = vadd.f32 0.0, %v4130
        %v4132 = vpop.f32.mrf.mxu0
        %v4133 = vadd.f32 0.0, %v4132
        %4134 = vmatmul.bf16.gmra.mxu0 %v4045
        %v4135 = vpop.f32.mrf.mxu0
        %v4136 = vadd.f32 0.0, %v4135
        %v4137 = vpop.f32.mrf.mxu0
        %v4138 = vadd.f32 0.0, %v4137
        %4139 = vdwg.mxu0
        %v4140 = vperm.slane %v494, 2
        %v4141 = vadd.f32 %v4121, %v4140
        %v4142 = vadd.f32 %v4123, %v4140
        %v4143 = vadd.f32 %v4126, %v4140
        %v4144 = vadd.f32 %v4128, %v4140
        %v4145 = vadd.f32 %v4131, %v4140
        %v4146 = vadd.f32 %v4133, %v4140
        %v4147 = vadd.f32 %v4136, %v4140
        %v4148 = vadd.f32 %v4138, %v4140
        %v4149 = vadd.f32 %v4141, %v3481
        %v4150 = vadd.f32 %v4142, %v3482
        %v4151 = vadd.f32 %v4143, %v3483
        %v4152 = vadd.f32 %v4144, %v3484
        %v4153 = vadd.f32 %v4145, %v3485
        %v4154 = vadd.f32 %v4146, %v3486
        %v4155 = vadd.f32 %v4147, %v3487
        %v4156 = vadd.f32 %v4148, %v3488
        %vm4157 = vcmask 64512
        %4158 = vst.msk [vmem:[%s489] sm:$0xff] %vm4157, %v4149
        %4159 = vst.msk [vmem:[%s489 + $0x8] sm:$0xff] %vm4157, %v4150
        %4160 = vst.msk [vmem:[%s489 + $0x10] sm:$0xff] %vm4157, %v4151
        %4161 = vst.msk [vmem:[%s489 + $0x18] sm:$0xff] %vm4157, %v4152
        %4162 = vst.msk [vmem:[%s489 + $0x20] sm:$0xff] %vm4157, %v4153
        %4163 = vst.msk [vmem:[%s489 + $0x28] sm:$0xff] %vm4157, %v4154
        %4164 = vst.msk [vmem:[%s489 + $0x30] sm:$0xff] %vm4157, %v4155
        %4165 = vst.msk [vmem:[%s489 + $0x38] sm:$0xff] %vm4157, %v4156
        %s4166 = smul.u32 8, %s30
        %p4167 = scmp.lt.s32.totalorder %s29, 1
        %s4168 = scalar_select %p4167, %s29, 1
        %p4169 = scmp.lt.s32.totalorder %s4166, 7
        %s4170 = scalar_select %p4169, %s4166, 7
        %s4171 = smul.addr %s4168, 8
        %s4172 = sadd.s32 %s4170, %s4171
        %s4173 = smul.addr %s4172, 8
        %s4174 = scalar_lea.vmem %s8, %s4173
        // Predicated region
        $region61: #{_star_forward_chunk.3} parent=51 // pred_check
          %p4175 = pneg %p259
        $region62: #{_star_forward_chunk.3} parent=51 // pred_check_branch
          %4177 = sbr.rel (%p4175) target = $region64
        $region63: #{_star_forward_chunk.3} parent=51 // pred_region
          %s4178 = smul.u32 8, %s30
        $region64: #{_star_forward_chunk.3} parent=51 // pred_fallthru
          _
      $region52: #{_star_forward_chunk.3} parent=5 // pred_fallthru
        _
      %p4179 = scmp.le.s32.totalorder 2, %s20
      // Predicated region
      $region65: #{_star_forward_chunk.3} parent=5 // pred_check
        %p4180 = pneg %p4179
      $region66: #{_star_forward_chunk.3} parent=5 // pred_check_branch
        %4182 = sbr.rel (%p4180) target = $region68
      $region67: #{_star_forward_chunk.3} parent=5 // pred_region
        %s4183 = ssub.s32 %s20, 2
        // Predicated region
        $region69: #{_star_forward_chunk.3} parent=67 // pred_check
          %p4184 = pneg %p265
        $region70: #{_star_forward_chunk.3} parent=67 // pred_check_branch
          %4186 = sbr.rel (%p4184) target = $region72
        $region71: #{_star_forward_chunk.3} parent=67 // pred_region
          %s4187 = smul.u32 8, %s32
          %p4188 = scmp.lt.s32.totalorder %s31, 1
          %s4189 = scalar_select %p4188, %s31, 1
          %p4190 = scmp.lt.s32.totalorder %s4187, 7
          %s4191 = scalar_select %p4190, %s4187, 7
          %s4192 = smul.addr %s4189, 8
          %s4193 = sadd.s32 %s4191, %s4192
          %s4194 = smul.addr %s4193, 8
          %s4195 = scalar_lea.vmem %s8, %s4194
        $region72: #{_star_forward_chunk.3} parent=67 // pred_fallthru
          _
      $region68: #{_star_forward_chunk.3} parent=5 // pred_fallthru
        _
    $region6: #{_star_forward_chunk.3} parent=1 // loop_footer
      %s24 = sadd.s32 1, %s20
    $region7: #{_star_forward_chunk.3} parent=1 // loop_footer_branch
      %19 = sbr.rel target = $region3
    $region8: #{_star_forward_chunk.3} parent=1 // loop_exit
      _
    %4196 = vsyncpa [#allocation3], 1
    %s4197 = scalar_lea.sflag [#allocation3], 1
    %4198 = vsyncpa %s4197, 1
    %4199 = vsyncpa [#allocation5], 1
    %s4200 = scalar_lea.sflag [#allocation5], 1
    %4201 = vsyncpa %s4200, 1

</llo_original>
